<compile_context>
chip_gen: v7x
topology: tpu7x:2x2x1
jax: 0.10.0
libtpu: 0.0.40
codegen_flags: <defaults>
</compile_context>

<pallas_src>
import functools

import jax
import jax.numpy as jnp
from jax.experimental import pallas as pl
from jax.experimental.pallas import tpu as pltpu

MXU_DTYPE = jnp.bfloat16          # matmul-input dtype (f32 accumulation everywhere)
VMEM_LIMIT = 32 * 1024 * 1024     # safe on v5e/v6e/v7x; well above our largest tiles


def _pick_tile(total, candidates, name):
    """Largest candidate (all multiples of 128) that divides `total`; small totals fall
    back to a single full-extent block, large non-divisible totals are an error so we
    never silently materialize a huge block (v7x VMEM safety)."""
    for c in candidates:
        if total % c == 0:
            return c
    if total <= max(candidates):
        return total
    raise ValueError(
        f"{name}={total} is not divisible by any of {candidates}; "
        "pad the problem size or add a masked-tail path.")


# ---------------------------------------------------------------------------
# Kernel 1: fused PointNet encoder, channels-major (points on the lane axis).
#   conv1 (3->64, VPU broadcast-FMA) -> conv2 (64->128, MXU) -> conv3 (128->code, MXU)
#   -> running max over points accumulated in the resident (1, code, 1) output block.
# Grid: (batch, point-chunks); the points axis is the "arbitrary" reduction axis.
# ---------------------------------------------------------------------------
def _encoder_kernel(x_ref, w1_ref, b1_ref, w2_ref, b2_ref, w3_ref, b3_ref, g_ref):
    p = pl.program_id(1)

    @pl.when(p == 0)
    def _():
        g_ref[...] = jnp.full_like(g_ref, -jnp.inf)

    x = x_ref[0]                          # (3, tn) f32, points lane-dense

    # conv1 (3 -> 64): tiny K, done as broadcast FMAs on the VPU (keeps MXU free).
    cin = w1_ref.shape[1]                 # static (== 3)
    h = b1_ref[...]                       # (64, 1), broadcasts up to (64, tn)
    for k in range(cin):                  # unrolled static loop
        h = h + w1_ref[:, k:k + 1] * x[k:k + 1, :]
    h = jnp.maximum(h, 0.0)               # (64, tn) f32

    # conv2 (64 -> 128) and conv3 (128 -> code): bf16 MXU inputs, f32 accumulation.
    h = jnp.dot(w2_ref[...], h.astype(w2_ref.dtype),
                preferred_element_type=jnp.float32) + b2_ref[...]
    h = jnp.maximum(h, 0.0)               # (128, tn) f32
    h = jnp.dot(w3_ref[...], h.astype(w3_ref.dtype),
                preferred_element_type=jnp.float32) + b3_ref[...]   # (code, tn) f32

    # running global max over this point chunk (lane-axis reduce on the XLU)
    g_ref[0] = jnp.maximum(g_ref[0], jnp.max(h, axis=1, keepdims=True))


def encoder_forward(x, w1, b1, w2, b2, w3, b3, *, max_point_tile=4096):
    """x: (B, 3, N) f32 in native PyTorch NCW layout. Returns (B, code) f32."""
    B, cin, N = x.shape
    code = w3.shape[0]
    cands = tuple(t for t in (4096, 2048, 1024, 512, 256, 128) if t <= max_point_tile)
    tn = _pick_tile(N, cands, "num_points")
    grid = (B, N // tn)

    g = pl.pallas_call(
        _encoder_kernel,
        out_shape=jax.ShapeDtypeStruct((B, code, 1), jnp.float32),
        grid=grid,
        in_specs=[
            pl.BlockSpec((1, cin, tn), lambda b, p: (b, 0, p)),
            pl.BlockSpec(w1.shape, lambda b, p: (0, 0)),
            pl.BlockSpec(b1.shape, lambda b, p: (0, 0)),
            pl.BlockSpec(w2.shape, lambda b, p: (0, 0)),
            pl.BlockSpec(b2.shape, lambda b, p: (0, 0)),
            pl.BlockSpec(w3.shape, lambda b, p: (0, 0)),
            pl.BlockSpec(b3.shape, lambda b, p: (0, 0)),
        ],
        out_specs=pl.BlockSpec((1, code, 1), lambda b, p: (b, 0, 0)),
        compiler_params=pltpu.CompilerParams(
            dimension_semantics=("parallel", "arbitrary"),
            vmem_limit_bytes=VMEM_LIMIT),
    )(x, w1, b1, w2, b2, w3, b3)
    return g.reshape(B, code)


# ---------------------------------------------------------------------------
# Kernel 2: fused small-MLP head.
#   code = relu(g @ We + be)                         (encoder Linear + folded BN + ReLU)
#   h    = relu(relu(relu(code@W1+b1)@W2+b2)@W3+b3)  (decoder 256 -> 512 -> 1024)
# Tiny (B, C) activations stay on-chip; h is emitted directly in bf16 for dec4.
# ---------------------------------------------------------------------------
def _mlp_head_kernel(g_ref, we_ref, be_ref, w1_ref, b1_ref, w2_ref, b2_ref,
                     w3_ref, b3_ref, code_ref, h_ref):
    def layer(x, w_ref, b_ref):
        y = jnp.dot(x.astype(w_ref.dtype), w_ref[...],
                    preferred_element_type=jnp.float32) + b_ref[...]
        return jnp.maximum(y, 0.0)

    code = layer(g_ref[...], we_ref, be_ref)
    code_ref[...] = code
    h = layer(code, w1_ref, b1_ref)
    h = layer(h, w2_ref, b2_ref)
    h = layer(h, w3_ref, b3_ref)
    h_ref[...] = h.astype(h_ref.dtype)          # bf16 output -> no recast in dec4


def mlp_head_forward(g, we, be, w1, b1, w2, b2, w3, b3):
    B, code = g.shape
    h_dim = w3.shape[1]
    full = lambda a: pl.BlockSpec(a.shape, lambda i: (0, 0))
    return pl.pallas_call(
        _mlp_head_kernel,
        out_shape=(jax.ShapeDtypeStruct((B, code), jnp.float32),
                   jax.ShapeDtypeStruct((B, h_dim), MXU_DTYPE)),
        grid=(1,),
        in_specs=[full(g), full(we), full(be), full(w1), full(b1),
                  full(w2), full(b2), full(w3), full(b3)],
        out_specs=(pl.BlockSpec((B, code), lambda i: (0, 0)),
                   pl.BlockSpec((B, h_dim), lambda i: (0, 0))),
        compiler_params=pltpu.CompilerParams(dimension_semantics=("arbitrary",)),
    )(g, we, be, w1, b1, w2, b2, w3, b3)


# ---------------------------------------------------------------------------
# Kernel 3: dec4  y = tanh(h @ W + b), tiled over output columns so the (1024, C*N)
# bf16 weight streams through VMEM with pipelined DMA (weight-bandwidth bound).
# ---------------------------------------------------------------------------
def _dec4_kernel(h_ref, w_ref, b_ref, o_ref):
    y = jnp.dot(h_ref[...], w_ref[...],
                preferred_element_type=jnp.float32) + b_ref[...]
    o_ref[...] = jnp.tanh(y)


def dec4_forward(h, w, b, *, max_col_tile=2048):
    B, K = h.shape
    n_out = w.shape[1]
    cands = tuple(t for t in (2048, 1536, 1280, 1024, 768, 640, 512, 384, 256, 128)
                  if t <= max_col_tile)
    tn = _pick_tile(n_out, cands, "output_channels*num_points")
    grid = (n_out // tn,)
    bytes_accessed = (int(w.size) * w.dtype.itemsize
                      + int(h.size) * h.dtype.itemsize
                      + B * n_out * 4)
    return pl.pallas_call(
        _dec4_kernel,
        out_shape=jax.ShapeDtypeStruct((B, n_out), jnp.float32),
        grid=grid,
        in_specs=[
            pl.BlockSpec((B, K), lambda j: (0, 0)),
            pl.BlockSpec((K, tn), lambda j: (0, j)),
            pl.BlockSpec((1, tn), lambda j: (0, j)),
        ],
        out_specs=pl.BlockSpec((B, tn), lambda j: (0, j)),
        compiler_params=pltpu.CompilerParams(
            dimension_semantics=("parallel",),
            vmem_limit_bytes=VMEM_LIMIT),
        cost_estimate=pl.CostEstimate(flops=2 * B * K * n_out,
                                      transcendentals=B * n_out,
                                      bytes_accessed=bytes_accessed),
    )(h, w, b)


# ---------------------------------------------------------------------------
# Deterministic parameter construction (BN folded at build time).
# ---------------------------------------------------------------------------
def linear_params(key, cin, cout):
    k1, k2 = jax.random.split(key)
    bound = 1.0 / float(cin) ** 0.5
    w = jax.random.uniform(k1, (cin, cout), jnp.float32, -bound, bound)
    b = jax.random.uniform(k2, (cout,), jnp.float32, -bound, bound)
    return w, b


def bn_affine(key, c, eps=1e-5):
    """Eval-mode BatchNorm1d(c) as per-channel (scale, shift)."""
    k1, k2, k3, k4 = jax.random.split(key, 4)
    gamma = 1.0 + 0.1 * jax.random.normal(k1, (c,), jnp.float32)
    beta = 0.1 * jax.random.normal(k2, (c,), jnp.float32)
    mean = 0.1 * jax.random.normal(k3, (c,), jnp.float32)
    var = jnp.abs(1.0 + 0.1 * jax.random.normal(k4, (c,), jnp.float32))
    scale = gamma / jnp.sqrt(var + eps)
    shift = beta - mean * scale
    return scale, shift


def fold_bn(w, b, scale, shift):
    """(x@w + b)*scale + shift  ==  x@(w*scale) + (b*scale + shift)  (w in (cin, cout))."""
    return w * scale[None, :], b * scale + shift


def build_params(code_nfts, num_points, output_channels, seed=0):
    key = jax.random.PRNGKey(seed)
    ks = jax.random.split(key, 16)
    p = {}

    # --- encoder 1x1 convs (BN folded), stored channels-major (cout, cin).
    #     conv1 stays f32 (VPU layer); conv2/conv3 are bf16 MXU weights. ---
    w, b = linear_params(ks[0], 3, 64)
    s, t = bn_affine(ks[1], 64)
    w, b = fold_bn(w, b, s, t)
    p["c1_w"], p["c1_b"] = w.T, b.reshape(-1, 1)                    # (64,3) f32

    w, b = linear_params(ks[2], 64, 128)
    s, t = bn_affine(ks[3], 128)
    w, b = fold_bn(w, b, s, t)
    p["c2_w"], p["c2_b"] = w.T.astype(MXU_DTYPE), b.reshape(-1, 1)  # (128,64) bf16

    w, b = linear_params(ks[4], 128, code_nfts)
    s, t = bn_affine(ks[5], code_nfts)
    w, b = fold_bn(w, b, s, t)
    p["c3_w"], p["c3_b"] = w.T.astype(MXU_DTYPE), b.reshape(-1, 1)  # (code,128) bf16

    # --- encoder head Linear(code, code) + BN (folded) ---
    w, b = linear_params(ks[6], code_nfts, code_nfts)
    s, t = bn_affine(ks[7], code_nfts)
    w, b = fold_bn(w, b, s, t)
    p["enc_w"], p["enc_b"] = w.astype(MXU_DTYPE), b.reshape(1, -1)

    # --- decoder MLP dec1..dec3 (BN folded), bf16 weights ---
    dims = [(code_nfts, 256), (256, 512), (512, 1024)]
    for i, (cin, cout) in enumerate(dims, start=1):
        w, b = linear_params(ks[8 + 2 * (i - 1)], cin, cout)
        s, t = bn_affine(ks[9 + 2 * (i - 1)], cout)
        w, b = fold_bn(w, b, s, t)
        p[f"d{i}_w"], p[f"d{i}_b"] = w.astype(MXU_DTYPE), b.reshape(1, -1)

    # --- dec4: Linear(1024, C*N) + Tanh. Columns pre-permuted (C, N) -> (N, C) so the
    #     kernel output reshapes directly to (B, N, C) with no XLA transpose pass. ---
    w, b = linear_params(ks[14], 1024, output_channels * num_points)
    w = (w.reshape(1024, output_channels, num_points)
          .transpose(0, 2, 1)
          .reshape(1024, num_points * output_channels))
    b = b.reshape(output_channels, num_points).T.reshape(-1)
    p["d4_w"], p["d4_b"] = w.astype(MXU_DTYPE), b.reshape(1, -1)
    return p


# ---------------------------------------------------------------------------
# Forward pass
# ---------------------------------------------------------------------------
def pointnet_fcae_forward(x, params, num_points, output_channels):
    """x: (B, 3, num_points) float32 (PyTorch NCW). Returns (recon (B,N,C), code (B,code))."""
    B, cin, N = x.shape
    assert cin == 3 and N == num_points

    # Encoder consumes the native (B, 3, N) layout directly (no transpose/pad pass).
    g = encoder_forward(x,
                        params["c1_w"], params["c1_b"],
                        params["c2_w"], params["c2_b"],
                        params["c3_w"], params["c3_b"])

    code, h = mlp_head_forward(g,
                               params["enc_w"], params["enc_b"],
                               params["d1_w"], params["d1_b"],
                               params["d2_w"], params["d2_b"],
                               params["d3_w"], params["d3_b"])

    d = dec4_forward(h, params["d4_w"], params["d4_b"])
    # dec4 columns were pre-permuted to (N, C) order -> free reshape; matches
    # x.view(-1, C, N).transpose(2, 1) of the PyTorch module.
    recon = d.reshape(B, num_points, output_channels)
    return recon, code


# ---------------------------------------------------------------------------
# Pure-JAX reference (same folded/bf16-stored params) for a sanity check.
# ---------------------------------------------------------------------------
def reference_forward(x, params, num_points, output_channels):
    B = x.shape[0]
    f32 = lambda a: a.astype(jnp.float32)
    h = jnp.maximum(jnp.einsum("oc,bcn->bon", f32(params["c1_w"]), x)
                    + params["c1_b"][None], 0.0)
    h = jnp.maximum(jnp.einsum("oc,bcn->bon", f32(params["c2_w"]), h)
                    + params["c2_b"][None], 0.0)
    h = jnp.einsum("oc,bcn->bon", f32(params["c3_w"]), h) + params["c3_b"][None]
    g = jnp.max(h, axis=2)
    code = jnp.maximum(g @ f32(params["enc_w"]) + params["enc_b"], 0.0)
    h = jnp.maximum(code @ f32(params["d1_w"]) + params["d1_b"], 0.0)
    h = jnp.maximum(h @ f32(params["d2_w"]) + params["d2_b"], 0.0)
    h = jnp.maximum(h @ f32(params["d3_w"]) + params["d3_b"], 0.0)
    d = jnp.tanh(h @ f32(params["d4_w"]) + params["d4_b"])
    return d.reshape(B, num_points, output_channels), code


# ---------------------------------------------------------------------------
if __name__ == "__main__":
    B = 2
    NUM_POINTS = 512         # small but tile-friendly (module default is 2048)
    OUTPUT_CHANNELS = 3
    CODE_NFTS = 128          # args.code_nfts

    params = build_params(CODE_NFTS, NUM_POINTS, OUTPUT_CHANNELS, seed=0)

    key = jax.random.PRNGKey(0)
    x = jax.random.normal(key, (B, 3, NUM_POINTS), jnp.float32)  # PyTorch NCW input

    fwd = jax.jit(functools.partial(pointnet_fcae_forward,
                                    num_points=NUM_POINTS,
                                    output_channels=OUTPUT_CHANNELS))
    recon, code = fwd(x, params)
    jax.block_until_ready((recon, code))

    assert recon.shape == (B, NUM_POINTS, OUTPUT_CHANNELS), recon.shape
    assert code.shape == (B, CODE_NFTS), code.shape
    assert recon.dtype == jnp.float32 and code.dtype == jnp.float32
    assert bool(jnp.all(jnp.isfinite(recon))) and bool(jnp.all(jnp.isfinite(code)))

    # Loose-tolerance check vs. pure-JAX reference (bf16 activation casts in the kernels).
    ref_recon, ref_code = reference_forward(x, params, NUM_POINTS, OUTPUT_CHANNELS)
    assert bool(jnp.allclose(recon, ref_recon, atol=0.15, rtol=0.15)), \
        float(jnp.max(jnp.abs(recon - ref_recon)))
    assert bool(jnp.allclose(code, ref_code, atol=0.15, rtol=0.15)), \
        float(jnp.max(jnp.abs(code - ref_code)))

    print("KERNEL_OK")
</pallas_src>

<mosaic_0001>
module attributes {stable_mosaic.version = 11 : i64} {
  func.func @_encoder_kernel(%arg0: i32, %arg1: i32, %arg2: memref<1x3x512xf32, #tpu.memory_space<vmem>>, %arg3: memref<64x3xf32, #tpu.memory_space<vmem>>, %arg4: memref<64x1xf32, #tpu.memory_space<vmem>>, %arg5: memref<128x64xbf16, #tpu.memory_space<vmem>>, %arg6: memref<128x1xf32, #tpu.memory_space<vmem>>, %arg7: memref<128x128xbf16, #tpu.memory_space<vmem>>, %arg8: memref<128x1xf32, #tpu.memory_space<vmem>>, %arg9: memref<1x128x1xf32, #tpu.memory_space<vmem>>) attributes {dimension_semantics = [#tpu.dimension_semantics<parallel>, #tpu.dimension_semantics<arbitrary>], iteration_bounds = array<i64: 2, 1>, scalar_prefetch = 0 : i64, scratch_operands = 0 : i64, tpu.core_type = #tpu.core_type<tc>, window_params = [{transform_indices = @transform_0, window_bounds = array<i64: 1, 3, 512>}, {pipeline_mode = #tpu.pipeline_mode<synchronous>, transform_indices = @transform_1, window_bounds = array<i64: 64, 3>}, {pipeline_mode = #tpu.pipeline_mode<synchronous>, transform_indices = @transform_2, window_bounds = array<i64: 64, 1>}, {pipeline_mode = #tpu.pipeline_mode<synchronous>, transform_indices = @transform_3, window_bounds = array<i64: 128, 64>}, {pipeline_mode = #tpu.pipeline_mode<synchronous>, transform_indices = @transform_4, window_bounds = array<i64: 128, 1>}, {pipeline_mode = #tpu.pipeline_mode<synchronous>, transform_indices = @transform_5, window_bounds = array<i64: 128, 128>}, {pipeline_mode = #tpu.pipeline_mode<synchronous>, transform_indices = @transform_6, window_bounds = array<i64: 128, 1>}, {transform_indices = @transform_7, window_bounds = array<i64: 1, 128, 1>}]} {
    %c0_i32 = arith.constant 0 : i32
    %0 = arith.cmpi eq, %arg1, %c0_i32 : i32
    %1 = arith.extui %0 : i1 to i32
    %c0_i32_0 = arith.constant 0 : i32
    %2 = arith.cmpi ne, %1, %c0_i32_0 : i32
    scf.if %2 {
      %cst_27 = arith.constant 0xFF800000 : f32
      %49 = vector.broadcast %cst_27 : f32 to vector<1x128x1xf32>
      %c0_28 = arith.constant 0 : index
      %c0_29 = arith.constant 0 : index
      %c0_30 = arith.constant 0 : index
      %50 = vector.load %arg9[%c0_28, %c0_29, %c0_30] : memref<1x128x1xf32, #tpu.memory_space<vmem>>, vector<1x128x1xf32>
      tpu.vector_store %arg9[%c0_28, %c0_29, %c0_30], %49 {strides = array<i32>} : memref<1x128x1xf32, #tpu.memory_space<vmem>>, vector<1x128x1xf32>,
    } else {
    }
    %c0 = arith.constant 0 : index
    %c0_1 = arith.constant 0 : index
    %c0_2 = arith.constant 0 : index
    %3 = vector.load %arg2[%c0, %c0_1, %c0_2] : memref<1x3x512xf32, #tpu.memory_space<vmem>>, vector<1x3x512xf32>
    %4 = vector.shape_cast %3 : vector<1x3x512xf32> to vector<3x512xf32>
    %c0_3 = arith.constant 0 : index
    %c0_4 = arith.constant 0 : index
    %5 = vector.load %arg4[%c0_3, %c0_4] : memref<64x1xf32, #tpu.memory_space<vmem>>, vector<64x1xf32>
    %c0_5 = arith.constant 0 : index
    %c0_6 = arith.constant 0 : index
    %6 = vector.load %arg3[%c0_5, %c0_6] : memref<64x3xf32, #tpu.memory_space<vmem>>, vector<64x1xf32>
    %7 = vector.extract_strided_slice %4 {offsets = [0, 0], sizes = [1, 512], strides = [1, 1]} : vector<3x512xf32> to vector<1x512xf32>
    %8 = vector.broadcast %6 : vector<64x1xf32> to vector<64x512xf32>
    %9 = vector.broadcast %7 : vector<1x512xf32> to vector<64x512xf32>
    %10 = arith.mulf %8, %9 : vector<64x512xf32>
    %11 = vector.broadcast %5 : vector<64x1xf32> to vector<64x512xf32>
    %12 = arith.addf %11, %10 : vector<64x512xf32>
    %c0_7 = arith.constant 0 : index
    %c1 = arith.constant 1 : index
    %13 = vector.load %arg3[%c0_7, %c1] : memref<64x3xf32, #tpu.memory_space<vmem>>, vector<64x1xf32>
    %14 = vector.extract_strided_slice %4 {offsets = [1, 0], sizes = [1, 512], strides = [1, 1]} : vector<3x512xf32> to vector<1x512xf32>
    %15 = vector.broadcast %13 : vector<64x1xf32> to vector<64x512xf32>
    %16 = vector.broadcast %14 : vector<1x512xf32> to vector<64x512xf32>
    %17 = arith.mulf %15, %16 : vector<64x512xf32>
    %18 = arith.addf %12, %17 : vector<64x512xf32>
    %c0_8 = arith.constant 0 : index
    %c2 = arith.constant 2 : index
    %19 = vector.load %arg3[%c0_8, %c2] : memref<64x3xf32, #tpu.memory_space<vmem>>, vector<64x1xf32>
    %20 = vector.extract_strided_slice %4 {offsets = [2, 0], sizes = [1, 512], strides = [1, 1]} : vector<3x512xf32> to vector<1x512xf32>
    %21 = vector.broadcast %19 : vector<64x1xf32> to vector<64x512xf32>
    %22 = vector.broadcast %20 : vector<1x512xf32> to vector<64x512xf32>
    %23 = arith.mulf %21, %22 : vector<64x512xf32>
    %24 = arith.addf %18, %23 : vector<64x512xf32>
    %cst = arith.constant 0.000000e+00 : f32
    %25 = vector.broadcast %cst : f32 to vector<64x512xf32>
    %26 = arith.maximumf %24, %25 : vector<64x512xf32>
    %c0_9 = arith.constant 0 : index
    %c0_10 = arith.constant 0 : index
    %27 = vector.load %arg5[%c0_9, %c0_10] : memref<128x64xbf16, #tpu.memory_space<vmem>>, vector<128x64xbf16>
    %28 = arith.truncf %26 : vector<64x512xf32> to vector<64x512xbf16>
    %cst_11 = arith.constant dense<0.000000e+00> : vector<128x512xf32>
    %29 = tpu.matmul %27, %28, %cst_11 {dimension_numbers = #tpu.dot_dimension_numbers<[1], [0], [0], [1], [0, 0, 1, 1], [], []>} : vector<128x64xbf16>, vector<64x512xbf16>, vector<128x512xf32> -> vector<128x512xf32>
    %c0_12 = arith.constant 0 : index
    %c0_13 = arith.constant 0 : index
    %30 = vector.load %arg6[%c0_12, %c0_13] : memref<128x1xf32, #tpu.memory_space<vmem>>, vector<128x1xf32>
    %31 = vector.broadcast %30 : vector<128x1xf32> to vector<128x512xf32>
    %32 = arith.addf %29, %31 : vector<128x512xf32>
    %cst_14 = arith.constant 0.000000e+00 : f32
    %33 = vector.broadcast %cst_14 : f32 to vector<128x512xf32>
    %34 = arith.maximumf %32, %33 : vector<128x512xf32>
    %c0_15 = arith.constant 0 : index
    %c0_16 = arith.constant 0 : index
    %35 = vector.load %arg7[%c0_15, %c0_16] : memref<128x128xbf16, #tpu.memory_space<vmem>>, vector<128x128xbf16>
    %36 = arith.truncf %34 : vector<128x512xf32> to vector<128x512xbf16>
    %cst_17 = arith.constant dense<0.000000e+00> : vector<128x512xf32>
    %37 = tpu.matmul %35, %36, %cst_17 {dimension_numbers = #tpu.dot_dimension_numbers<[1], [0], [0], [1], [0, 0, 1, 1], [], []>} : vector<128x128xbf16>, vector<128x512xbf16>, vector<128x512xf32> -> vector<128x512xf32>
    %c0_18 = arith.constant 0 : index
    %c0_19 = arith.constant 0 : index
    %38 = vector.load %arg8[%c0_18, %c0_19] : memref<128x1xf32, #tpu.memory_space<vmem>>, vector<128x1xf32>
    %39 = vector.broadcast %38 : vector<128x1xf32> to vector<128x512xf32>
    %40 = arith.addf %37, %39 : vector<128x512xf32>
    %c0_20 = arith.constant 0 : index
    %c0_21 = arith.constant 0 : index
    %c0_22 = arith.constant 0 : index
    %41 = vector.load %arg9[%c0_20, %c0_21, %c0_22] : memref<1x128x1xf32, #tpu.memory_space<vmem>>, vector<1x128x1xf32>
    %42 = vector.shape_cast %41 : vector<1x128x1xf32> to vector<128x1xf32>
    %cst_23 = arith.constant dense<0xFF800000> : vector<128xf32>
    %43 = vector.multi_reduction <maximumf>, %40, %cst_23 [1] : vector<128x512xf32> to vector<128xf32>
    %44 = vector.shape_cast %43 : vector<128xf32> to vector<128x1xf32>
    %45 = arith.maximumf %42, %44 : vector<128x1xf32>
    %c0_24 = arith.constant 0 : index
    %c0_25 = arith.constant 0 : index
    %c0_26 = arith.constant 0 : index
    %46 = vector.load %arg9[%c0_24, %c0_25, %c0_26] : memref<1x128x1xf32, #tpu.memory_space<vmem>>, vector<1x128x1xf32>
    %47 = vector.shape_cast %46 : vector<1x128x1xf32> to vector<128x1xf32>
    %48 = vector.shape_cast %45 : vector<128x1xf32> to vector<1x128x1xf32>
    tpu.vector_store %arg9[%c0_24, %c0_25, %c0_26], %48 {strides = array<i32>} : memref<1x128x1xf32, #tpu.memory_space<vmem>>, vector<1x128x1xf32>,
    return
  }
  func.func @transform_0(%arg0: i32, %arg1: i32) -> (i32, i32, i32) {
    %c0_i32 = arith.constant 0 : i32
    %c0_i32_0 = arith.constant 0 : i32
    return %arg0, %c0_i32, %arg1 : i32, i32, i32
  }
  func.func @transform_1(%arg0: i32, %arg1: i32) -> (i32, i32) {
    %c0_i32 = arith.constant 0 : i32
    %c0_i32_0 = arith.constant 0 : i32
    %c0_i32_1 = arith.constant 0 : i32
    return %c0_i32, %c0_i32_0 : i32, i32
  }
  func.func @transform_2(%arg0: i32, %arg1: i32) -> (i32, i32) {
    %c0_i32 = arith.constant 0 : i32
    %c0_i32_0 = arith.constant 0 : i32
    %c0_i32_1 = arith.constant 0 : i32
    return %c0_i32, %c0_i32_0 : i32, i32
  }
  func.func @transform_3(%arg0: i32, %arg1: i32) -> (i32, i32) {
    %c0_i32 = arith.constant 0 : i32
    %c0_i32_0 = arith.constant 0 : i32
    %c0_i32_1 = arith.constant 0 : i32
    return %c0_i32, %c0_i32_0 : i32, i32
  }
  func.func @transform_4(%arg0: i32, %arg1: i32) -> (i32, i32) {
    %c0_i32 = arith.constant 0 : i32
    %c0_i32_0 = arith.constant 0 : i32
    %c0_i32_1 = arith.constant 0 : i32
    return %c0_i32, %c0_i32_0 : i32, i32
  }
  func.func @transform_5(%arg0: i32, %arg1: i32) -> (i32, i32) {
    %c0_i32 = arith.constant 0 : i32
    %c0_i32_0 = arith.constant 0 : i32
    %c0_i32_1 = arith.constant 0 : i32
    return %c0_i32, %c0_i32_0 : i32, i32
  }
  func.func @transform_6(%arg0: i32, %arg1: i32) -> (i32, i32) {
    %c0_i32 = arith.constant 0 : i32
    %c0_i32_0 = arith.constant 0 : i32
    %c0_i32_1 = arith.constant 0 : i32
    return %c0_i32, %c0_i32_0 : i32, i32
  }
  func.func @transform_7(%arg0: i32, %arg1: i32) -> (i32, i32, i32) {
    %c0_i32 = arith.constant 0 : i32
    %c0_i32_0 = arith.constant 0 : i32
    %c0_i32_1 = arith.constant 0 : i32
    return %arg0, %c0_i32, %c0_i32_0 : i32, i32, i32
  }
}

module attributes {stable_mosaic.version = 11 : i64} {
  func.func @_dec4_kernel(%arg0: i32, %arg1: memref<2x1024xbf16, #tpu.memory_space<vmem>>, %arg2: memref<1024x1536xbf16, #tpu.memory_space<vmem>>, %arg3: memref<1x1536xf32, #tpu.memory_space<vmem>>, %arg4: memref<2x1536xf32, #tpu.memory_space<vmem>>) attributes {dimension_semantics = [#tpu.dimension_semantics<parallel>], iteration_bounds = array<i64: 1>, scalar_prefetch = 0 : i64, scratch_operands = 0 : i64, tpu.core_type = #tpu.core_type<tc>, window_params = [{pipeline_mode = #tpu.pipeline_mode<synchronous>, transform_indices = @transform_0, window_bounds = array<i64: 2, 1024>}, {transform_indices = @transform_1, window_bounds = array<i64: 1024, 1536>}, {transform_indices = @transform_2, window_bounds = array<i64: 1, 1536>}, {transform_indices = @transform_3, window_bounds = array<i64: 2, 1536>}]} {
    %c0 = arith.constant 0 : index
    %c0_0 = arith.constant 0 : index
    %0 = vector.load %arg1[%c0, %c0_0] : memref<2x1024xbf16, #tpu.memory_space<vmem>>, vector<2x1024xbf16>
    %c0_1 = arith.constant 0 : index
    %c0_2 = arith.constant 0 : index
    %1 = vector.load %arg2[%c0_1, %c0_2] : memref<1024x1536xbf16, #tpu.memory_space<vmem>>, vector<1024x1536xbf16>
    %cst = arith.constant dense<0.000000e+00> : vector<2x1536xf32>
    %2 = tpu.matmul %0, %1, %cst {dimension_numbers = #tpu.dot_dimension_numbers<[1], [0], [0], [1], [0, 0, 1, 1], [], []>} : vector<2x1024xbf16>, vector<1024x1536xbf16>, vector<2x1536xf32> -> vector<2x1536xf32>
    %c0_3 = arith.constant 0 : index
    %c0_4 = arith.constant 0 : index
    %3 = vector.load %arg3[%c0_3, %c0_4] : memref<1x1536xf32, #tpu.memory_space<vmem>>, vector<1x1536xf32>
    %4 = vector.broadcast %3 : vector<1x1536xf32> to vector<2x1536xf32>
    %5 = arith.addf %2, %4 : vector<2x1536xf32>
    %6 = math.tanh %5 : vector<2x1536xf32>
    %c0_5 = arith.constant 0 : index
    %c0_6 = arith.constant 0 : index
    %7 = vector.load %arg4[%c0_5, %c0_6] : memref<2x1536xf32, #tpu.memory_space<vmem>>, vector<2x1536xf32>
    tpu.vector_store %arg4[%c0_5, %c0_6], %6 {strides = array<i32>} : memref<2x1536xf32, #tpu.memory_space<vmem>>, vector<2x1536xf32>,
    return
  }
  func.func @transform_0(%arg0: i32) -> (i32, i32) {
    %c0_i32 = arith.constant 0 : i32
    %c0_i32_0 = arith.constant 0 : i32
    %c0_i32_1 = arith.constant 0 : i32
    return %c0_i32, %c0_i32_0 : i32, i32
  }
  func.func @transform_1(%arg0: i32) -> (i32, i32) {
    %c0_i32 = arith.constant 0 : i32
    %c0_i32_0 = arith.constant 0 : i32
    return %c0_i32, %arg0 : i32, i32
  }
  func.func @transform_2(%arg0: i32) -> (i32, i32) {
    %c0_i32 = arith.constant 0 : i32
    %c0_i32_0 = arith.constant 0 : i32
    return %c0_i32, %arg0 : i32, i32
  }
  func.func @transform_3(%arg0: i32) -> (i32, i32) {
    %c0_i32 = arith.constant 0 : i32
    %c0_i32_0 = arith.constant 0 : i32
    return %c0_i32, %arg0 : i32, i32
  }
}

module attributes {stable_mosaic.version = 11 : i64} {
  func.func @_mlp_head_kernel(%arg0: i32, %arg1: memref<2x128xf32, #tpu.memory_space<vmem>>, %arg2: memref<128x128xbf16, #tpu.memory_space<vmem>>, %arg3: memref<1x128xf32, #tpu.memory_space<vmem>>, %arg4: memref<128x256xbf16, #tpu.memory_space<vmem>>, %arg5: memref<1x256xf32, #tpu.memory_space<vmem>>, %arg6: memref<256x512xbf16, #tpu.memory_space<vmem>>, %arg7: memref<1x512xf32, #tpu.memory_space<vmem>>, %arg8: memref<512x1024xbf16, #tpu.memory_space<vmem>>, %arg9: memref<1x1024xf32, #tpu.memory_space<vmem>>, %arg10: memref<2x128xf32, #tpu.memory_space<vmem>>, %arg11: memref<2x1024xbf16, #tpu.memory_space<vmem>>) attributes {dimension_semantics = [#tpu.dimension_semantics<arbitrary>], iteration_bounds = array<i64: 1>, scalar_prefetch = 0 : i64, scratch_operands = 0 : i64, tpu.core_type = #tpu.core_type<tc>, window_params = [{pipeline_mode = #tpu.pipeline_mode<synchronous>, transform_indices = @transform_0, window_bounds = array<i64: 2, 128>}, {pipeline_mode = #tpu.pipeline_mode<synchronous>, transform_indices = @transform_1, window_bounds = array<i64: 128, 128>}, {pipeline_mode = #tpu.pipeline_mode<synchronous>, transform_indices = @transform_2, window_bounds = array<i64: 1, 128>}, {pipeline_mode = #tpu.pipeline_mode<synchronous>, transform_indices = @transform_3, window_bounds = array<i64: 128, 256>}, {pipeline_mode = #tpu.pipeline_mode<synchronous>, transform_indices = @transform_4, window_bounds = array<i64: 1, 256>}, {pipeline_mode = #tpu.pipeline_mode<synchronous>, transform_indices = @transform_5, window_bounds = array<i64: 256, 512>}, {pipeline_mode = #tpu.pipeline_mode<synchronous>, transform_indices = @transform_6, window_bounds = array<i64: 1, 512>}, {pipeline_mode = #tpu.pipeline_mode<synchronous>, transform_indices = @transform_7, window_bounds = array<i64: 512, 1024>}, {pipeline_mode = #tpu.pipeline_mode<synchronous>, transform_indices = @transform_8, window_bounds = array<i64: 1, 1024>}, {pipeline_mode = #tpu.pipeline_mode<synchronous>, transform_indices = @transform_9, window_bounds = array<i64: 2, 128>}, {pipeline_mode = #tpu.pipeline_mode<synchronous>, transform_indices = @transform_10, window_bounds = array<i64: 2, 1024>}]} {
    %c0 = arith.constant 0 : index
    %c0_0 = arith.constant 0 : index
    %0 = vector.load %arg1[%c0, %c0_0] : memref<2x128xf32, #tpu.memory_space<vmem>>, vector<2x128xf32>
    %1 = arith.truncf %0 : vector<2x128xf32> to vector<2x128xbf16>
    %c0_1 = arith.constant 0 : index
    %c0_2 = arith.constant 0 : index
    %2 = vector.load %arg2[%c0_1, %c0_2] : memref<128x128xbf16, #tpu.memory_space<vmem>>, vector<128x128xbf16>
    %cst = arith.constant dense<0.000000e+00> : vector<2x128xf32>
    %3 = tpu.matmul %1, %2, %cst {dimension_numbers = #tpu.dot_dimension_numbers<[1], [0], [0], [1], [0, 0, 1, 1], [], []>} : vector<2x128xbf16>, vector<128x128xbf16>, vector<2x128xf32> -> vector<2x128xf32>
    %c0_3 = arith.constant 0 : index
    %c0_4 = arith.constant 0 : index
    %4 = vector.load %arg3[%c0_3, %c0_4] : memref<1x128xf32, #tpu.memory_space<vmem>>, vector<1x128xf32>
    %5 = vector.broadcast %4 : vector<1x128xf32> to vector<2x128xf32>
    %6 = arith.addf %3, %5 : vector<2x128xf32>
    %cst_5 = arith.constant 0.000000e+00 : f32
    %7 = vector.broadcast %cst_5 : f32 to vector<2x128xf32>
    %8 = arith.maximumf %6, %7 : vector<2x128xf32>
    %c0_6 = arith.constant 0 : index
    %c0_7 = arith.constant 0 : index
    %9 = vector.load %arg10[%c0_6, %c0_7] : memref<2x128xf32, #tpu.memory_space<vmem>>, vector<2x128xf32>
    tpu.vector_store %arg10[%c0_6, %c0_7], %8 {strides = array<i32>} : memref<2x128xf32, #tpu.memory_space<vmem>>, vector<2x128xf32>,
    %10 = arith.truncf %8 : vector<2x128xf32> to vector<2x128xbf16>
    %c0_8 = arith.constant 0 : index
    %c0_9 = arith.constant 0 : index
    %11 = vector.load %arg4[%c0_8, %c0_9] : memref<128x256xbf16, #tpu.memory_space<vmem>>, vector<128x256xbf16>
    %cst_10 = arith.constant dense<0.000000e+00> : vector<2x256xf32>
    %12 = tpu.matmul %10, %11, %cst_10 {dimension_numbers = #tpu.dot_dimension_numbers<[1], [0], [0], [1], [0, 0, 1, 1], [], []>} : vector<2x128xbf16>, vector<128x256xbf16>, vector<2x256xf32> -> vector<2x256xf32>
    %c0_11 = arith.constant 0 : index
    %c0_12 = arith.constant 0 : index
    %13 = vector.load %arg5[%c0_11, %c0_12] : memref<1x256xf32, #tpu.memory_space<vmem>>, vector<1x256xf32>
    %14 = vector.broadcast %13 : vector<1x256xf32> to vector<2x256xf32>
    %15 = arith.addf %12, %14 : vector<2x256xf32>
    %cst_13 = arith.constant 0.000000e+00 : f32
    %16 = vector.broadcast %cst_13 : f32 to vector<2x256xf32>
    %17 = arith.maximumf %15, %16 : vector<2x256xf32>
    %18 = arith.truncf %17 : vector<2x256xf32> to vector<2x256xbf16>
    %c0_14 = arith.constant 0 : index
    %c0_15 = arith.constant 0 : index
    %19 = vector.load %arg6[%c0_14, %c0_15] : memref<256x512xbf16, #tpu.memory_space<vmem>>, vector<256x512xbf16>
    %cst_16 = arith.constant dense<0.000000e+00> : vector<2x512xf32>
    %20 = tpu.matmul %18, %19, %cst_16 {dimension_numbers = #tpu.dot_dimension_numbers<[1], [0], [0], [1], [0, 0, 1, 1], [], []>} : vector<2x256xbf16>, vector<256x512xbf16>, vector<2x512xf32> -> vector<2x512xf32>
    %c0_17 = arith.constant 0 : index
    %c0_18 = arith.constant 0 : index
    %21 = vector.load %arg7[%c0_17, %c0_18] : memref<1x512xf32, #tpu.memory_space<vmem>>, vector<1x512xf32>
    %22 = vector.broadcast %21 : vector<1x512xf32> to vector<2x512xf32>
    %23 = arith.addf %20, %22 : vector<2x512xf32>
    %cst_19 = arith.constant 0.000000e+00 : f32
    %24 = vector.broadcast %cst_19 : f32 to vector<2x512xf32>
    %25 = arith.maximumf %23, %24 : vector<2x512xf32>
    %26 = arith.truncf %25 : vector<2x512xf32> to vector<2x512xbf16>
    %c0_20 = arith.constant 0 : index
    %c0_21 = arith.constant 0 : index
    %27 = vector.load %arg8[%c0_20, %c0_21] : memref<512x1024xbf16, #tpu.memory_space<vmem>>, vector<512x1024xbf16>
    %cst_22 = arith.constant dense<0.000000e+00> : vector<2x1024xf32>
    %28 = tpu.matmul %26, %27, %cst_22 {dimension_numbers = #tpu.dot_dimension_numbers<[1], [0], [0], [1], [0, 0, 1, 1], [], []>} : vector<2x512xbf16>, vector<512x1024xbf16>, vector<2x1024xf32> -> vector<2x1024xf32>
    %c0_23 = arith.constant 0 : index
    %c0_24 = arith.constant 0 : index
    %29 = vector.load %arg9[%c0_23, %c0_24] : memref<1x1024xf32, #tpu.memory_space<vmem>>, vector<1x1024xf32>
    %30 = vector.broadcast %29 : vector<1x1024xf32> to vector<2x1024xf32>
    %31 = arith.addf %28, %30 : vector<2x1024xf32>
    %cst_25 = arith.constant 0.000000e+00 : f32
    %32 = vector.broadcast %cst_25 : f32 to vector<2x1024xf32>
    %33 = arith.maximumf %31, %32 : vector<2x1024xf32>
    %34 = arith.truncf %33 : vector<2x1024xf32> to vector<2x1024xbf16>
    %c0_26 = arith.constant 0 : index
    %c0_27 = arith.constant 0 : index
    %35 = vector.load %arg11[%c0_26, %c0_27] : memref<2x1024xbf16, #tpu.memory_space<vmem>>, vector<2x1024xbf16>
    tpu.vector_store %arg11[%c0_26, %c0_27], %34 {strides = array<i32>} : memref<2x1024xbf16, #tpu.memory_space<vmem>>, vector<2x1024xbf16>,
    return
  }
  func.func @transform_0(%arg0: i32) -> (i32, i32) {
    %c0_i32 = arith.constant 0 : i32
    %c0_i32_0 = arith.constant 0 : i32
    %c0_i32_1 = arith.constant 0 : i32
    return %c0_i32, %c0_i32_0 : i32, i32
  }
  func.func @transform_1(%arg0: i32) -> (i32, i32) {
    %c0_i32 = arith.constant 0 : i32
    %c0_i32_0 = arith.constant 0 : i32
    %c0_i32_1 = arith.constant 0 : i32
    return %c0_i32, %c0_i32_0 : i32, i32
  }
  func.func @transform_2(%arg0: i32) -> (i32, i32) {
    %c0_i32 = arith.constant 0 : i32
    %c0_i32_0 = arith.constant 0 : i32
    %c0_i32_1 = arith.constant 0 : i32
    return %c0_i32, %c0_i32_0 : i32, i32
  }
  func.func @transform_3(%arg0: i32) -> (i32, i32) {
    %c0_i32 = arith.constant 0 : i32
    %c0_i32_0 = arith.constant 0 : i32
    %c0_i32_1 = arith.constant 0 : i32
    return %c0_i32, %c0_i32_0 : i32, i32
  }
  func.func @transform_4(%arg0: i32) -> (i32, i32) {
    %c0_i32 = arith.constant 0 : i32
    %c0_i32_0 = arith.constant 0 : i32
    %c0_i32_1 = arith.constant 0 : i32
    return %c0_i32, %c0_i32_0 : i32, i32
  }
  func.func @transform_5(%arg0: i32) -> (i32, i32) {
    %c0_i32 = arith.constant 0 : i32
    %c0_i32_0 = arith.constant 0 : i32
    %c0_i32_1 = arith.constant 0 : i32
    return %c0_i32, %c0_i32_0 : i32, i32
  }
  func.func @transform_6(%arg0: i32) -> (i32, i32) {
    %c0_i32 = arith.constant 0 : i32
    %c0_i32_0 = arith.constant 0 : i32
    %c0_i32_1 = arith.constant 0 : i32
    return %c0_i32, %c0_i32_0 : i32, i32
  }
  func.func @transform_7(%arg0: i32) -> (i32, i32) {
    %c0_i32 = arith.constant 0 : i32
    %c0_i32_0 = arith.constant 0 : i32
    %c0_i32_1 = arith.constant 0 : i32
    return %c0_i32, %c0_i32_0 : i32, i32
  }
  func.func @transform_8(%arg0: i32) -> (i32, i32) {
    %c0_i32 = arith.constant 0 : i32
    %c0_i32_0 = arith.constant 0 : i32
    %c0_i32_1 = arith.constant 0 : i32
    return %c0_i32, %c0_i32_0 : i32, i32
  }
  func.func @transform_9(%arg0: i32) -> (i32, i32) {
    %c0_i32 = arith.constant 0 : i32
    %c0_i32_0 = arith.constant 0 : i32
    %c0_i32_1 = arith.constant 0 : i32
    return %c0_i32, %c0_i32_0 : i32, i32
  }
  func.func @transform_10(%arg0: i32) -> (i32, i32) {
    %c0_i32 = arith.constant 0 : i32
    %c0_i32_0 = arith.constant 0 : i32
    %c0_i32_1 = arith.constant 0 : i32
    return %c0_i32, %c0_i32_0 : i32, i32
  }
}

</mosaic_0001>

<llo_original>
// kernel: pointnet_fcae_forward.3
$region0: #{pointnet_fcae_forward.3}
  #allocation0 [shape = 'u32[]', space=smem, size = 0x4, offset = 0x4, fixed_abs, tag = 'smem constant byte address 0x4 - core index']
  #allocation1 [shape = 'u32[144,128]{1,0:T(1,128)}', space=vmem, size = 0x12000, scoped, tag = 'internal scratch']
  %s0 = inlined_call_operand.vmem [shape: f32[2,3,512], index: 0, kind: input, shape index: {}]
  %s1 = inlined_call_operand.vmem [shape: f32[64,3], index: 1, kind: input, shape index: {}]
  %s2 = inlined_call_operand.vmem [shape: f32[64,1], index: 2, kind: input, shape index: {}]
  %s3 = inlined_call_operand.vmem [shape: bf16[128,64], index: 3, kind: input, shape index: {}]
  %s4 = inlined_call_operand.vmem [shape: f32[128,1], index: 4, kind: input, shape index: {}]
  %s5 = inlined_call_operand.hbm [shape: bf16[128,128], index: 5, kind: input, shape index: {}]
  %s6 = inlined_call_operand.vmem [shape: f32[128,1], index: 6, kind: input, shape index: {}]
  %s7 = inlined_call_operand.vmem [shape: f32[2,128,1], index: 7, kind: output, shape index: {}]
  %s8 = sld [smem:[#allocation0]]
  $region69: #{pointnet_fcae_forward.3} parent=0
    _
  %s10 = ssub.s32 1, %s8
  %s11 = scalar_select 0, %s10, %s8
  $region1: #{pointnet_fcae_forward.3} parent=0
    #allocation2 [shape = 'u8[32768]{0}', space=vmem, size = 0x8000, scoped, tag = 'input window, operand 5, single buffered']
    #allocation3 [shape = 's32[2]{0}', space=sflag, size = 0x8, scoped, tag = 'scoped memory for pointnet_fcae_forward.3']
    %12 = vsyncpa [#allocation3], 0
    loop: start=0, step=1, limit=4
    $region2: #{pointnet_fcae_forward.3} parent=1 // loop_pre_header
      _
    $region3: #{pointnet_fcae_forward.3} parent=1 // loop_header
      %s14 = sphi 0, %s18
      %p15 = scmp.ge.s32.totalorder %s14, 4
      %s21 = sphi 0, %s33
      %s22 = sphi 0, %s29
      %s23 = sphi 0, %s21
      %s24 = sphi 0, %s22
      %s25 = sphi 0, %s23
      %s26 = sphi 0, %s24
      %s38 = sphi 0, %s40
      %s41 = sphi 0, %s38
      %s42 = sphi 0, %s41
      %s58 = sphi 0, %s42
      %s62 = sphi 0, %s62
      %s64 = sphi 0, %s62
      %s65 = sphi 0, %s64
      %s79 = sphi 0, %s65
      %s83 = sphi 0, %s83
      %s85 = sphi 0, %s83
      %s86 = sphi 0, %s85
      %s100 = sphi 0, %s86
      %s104 = sphi 0, %s104
      %s106 = sphi 0, %s104
      %s107 = sphi 0, %s106
      %s121 = sphi 0, %s107
      %s125 = sphi 0, %s125
      %s127 = sphi 0, %s125
      %s128 = sphi 0, %s127
      %s142 = sphi 0, %s128
      %s146 = sphi 0, %s146
      %s148 = sphi 0, %s146
      %s149 = sphi 0, %s148
      %s163 = sphi 0, %s149
      %s167 = sphi 0, %s167
      %s169 = sphi 0, %s167
      %s170 = sphi 0, %s169
      %s184 = sphi 0, %s170
      %s190 = sphi 0, %s192
      %s193 = sphi 0, %s190
      %s194 = sphi 0, %s193
      %s210 = sphi 0, %s194
    $region4: #{pointnet_fcae_forward.3} parent=1 // loop_header_branch
      %17 = sbr.rel (%p15) target = $region8
    $region5: #{pointnet_fcae_forward.3} parent=1 // loop_body
      %s19 = ssub.s32 %s14, 1
      %s20 = ssub.s32 %s14, 2
      %s27 = sadd.s32 1, %s22
      %p28 = scmp.ge.s32.totalorder %s27, 1
      %s29 = scalar_select %p28, 0, %s27
      %s30 = sadd.s32 1, %s21
      %s31 = scalar_select %p28, %s30, %s21
      %p32 = scmp.ge.s32.totalorder %s31, 2
      %s33 = scalar_select %p32, 0, %s31
      %s34 = ssub.s32 %s21, %s33
      %s35 = ssub.s32 %s22, %s29
      %s36 = sor.u32 %s34, %s35
      %p37 = scmp.eq.s32.totalorder %s36, 0
      %s39 = sadd.s32 %s38, 1
      %s40 = scalar_select %p37, %s38, %s39
      %p43 = pneg %p37
      %p44 = scmp.eq.s32.totalorder %s14, 1
      %p45 = por %p43, %p44
      %p46 = scmp.ne.s32.totalorder %s38, %s41
      %p47 = scmp.eq.s32.totalorder %s14, 0
      %p48 = por %p46, %p47
      %p49 = scmp.ne.s32.totalorder %s38, %s41
      %p50 = scmp.eq.s32.totalorder %s19, 1
      %p51 = por %p49, %p50
      %p52 = scmp.ne.s32.totalorder %s41, %s42
      %p53 = scmp.eq.s32.totalorder %s19, 0
      %p54 = por %p52, %p53
      %p55 = scmp.ne.s32.totalorder %s41, %s42
      %p56 = scmp.eq.s32.totalorder %s20, 1
      %p57 = por %p55, %p56
      %p59 = scmp.ne.s32.totalorder %s42, %s58
      %p60 = scmp.eq.s32.totalorder %s20, 0
      %p61 = por %p59, %p60
      %s63 = sadd.s32 %s62, 1
      %p66 = scmp.eq.s32.totalorder %s14, 1
      %p67 = scmp.ne.s32.totalorder %s62, %s64
      %p68 = scmp.eq.s32.totalorder %s14, 0
      %p69 = por %p67, %p68
      %p70 = scmp.ne.s32.totalorder %s62, %s64
      %p71 = scmp.eq.s32.totalorder %s19, 1
      %p72 = por %p70, %p71
      %p73 = scmp.ne.s32.totalorder %s64, %s65
      %p74 = scmp.eq.s32.totalorder %s19, 0
      %p75 = por %p73, %p74
      %p76 = scmp.ne.s32.totalorder %s64, %s65
      %p77 = scmp.eq.s32.totalorder %s20, 1
      %p78 = por %p76, %p77
      %p80 = scmp.ne.s32.totalorder %s65, %s79
      %p81 = scmp.eq.s32.totalorder %s20, 0
      %p82 = por %p80, %p81
      %s84 = sadd.s32 %s83, 1
      %p87 = scmp.eq.s32.totalorder %s14, 1
      %p88 = scmp.ne.s32.totalorder %s83, %s85
      %p89 = scmp.eq.s32.totalorder %s14, 0
      %p90 = por %p88, %p89
      %p91 = scmp.ne.s32.totalorder %s83, %s85
      %p92 = scmp.eq.s32.totalorder %s19, 1
      %p93 = por %p91, %p92
      %p94 = scmp.ne.s32.totalorder %s85, %s86
      %p95 = scmp.eq.s32.totalorder %s19, 0
      %p96 = por %p94, %p95
      %p97 = scmp.ne.s32.totalorder %s85, %s86
      %p98 = scmp.eq.s32.totalorder %s20, 1
      %p99 = por %p97, %p98
      %p101 = scmp.ne.s32.totalorder %s86, %s100
      %p102 = scmp.eq.s32.totalorder %s20, 0
      %p103 = por %p101, %p102
      %s105 = sadd.s32 %s104, 1
      %p108 = scmp.eq.s32.totalorder %s14, 1
      %p109 = scmp.ne.s32.totalorder %s104, %s106
      %p110 = scmp.eq.s32.totalorder %s14, 0
      %p111 = por %p109, %p110
      %p112 = scmp.ne.s32.totalorder %s104, %s106
      %p113 = scmp.eq.s32.totalorder %s19, 1
      %p114 = por %p112, %p113
      %p115 = scmp.ne.s32.totalorder %s106, %s107
      %p116 = scmp.eq.s32.totalorder %s19, 0
      %p117 = por %p115, %p116
      %p118 = scmp.ne.s32.totalorder %s106, %s107
      %p119 = scmp.eq.s32.totalorder %s20, 1
      %p120 = por %p118, %p119
      %p122 = scmp.ne.s32.totalorder %s107, %s121
      %p123 = scmp.eq.s32.totalorder %s20, 0
      %p124 = por %p122, %p123
      %s126 = sadd.s32 %s125, 1
      %p129 = scmp.eq.s32.totalorder %s14, 1
      %p130 = scmp.ne.s32.totalorder %s125, %s127
      %p131 = scmp.eq.s32.totalorder %s14, 0
      %p132 = por %p130, %p131
      %p133 = scmp.ne.s32.totalorder %s125, %s127
      %p134 = scmp.eq.s32.totalorder %s19, 1
      %p135 = por %p133, %p134
      %p136 = scmp.ne.s32.totalorder %s127, %s128
      %p137 = scmp.eq.s32.totalorder %s19, 0
      %p138 = por %p136, %p137
      %p139 = scmp.ne.s32.totalorder %s127, %s128
      %p140 = scmp.eq.s32.totalorder %s20, 1
      %p141 = por %p139, %p140
      %p143 = scmp.ne.s32.totalorder %s128, %s142
      %p144 = scmp.eq.s32.totalorder %s20, 0
      %p145 = por %p143, %p144
      %s147 = sadd.s32 %s146, 1
      %p150 = scmp.eq.s32.totalorder %s14, 1
      %p151 = scmp.ne.s32.totalorder %s146, %s148
      %p152 = scmp.eq.s32.totalorder %s14, 0
      %p153 = por %p151, %p152
      %p154 = scmp.ne.s32.totalorder %s146, %s148
      %p155 = scmp.eq.s32.totalorder %s19, 1
      %p156 = por %p154, %p155
      %p157 = scmp.ne.s32.totalorder %s148, %s149
      %p158 = scmp.eq.s32.totalorder %s19, 0
      %p159 = por %p157, %p158
      %p160 = scmp.ne.s32.totalorder %s148, %s149
      %p161 = scmp.eq.s32.totalorder %s20, 1
      %p162 = por %p160, %p161
      %p164 = scmp.ne.s32.totalorder %s149, %s163
      %p165 = scmp.eq.s32.totalorder %s20, 0
      %p166 = por %p164, %p165
      %s168 = sadd.s32 %s167, 1
      %p171 = scmp.eq.s32.totalorder %s14, 1
      %p172 = scmp.ne.s32.totalorder %s167, %s169
      %p173 = scmp.eq.s32.totalorder %s14, 0
      %p174 = por %p172, %p173
      %p175 = scmp.ne.s32.totalorder %s167, %s169
      %p176 = scmp.eq.s32.totalorder %s19, 1
      %p177 = por %p175, %p176
      %p178 = scmp.ne.s32.totalorder %s169, %s170
      %p179 = scmp.eq.s32.totalorder %s19, 0
      %p180 = por %p178, %p179
      %p181 = scmp.ne.s32.totalorder %s169, %s170
      %p182 = scmp.eq.s32.totalorder %s20, 1
      %p183 = por %p181, %p182
      %p185 = scmp.ne.s32.totalorder %s170, %s184
      %p186 = scmp.eq.s32.totalorder %s20, 0
      %p187 = por %p185, %p186
      %s188 = ssub.s32 %s21, %s33
      %p189 = scmp.eq.s32.totalorder %s188, 0
      %s191 = sadd.s32 %s190, 1
      %s192 = scalar_select %p189, %s190, %s191
      %p195 = pneg %p189
      %p196 = scmp.eq.s32.totalorder %s14, 1
      %p197 = por %p195, %p196
      %p198 = scmp.ne.s32.totalorder %s190, %s193
      %p199 = scmp.eq.s32.totalorder %s14, 0
      %p200 = por %p198, %p199
      %p201 = scmp.ne.s32.totalorder %s190, %s193
      %p202 = scmp.eq.s32.totalorder %s19, 1
      %p203 = por %p201, %p202
      %p204 = scmp.ne.s32.totalorder %s193, %s194
      %p205 = scmp.eq.s32.totalorder %s19, 0
      %p206 = por %p204, %p205
      %p207 = scmp.ne.s32.totalorder %s193, %s194
      %p208 = scmp.eq.s32.totalorder %s20, 1
      %p209 = por %p207, %p208
      %p211 = scmp.ne.s32.totalorder %s194, %s210
      %p212 = scmp.eq.s32.totalorder %s20, 0
      %p213 = por %p211, %p212
      %p214 = scmp.le.s32.totalorder 1, %s14
      %p215 = scmp.lt.s32.totalorder %s14, 3
      %p216 = pnand %p214, %p215
      %p217 = pneg %p216
      // Predicated region
      $region9: #{pointnet_fcae_forward.3} parent=5 // pred_check
        _
      $region10: #{pointnet_fcae_forward.3} parent=5 // pred_check_branch
        %219 = sbr.rel (%p216) target = $region12
      $region11: #{pointnet_fcae_forward.3} parent=5 // pred_region
        %s220 = ssub.s32 %s14, 1
        // Predicated region
        $region13: #{pointnet_fcae_forward.3} parent=11 // pred_check
          %p221 = pneg %p75
        $region14: #{pointnet_fcae_forward.3} parent=11 // pred_check_branch
          %223 = sbr.rel (%p221) target = $region16
        $region15: #{pointnet_fcae_forward.3} parent=11 // pred_region
          _
        $region16: #{pointnet_fcae_forward.3} parent=11 // pred_fallthru
          _
        // Predicated region
        $region17: #{pointnet_fcae_forward.3} parent=11 // pred_check
          %p224 = pneg %p96
        $region18: #{pointnet_fcae_forward.3} parent=11 // pred_check_branch
          %226 = sbr.rel (%p224) target = $region20
        $region19: #{pointnet_fcae_forward.3} parent=11 // pred_region
          _
        $region20: #{pointnet_fcae_forward.3} parent=11 // pred_fallthru
          _
        // Predicated region
        $region21: #{pointnet_fcae_forward.3} parent=11 // pred_check
          %p227 = pneg %p117
        $region22: #{pointnet_fcae_forward.3} parent=11 // pred_check_branch
          %229 = sbr.rel (%p227) target = $region24
        $region23: #{pointnet_fcae_forward.3} parent=11 // pred_region
          _
        $region24: #{pointnet_fcae_forward.3} parent=11 // pred_fallthru
          _
        // Predicated region
        $region25: #{pointnet_fcae_forward.3} parent=11 // pred_check
          %p230 = pneg %p138
        $region26: #{pointnet_fcae_forward.3} parent=11 // pred_check_branch
          %232 = sbr.rel (%p230) target = $region28
        $region27: #{pointnet_fcae_forward.3} parent=11 // pred_region
          _
        $region28: #{pointnet_fcae_forward.3} parent=11 // pred_fallthru
          _
        // Predicated region
        $region29: #{pointnet_fcae_forward.3} parent=11 // pred_check
          %p233 = pneg %p159
        $region30: #{pointnet_fcae_forward.3} parent=11 // pred_check_branch
          %235 = sbr.rel (%p233) target = $region32
        $region31: #{pointnet_fcae_forward.3} parent=11 // pred_region
          %s237 = ssub.s32 1024, 1024
          %238 = vsyncadd [#allocation3], %s237
          %s239 = sshll.u32 [#allocation2], 4
          %s240 = int_to_ptr.vmem [resolvable:$true] %s239
          %245 = dma.hbm_to_vmem [thread:$0]  %s5, 1024, %s240, [#allocation3], 64, 64, 4
        $region32: #{pointnet_fcae_forward.3} parent=11 // pred_fallthru
          _
        // Predicated region
        $region33: #{pointnet_fcae_forward.3} parent=11 // pred_check
          %p246 = pneg %p180
        $region34: #{pointnet_fcae_forward.3} parent=11 // pred_check_branch
          %248 = sbr.rel (%p246) target = $region36
        $region35: #{pointnet_fcae_forward.3} parent=11 // pred_region
          _
        $region36: #{pointnet_fcae_forward.3} parent=11 // pred_fallthru
          _
      $region12: #{pointnet_fcae_forward.3} parent=5 // pred_fallthru
        _
      %p249 = scmp.lt.s32.totalorder %s14, 2
      // Predicated region
      $region37: #{pointnet_fcae_forward.3} parent=5 // pred_check
        %p250 = pneg %p249
      $region38: #{pointnet_fcae_forward.3} parent=5 // pred_check_branch
        %252 = sbr.rel (%p250) target = $region40
      $region39: #{pointnet_fcae_forward.3} parent=5 // pred_region
        // Predicated region
        $region41: #{pointnet_fcae_forward.3} parent=39 // pred_check
          %p253 = pneg %p48
        $region42: #{pointnet_fcae_forward.3} parent=39 // pred_check_branch
          %255 = sbr.rel (%p253) target = $region44
        $region43: #{pointnet_fcae_forward.3} parent=39 // pred_region
          %s256 = smul.u32 4, %s22
          %p257 = scmp.lt.s32.totalorder %s21, 1
          %s258 = scalar_select %p257, %s21, 1
          %p259 = scmp.lt.s32.totalorder %s256, 3
          %s260 = scalar_select %p259, %s256, 3
          %s261 = smul.addr %s258, 4
          %s262 = sadd.s32 %s260, %s261
          %s263 = smul.addr %s262, 4
          %s264 = scalar_lea.vmem %s0, %s263
          %s265 = smul.u32 4, %s22
        $region44: #{pointnet_fcae_forward.3} parent=39 // pred_fallthru
          _
      $region40: #{pointnet_fcae_forward.3} parent=5 // pred_fallthru
        _
      %p266 = scmp.le.s32.totalorder 1, %s14
      %p267 = scmp.lt.s32.totalorder %s14, 3
      %p268 = pnand %p266, %p267
      %p269 = pneg %p268
      // Predicated region
      $region45: #{pointnet_fcae_forward.3} parent=5 // pred_check
        _
      $region46: #{pointnet_fcae_forward.3} parent=5 // pred_check_branch
        %271 = sbr.rel (%p268) target = $region48
      $region47: #{pointnet_fcae_forward.3} parent=5 // pred_region
        %s272 = ssub.s32 %s14, 1
        // Predicated region
        $region49: #{pointnet_fcae_forward.3} parent=47 // pred_check
          %p273 = pneg %p159
        $region50: #{pointnet_fcae_forward.3} parent=47 // pred_check_branch
          %275 = sbr.rel (%p273) target = $region52
        $region51: #{pointnet_fcae_forward.3} parent=47 // pred_region
          %276 = dma.done [#allocation3], 1024
        $region52: #{pointnet_fcae_forward.3} parent=47 // pred_fallthru
          _
        %s277 = smul.u32 4, %s24
        %p278 = scmp.lt.s32.totalorder %s23, 1
        %s279 = scalar_select %p278, %s23, 1
        %p280 = scmp.lt.s32.totalorder %s277, 3
        %s281 = scalar_select %p280, %s277, 3
        %s282 = smul.addr %s279, 4
        %s283 = sadd.s32 %s281, %s282
        %s284 = smul.addr %s283, 4
        %s285 = scalar_lea.vmem %s0, %s284
        %p286 = pneg %p54
        %p287 = pneg %p51
        %p288 = pneg %p75
        %p289 = pneg %p72
        %p290 = pneg %p96
        %p291 = pneg %p93
        %p292 = pneg %p117
        %p293 = pneg %p114
        %p294 = pneg %p138
        %p295 = pneg %p135
        %p296 = pneg %p159
        %p297 = pneg %p156
        %p298 = pneg %p180
        %p299 = pneg %p177
        %p300 = pneg %p206
        %p301 = pneg %p203
        %p302 = scmp.lt.s32.totalorder %s23, 1
        %s303 = scalar_select %p302, %s23, 1
        %s304 = smul.addr %s303, 16
        %s305 = smul.addr %s304, 8
        %s306 = scalar_lea.vmem %s7, %s305
        %s307 = smul.u32 4, %s24
        %p308 = scmp.lt.s32.totalorder %s23, 1
        %s309 = scalar_select %p308, %s23, 1
        %p310 = scmp.lt.s32.totalorder %s307, 3
        %s311 = scalar_select %p310, %s307, 3
        %s312 = smul.addr %s309, 4
        %s313 = sadd.s32 %s311, %s312
        %s314 = smul.addr %s313, 4
        %s315 = scalar_lea.vmem %s0, %s314
        %s316 = smul.u32 4, %s24
        %p317 = scmp.lt.s32.totalorder %s23, 1
        %s318 = scalar_select %p317, %s23, 1
        %s319 = smul.addr %s318, 16
        %s320 = smul.addr %s319, 8
        %s321 = scalar_lea.vmem %s7, %s320
        %p323 = scmp.eq.s32.totalorder %s24, 0
        // Predicated region
        $region53: #{pointnet_fcae_forward.3} parent=47 // pred_check
          %p324 = pneg %p323
        $region54: #{pointnet_fcae_forward.3} parent=47 // pred_check_branch
          %326 = sbr.rel (%p324) target = $region56
        $region55: #{pointnet_fcae_forward.3} parent=47 // pred_region
          %vm327 = vcmask 7168
          %328 = vst.msk [vmem:[%s321] sm:$0xff] %vm327, -inf
          %329 = vst.msk [vmem:[%s321 + $0x8] sm:$0xff] %vm327, -inf
          %330 = vst.msk [vmem:[%s321 + $0x10] sm:$0xff] %vm327, -inf
          %331 = vst.msk [vmem:[%s321 + $0x18] sm:$0xff] %vm327, -inf
          %332 = vst.msk [vmem:[%s321 + $0x20] sm:$0xff] %vm327, -inf
          %333 = vst.msk [vmem:[%s321 + $0x28] sm:$0xff] %vm327, -inf
          %334 = vst.msk [vmem:[%s321 + $0x30] sm:$0xff] %vm327, -inf
          %335 = vst.msk [vmem:[%s321 + $0x38] sm:$0xff] %vm327, -inf
          %336 = vst.msk [vmem:[%s321 + $0x40] sm:$0xff] %vm327, -inf
          %337 = vst.msk [vmem:[%s321 + $0x48] sm:$0xff] %vm327, -inf
          %338 = vst.msk [vmem:[%s321 + $0x50] sm:$0xff] %vm327, -inf
          %339 = vst.msk [vmem:[%s321 + $0x58] sm:$0xff] %vm327, -inf
          %340 = vst.msk [vmem:[%s321 + $0x60] sm:$0xff] %vm327, -inf
          %341 = vst.msk [vmem:[%s321 + $0x68] sm:$0xff] %vm327, -inf
          %342 = vst.msk [vmem:[%s321 + $0x70] sm:$0xff] %vm327, -inf
          %343 = vst.msk [vmem:[%s321 + $0x78] sm:$0xff] %vm327, -inf
        $region56: #{pointnet_fcae_forward.3} parent=47 // pred_fallthru
          _
        %v344 = vld [vmem:[%s315] sm:$0x77]
        %v345 = vld [vmem:[%s315 + $0x8] sm:$0x77]
        %v346 = vld [vmem:[%s2] sm:$0xff]
        %v347 = vld [vmem:[%s2 + $0x8] sm:$0xff]
        %v348 = vld [vmem:[%s2 + $0x10] sm:$0xff]
        %v349 = vld [vmem:[%s2 + $0x18] sm:$0xff]
        %v350 = vld [vmem:[%s2 + $0x20] sm:$0xff]
        %v351 = vld [vmem:[%s2 + $0x28] sm:$0xff]
        %v352 = vld [vmem:[%s2 + $0x30] sm:$0xff]
        %v353 = vld [vmem:[%s2 + $0x38] sm:$0xff]
        %v354 = vld [vmem:[%s1] sm:$0xff]
        %v355 = vld [vmem:[%s1 + $0x8] sm:$0xff]
        %v356 = vld [vmem:[%s1 + $0x10] sm:$0xff]
        %v357 = vld [vmem:[%s1 + $0x18] sm:$0xff]
        %v358 = vld [vmem:[%s1 + $0x20] sm:$0xff]
        %v359 = vld [vmem:[%s1 + $0x28] sm:$0xff]
        %v360 = vld [vmem:[%s1 + $0x30] sm:$0xff]
        %v361 = vld [vmem:[%s1 + $0x38] sm:$0xff]
        %363 = vset.pattern.permute.xlu0 0
        %364 = vperm.xlu0 %363, %v354
        %v365 = vpop.permute.xlu0 %364
        %368 = vset.pattern.permute.xlu0 0
        %369 = vperm.xlu0 %368, %v355
        %v370 = vpop.permute.xlu0 %369
        %373 = vset.pattern.permute.xlu0 0
        %374 = vperm.xlu0 %373, %v356
        %v375 = vpop.permute.xlu0 %374
        %378 = vset.pattern.permute.xlu0 0
        %379 = vperm.xlu0 %378, %v357
        %v380 = vpop.permute.xlu0 %379
        %383 = vset.pattern.permute.xlu0 0
        %384 = vperm.xlu0 %383, %v358
        %v385 = vpop.permute.xlu0 %384
        %388 = vset.pattern.permute.xlu0 0
        %389 = vperm.xlu0 %388, %v359
        %v390 = vpop.permute.xlu0 %389
        %393 = vset.pattern.permute.xlu0 0
        %394 = vperm.xlu0 %393, %v360
        %v395 = vpop.permute.xlu0 %394
        %398 = vset.pattern.permute.xlu0 0
        %399 = vperm.xlu0 %398, %v361
        %v400 = vpop.permute.xlu0 %399
        %v404 = vlaneseq
        %v405 = vshrl.u32 %v404, 7
        %v406 = vsub.s32 0, %v405
        %v407 = vrot.slane %v344, %v406
        %v408 = vlaneseq
        %v409 = vshrl.u32 %v408, 7
        %v410 = vsub.s32 4, %v409
        %v411 = vrot.slane %v344, %v410
        %v412 = vlaneseq
        %v413 = vshrl.u32 %v412, 7
        %v414 = vsub.s32 0, %v413
        %v415 = vrot.slane %v345, %v414
        %v416 = vlaneseq
        %v417 = vshrl.u32 %v416, 7
        %v418 = vsub.s32 4, %v417
        %v419 = vrot.slane %v345, %v418
        %v424 = vlaneseq
        %v425 = vshrl.u32 %v424, 7
        %v426 = vsub.s32 0, %v425
        %v427 = vrot.slane %v407, %v426
        %v428 = vlaneseq
        %v429 = vshrl.u32 %v428, 7
        %v430 = vsub.s32 0, %v429
        %v431 = vrot.slane %v411, %v430
        %v432 = vlaneseq
        %v433 = vshrl.u32 %v432, 7
        %v434 = vsub.s32 0, %v433
        %v435 = vrot.slane %v415, %v434
        %v436 = vlaneseq
        %v437 = vshrl.u32 %v436, 7
        %v438 = vsub.s32 0, %v437
        %v439 = vrot.slane %v419, %v438
        %v440 = vmul.f32 %v365, %v427
        %v441 = vmul.f32 %v365, %v431
        %v442 = vmul.f32 %v365, %v435
        %v443 = vmul.f32 %v365, %v439
        %v444 = vmul.f32 %v370, %v427
        %v445 = vmul.f32 %v370, %v431
        %v446 = vmul.f32 %v370, %v435
        %v447 = vmul.f32 %v370, %v439
        %v448 = vmul.f32 %v375, %v427
        %v449 = vmul.f32 %v375, %v431
        %v450 = vmul.f32 %v375, %v435
        %v451 = vmul.f32 %v375, %v439
        %v452 = vmul.f32 %v380, %v427
        %v453 = vmul.f32 %v380, %v431
        %v454 = vmul.f32 %v380, %v435
        %v455 = vmul.f32 %v380, %v439
        %v456 = vmul.f32 %v385, %v427
        %v457 = vmul.f32 %v385, %v431
        %v458 = vmul.f32 %v385, %v435
        %v459 = vmul.f32 %v385, %v439
        %v460 = vmul.f32 %v390, %v427
        %v461 = vmul.f32 %v390, %v431
        %v462 = vmul.f32 %v390, %v435
        %v463 = vmul.f32 %v390, %v439
        %v464 = vmul.f32 %v395, %v427
        %v465 = vmul.f32 %v395, %v431
        %v466 = vmul.f32 %v395, %v435
        %v467 = vmul.f32 %v395, %v439
        %v468 = vmul.f32 %v400, %v427
        %v469 = vmul.f32 %v400, %v431
        %v470 = vmul.f32 %v400, %v435
        %v471 = vmul.f32 %v400, %v439
        %473 = vset.pattern.permute.xlu0 0
        %474 = vperm.xlu0 %473, %v346
        %v475 = vpop.permute.xlu0 %474
        %478 = vset.pattern.permute.xlu0 0
        %479 = vperm.xlu0 %478, %v347
        %v480 = vpop.permute.xlu0 %479
        %483 = vset.pattern.permute.xlu0 0
        %484 = vperm.xlu0 %483, %v348
        %v485 = vpop.permute.xlu0 %484
        %488 = vset.pattern.permute.xlu0 0
        %489 = vperm.xlu0 %488, %v349
        %v490 = vpop.permute.xlu0 %489
        %493 = vset.pattern.permute.xlu0 0
        %494 = vperm.xlu0 %493, %v350
        %v495 = vpop.permute.xlu0 %494
        %498 = vset.pattern.permute.xlu0 0
        %499 = vperm.xlu0 %498, %v351
        %v500 = vpop.permute.xlu0 %499
        %503 = vset.pattern.permute.xlu0 0
        %504 = vperm.xlu0 %503, %v352
        %v505 = vpop.permute.xlu0 %504
        %508 = vset.pattern.permute.xlu0 0
        %509 = vperm.xlu0 %508, %v353
        %v510 = vpop.permute.xlu0 %509
        %v512 = vadd.f32 %v475, %v440
        %v513 = vadd.f32 %v475, %v441
        %v514 = vadd.f32 %v475, %v442
        %v515 = vadd.f32 %v475, %v443
        %v516 = vadd.f32 %v480, %v444
        %v517 = vadd.f32 %v480, %v445
        %v518 = vadd.f32 %v480, %v446
        %v519 = vadd.f32 %v480, %v447
        %v520 = vadd.f32 %v485, %v448
        %v521 = vadd.f32 %v485, %v449
        %v522 = vadd.f32 %v485, %v450
        %v523 = vadd.f32 %v485, %v451
        %v524 = vadd.f32 %v490, %v452
        %v525 = vadd.f32 %v490, %v453
        %v526 = vadd.f32 %v490, %v454
        %v527 = vadd.f32 %v490, %v455
        %v528 = vadd.f32 %v495, %v456
        %v529 = vadd.f32 %v495, %v457
        %v530 = vadd.f32 %v495, %v458
        %v531 = vadd.f32 %v495, %v459
        %v532 = vadd.f32 %v500, %v460
        %v533 = vadd.f32 %v500, %v461
        %v534 = vadd.f32 %v500, %v462
        %v535 = vadd.f32 %v500, %v463
        %v536 = vadd.f32 %v505, %v464
        %v537 = vadd.f32 %v505, %v465
        %v538 = vadd.f32 %v505, %v466
        %v539 = vadd.f32 %v505, %v467
        %v540 = vadd.f32 %v510, %v468
        %v541 = vadd.f32 %v510, %v469
        %v542 = vadd.f32 %v510, %v470
        %v543 = vadd.f32 %v510, %v471
        %544 = vset.pattern.permute.xlu0 1
        %545 = vperm.xlu0 %544, %v354
        %v546 = vpop.permute.xlu0 %545
        %548 = vset.pattern.permute.xlu0 1
        %549 = vperm.xlu0 %548, %v355
        %v550 = vpop.permute.xlu0 %549
        %552 = vset.pattern.permute.xlu0 1
        %553 = vperm.xlu0 %552, %v356
        %v554 = vpop.permute.xlu0 %553
        %556 = vset.pattern.permute.xlu0 1
        %557 = vperm.xlu0 %556, %v357
        %v558 = vpop.permute.xlu0 %557
        %560 = vset.pattern.permute.xlu0 1
        %561 = vperm.xlu0 %560, %v358
        %v562 = vpop.permute.xlu0 %561
        %564 = vset.pattern.permute.xlu0 1
        %565 = vperm.xlu0 %564, %v359
        %v566 = vpop.permute.xlu0 %565
        %568 = vset.pattern.permute.xlu0 1
        %569 = vperm.xlu0 %568, %v360
        %v570 = vpop.permute.xlu0 %569
        %572 = vset.pattern.permute.xlu0 1
        %573 = vperm.xlu0 %572, %v361
        %v574 = vpop.permute.xlu0 %573
        %v576 = vlaneseq
        %v577 = vshrl.u32 %v576, 7
        %v578 = vsub.s32 1, %v577
        %v579 = vrot.slane %v344, %v578
        %v580 = vlaneseq
        %v581 = vshrl.u32 %v580, 7
        %v582 = vsub.s32 5, %v581
        %v583 = vrot.slane %v344, %v582
        %v584 = vlaneseq
        %v585 = vshrl.u32 %v584, 7
        %v586 = vsub.s32 1, %v585
        %v587 = vrot.slane %v345, %v586
        %v588 = vlaneseq
        %v589 = vshrl.u32 %v588, 7
        %v590 = vsub.s32 5, %v589
        %v591 = vrot.slane %v345, %v590
        %v596 = vlaneseq
        %v597 = vshrl.u32 %v596, 7
        %v598 = vsub.s32 1, %v597
        %v599 = vrot.slane %v579, %v598
        %v600 = vlaneseq
        %v601 = vshrl.u32 %v600, 7
        %v602 = vsub.s32 1, %v601
        %v603 = vrot.slane %v583, %v602
        %v604 = vlaneseq
        %v605 = vshrl.u32 %v604, 7
        %v606 = vsub.s32 1, %v605
        %v607 = vrot.slane %v587, %v606
        %v608 = vlaneseq
        %v609 = vshrl.u32 %v608, 7
        %v610 = vsub.s32 1, %v609
        %v611 = vrot.slane %v591, %v610
        %v612 = vmul.f32 %v546, %v599
        %v613 = vmul.f32 %v546, %v603
        %v614 = vmul.f32 %v546, %v607
        %v615 = vmul.f32 %v546, %v611
        %v616 = vmul.f32 %v550, %v599
        %v617 = vmul.f32 %v550, %v603
        %v618 = vmul.f32 %v550, %v607
        %v619 = vmul.f32 %v550, %v611
        %v620 = vmul.f32 %v554, %v599
        %v621 = vmul.f32 %v554, %v603
        %v622 = vmul.f32 %v554, %v607
        %v623 = vmul.f32 %v554, %v611
        %v624 = vmul.f32 %v558, %v599
        %v625 = vmul.f32 %v558, %v603
        %v626 = vmul.f32 %v558, %v607
        %v627 = vmul.f32 %v558, %v611
        %v628 = vmul.f32 %v562, %v599
        %v629 = vmul.f32 %v562, %v603
        %v630 = vmul.f32 %v562, %v607
        %v631 = vmul.f32 %v562, %v611
        %v632 = vmul.f32 %v566, %v599
        %v633 = vmul.f32 %v566, %v603
        %v634 = vmul.f32 %v566, %v607
        %v635 = vmul.f32 %v566, %v611
        %v636 = vmul.f32 %v570, %v599
        %v637 = vmul.f32 %v570, %v603
        %v638 = vmul.f32 %v570, %v607
        %v639 = vmul.f32 %v570, %v611
        %v640 = vmul.f32 %v574, %v599
        %v641 = vmul.f32 %v574, %v603
        %v642 = vmul.f32 %v574, %v607
        %v643 = vmul.f32 %v574, %v611
        %v644 = vadd.f32 %v512, %v612
        %v645 = vadd.f32 %v513, %v613
        %v646 = vadd.f32 %v514, %v614
        %v647 = vadd.f32 %v515, %v615
        %v648 = vadd.f32 %v516, %v616
        %v649 = vadd.f32 %v517, %v617
        %v650 = vadd.f32 %v518, %v618
        %v651 = vadd.f32 %v519, %v619
        %v652 = vadd.f32 %v520, %v620
        %v653 = vadd.f32 %v521, %v621
        %v654 = vadd.f32 %v522, %v622
        %v655 = vadd.f32 %v523, %v623
        %v656 = vadd.f32 %v524, %v624
        %v657 = vadd.f32 %v525, %v625
        %v658 = vadd.f32 %v526, %v626
        %v659 = vadd.f32 %v527, %v627
        %v660 = vadd.f32 %v528, %v628
        %v661 = vadd.f32 %v529, %v629
        %v662 = vadd.f32 %v530, %v630
        %v663 = vadd.f32 %v531, %v631
        %v664 = vadd.f32 %v532, %v632
        %v665 = vadd.f32 %v533, %v633
        %v666 = vadd.f32 %v534, %v634
        %v667 = vadd.f32 %v535, %v635
        %v668 = vadd.f32 %v536, %v636
        %v669 = vadd.f32 %v537, %v637
        %v670 = vadd.f32 %v538, %v638
        %v671 = vadd.f32 %v539, %v639
        %v672 = vadd.f32 %v540, %v640
        %v673 = vadd.f32 %v541, %v641
        %v674 = vadd.f32 %v542, %v642
        %v675 = vadd.f32 %v543, %v643
        %676 = vset.pattern.permute.xlu0 2
        %677 = vperm.xlu0 %676, %v354
        %v678 = vpop.permute.xlu0 %677
        %680 = vset.pattern.permute.xlu0 2
        %681 = vperm.xlu0 %680, %v355
        %v682 = vpop.permute.xlu0 %681
        %684 = vset.pattern.permute.xlu0 2
        %685 = vperm.xlu0 %684, %v356
        %v686 = vpop.permute.xlu0 %685
        %688 = vset.pattern.permute.xlu0 2
        %689 = vperm.xlu0 %688, %v357
        %v690 = vpop.permute.xlu0 %689
        %692 = vset.pattern.permute.xlu0 2
        %693 = vperm.xlu0 %692, %v358
        %v694 = vpop.permute.xlu0 %693
        %696 = vset.pattern.permute.xlu0 2
        %697 = vperm.xlu0 %696, %v359
        %v698 = vpop.permute.xlu0 %697
        %700 = vset.pattern.permute.xlu0 2
        %701 = vperm.xlu0 %700, %v360
        %v702 = vpop.permute.xlu0 %701
        %704 = vset.pattern.permute.xlu0 2
        %705 = vperm.xlu0 %704, %v361
        %v706 = vpop.permute.xlu0 %705
        %v708 = vlaneseq
        %v709 = vshrl.u32 %v708, 7
        %v710 = vsub.s32 2, %v709
        %v711 = vrot.slane %v344, %v710
        %v712 = vlaneseq
        %v713 = vshrl.u32 %v712, 7
        %v714 = vsub.s32 6, %v713
        %v715 = vrot.slane %v344, %v714
        %v716 = vlaneseq
        %v717 = vshrl.u32 %v716, 7
        %v718 = vsub.s32 2, %v717
        %v719 = vrot.slane %v345, %v718
        %v720 = vlaneseq
        %v721 = vshrl.u32 %v720, 7
        %v722 = vsub.s32 6, %v721
        %v723 = vrot.slane %v345, %v722
        %v728 = vlaneseq
        %v729 = vshrl.u32 %v728, 7
        %v730 = vsub.s32 2, %v729
        %v731 = vrot.slane %v711, %v730
        %v732 = vlaneseq
        %v733 = vshrl.u32 %v732, 7
        %v734 = vsub.s32 2, %v733
        %v735 = vrot.slane %v715, %v734
        %v736 = vlaneseq
        %v737 = vshrl.u32 %v736, 7
        %v738 = vsub.s32 2, %v737
        %v739 = vrot.slane %v719, %v738
        %v740 = vlaneseq
        %v741 = vshrl.u32 %v740, 7
        %v742 = vsub.s32 2, %v741
        %v743 = vrot.slane %v723, %v742
        %v744 = vmul.f32 %v678, %v731
        %v745 = vmul.f32 %v678, %v735
        %v746 = vmul.f32 %v678, %v739
        %v747 = vmul.f32 %v678, %v743
        %v748 = vmul.f32 %v682, %v731
        %v749 = vmul.f32 %v682, %v735
        %v750 = vmul.f32 %v682, %v739
        %v751 = vmul.f32 %v682, %v743
        %v752 = vmul.f32 %v686, %v731
        %v753 = vmul.f32 %v686, %v735
        %v754 = vmul.f32 %v686, %v739
        %v755 = vmul.f32 %v686, %v743
        %v756 = vmul.f32 %v690, %v731
        %v757 = vmul.f32 %v690, %v735
        %v758 = vmul.f32 %v690, %v739
        %v759 = vmul.f32 %v690, %v743
        %v760 = vmul.f32 %v694, %v731
        %v761 = vmul.f32 %v694, %v735
        %v762 = vmul.f32 %v694, %v739
        %v763 = vmul.f32 %v694, %v743
        %v764 = vmul.f32 %v698, %v731
        %v765 = vmul.f32 %v698, %v735
        %v766 = vmul.f32 %v698, %v739
        %v767 = vmul.f32 %v698, %v743
        %v768 = vmul.f32 %v702, %v731
        %v769 = vmul.f32 %v702, %v735
        %v770 = vmul.f32 %v702, %v739
        %v771 = vmul.f32 %v702, %v743
        %v772 = vmul.f32 %v706, %v731
        %v773 = vmul.f32 %v706, %v735
        %v774 = vmul.f32 %v706, %v739
        %v775 = vmul.f32 %v706, %v743
        %v776 = vadd.f32 %v644, %v744
        %v777 = vadd.f32 %v645, %v745
        %v778 = vadd.f32 %v646, %v746
        %v779 = vadd.f32 %v647, %v747
        %v780 = vadd.f32 %v648, %v748
        %v781 = vadd.f32 %v649, %v749
        %v782 = vadd.f32 %v650, %v750
        %v783 = vadd.f32 %v651, %v751
        %v784 = vadd.f32 %v652, %v752
        %v785 = vadd.f32 %v653, %v753
        %v786 = vadd.f32 %v654, %v754
        %v787 = vadd.f32 %v655, %v755
        %v788 = vadd.f32 %v656, %v756
        %v789 = vadd.f32 %v657, %v757
        %v790 = vadd.f32 %v658, %v758
        %v791 = vadd.f32 %v659, %v759
        %v792 = vadd.f32 %v660, %v760
        %v793 = vadd.f32 %v661, %v761
        %v794 = vadd.f32 %v662, %v762
        %v795 = vadd.f32 %v663, %v763
        %v796 = vadd.f32 %v664, %v764
        %v797 = vadd.f32 %v665, %v765
        %v798 = vadd.f32 %v666, %v766
        %v799 = vadd.f32 %v667, %v767
        %v800 = vadd.f32 %v668, %v768
        %v801 = vadd.f32 %v669, %v769
        %v802 = vadd.f32 %v670, %v770
        %v803 = vadd.f32 %v671, %v771
        %v804 = vadd.f32 %v672, %v772
        %v805 = vadd.f32 %v673, %v773
        %v806 = vadd.f32 %v674, %v774
        %v807 = vadd.f32 %v675, %v775
        %v808 = vmax.f32 %v776, 0.0
        %v809 = vmax.f32 %v777, 0.0
        %v810 = vmax.f32 %v778, 0.0
        %v811 = vmax.f32 %v779, 0.0
        %v812 = vmax.f32 %v780, 0.0
        %v813 = vmax.f32 %v781, 0.0
        %v814 = vmax.f32 %v782, 0.0
        %v815 = vmax.f32 %v783, 0.0
        %v816 = vmax.f32 %v784, 0.0
        %v817 = vmax.f32 %v785, 0.0
        %v818 = vmax.f32 %v786, 0.0
        %v819 = vmax.f32 %v787, 0.0
        %v820 = vmax.f32 %v788, 0.0
        %v821 = vmax.f32 %v789, 0.0
        %v822 = vmax.f32 %v790, 0.0
        %v823 = vmax.f32 %v791, 0.0
        %v824 = vmax.f32 %v792, 0.0
        %v825 = vmax.f32 %v793, 0.0
        %v826 = vmax.f32 %v794, 0.0
        %v827 = vmax.f32 %v795, 0.0
        %v828 = vmax.f32 %v796, 0.0
        %v829 = vmax.f32 %v797, 0.0
        %v830 = vmax.f32 %v798, 0.0
        %v831 = vmax.f32 %v799, 0.0
        %v832 = vmax.f32 %v800, 0.0
        %v833 = vmax.f32 %v801, 0.0
        %v834 = vmax.f32 %v802, 0.0
        %v835 = vmax.f32 %v803, 0.0
        %v836 = vmax.f32 %v804, 0.0
        %v837 = vmax.f32 %v805, 0.0
        %v838 = vmax.f32 %v806, 0.0
        %v839 = vmax.f32 %v807, 0.0
        %v840 = vld [vmem:[%s3] sm:$0xf]
        %v841 = vld [vmem:[%s3 + $0x4] sm:$0xf]
        %v842 = vld [vmem:[%s3 + $0x8] sm:$0xf]
        %v843 = vld [vmem:[%s3 + $0xc] sm:$0xf]
        %v844 = vld [vmem:[%s3 + $0x10] sm:$0xf]
        %v845 = vld [vmem:[%s3 + $0x14] sm:$0xf]
        %v846 = vld [vmem:[%s3 + $0x18] sm:$0xf]
        %v847 = vld [vmem:[%s3 + $0x1c] sm:$0xf]
        %v848 = vld [vmem:[%s3 + $0x20] sm:$0xf]
        %v849 = vld [vmem:[%s3 + $0x24] sm:$0xf]
        %v850 = vld [vmem:[%s3 + $0x28] sm:$0xf]
        %v851 = vld [vmem:[%s3 + $0x2c] sm:$0xf]
        %v852 = vld [vmem:[%s3 + $0x30] sm:$0xf]
        %v853 = vld [vmem:[%s3 + $0x34] sm:$0xf]
        %v854 = vld [vmem:[%s3 + $0x38] sm:$0xf]
        %v855 = vld [vmem:[%s3 + $0x3c] sm:$0xf]
        %v856 = vpack.c.bf16 %v812, %v808
        %v857 = vpack.c.bf16 %v813, %v809
        %v858 = vpack.c.bf16 %v814, %v810
        %v859 = vpack.c.bf16 %v815, %v811
        %v860 = vpack.c.bf16 %v820, %v816
        %v861 = vpack.c.bf16 %v821, %v817
        %v862 = vpack.c.bf16 %v822, %v818
        %v863 = vpack.c.bf16 %v823, %v819
        %v864 = vpack.c.bf16 %v828, %v824
        %v865 = vpack.c.bf16 %v829, %v825
        %v866 = vpack.c.bf16 %v830, %v826
        %v867 = vpack.c.bf16 %v831, %v827
        %v868 = vpack.c.bf16 %v836, %v832
        %v869 = vpack.c.bf16 %v837, %v833
        %v870 = vpack.c.bf16 %v838, %v834
        %v871 = vpack.c.bf16 %v839, %v835
        %v872 = vld [vmem:[%s4] sm:$0xff]
        %v873 = vld [vmem:[%s4 + $0x8] sm:$0xff]
        %v874 = vld [vmem:[%s4 + $0x10] sm:$0xff]
        %v875 = vld [vmem:[%s4 + $0x18] sm:$0xff]
        %v876 = vld [vmem:[%s4 + $0x20] sm:$0xff]
        %v877 = vld [vmem:[%s4 + $0x28] sm:$0xff]
        %v878 = vld [vmem:[%s4 + $0x30] sm:$0xff]
        %v879 = vld [vmem:[%s4 + $0x38] sm:$0xff]
        %v880 = vld [vmem:[%s4 + $0x40] sm:$0xff]
        %v881 = vld [vmem:[%s4 + $0x48] sm:$0xff]
        %v882 = vld [vmem:[%s4 + $0x50] sm:$0xff]
        %v883 = vld [vmem:[%s4 + $0x58] sm:$0xff]
        %v884 = vld [vmem:[%s4 + $0x60] sm:$0xff]
        %v885 = vld [vmem:[%s4 + $0x68] sm:$0xff]
        %v886 = vld [vmem:[%s4 + $0x70] sm:$0xff]
        %v887 = vld [vmem:[%s4 + $0x78] sm:$0xff]
        %889 = vset.pattern.permute.xlu0 0
        %890 = vperm.xlu0 %889, %v872
        %v891 = vpop.permute.xlu0 %890
        %894 = vset.pattern.permute.xlu0 0
        %895 = vperm.xlu0 %894, %v873
        %v896 = vpop.permute.xlu0 %895
        %899 = vset.pattern.permute.xlu0 0
        %900 = vperm.xlu0 %899, %v874
        %v901 = vpop.permute.xlu0 %900
        %904 = vset.pattern.permute.xlu0 0
        %905 = vperm.xlu0 %904, %v875
        %v906 = vpop.permute.xlu0 %905
        %909 = vset.pattern.permute.xlu0 0
        %910 = vperm.xlu0 %909, %v876
        %v911 = vpop.permute.xlu0 %910
        %914 = vset.pattern.permute.xlu0 0
        %915 = vperm.xlu0 %914, %v877
        %v916 = vpop.permute.xlu0 %915
        %919 = vset.pattern.permute.xlu0 0
        %920 = vperm.xlu0 %919, %v878
        %v921 = vpop.permute.xlu0 %920
        %924 = vset.pattern.permute.xlu0 0
        %925 = vperm.xlu0 %924, %v879
        %v926 = vpop.permute.xlu0 %925
        %929 = vset.pattern.permute.xlu0 0
        %930 = vperm.xlu0 %929, %v880
        %v931 = vpop.permute.xlu0 %930
        %934 = vset.pattern.permute.xlu0 0
        %935 = vperm.xlu0 %934, %v881
        %v936 = vpop.permute.xlu0 %935
        %939 = vset.pattern.permute.xlu0 0
        %940 = vperm.xlu0 %939, %v882
        %v941 = vpop.permute.xlu0 %940
        %944 = vset.pattern.permute.xlu0 0
        %945 = vperm.xlu0 %944, %v883
        %v946 = vpop.permute.xlu0 %945
        %949 = vset.pattern.permute.xlu0 0
        %950 = vperm.xlu0 %949, %v884
        %v951 = vpop.permute.xlu0 %950
        %954 = vset.pattern.permute.xlu0 0
        %955 = vperm.xlu0 %954, %v885
        %v956 = vpop.permute.xlu0 %955
        %959 = vset.pattern.permute.xlu0 0
        %960 = vperm.xlu0 %959, %v886
        %v961 = vpop.permute.xlu0 %960
        %964 = vset.pattern.permute.xlu0 0
        %965 = vperm.xlu0 %964, %v887
        %v966 = vpop.permute.xlu0 %965
        %v984 = vunpack.c.l.b16 %v840
        %v985 = vunpack.c.l.b16 %v841
        %v986 = vunpack.c.l.b16 %v842
        %v987 = vunpack.c.l.b16 %v843
        %v988 = vunpack.c.l.b16 %v844
        %v989 = vunpack.c.l.b16 %v845
        %v990 = vunpack.c.l.b16 %v846
        %v991 = vunpack.c.l.b16 %v847
        %v992 = vunpack.c.l.b16 %v848
        %v993 = vunpack.c.l.b16 %v849
        %v994 = vunpack.c.l.b16 %v850
        %v995 = vunpack.c.l.b16 %v851
        %v996 = vunpack.c.l.b16 %v852
        %v997 = vunpack.c.l.b16 %v853
        %v998 = vunpack.c.l.b16 %v854
        %v999 = vunpack.c.l.b16 %v855
        %v1000 = vpack.c.b16 %v985, %v984
        %v1001 = vpack.c.b16 %v987, %v986
        %v1002 = vpack.c.b16 %v989, %v988
        %v1003 = vpack.c.b16 %v991, %v990
        %v1004 = vpack.c.b16 %v993, %v992
        %v1005 = vpack.c.b16 %v995, %v994
        %v1006 = vpack.c.b16 %v997, %v996
        %v1007 = vpack.c.b16 %v999, %v998
        %vm1008 = vcmask 523264
        %v1010 = vsel %vm1008, %v1000, 0
        %v1013 = vsel %vm1008, %v1001, 0
        %v1016 = vsel %vm1008, %v1002, 0
        %v1019 = vsel %vm1008, %v1003, 0
        %v1022 = vsel %vm1008, %v1004, 0
        %v1025 = vsel %vm1008, %v1005, 0
        %v1028 = vsel %vm1008, %v1006, 0
        %v1031 = vsel %vm1008, %v1007, 0
        %1033 = vmatprep.subr.bf16.mxu0 %v857
        %1034 = vmatpush1.bf16.msra.mxu0 %v856
        %1035 = vmatprep.subr.bf16.mxu0 %v861
        %1036 = vmatpush1.bf16.msra.mxu0 %v860
        %1037 = vmatprep.subr.bf16.mxu0 %v865
        %1038 = vmatpush1.bf16.msra.mxu0 %v864
        %1039 = vmatprep.subr.bf16.mxu0 %v869
        %1040 = vmatpush1.bf16.msra.mxu0 %v868
        %1041 = vmatprep.subr.bf16.mxu0 0
        %1042 = vmatpush1.bf16.msra.mxu0 0
        %1043 = vmatprep.subr.bf16.mxu0 0
        %1044 = vmatpush1.bf16.msra.mxu0 0
        %1045 = vmatprep.subr.bf16.mxu0 0
        %1046 = vmatpush1.bf16.msra.mxu0 0
        %1047 = vmatprep.subr.bf16.mxu0 0
        %1048 = vmatpush1.bf16.msra.mxu0 0
        %1049 = vmatprep.subr.bf16.mxu0 0
        %1050 = vmatpush1.bf16.msra.mxu0 0
        %1051 = vmatprep.subr.bf16.mxu0 0
        %1052 = vmatpush1.bf16.msra.mxu0 0
        %1053 = vmatprep.subr.bf16.mxu0 0
        %1054 = vmatpush1.bf16.msra.mxu0 0
        %1055 = vmatprep.subr.bf16.mxu0 0
        %1056 = vmatpush1.bf16.msra.mxu0 0
        %1057 = vmatprep.subr.bf16.mxu0 0
        %1058 = vmatpush1.bf16.msra.mxu0 0
        %1059 = vmatprep.subr.bf16.mxu0 0
        %1060 = vmatpush1.bf16.msra.mxu0 0
        %1061 = vmatprep.subr.bf16.mxu0 0
        %1062 = vmatpush1.bf16.msra.mxu0 0
        %1063 = vmatprep.subr.bf16.mxu0 0
        %1064 = vmatpush1.bf16.msra.mxu0 0
        %1065 = vmatprep.mubr.bf16.mxu0 0
        %1066 = vmatmul.mubr.bf16.gmra.mrb[0].mxu0 %v1010
        %v1067 = vpop.f32.mrb[0].mxu0
        %v1068 = vadd.f32 %v891, %v1067
        %v1069 = vpop.f32.mrb[0].mxu0
        %v1070 = vadd.f32 %v891, %v1069
        %v1071 = vpop.f32.mrb[0].mxu0
        %v1072 = vadd.f32 %v896, %v1071
        %v1073 = vpop.f32.mrb[0].mxu0
        %v1074 = vadd.f32 %v896, %v1073
        %1075 = vmatprep.mubr.bf16.mxu0 0
        %1076 = vmatmul.mubr.bf16.gmra.mrb[0].mxu0 %v1013
        %v1077 = vpop.f32.mrb[0].mxu0
        %v1078 = vadd.f32 %v901, %v1077
        %v1079 = vpop.f32.mrb[0].mxu0
        %v1080 = vadd.f32 %v901, %v1079
        %v1081 = vpop.f32.mrb[0].mxu0
        %v1082 = vadd.f32 %v906, %v1081
        %v1083 = vpop.f32.mrb[0].mxu0
        %v1084 = vadd.f32 %v906, %v1083
        %1085 = vmatprep.mubr.bf16.mxu0 0
        %1086 = vmatmul.mubr.bf16.gmra.mrb[0].mxu0 %v1016
        %v1087 = vpop.f32.mrb[0].mxu0
        %v1088 = vadd.f32 %v911, %v1087
        %v1089 = vpop.f32.mrb[0].mxu0
        %v1090 = vadd.f32 %v911, %v1089
        %v1091 = vpop.f32.mrb[0].mxu0
        %v1092 = vadd.f32 %v916, %v1091
        %v1093 = vpop.f32.mrb[0].mxu0
        %v1094 = vadd.f32 %v916, %v1093
        %1095 = vmatprep.mubr.bf16.mxu0 0
        %1096 = vmatmul.mubr.bf16.gmra.mrb[0].mxu0 %v1019
        %v1097 = vpop.f32.mrb[0].mxu0
        %v1098 = vadd.f32 %v921, %v1097
        %v1099 = vpop.f32.mrb[0].mxu0
        %v1100 = vadd.f32 %v921, %v1099
        %v1101 = vpop.f32.mrb[0].mxu0
        %v1102 = vadd.f32 %v926, %v1101
        %v1103 = vpop.f32.mrb[0].mxu0
        %v1104 = vadd.f32 %v926, %v1103
        %1105 = vmatprep.mubr.bf16.mxu0 0
        %1106 = vmatmul.mubr.bf16.gmra.mrb[0].mxu0 %v1022
        %v1107 = vpop.f32.mrb[0].mxu0
        %v1108 = vadd.f32 %v931, %v1107
        %v1109 = vpop.f32.mrb[0].mxu0
        %v1110 = vadd.f32 %v931, %v1109
        %v1111 = vpop.f32.mrb[0].mxu0
        %v1112 = vadd.f32 %v936, %v1111
        %v1113 = vpop.f32.mrb[0].mxu0
        %v1114 = vadd.f32 %v936, %v1113
        %1115 = vmatprep.mubr.bf16.mxu0 0
        %1116 = vmatmul.mubr.bf16.gmra.mrb[0].mxu0 %v1025
        %v1117 = vpop.f32.mrb[0].mxu0
        %v1118 = vadd.f32 %v941, %v1117
        %v1119 = vpop.f32.mrb[0].mxu0
        %v1120 = vadd.f32 %v941, %v1119
        %v1121 = vpop.f32.mrb[0].mxu0
        %v1122 = vadd.f32 %v946, %v1121
        %v1123 = vpop.f32.mrb[0].mxu0
        %v1124 = vadd.f32 %v946, %v1123
        %1125 = vmatprep.mubr.bf16.mxu0 0
        %1126 = vmatmul.mubr.bf16.gmra.mrb[0].mxu0 %v1028
        %v1127 = vpop.f32.mrb[0].mxu0
        %v1128 = vadd.f32 %v951, %v1127
        %v1129 = vpop.f32.mrb[0].mxu0
        %v1130 = vadd.f32 %v951, %v1129
        %v1131 = vpop.f32.mrb[0].mxu0
        %v1132 = vadd.f32 %v956, %v1131
        %v1133 = vpop.f32.mrb[0].mxu0
        %v1134 = vadd.f32 %v956, %v1133
        %1135 = vmatprep.mubr.bf16.mxu0 0
        %1136 = vmatmul.mubr.bf16.gmra.mrb[0].mxu0 %v1031
        %v1137 = vpop.f32.mrb[0].mxu0
        %v1138 = vadd.f32 %v961, %v1137
        %v1139 = vpop.f32.mrb[0].mxu0
        %v1140 = vadd.f32 %v961, %v1139
        %v1141 = vpop.f32.mrb[0].mxu0
        %v1142 = vadd.f32 %v966, %v1141
        %v1143 = vpop.f32.mrb[0].mxu0
        %v1144 = vadd.f32 %v966, %v1143
        %1145 = vdwg.mxu0
        %1146 = vmatprep.subr.bf16.mxu0 %v859
        %1147 = vmatpush1.bf16.msra.mxu0 %v858
        %1148 = vmatprep.subr.bf16.mxu0 %v863
        %1149 = vmatpush1.bf16.msra.mxu0 %v862
        %1150 = vmatprep.subr.bf16.mxu0 %v867
        %1151 = vmatpush1.bf16.msra.mxu0 %v866
        %1152 = vmatprep.subr.bf16.mxu0 %v871
        %1153 = vmatpush1.bf16.msra.mxu0 %v870
        %1154 = vmatprep.subr.bf16.mxu0 0
        %1155 = vmatpush1.bf16.msra.mxu0 0
        %1156 = vmatprep.subr.bf16.mxu0 0
        %1157 = vmatpush1.bf16.msra.mxu0 0
        %1158 = vmatprep.subr.bf16.mxu0 0
        %1159 = vmatpush1.bf16.msra.mxu0 0
        %1160 = vmatprep.subr.bf16.mxu0 0
        %1161 = vmatpush1.bf16.msra.mxu0 0
        %1162 = vmatprep.subr.bf16.mxu0 0
        %1163 = vmatpush1.bf16.msra.mxu0 0
        %1164 = vmatprep.subr.bf16.mxu0 0
        %1165 = vmatpush1.bf16.msra.mxu0 0
        %1166 = vmatprep.subr.bf16.mxu0 0
        %1167 = vmatpush1.bf16.msra.mxu0 0
        %1168 = vmatprep.subr.bf16.mxu0 0
        %1169 = vmatpush1.bf16.msra.mxu0 0
        %1170 = vmatprep.subr.bf16.mxu0 0
        %1171 = vmatpush1.bf16.msra.mxu0 0
        %1172 = vmatprep.subr.bf16.mxu0 0
        %1173 = vmatpush1.bf16.msra.mxu0 0
        %1174 = vmatprep.subr.bf16.mxu0 0
        %1175 = vmatpush1.bf16.msra.mxu0 0
        %1176 = vmatprep.subr.bf16.mxu0 0
        %1177 = vmatpush1.bf16.msra.mxu0 0
        %1178 = vmatprep.mubr.bf16.mxu0 0
        %1179 = vmatmul.mubr.bf16.gmra.mrb[0].mxu0 %v1010
        %v1180 = vpop.f32.mrb[0].mxu0
        %v1181 = vadd.f32 %v891, %v1180
        %v1182 = vpop.f32.mrb[0].mxu0
        %v1183 = vadd.f32 %v891, %v1182
        %v1184 = vpop.f32.mrb[0].mxu0
        %v1185 = vadd.f32 %v896, %v1184
        %v1186 = vpop.f32.mrb[0].mxu0
        %v1187 = vadd.f32 %v896, %v1186
        %1188 = vmatprep.mubr.bf16.mxu0 0
        %1189 = vmatmul.mubr.bf16.gmra.mrb[0].mxu0 %v1013
        %v1190 = vpop.f32.mrb[0].mxu0
        %v1191 = vadd.f32 %v901, %v1190
        %v1192 = vpop.f32.mrb[0].mxu0
        %v1193 = vadd.f32 %v901, %v1192
        %v1194 = vpop.f32.mrb[0].mxu0
        %v1195 = vadd.f32 %v906, %v1194
        %v1196 = vpop.f32.mrb[0].mxu0
        %v1197 = vadd.f32 %v906, %v1196
        %1198 = vmatprep.mubr.bf16.mxu0 0
        %1199 = vmatmul.mubr.bf16.gmra.mrb[0].mxu0 %v1016
        %v1200 = vpop.f32.mrb[0].mxu0
        %v1201 = vadd.f32 %v911, %v1200
        %v1202 = vpop.f32.mrb[0].mxu0
        %v1203 = vadd.f32 %v911, %v1202
        %v1204 = vpop.f32.mrb[0].mxu0
        %v1205 = vadd.f32 %v916, %v1204
        %v1206 = vpop.f32.mrb[0].mxu0
        %v1207 = vadd.f32 %v916, %v1206
        %1208 = vmatprep.mubr.bf16.mxu0 0
        %1209 = vmatmul.mubr.bf16.gmra.mrb[0].mxu0 %v1019
        %v1210 = vpop.f32.mrb[0].mxu0
        %v1211 = vadd.f32 %v921, %v1210
        %v1212 = vpop.f32.mrb[0].mxu0
        %v1213 = vadd.f32 %v921, %v1212
        %v1214 = vpop.f32.mrb[0].mxu0
        %v1215 = vadd.f32 %v926, %v1214
        %v1216 = vpop.f32.mrb[0].mxu0
        %v1217 = vadd.f32 %v926, %v1216
        %1218 = vmatprep.mubr.bf16.mxu0 0
        %1219 = vmatmul.mubr.bf16.gmra.mrb[0].mxu0 %v1022
        %v1220 = vpop.f32.mrb[0].mxu0
        %v1221 = vadd.f32 %v931, %v1220
        %v1222 = vpop.f32.mrb[0].mxu0
        %v1223 = vadd.f32 %v931, %v1222
        %v1224 = vpop.f32.mrb[0].mxu0
        %v1225 = vadd.f32 %v936, %v1224
        %v1226 = vpop.f32.mrb[0].mxu0
        %v1227 = vadd.f32 %v936, %v1226
        %1228 = vmatprep.mubr.bf16.mxu0 0
        %1229 = vmatmul.mubr.bf16.gmra.mrb[0].mxu0 %v1025
        %v1230 = vpop.f32.mrb[0].mxu0
        %v1231 = vadd.f32 %v941, %v1230
        %v1232 = vpop.f32.mrb[0].mxu0
        %v1233 = vadd.f32 %v941, %v1232
        %v1234 = vpop.f32.mrb[0].mxu0
        %v1235 = vadd.f32 %v946, %v1234
        %v1236 = vpop.f32.mrb[0].mxu0
        %v1237 = vadd.f32 %v946, %v1236
        %1238 = vmatprep.mubr.bf16.mxu0 0
        %1239 = vmatmul.mubr.bf16.gmra.mrb[0].mxu0 %v1028
        %v1240 = vpop.f32.mrb[0].mxu0
        %v1241 = vadd.f32 %v951, %v1240
        %v1242 = vpop.f32.mrb[0].mxu0
        %v1243 = vadd.f32 %v951, %v1242
        %v1244 = vpop.f32.mrb[0].mxu0
        %v1245 = vadd.f32 %v956, %v1244
        %v1246 = vpop.f32.mrb[0].mxu0
        %v1247 = vadd.f32 %v956, %v1246
        %1248 = vmatprep.mubr.bf16.mxu0 0
        %1249 = vmatmul.mubr.bf16.gmra.mrb[0].mxu0 %v1031
        %v1250 = vpop.f32.mrb[0].mxu0
        %v1251 = vadd.f32 %v961, %v1250
        %v1252 = vpop.f32.mrb[0].mxu0
        %v1253 = vadd.f32 %v961, %v1252
        %v1254 = vpop.f32.mrb[0].mxu0
        %v1255 = vadd.f32 %v966, %v1254
        %v1256 = vpop.f32.mrb[0].mxu0
        %v1257 = vadd.f32 %v966, %v1256
        %1258 = vdwg.mxu0
        %v1259 = vmax.f32 %v1068, 0.0
        %v1260 = vmax.f32 %v1070, 0.0
        %v1261 = vmax.f32 %v1181, 0.0
        %v1262 = vmax.f32 %v1183, 0.0
        %v1263 = vmax.f32 %v1072, 0.0
        %v1264 = vmax.f32 %v1074, 0.0
        %v1265 = vmax.f32 %v1185, 0.0
        %v1266 = vmax.f32 %v1187, 0.0
        %v1267 = vmax.f32 %v1078, 0.0
        %v1268 = vmax.f32 %v1080, 0.0
        %v1269 = vmax.f32 %v1191, 0.0
        %v1270 = vmax.f32 %v1193, 0.0
        %v1271 = vmax.f32 %v1082, 0.0
        %v1272 = vmax.f32 %v1084, 0.0
        %v1273 = vmax.f32 %v1195, 0.0
        %v1274 = vmax.f32 %v1197, 0.0
        %v1275 = vmax.f32 %v1088, 0.0
        %v1276 = vmax.f32 %v1090, 0.0
        %v1277 = vmax.f32 %v1201, 0.0
        %v1278 = vmax.f32 %v1203, 0.0
        %v1279 = vmax.f32 %v1092, 0.0
        %v1280 = vmax.f32 %v1094, 0.0
        %v1281 = vmax.f32 %v1205, 0.0
        %v1282 = vmax.f32 %v1207, 0.0
        %v1283 = vmax.f32 %v1098, 0.0
        %v1284 = vmax.f32 %v1100, 0.0
        %v1285 = vmax.f32 %v1211, 0.0
        %v1286 = vmax.f32 %v1213, 0.0
        %v1287 = vmax.f32 %v1102, 0.0
        %v1288 = vmax.f32 %v1104, 0.0
        %v1289 = vmax.f32 %v1215, 0.0
        %v1290 = vmax.f32 %v1217, 0.0
        %v1291 = vmax.f32 %v1108, 0.0
        %v1292 = vmax.f32 %v1110, 0.0
        %v1293 = vmax.f32 %v1221, 0.0
        %v1294 = vmax.f32 %v1223, 0.0
        %v1295 = vmax.f32 %v1112, 0.0
        %v1296 = vmax.f32 %v1114, 0.0
        %v1297 = vmax.f32 %v1225, 0.0
        %v1298 = vmax.f32 %v1227, 0.0
        %v1299 = vmax.f32 %v1118, 0.0
        %v1300 = vmax.f32 %v1120, 0.0
        %v1301 = vmax.f32 %v1231, 0.0
        %v1302 = vmax.f32 %v1233, 0.0
        %v1303 = vmax.f32 %v1122, 0.0
        %v1304 = vmax.f32 %v1124, 0.0
        %v1305 = vmax.f32 %v1235, 0.0
        %v1306 = vmax.f32 %v1237, 0.0
        %v1307 = vmax.f32 %v1128, 0.0
        %v1308 = vmax.f32 %v1130, 0.0
        %v1309 = vmax.f32 %v1241, 0.0
        %v1310 = vmax.f32 %v1243, 0.0
        %v1311 = vmax.f32 %v1132, 0.0
        %v1312 = vmax.f32 %v1134, 0.0
        %v1313 = vmax.f32 %v1245, 0.0
        %v1314 = vmax.f32 %v1247, 0.0
        %v1315 = vmax.f32 %v1138, 0.0
        %v1316 = vmax.f32 %v1140, 0.0
        %v1317 = vmax.f32 %v1251, 0.0
        %v1318 = vmax.f32 %v1253, 0.0
        %v1319 = vmax.f32 %v1142, 0.0
        %v1320 = vmax.f32 %v1144, 0.0
        %v1321 = vmax.f32 %v1255, 0.0
        %v1322 = vmax.f32 %v1257, 0.0
        %v1323 = vld [vmem:[#allocation2] sm:$0xf]
        %v1324 = vld [vmem:[#allocation2 + $0x4] sm:$0xf]
        %v1325 = vld [vmem:[#allocation2 + $0x8] sm:$0xf]
        %v1326 = vld [vmem:[#allocation2 + $0xc] sm:$0xf]
        %v1327 = vld [vmem:[#allocation2 + $0x10] sm:$0xf]
        %v1328 = vld [vmem:[#allocation2 + $0x14] sm:$0xf]
        %v1329 = vld [vmem:[#allocation2 + $0x18] sm:$0xf]
        %v1330 = vld [vmem:[#allocation2 + $0x1c] sm:$0xf]
        %v1331 = vld [vmem:[#allocation2 + $0x20] sm:$0xf]
        %v1332 = vld [vmem:[#allocation2 + $0x24] sm:$0xf]
        %v1333 = vld [vmem:[#allocation2 + $0x28] sm:$0xf]
        %v1334 = vld [vmem:[#allocation2 + $0x2c] sm:$0xf]
        %v1335 = vld [vmem:[#allocation2 + $0x30] sm:$0xf]
        %v1336 = vld [vmem:[#allocation2 + $0x34] sm:$0xf]
        %v1337 = vld [vmem:[#allocation2 + $0x38] sm:$0xf]
        %v1338 = vld [vmem:[#allocation2 + $0x3c] sm:$0xf]
        %v1339 = vpack.c.bf16 %v1263, %v1259
        %v1340 = vpack.c.bf16 %v1264, %v1260
        %v1341 = vpack.c.bf16 %v1265, %v1261
        %v1342 = vpack.c.bf16 %v1266, %v1262
        %v1343 = vpack.c.bf16 %v1271, %v1267
        %v1344 = vpack.c.bf16 %v1272, %v1268
        %v1345 = vpack.c.bf16 %v1273, %v1269
        %v1346 = vpack.c.bf16 %v1274, %v1270
        %v1347 = vpack.c.bf16 %v1279, %v1275
        %v1348 = vpack.c.bf16 %v1280, %v1276
        %v1349 = vpack.c.bf16 %v1281, %v1277
        %v1350 = vpack.c.bf16 %v1282, %v1278
        %v1351 = vpack.c.bf16 %v1287, %v1283
        %v1352 = vpack.c.bf16 %v1288, %v1284
        %v1353 = vpack.c.bf16 %v1289, %v1285
        %v1354 = vpack.c.bf16 %v1290, %v1286
        %v1355 = vpack.c.bf16 %v1295, %v1291
        %v1356 = vpack.c.bf16 %v1296, %v1292
        %v1357 = vpack.c.bf16 %v1297, %v1293
        %v1358 = vpack.c.bf16 %v1298, %v1294
        %v1359 = vpack.c.bf16 %v1303, %v1299
        %v1360 = vpack.c.bf16 %v1304, %v1300
        %v1361 = vpack.c.bf16 %v1305, %v1301
        %v1362 = vpack.c.bf16 %v1306, %v1302
        %v1363 = vpack.c.bf16 %v1311, %v1307
        %v1364 = vpack.c.bf16 %v1312, %v1308
        %v1365 = vpack.c.bf16 %v1313, %v1309
        %v1366 = vpack.c.bf16 %v1314, %v1310
        %v1367 = vpack.c.bf16 %v1319, %v1315
        %v1368 = vpack.c.bf16 %v1320, %v1316
        %v1369 = vpack.c.bf16 %v1321, %v1317
        %v1370 = vpack.c.bf16 %v1322, %v1318
        %v1371 = vld [vmem:[%s6] sm:$0xff]
        %v1372 = vld [vmem:[%s6 + $0x8] sm:$0xff]
        %v1373 = vld [vmem:[%s6 + $0x10] sm:$0xff]
        %v1374 = vld [vmem:[%s6 + $0x18] sm:$0xff]
        %v1375 = vld [vmem:[%s6 + $0x20] sm:$0xff]
        %v1376 = vld [vmem:[%s6 + $0x28] sm:$0xff]
        %v1377 = vld [vmem:[%s6 + $0x30] sm:$0xff]
        %v1378 = vld [vmem:[%s6 + $0x38] sm:$0xff]
        %v1379 = vld [vmem:[%s6 + $0x40] sm:$0xff]
        %v1380 = vld [vmem:[%s6 + $0x48] sm:$0xff]
        %v1381 = vld [vmem:[%s6 + $0x50] sm:$0xff]
        %v1382 = vld [vmem:[%s6 + $0x58] sm:$0xff]
        %v1383 = vld [vmem:[%s6 + $0x60] sm:$0xff]
        %v1384 = vld [vmem:[%s6 + $0x68] sm:$0xff]
        %v1385 = vld [vmem:[%s6 + $0x70] sm:$0xff]
        %v1386 = vld [vmem:[%s6 + $0x78] sm:$0xff]
        %1388 = vset.pattern.permute.xlu0 0
        %1389 = vperm.xlu0 %1388, %v1371
        %v1390 = vpop.permute.xlu0 %1389
        %1393 = vset.pattern.permute.xlu0 0
        %1394 = vperm.xlu0 %1393, %v1372
        %v1395 = vpop.permute.xlu0 %1394
        %1398 = vset.pattern.permute.xlu0 0
        %1399 = vperm.xlu0 %1398, %v1373
        %v1400 = vpop.permute.xlu0 %1399
        %1403 = vset.pattern.permute.xlu0 0
        %1404 = vperm.xlu0 %1403, %v1374
        %v1405 = vpop.permute.xlu0 %1404
        %1408 = vset.pattern.permute.xlu0 0
        %1409 = vperm.xlu0 %1408, %v1375
        %v1410 = vpop.permute.xlu0 %1409
        %1413 = vset.pattern.permute.xlu0 0
        %1414 = vperm.xlu0 %1413, %v1376
        %v1415 = vpop.permute.xlu0 %1414
        %1418 = vset.pattern.permute.xlu0 0
        %1419 = vperm.xlu0 %1418, %v1377
        %v1420 = vpop.permute.xlu0 %1419
        %1423 = vset.pattern.permute.xlu0 0
        %1424 = vperm.xlu0 %1423, %v1378
        %v1425 = vpop.permute.xlu0 %1424
        %1428 = vset.pattern.permute.xlu0 0
        %1429 = vperm.xlu0 %1428, %v1379
        %v1430 = vpop.permute.xlu0 %1429
        %1433 = vset.pattern.permute.xlu0 0
        %1434 = vperm.xlu0 %1433, %v1380
        %v1435 = vpop.permute.xlu0 %1434
        %1438 = vset.pattern.permute.xlu0 0
        %1439 = vperm.xlu0 %1438, %v1381
        %v1440 = vpop.permute.xlu0 %1439
        %1443 = vset.pattern.permute.xlu0 0
        %1444 = vperm.xlu0 %1443, %v1382
        %v1445 = vpop.permute.xlu0 %1444
        %1448 = vset.pattern.permute.xlu0 0
        %1449 = vperm.xlu0 %1448, %v1383
        %v1450 = vpop.permute.xlu0 %1449
        %1453 = vset.pattern.permute.xlu0 0
        %1454 = vperm.xlu0 %1453, %v1384
        %v1455 = vpop.permute.xlu0 %1454
        %1458 = vset.pattern.permute.xlu0 0
        %1459 = vperm.xlu0 %1458, %v1385
        %v1460 = vpop.permute.xlu0 %1459
        %1463 = vset.pattern.permute.xlu0 0
        %1464 = vperm.xlu0 %1463, %v1386
        %v1465 = vpop.permute.xlu0 %1464
        %v1483 = vunpack.c.l.b16 %v1323
        %v1484 = vunpack.c.l.b16 %v1324
        %v1485 = vunpack.c.l.b16 %v1325
        %v1486 = vunpack.c.l.b16 %v1326
        %v1487 = vunpack.c.l.b16 %v1327
        %v1488 = vunpack.c.l.b16 %v1328
        %v1489 = vunpack.c.l.b16 %v1329
        %v1490 = vunpack.c.l.b16 %v1330
        %v1491 = vunpack.c.l.b16 %v1331
        %v1492 = vunpack.c.l.b16 %v1332
        %v1493 = vunpack.c.l.b16 %v1333
        %v1494 = vunpack.c.l.b16 %v1334
        %v1495 = vunpack.c.l.b16 %v1335
        %v1496 = vunpack.c.l.b16 %v1336
        %v1497 = vunpack.c.l.b16 %v1337
        %v1498 = vunpack.c.l.b16 %v1338
        %v1499 = vpack.c.b16 %v1484, %v1483
        %v1500 = vpack.c.b16 %v1486, %v1485
        %v1501 = vpack.c.b16 %v1488, %v1487
        %v1502 = vpack.c.b16 %v1490, %v1489
        %v1503 = vpack.c.b16 %v1492, %v1491
        %v1504 = vpack.c.b16 %v1494, %v1493
        %v1505 = vpack.c.b16 %v1496, %v1495
        %v1506 = vpack.c.b16 %v1498, %v1497
        %1515 = vmatprep.subr.bf16.mxu0 %v1340
        %1516 = vmatpush1.bf16.msra.mxu0 %v1339
        %1517 = vmatprep.subr.bf16.mxu0 %v1344
        %1518 = vmatpush1.bf16.msra.mxu0 %v1343
        %1519 = vmatprep.subr.bf16.mxu0 %v1348
        %1520 = vmatpush1.bf16.msra.mxu0 %v1347
        %1521 = vmatprep.subr.bf16.mxu0 %v1352
        %1522 = vmatpush1.bf16.msra.mxu0 %v1351
        %1523 = vmatprep.subr.bf16.mxu0 %v1356
        %1524 = vmatpush1.bf16.msra.mxu0 %v1355
        %1525 = vmatprep.subr.bf16.mxu0 %v1360
        %1526 = vmatpush1.bf16.msra.mxu0 %v1359
        %1527 = vmatprep.subr.bf16.mxu0 %v1364
        %1528 = vmatpush1.bf16.msra.mxu0 %v1363
        %1529 = vmatprep.subr.bf16.mxu0 %v1368
        %1530 = vmatpush1.bf16.msra.mxu0 %v1367
        %1531 = vmatprep.subr.bf16.mxu0 0
        %1532 = vmatpush1.bf16.msra.mxu0 0
        %1533 = vmatprep.subr.bf16.mxu0 0
        %1534 = vmatpush1.bf16.msra.mxu0 0
        %1535 = vmatprep.subr.bf16.mxu0 0
        %1536 = vmatpush1.bf16.msra.mxu0 0
        %1537 = vmatprep.subr.bf16.mxu0 0
        %1538 = vmatpush1.bf16.msra.mxu0 0
        %1539 = vmatprep.subr.bf16.mxu0 0
        %1540 = vmatpush1.bf16.msra.mxu0 0
        %1541 = vmatprep.subr.bf16.mxu0 0
        %1542 = vmatpush1.bf16.msra.mxu0 0
        %1543 = vmatprep.subr.bf16.mxu0 0
        %1544 = vmatpush1.bf16.msra.mxu0 0
        %1545 = vmatprep.subr.bf16.mxu0 0
        %1546 = vmatpush1.bf16.msra.mxu0 0
        %1547 = vmatprep.mubr.bf16.mxu0 0
        %1548 = vmatmul.mubr.bf16.gmra.mrb[0].mxu0 %v1499
        %v1549 = vpop.f32.mrb[0].mxu0
        %v1550 = vadd.f32 %v1390, %v1549
        %v1551 = vpop.f32.mrb[0].mxu0
        %v1552 = vadd.f32 %v1390, %v1551
        %v1553 = vpop.f32.mrb[0].mxu0
        %v1554 = vadd.f32 %v1395, %v1553
        %v1555 = vpop.f32.mrb[0].mxu0
        %v1556 = vadd.f32 %v1395, %v1555
        %1557 = vmatprep.mubr.bf16.mxu0 0
        %1558 = vmatmul.mubr.bf16.gmra.mrb[0].mxu0 %v1500
        %v1559 = vpop.f32.mrb[0].mxu0
        %v1560 = vadd.f32 %v1400, %v1559
        %v1561 = vpop.f32.mrb[0].mxu0
        %v1562 = vadd.f32 %v1400, %v1561
        %v1563 = vpop.f32.mrb[0].mxu0
        %v1564 = vadd.f32 %v1405, %v1563
        %v1565 = vpop.f32.mrb[0].mxu0
        %v1566 = vadd.f32 %v1405, %v1565
        %1567 = vmatprep.mubr.bf16.mxu0 0
        %1568 = vmatmul.mubr.bf16.gmra.mrb[0].mxu0 %v1501
        %v1569 = vpop.f32.mrb[0].mxu0
        %v1570 = vadd.f32 %v1410, %v1569
        %v1571 = vpop.f32.mrb[0].mxu0
        %v1572 = vadd.f32 %v1410, %v1571
        %v1573 = vpop.f32.mrb[0].mxu0
        %v1574 = vadd.f32 %v1415, %v1573
        %v1575 = vpop.f32.mrb[0].mxu0
        %v1576 = vadd.f32 %v1415, %v1575
        %1577 = vmatprep.mubr.bf16.mxu0 0
        %1578 = vmatmul.mubr.bf16.gmra.mrb[0].mxu0 %v1502
        %v1579 = vpop.f32.mrb[0].mxu0
        %v1580 = vadd.f32 %v1420, %v1579
        %v1581 = vpop.f32.mrb[0].mxu0
        %v1582 = vadd.f32 %v1420, %v1581
        %v1583 = vpop.f32.mrb[0].mxu0
        %v1584 = vadd.f32 %v1425, %v1583
        %v1585 = vpop.f32.mrb[0].mxu0
        %v1586 = vadd.f32 %v1425, %v1585
        %1587 = vmatprep.mubr.bf16.mxu0 0
        %1588 = vmatmul.mubr.bf16.gmra.mrb[0].mxu0 %v1503
        %v1589 = vpop.f32.mrb[0].mxu0
        %v1590 = vadd.f32 %v1430, %v1589
        %v1591 = vpop.f32.mrb[0].mxu0
        %v1592 = vadd.f32 %v1430, %v1591
        %v1593 = vpop.f32.mrb[0].mxu0
        %v1594 = vadd.f32 %v1435, %v1593
        %v1595 = vpop.f32.mrb[0].mxu0
        %v1596 = vadd.f32 %v1435, %v1595
        %1597 = vmatprep.mubr.bf16.mxu0 0
        %1598 = vmatmul.mubr.bf16.gmra.mrb[0].mxu0 %v1504
        %v1599 = vpop.f32.mrb[0].mxu0
        %v1600 = vadd.f32 %v1440, %v1599
        %v1601 = vpop.f32.mrb[0].mxu0
        %v1602 = vadd.f32 %v1440, %v1601
        %v1603 = vpop.f32.mrb[0].mxu0
        %v1604 = vadd.f32 %v1445, %v1603
        %v1605 = vpop.f32.mrb[0].mxu0
        %v1606 = vadd.f32 %v1445, %v1605
        %1607 = vmatprep.mubr.bf16.mxu0 0
        %1608 = vmatmul.mubr.bf16.gmra.mrb[0].mxu0 %v1505
        %v1609 = vpop.f32.mrb[0].mxu0
        %v1610 = vadd.f32 %v1450, %v1609
        %v1611 = vpop.f32.mrb[0].mxu0
        %v1612 = vadd.f32 %v1450, %v1611
        %v1613 = vpop.f32.mrb[0].mxu0
        %v1614 = vadd.f32 %v1455, %v1613
        %v1615 = vpop.f32.mrb[0].mxu0
        %v1616 = vadd.f32 %v1455, %v1615
        %1617 = vmatprep.mubr.bf16.mxu0 0
        %1618 = vmatmul.mubr.bf16.gmra.mrb[0].mxu0 %v1506
        %v1619 = vpop.f32.mrb[0].mxu0
        %v1620 = vadd.f32 %v1460, %v1619
        %v1621 = vpop.f32.mrb[0].mxu0
        %v1622 = vadd.f32 %v1460, %v1621
        %v1623 = vpop.f32.mrb[0].mxu0
        %v1624 = vadd.f32 %v1465, %v1623
        %v1625 = vpop.f32.mrb[0].mxu0
        %v1626 = vadd.f32 %v1465, %v1625
        %1627 = vdwg.mxu0
        %1628 = vmatprep.subr.bf16.mxu0 %v1342
        %1629 = vmatpush1.bf16.msra.mxu0 %v1341
        %1630 = vmatprep.subr.bf16.mxu0 %v1346
        %1631 = vmatpush1.bf16.msra.mxu0 %v1345
        %1632 = vmatprep.subr.bf16.mxu0 %v1350
        %1633 = vmatpush1.bf16.msra.mxu0 %v1349
        %1634 = vmatprep.subr.bf16.mxu0 %v1354
        %1635 = vmatpush1.bf16.msra.mxu0 %v1353
        %1636 = vmatprep.subr.bf16.mxu0 %v1358
        %1637 = vmatpush1.bf16.msra.mxu0 %v1357
        %1638 = vmatprep.subr.bf16.mxu0 %v1362
        %1639 = vmatpush1.bf16.msra.mxu0 %v1361
        %1640 = vmatprep.subr.bf16.mxu0 %v1366
        %1641 = vmatpush1.bf16.msra.mxu0 %v1365
        %1642 = vmatprep.subr.bf16.mxu0 %v1370
        %1643 = vmatpush1.bf16.msra.mxu0 %v1369
        %1644 = vmatprep.subr.bf16.mxu0 0
        %1645 = vmatpush1.bf16.msra.mxu0 0
        %1646 = vmatprep.subr.bf16.mxu0 0
        %1647 = vmatpush1.bf16.msra.mxu0 0
        %1648 = vmatprep.subr.bf16.mxu0 0
        %1649 = vmatpush1.bf16.msra.mxu0 0
        %1650 = vmatprep.subr.bf16.mxu0 0
        %1651 = vmatpush1.bf16.msra.mxu0 0
        %1652 = vmatprep.subr.bf16.mxu0 0
        %1653 = vmatpush1.bf16.msra.mxu0 0
        %1654 = vmatprep.subr.bf16.mxu0 0
        %1655 = vmatpush1.bf16.msra.mxu0 0
        %1656 = vmatprep.subr.bf16.mxu0 0
        %1657 = vmatpush1.bf16.msra.mxu0 0
        %1658 = vmatprep.subr.bf16.mxu0 0
        %1659 = vmatpush1.bf16.msra.mxu0 0
        %1660 = vmatprep.mubr.bf16.mxu0 0
        %1661 = vmatmul.mubr.bf16.gmra.mrb[0].mxu0 %v1499
        %v1662 = vpop.f32.mrb[0].mxu0
        %v1663 = vadd.f32 %v1390, %v1662
        %v1664 = vpop.f32.mrb[0].mxu0
        %v1665 = vadd.f32 %v1390, %v1664
        %v1666 = vpop.f32.mrb[0].mxu0
        %v1667 = vadd.f32 %v1395, %v1666
        %v1668 = vpop.f32.mrb[0].mxu0
        %v1669 = vadd.f32 %v1395, %v1668
        %1670 = vmatprep.mubr.bf16.mxu0 0
        %1671 = vmatmul.mubr.bf16.gmra.mrb[0].mxu0 %v1500
        %v1672 = vpop.f32.mrb[0].mxu0
        %v1673 = vadd.f32 %v1400, %v1672
        %v1674 = vpop.f32.mrb[0].mxu0
        %v1675 = vadd.f32 %v1400, %v1674
        %v1676 = vpop.f32.mrb[0].mxu0
        %v1677 = vadd.f32 %v1405, %v1676
        %v1678 = vpop.f32.mrb[0].mxu0
        %v1679 = vadd.f32 %v1405, %v1678
        %1680 = vmatprep.mubr.bf16.mxu0 0
        %1681 = vmatmul.mubr.bf16.gmra.mrb[0].mxu0 %v1501
        %v1682 = vpop.f32.mrb[0].mxu0
        %v1683 = vadd.f32 %v1410, %v1682
        %v1684 = vpop.f32.mrb[0].mxu0
        %v1685 = vadd.f32 %v1410, %v1684
        %v1686 = vpop.f32.mrb[0].mxu0
        %v1687 = vadd.f32 %v1415, %v1686
        %v1688 = vpop.f32.mrb[0].mxu0
        %v1689 = vadd.f32 %v1415, %v1688
        %1690 = vmatprep.mubr.bf16.mxu0 0
        %1691 = vmatmul.mubr.bf16.gmra.mrb[0].mxu0 %v1502
        %v1692 = vpop.f32.mrb[0].mxu0
        %v1693 = vadd.f32 %v1420, %v1692
        %v1694 = vpop.f32.mrb[0].mxu0
        %v1695 = vadd.f32 %v1420, %v1694
        %v1696 = vpop.f32.mrb[0].mxu0
        %v1697 = vadd.f32 %v1425, %v1696
        %v1698 = vpop.f32.mrb[0].mxu0
        %v1699 = vadd.f32 %v1425, %v1698
        %1700 = vmatprep.mubr.bf16.mxu0 0
        %1701 = vmatmul.mubr.bf16.gmra.mrb[0].mxu0 %v1503
        %v1702 = vpop.f32.mrb[0].mxu0
        %v1703 = vadd.f32 %v1430, %v1702
        %v1704 = vpop.f32.mrb[0].mxu0
        %v1705 = vadd.f32 %v1430, %v1704
        %v1706 = vpop.f32.mrb[0].mxu0
        %v1707 = vadd.f32 %v1435, %v1706
        %v1708 = vpop.f32.mrb[0].mxu0
        %v1709 = vadd.f32 %v1435, %v1708
        %1710 = vmatprep.mubr.bf16.mxu0 0
        %1711 = vmatmul.mubr.bf16.gmra.mrb[0].mxu0 %v1504
        %v1712 = vpop.f32.mrb[0].mxu0
        %v1713 = vadd.f32 %v1440, %v1712
        %v1714 = vpop.f32.mrb[0].mxu0
        %v1715 = vadd.f32 %v1440, %v1714
        %v1716 = vpop.f32.mrb[0].mxu0
        %v1717 = vadd.f32 %v1445, %v1716
        %v1718 = vpop.f32.mrb[0].mxu0
        %v1719 = vadd.f32 %v1445, %v1718
        %1720 = vmatprep.mubr.bf16.mxu0 0
        %1721 = vmatmul.mubr.bf16.gmra.mrb[0].mxu0 %v1505
        %v1722 = vpop.f32.mrb[0].mxu0
        %v1723 = vadd.f32 %v1450, %v1722
        %v1724 = vpop.f32.mrb[0].mxu0
        %v1725 = vadd.f32 %v1450, %v1724
        %v1726 = vpop.f32.mrb[0].mxu0
        %v1727 = vadd.f32 %v1455, %v1726
        %v1728 = vpop.f32.mrb[0].mxu0
        %v1729 = vadd.f32 %v1455, %v1728
        %1730 = vmatprep.mubr.bf16.mxu0 0
        %1731 = vmatmul.mubr.bf16.gmra.mrb[0].mxu0 %v1506
        %v1732 = vpop.f32.mrb[0].mxu0
        %v1733 = vadd.f32 %v1460, %v1732
        %v1734 = vpop.f32.mrb[0].mxu0
        %v1735 = vadd.f32 %v1460, %v1734
        %v1736 = vpop.f32.mrb[0].mxu0
        %v1737 = vadd.f32 %v1465, %v1736
        %v1738 = vpop.f32.mrb[0].mxu0
        %v1739 = vadd.f32 %v1465, %v1738
        %1740 = vdwg.mxu0
        %v1741 = vld [vmem:[%s321] sm:$0xff]
        %v1742 = vld [vmem:[%s321 + $0x8] sm:$0xff]
        %v1743 = vld [vmem:[%s321 + $0x10] sm:$0xff]
        %v1744 = vld [vmem:[%s321 + $0x18] sm:$0xff]
        %v1745 = vld [vmem:[%s321 + $0x20] sm:$0xff]
        %v1746 = vld [vmem:[%s321 + $0x28] sm:$0xff]
        %v1747 = vld [vmem:[%s321 + $0x30] sm:$0xff]
        %v1748 = vld [vmem:[%s321 + $0x38] sm:$0xff]
        %v1749 = vld [vmem:[%s321 + $0x40] sm:$0xff]
        %v1750 = vld [vmem:[%s321 + $0x48] sm:$0xff]
        %v1751 = vld [vmem:[%s321 + $0x50] sm:$0xff]
        %v1752 = vld [vmem:[%s321 + $0x58] sm:$0xff]
        %v1753 = vld [vmem:[%s321 + $0x60] sm:$0xff]
        %v1754 = vld [vmem:[%s321 + $0x68] sm:$0xff]
        %v1755 = vld [vmem:[%s321 + $0x70] sm:$0xff]
        %v1756 = vld [vmem:[%s321 + $0x78] sm:$0xff]
        %v1757 = vmax.f32 %v1550, %v1552
        %v1758 = vmax.f32 %v1757, %v1663
        %v1759 = vmax.f32 %v1758, %v1665
        %1760 = vmax.xlane.f32.xlu0 %v1759
        %v1761 = vpop.xlane.xlu0 %1760
        %v1762 = vmax.f32 %v1554, %v1556
        %v1763 = vmax.f32 %v1762, %v1667
        %v1764 = vmax.f32 %v1763, %v1669
        %1765 = vmax.xlane.f32.xlu0 %v1764
        %v1766 = vpop.xlane.xlu0 %1765
        %v1767 = vmax.f32 %v1560, %v1562
        %v1768 = vmax.f32 %v1767, %v1673
        %v1769 = vmax.f32 %v1768, %v1675
        %1770 = vmax.xlane.f32.xlu0 %v1769
        %v1771 = vpop.xlane.xlu0 %1770
        %v1772 = vmax.f32 %v1564, %v1566
        %v1773 = vmax.f32 %v1772, %v1677
        %v1774 = vmax.f32 %v1773, %v1679
        %1775 = vmax.xlane.f32.xlu0 %v1774
        %v1776 = vpop.xlane.xlu0 %1775
        %v1777 = vmax.f32 %v1570, %v1572
        %v1778 = vmax.f32 %v1777, %v1683
        %v1779 = vmax.f32 %v1778, %v1685
        %1780 = vmax.xlane.f32.xlu0 %v1779
        %v1781 = vpop.xlane.xlu0 %1780
        %v1782 = vmax.f32 %v1574, %v1576
        %v1783 = vmax.f32 %v1782, %v1687
        %v1784 = vmax.f32 %v1783, %v1689
        %1785 = vmax.xlane.f32.xlu0 %v1784
        %v1786 = vpop.xlane.xlu0 %1785
        %v1787 = vmax.f32 %v1580, %v1582
        %v1788 = vmax.f32 %v1787, %v1693
        %v1789 = vmax.f32 %v1788, %v1695
        %1790 = vmax.xlane.f32.xlu0 %v1789
        %v1791 = vpop.xlane.xlu0 %1790
        %v1792 = vmax.f32 %v1584, %v1586
        %v1793 = vmax.f32 %v1792, %v1697
        %v1794 = vmax.f32 %v1793, %v1699
        %1795 = vmax.xlane.f32.xlu0 %v1794
        %v1796 = vpop.xlane.xlu0 %1795
        %v1797 = vmax.f32 %v1590, %v1592
        %v1798 = vmax.f32 %v1797, %v1703
        %v1799 = vmax.f32 %v1798, %v1705
        %1800 = vmax.xlane.f32.xlu0 %v1799
        %v1801 = vpop.xlane.xlu0 %1800
        %v1802 = vmax.f32 %v1594, %v1596
        %v1803 = vmax.f32 %v1802, %v1707
        %v1804 = vmax.f32 %v1803, %v1709
        %1805 = vmax.xlane.f32.xlu0 %v1804
        %v1806 = vpop.xlane.xlu0 %1805
        %v1807 = vmax.f32 %v1600, %v1602
        %v1808 = vmax.f32 %v1807, %v1713
        %v1809 = vmax.f32 %v1808, %v1715
        %1810 = vmax.xlane.f32.xlu0 %v1809
        %v1811 = vpop.xlane.xlu0 %1810
        %v1812 = vmax.f32 %v1604, %v1606
        %v1813 = vmax.f32 %v1812, %v1717
        %v1814 = vmax.f32 %v1813, %v1719
        %1815 = vmax.xlane.f32.xlu0 %v1814
        %v1816 = vpop.xlane.xlu0 %1815
        %v1817 = vmax.f32 %v1610, %v1612
        %v1818 = vmax.f32 %v1817, %v1723
        %v1819 = vmax.f32 %v1818, %v1725
        %1820 = vmax.xlane.f32.xlu0 %v1819
        %v1821 = vpop.xlane.xlu0 %1820
        %v1822 = vmax.f32 %v1614, %v1616
        %v1823 = vmax.f32 %v1822, %v1727
        %v1824 = vmax.f32 %v1823, %v1729
        %1825 = vmax.xlane.f32.xlu0 %v1824
        %v1826 = vpop.xlane.xlu0 %1825
        %v1827 = vmax.f32 %v1620, %v1622
        %v1828 = vmax.f32 %v1827, %v1733
        %v1829 = vmax.f32 %v1828, %v1735
        %1830 = vmax.xlane.f32.xlu0 %v1829
        %v1831 = vpop.xlane.xlu0 %1830
        %v1832 = vmax.f32 %v1624, %v1626
        %v1833 = vmax.f32 %v1832, %v1737
        %v1834 = vmax.f32 %v1833, %v1739
        %1835 = vmax.xlane.f32.xlu0 %v1834
        %v1836 = vpop.xlane.xlu0 %1835
        %v1837 = vmax.f32 %v1741, %v1761
        %v1838 = vmax.f32 %v1742, %v1766
        %v1839 = vmax.f32 %v1743, %v1771
        %v1840 = vmax.f32 %v1744, %v1776
        %v1841 = vmax.f32 %v1745, %v1781
        %v1842 = vmax.f32 %v1746, %v1786
        %v1843 = vmax.f32 %v1747, %v1791
        %v1844 = vmax.f32 %v1748, %v1796
        %v1845 = vmax.f32 %v1749, %v1801
        %v1846 = vmax.f32 %v1750, %v1806
        %v1847 = vmax.f32 %v1751, %v1811
        %v1848 = vmax.f32 %v1752, %v1816
        %v1849 = vmax.f32 %v1753, %v1821
        %v1850 = vmax.f32 %v1754, %v1826
        %v1851 = vmax.f32 %v1755, %v1831
        %v1852 = vmax.f32 %v1756, %v1836
        %vm1853 = vcmask 7168
        %1854 = vst.msk [vmem:[%s321] sm:$0xff] %vm1853, %v1837
        %1855 = vst.msk [vmem:[%s321 + $0x8] sm:$0xff] %vm1853, %v1838
        %1856 = vst.msk [vmem:[%s321 + $0x10] sm:$0xff] %vm1853, %v1839
        %1857 = vst.msk [vmem:[%s321 + $0x18] sm:$0xff] %vm1853, %v1840
        %1858 = vst.msk [vmem:[%s321 + $0x20] sm:$0xff] %vm1853, %v1841
        %1859 = vst.msk [vmem:[%s321 + $0x28] sm:$0xff] %vm1853, %v1842
        %1860 = vst.msk [vmem:[%s321 + $0x30] sm:$0xff] %vm1853, %v1843
        %1861 = vst.msk [vmem:[%s321 + $0x38] sm:$0xff] %vm1853, %v1844
        %1862 = vst.msk [vmem:[%s321 + $0x40] sm:$0xff] %vm1853, %v1845
        %1863 = vst.msk [vmem:[%s321 + $0x48] sm:$0xff] %vm1853, %v1846
        %1864 = vst.msk [vmem:[%s321 + $0x50] sm:$0xff] %vm1853, %v1847
        %1865 = vst.msk [vmem:[%s321 + $0x58] sm:$0xff] %vm1853, %v1848
        %1866 = vst.msk [vmem:[%s321 + $0x60] sm:$0xff] %vm1853, %v1849
        %1867 = vst.msk [vmem:[%s321 + $0x68] sm:$0xff] %vm1853, %v1850
        %1868 = vst.msk [vmem:[%s321 + $0x70] sm:$0xff] %vm1853, %v1851
        %1869 = vst.msk [vmem:[%s321 + $0x78] sm:$0xff] %vm1853, %v1852
        %p1870 = scmp.lt.s32.totalorder %s23, 1
        %s1871 = scalar_select %p1870, %s23, 1
        %s1872 = smul.addr %s1871, 16
        %s1873 = smul.addr %s1872, 8
        %s1874 = scalar_lea.vmem %s7, %s1873
        // Predicated region
        $region57: #{pointnet_fcae_forward.3} parent=47 // pred_check
          %p1875 = pneg %p203
        $region58: #{pointnet_fcae_forward.3} parent=47 // pred_check_branch
          %1877 = sbr.rel (%p1875) target = $region60
        $region59: #{pointnet_fcae_forward.3} parent=47 // pred_region
          _
        $region60: #{pointnet_fcae_forward.3} parent=47 // pred_fallthru
          _
      $region48: #{pointnet_fcae_forward.3} parent=5 // pred_fallthru
        _
      %p1878 = scmp.le.s32.totalorder 2, %s14
      // Predicated region
      $region61: #{pointnet_fcae_forward.3} parent=5 // pred_check
        %p1879 = pneg %p1878
      $region62: #{pointnet_fcae_forward.3} parent=5 // pred_check_branch
        %1881 = sbr.rel (%p1879) target = $region64
      $region63: #{pointnet_fcae_forward.3} parent=5 // pred_region
        %s1882 = ssub.s32 %s14, 2
        // Predicated region
        $region65: #{pointnet_fcae_forward.3} parent=63 // pred_check
          %p1883 = pneg %p209
        $region66: #{pointnet_fcae_forward.3} parent=63 // pred_check_branch
          %1885 = sbr.rel (%p1883) target = $region68
        $region67: #{pointnet_fcae_forward.3} parent=63 // pred_region
          %p1886 = scmp.lt.s32.totalorder %s25, 1
          %s1887 = scalar_select %p1886, %s25, 1
          %s1888 = smul.addr %s1887, 16
          %s1889 = smul.addr %s1888, 8
          %s1890 = scalar_lea.vmem %s7, %s1889
        $region68: #{pointnet_fcae_forward.3} parent=63 // pred_fallthru
          _
      $region64: #{pointnet_fcae_forward.3} parent=5 // pred_fallthru
        _
    $region6: #{pointnet_fcae_forward.3} parent=1 // loop_footer
      %s18 = sadd.s32 1, %s14
    $region7: #{pointnet_fcae_forward.3} parent=1 // loop_footer_branch
      %13 = sbr.rel target = $region3
    $region8: #{pointnet_fcae_forward.3} parent=1 // loop_exit
      _
    %1891 = vsyncpa [#allocation3], 1
    %s1892 = scalar_lea.sflag [#allocation3], 1
    %1893 = vsyncpa %s1892, 1

// kernel: pointnet_fcae_forward.4
$region0: #{pointnet_fcae_forward.4}
  #allocation0 [shape = 'u32[]', space=smem, size = 0x4, offset = 0x4, fixed_abs, tag = 'smem constant byte address 0x4 - core index']
  #allocation1 [shape = 'u32[144,128]{1,0:T(1,128)}', space=vmem, size = 0x12000, scoped, tag = 'internal scratch']
  %s0 = inlined_call_operand.vmem [shape: f32[2,128], index: 0, kind: input, shape index: {}]
  %s1 = inlined_call_operand.hbm [shape: bf16[128,128], index: 1, kind: input, shape index: {}]
  %s2 = inlined_call_operand.hbm [shape: f32[1,128], index: 2, kind: input, shape index: {}]
  %s3 = inlined_call_operand.hbm [shape: bf16[128,256], index: 3, kind: input, shape index: {}]
  %s4 = inlined_call_operand.hbm [shape: f32[1,256], index: 4, kind: input, shape index: {}]
  %s5 = inlined_call_operand.hbm [shape: bf16[256,512], index: 5, kind: input, shape index: {}]
  %s6 = inlined_call_operand.hbm [shape: f32[1,512], index: 6, kind: input, shape index: {}]
  %s7 = inlined_call_operand.hbm [shape: bf16[512,1024], index: 7, kind: input, shape index: {}]
  %s8 = inlined_call_operand.hbm [shape: f32[1,1024], index: 8, kind: input, shape index: {}]
  %s9 = inlined_call_operand.hbm [shape: f32[2,128], index: 9, kind: output, shape index: {0}]
  %s10 = inlined_call_operand.vmem [shape: bf16[2,1024], index: 10, kind: output, shape index: {1}]
  %11 = xla_tuple %s9, %s10
  %s12 = sld [smem:[#allocation0]]
  $region86: #{pointnet_fcae_forward.4} parent=0
    _
  %s14 = ssub.s32 1, %s12
  %s15 = scalar_select 0, %s14, %s12
  $region1: #{pointnet_fcae_forward.4} parent=0
    #allocation2 [shape = 'u8[32768]{0}', space=vmem, size = 0x8000, scoped, tag = 'input window, operand 1, single buffered']
    #allocation3 [shape = 's32[1]{0}', space=sflag, size = 0x4, scoped, tag = 'scoped memory for pointnet_fcae_forward.4']
    #allocation4 [shape = 's32[1]{0}', space=sflag, size = 0x4, scoped, tag = 'scoped memory for pointnet_fcae_forward.4']
    #allocation5 [shape = 'u8[512]{0}', space=vmem, size = 0x400, scoped, tag = 'input window, operand 2, single buffered']
    #allocation6 [shape = 's32[1]{0}', space=sflag, size = 0x4, scoped, tag = 'scoped memory for pointnet_fcae_forward.4']
    #allocation7 [shape = 'u8[65536]{0}', space=vmem, size = 0x10000, scoped, tag = 'input window, operand 3, single buffered']
    #allocation8 [shape = 'u8[1024]{0}', space=vmem, size = 0x400, scoped, tag = 'input window, operand 4, single buffered']
    #allocation9 [shape = 's32[1]{0}', space=sflag, size = 0x4, scoped, tag = 'scoped memory for pointnet_fcae_forward.4']
    #allocation10 [shape = 'u8[262144]{0}', space=vmem, size = 0x40000, scoped, tag = 'input window, operand 5, single buffered']
    #allocation11 [shape = 'u8[2048]{0}', space=vmem, size = 0x800, scoped, tag = 'input window, operand 6, single buffered']
    #allocation12 [shape = 's32[1]{0}', space=sflag, size = 0x4, scoped, tag = 'scoped memory for pointnet_fcae_forward.4']
    #allocation13 [shape = 'u8[1048576]{0}', space=vmem, size = 0x100000, scoped, tag = 'input window, operand 7, single buffered']
    #allocation14 [shape = 'u8[4096]{0}', space=vmem, size = 0x1000, scoped, tag = 'input window, operand 8, single buffered']
    #allocation15 [shape = 's32[1]{0}', space=sflag, size = 0x4, scoped, tag = 'scoped memory for pointnet_fcae_forward.4']
    #allocation16 [shape = 'u8[1024]{0}', space=vmem, size = 0x400, scoped, tag = 'output window, operand 0, single buffered']
    %16 = vsyncpa [#allocation3], 0
    %17 = vsyncpa [#allocation6], 0
    %18 = vsyncpa [#allocation9], 0
    %19 = vsyncpa [#allocation12], 0
    %20 = vsyncpa [#allocation15], 0
    %21 = vsyncpa [#allocation4], 0
    // Predicated region
    $region2: #{pointnet_fcae_forward.4} parent=1 // pred_check
      _
    $region3: #{pointnet_fcae_forward.4} parent=1 // pred_check_branch
      %23 = sbr.rel (0) target = $region5
    $region4: #{pointnet_fcae_forward.4} parent=1 // pred_region
      _
    $region5: #{pointnet_fcae_forward.4} parent=1 // pred_fallthru
      _
    // Predicated region
    $region6: #{pointnet_fcae_forward.4} parent=1 // pred_check
      _
    $region7: #{pointnet_fcae_forward.4} parent=1 // pred_check_branch
      %25 = sbr.rel (0) target = $region9
    $region8: #{pointnet_fcae_forward.4} parent=1 // pred_region
      %s27 = ssub.s32 1024, 1024
      %28 = vsyncadd [#allocation3], %s27
      %s29 = sshll.u32 [#allocation2], 4
      %s30 = int_to_ptr.vmem [resolvable:$true] %s29
      %35 = dma.hbm_to_vmem [thread:$0]  %s1, 1024, %s30, [#allocation3], 64, 64, 4
    $region9: #{pointnet_fcae_forward.4} parent=1 // pred_fallthru
      _
    // Predicated region
    $region10: #{pointnet_fcae_forward.4} parent=1 // pred_check
      _
    $region11: #{pointnet_fcae_forward.4} parent=1 // pred_check_branch
      %37 = sbr.rel (0) target = $region13
    $region12: #{pointnet_fcae_forward.4} parent=1 // pred_region
      %s39 = ssub.s32 16, 16
      %40 = vsyncadd [#allocation6], %s39
      %s42 = sshll.u32 [#allocation5], 4
      %s43 = int_to_ptr.vmem [resolvable:$true] %s42
      %45 = dma.hbm_to_vmem [thread:$0]  %s2, 16, %s43, [#allocation6]
    $region13: #{pointnet_fcae_forward.4} parent=1 // pred_fallthru
      _
    // Predicated region
    $region14: #{pointnet_fcae_forward.4} parent=1 // pred_check
      _
    $region15: #{pointnet_fcae_forward.4} parent=1 // pred_check_branch
      %47 = sbr.rel (0) target = $region17
    $region16: #{pointnet_fcae_forward.4} parent=1 // pred_region
      %s49 = ssub.s32 2048, 2048
      %50 = vsyncadd [#allocation6], %s49
      %s51 = sshll.u32 [#allocation7], 4
      %s52 = int_to_ptr.vmem [resolvable:$true] %s51
      %57 = dma.hbm_to_vmem [thread:$0]  %s3, 2048, %s52, [#allocation6], 128, 128, 8
    $region17: #{pointnet_fcae_forward.4} parent=1 // pred_fallthru
      _
    // Predicated region
    $region18: #{pointnet_fcae_forward.4} parent=1 // pred_check
      _
    $region19: #{pointnet_fcae_forward.4} parent=1 // pred_check_branch
      %59 = sbr.rel (0) target = $region21
    $region20: #{pointnet_fcae_forward.4} parent=1 // pred_region
      %s61 = ssub.s32 32, 32
      %62 = vsyncadd [#allocation9], %s61
      %s64 = sshll.u32 [#allocation8], 4
      %s65 = int_to_ptr.vmem [resolvable:$true] %s64
      %67 = dma.hbm_to_vmem [thread:$0]  %s4, 32, %s65, [#allocation9]
    $region21: #{pointnet_fcae_forward.4} parent=1 // pred_fallthru
      _
    // Predicated region
    $region22: #{pointnet_fcae_forward.4} parent=1 // pred_check
      _
    $region23: #{pointnet_fcae_forward.4} parent=1 // pred_check_branch
      %69 = sbr.rel (0) target = $region25
    $region24: #{pointnet_fcae_forward.4} parent=1 // pred_region
      %s71 = ssub.s32 8192, 8192
      %72 = vsyncadd [#allocation9], %s71
      %s73 = sshll.u32 [#allocation10], 4
      %s74 = int_to_ptr.vmem [resolvable:$true] %s73
      %79 = dma.hbm_to_vmem [thread:$0]  %s5, 8192, %s74, [#allocation9], 256, 256, 16
    $region25: #{pointnet_fcae_forward.4} parent=1 // pred_fallthru
      _
    // Predicated region
    $region26: #{pointnet_fcae_forward.4} parent=1 // pred_check
      _
    $region27: #{pointnet_fcae_forward.4} parent=1 // pred_check_branch
      %81 = sbr.rel (0) target = $region29
    $region28: #{pointnet_fcae_forward.4} parent=1 // pred_region
      %s83 = ssub.s32 64, 64
      %84 = vsyncadd [#allocation12], %s83
      %s86 = sshll.u32 [#allocation11], 4
      %s87 = int_to_ptr.vmem [resolvable:$true] %s86
      %89 = dma.hbm_to_vmem [thread:$0]  %s6, 64, %s87, [#allocation12]
    $region29: #{pointnet_fcae_forward.4} parent=1 // pred_fallthru
      _
    // Predicated region
    $region30: #{pointnet_fcae_forward.4} parent=1 // pred_check
      _
    $region31: #{pointnet_fcae_forward.4} parent=1 // pred_check_branch
      %91 = sbr.rel (0) target = $region33
    $region32: #{pointnet_fcae_forward.4} parent=1 // pred_region
      %s93 = ssub.s32 32768, 32768
      %94 = vsyncadd [#allocation12], %s93
      %s95 = sshll.u32 [#allocation13], 4
      %s96 = int_to_ptr.vmem [resolvable:$true] %s95
      %101 = dma.hbm_to_vmem [thread:$0]  %s7, 32768, %s96, [#allocation12], 512, 512, 32
    $region33: #{pointnet_fcae_forward.4} parent=1 // pred_fallthru
      _
    // Predicated region
    $region34: #{pointnet_fcae_forward.4} parent=1 // pred_check
      _
    $region35: #{pointnet_fcae_forward.4} parent=1 // pred_check_branch
      %103 = sbr.rel (0) target = $region37
    $region36: #{pointnet_fcae_forward.4} parent=1 // pred_region
      %s105 = ssub.s32 128, 128
      %106 = vsyncadd [#allocation15], %s105
      %s108 = sshll.u32 [#allocation14], 4
      %s109 = int_to_ptr.vmem [resolvable:$true] %s108
      %111 = dma.hbm_to_vmem [thread:$0]  %s8, 128, %s109, [#allocation15]
    $region37: #{pointnet_fcae_forward.4} parent=1 // pred_fallthru
      _
    // Predicated region
    $region38: #{pointnet_fcae_forward.4} parent=1 // pred_check
      _
    $region39: #{pointnet_fcae_forward.4} parent=1 // pred_check_branch
      %113 = sbr.rel (0) target = $region41
    $region40: #{pointnet_fcae_forward.4} parent=1 // pred_region
      %114 = dma.done [#allocation3], 1024
    $region41: #{pointnet_fcae_forward.4} parent=1 // pred_fallthru
      _
    // Predicated region
    $region42: #{pointnet_fcae_forward.4} parent=1 // pred_check
      _
    $region43: #{pointnet_fcae_forward.4} parent=1 // pred_check_branch
      %116 = sbr.rel (0) target = $region45
    $region44: #{pointnet_fcae_forward.4} parent=1 // pred_region
      %117 = dma.done [#allocation6], 16
    $region45: #{pointnet_fcae_forward.4} parent=1 // pred_fallthru
      _
    // Predicated region
    $region46: #{pointnet_fcae_forward.4} parent=1 // pred_check
      _
    $region47: #{pointnet_fcae_forward.4} parent=1 // pred_check_branch
      %119 = sbr.rel (0) target = $region49
    $region48: #{pointnet_fcae_forward.4} parent=1 // pred_region
      %120 = dma.done [#allocation6], 2048
    $region49: #{pointnet_fcae_forward.4} parent=1 // pred_fallthru
      _
    // Predicated region
    $region50: #{pointnet_fcae_forward.4} parent=1 // pred_check
      _
    $region51: #{pointnet_fcae_forward.4} parent=1 // pred_check_branch
      %122 = sbr.rel (0) target = $region53
    $region52: #{pointnet_fcae_forward.4} parent=1 // pred_region
      %123 = dma.done [#allocation9], 32
    $region53: #{pointnet_fcae_forward.4} parent=1 // pred_fallthru
      _
    // Predicated region
    $region54: #{pointnet_fcae_forward.4} parent=1 // pred_check
      _
    $region55: #{pointnet_fcae_forward.4} parent=1 // pred_check_branch
      %125 = sbr.rel (0) target = $region57
    $region56: #{pointnet_fcae_forward.4} parent=1 // pred_region
      %126 = dma.done [#allocation9], 8192
    $region57: #{pointnet_fcae_forward.4} parent=1 // pred_fallthru
      _
    // Predicated region
    $region58: #{pointnet_fcae_forward.4} parent=1 // pred_check
      _
    $region59: #{pointnet_fcae_forward.4} parent=1 // pred_check_branch
      %128 = sbr.rel (0) target = $region61
    $region60: #{pointnet_fcae_forward.4} parent=1 // pred_region
      %129 = dma.done [#allocation12], 64
    $region61: #{pointnet_fcae_forward.4} parent=1 // pred_fallthru
      _
    // Predicated region
    $region62: #{pointnet_fcae_forward.4} parent=1 // pred_check
      _
    $region63: #{pointnet_fcae_forward.4} parent=1 // pred_check_branch
      %131 = sbr.rel (0) target = $region65
    $region64: #{pointnet_fcae_forward.4} parent=1 // pred_region
      %132 = dma.done [#allocation12], 32768
    $region65: #{pointnet_fcae_forward.4} parent=1 // pred_fallthru
      _
    // Predicated region
    $region66: #{pointnet_fcae_forward.4} parent=1 // pred_check
      _
    $region67: #{pointnet_fcae_forward.4} parent=1 // pred_check_branch
      %134 = sbr.rel (0) target = $region69
    $region68: #{pointnet_fcae_forward.4} parent=1 // pred_region
      %135 = dma.done [#allocation15], 128
    $region69: #{pointnet_fcae_forward.4} parent=1 // pred_fallthru
      _
    %v137 = vld [vmem:[%s0] sm:$0x3]
    %v138 = vpack.c.bf16 %v137, %v137
    %v139 = vld [vmem:[#allocation2] sm:$0xf]
    %v140 = vld [vmem:[#allocation2 + $0x4] sm:$0xf]
    %v141 = vld [vmem:[#allocation2 + $0x8] sm:$0xf]
    %v142 = vld [vmem:[#allocation2 + $0xc] sm:$0xf]
    %v143 = vld [vmem:[#allocation2 + $0x10] sm:$0xf]
    %v144 = vld [vmem:[#allocation2 + $0x14] sm:$0xf]
    %v145 = vld [vmem:[#allocation2 + $0x18] sm:$0xf]
    %v146 = vld [vmem:[#allocation2 + $0x1c] sm:$0xf]
    %v147 = vld [vmem:[#allocation2 + $0x20] sm:$0xf]
    %v148 = vld [vmem:[#allocation2 + $0x24] sm:$0xf]
    %v149 = vld [vmem:[#allocation2 + $0x28] sm:$0xf]
    %v150 = vld [vmem:[#allocation2 + $0x2c] sm:$0xf]
    %v151 = vld [vmem:[#allocation2 + $0x30] sm:$0xf]
    %v152 = vld [vmem:[#allocation2 + $0x34] sm:$0xf]
    %v153 = vld [vmem:[#allocation2 + $0x38] sm:$0xf]
    %v154 = vld [vmem:[#allocation2 + $0x3c] sm:$0xf]
    %v155 = vld [vmem:[#allocation5] sm:$0x1]
    %v157 = vlaneseq
    %v158 = vshrl.u32 %v157, 7
    %v159 = vsub.s32 0, %v158
    %v160 = vrot.slane %v155, %v159
    %v178 = vunpack.c.l.b16 %v139
    %v179 = vunpack.c.l.b16 %v140
    %v180 = vunpack.c.l.b16 %v141
    %v181 = vunpack.c.l.b16 %v142
    %v182 = vunpack.c.l.b16 %v143
    %v183 = vunpack.c.l.b16 %v144
    %v184 = vunpack.c.l.b16 %v145
    %v185 = vunpack.c.l.b16 %v146
    %v186 = vunpack.c.l.b16 %v147
    %v187 = vunpack.c.l.b16 %v148
    %v188 = vunpack.c.l.b16 %v149
    %v189 = vunpack.c.l.b16 %v150
    %v190 = vunpack.c.l.b16 %v151
    %v191 = vunpack.c.l.b16 %v152
    %v192 = vunpack.c.l.b16 %v153
    %v193 = vunpack.c.l.b16 %v154
    %v194 = vpack.c.b16 %v179, %v178
    %v195 = vpack.c.b16 %v181, %v180
    %v196 = vpack.c.b16 %v183, %v182
    %v197 = vpack.c.b16 %v185, %v184
    %v198 = vpack.c.b16 %v187, %v186
    %v199 = vpack.c.b16 %v189, %v188
    %v200 = vpack.c.b16 %v191, %v190
    %v201 = vpack.c.b16 %v193, %v192
    %210 = vmatprep.subr.bf16.mxu0 0
    %211 = vmatpush1.bf16.msra.mxu0 %v194
    %212 = vmatprep.subr.bf16.mxu0 0
    %213 = vmatpush1.bf16.msra.mxu0 %v195
    %214 = vmatprep.subr.bf16.mxu0 0
    %215 = vmatpush1.bf16.msra.mxu0 %v196
    %216 = vmatprep.subr.bf16.mxu0 0
    %217 = vmatpush1.bf16.msra.mxu0 %v197
    %218 = vmatprep.subr.bf16.mxu0 0
    %219 = vmatpush1.bf16.msra.mxu0 %v198
    %220 = vmatprep.subr.bf16.mxu0 0
    %221 = vmatpush1.bf16.msra.mxu0 %v199
    %222 = vmatprep.subr.bf16.mxu0 0
    %223 = vmatpush1.bf16.msra.mxu0 %v200
    %224 = vmatprep.subr.bf16.mxu0 0
    %225 = vmatpush1.bf16.msra.mxu0 %v201
    %226 = vmatprep.subr.bf16.mxu0 0
    %227 = vmatpush1.bf16.msra.mxu0 0
    %228 = vmatprep.subr.bf16.mxu0 0
    %229 = vmatpush1.bf16.msra.mxu0 0
    %230 = vmatprep.subr.bf16.mxu0 0
    %231 = vmatpush1.bf16.msra.mxu0 0
    %232 = vmatprep.subr.bf16.mxu0 0
    %233 = vmatpush1.bf16.msra.mxu0 0
    %234 = vmatprep.subr.bf16.mxu0 0
    %235 = vmatpush1.bf16.msra.mxu0 0
    %236 = vmatprep.subr.bf16.mxu0 0
    %237 = vmatpush1.bf16.msra.mxu0 0
    %238 = vmatprep.subr.bf16.mxu0 0
    %239 = vmatpush1.bf16.msra.mxu0 0
    %240 = vmatprep.subr.bf16.mxu0 0
    %241 = vmatpush1.bf16.msra.mxu0 0
    %242 = vmatprep.mubr.bf16.mxu0 0
    %243 = vmatmul.mubr.bf16.gmra.mrb[0].mxu0 %v138
    %v244 = vpop.f32.mrb[0].mxu0
    %v245 = vadd.f32 %v160, %v244
    %v246 = vpop.f32.mrb[0].mxu0
    %v247 = vpop.f32.mrb[0].mxu0
    %v248 = vpop.f32.mrb[0].mxu0
    %249 = vdwg.mxu0
    %v250 = vmax.f32 %v245, 0.0
    %251 = vst [vmem:[#allocation16] sm:$0x3] %v250
    %v252 = vpack.c.bf16 %v250, %v250
    %v253 = vld [vmem:[#allocation7] sm:$0xff]
    %v254 = vld [vmem:[#allocation7 + $0x8] sm:$0xff]
    %v255 = vld [vmem:[#allocation7 + $0x10] sm:$0xff]
    %v256 = vld [vmem:[#allocation7 + $0x18] sm:$0xff]
    %v257 = vld [vmem:[#allocation7 + $0x20] sm:$0xff]
    %v258 = vld [vmem:[#allocation7 + $0x28] sm:$0xff]
    %v259 = vld [vmem:[#allocation7 + $0x30] sm:$0xff]
    %v260 = vld [vmem:[#allocation7 + $0x38] sm:$0xff]
    %v261 = vld [vmem:[#allocation7 + $0x40] sm:$0xff]
    %v262 = vld [vmem:[#allocation7 + $0x48] sm:$0xff]
    %v263 = vld [vmem:[#allocation7 + $0x50] sm:$0xff]
    %v264 = vld [vmem:[#allocation7 + $0x58] sm:$0xff]
    %v265 = vld [vmem:[#allocation7 + $0x60] sm:$0xff]
    %v266 = vld [vmem:[#allocation7 + $0x68] sm:$0xff]
    %v267 = vld [vmem:[#allocation7 + $0x70] sm:$0xff]
    %v268 = vld [vmem:[#allocation7 + $0x78] sm:$0xff]
    %v269 = vld [vmem:[#allocation8] sm:$0x3]
    %v271 = vlaneseq
    %v272 = vshrl.u32 %v271, 7
    %v273 = vsub.s32 0, %v272
    %v274 = vrot.slane %v269, %v273
    %v275 = vlaneseq
    %v276 = vshrl.u32 %v275, 7
    %v277 = vsub.s32 1, %v276
    %v278 = vrot.slane %v269, %v277
    %v297 = vunpack.c.l.b16 %v253
    %v298 = vunpack.c.h.b16 %v253
    %v299 = vunpack.c.l.b16 %v254
    %v300 = vunpack.c.h.b16 %v254
    %v301 = vunpack.c.l.b16 %v255
    %v302 = vunpack.c.h.b16 %v255
    %v303 = vunpack.c.l.b16 %v256
    %v304 = vunpack.c.h.b16 %v256
    %v305 = vunpack.c.l.b16 %v257
    %v306 = vunpack.c.h.b16 %v257
    %v307 = vunpack.c.l.b16 %v258
    %v308 = vunpack.c.h.b16 %v258
    %v309 = vunpack.c.l.b16 %v259
    %v310 = vunpack.c.h.b16 %v259
    %v311 = vunpack.c.l.b16 %v260
    %v312 = vunpack.c.h.b16 %v260
    %v313 = vunpack.c.l.b16 %v261
    %v314 = vunpack.c.h.b16 %v261
    %v315 = vunpack.c.l.b16 %v262
    %v316 = vunpack.c.h.b16 %v262
    %v317 = vunpack.c.l.b16 %v263
    %v318 = vunpack.c.h.b16 %v263
    %v319 = vunpack.c.l.b16 %v264
    %v320 = vunpack.c.h.b16 %v264
    %v321 = vunpack.c.l.b16 %v265
    %v322 = vunpack.c.h.b16 %v265
    %v323 = vunpack.c.l.b16 %v266
    %v324 = vunpack.c.h.b16 %v266
    %v325 = vunpack.c.l.b16 %v267
    %v326 = vunpack.c.h.b16 %v267
    %v327 = vunpack.c.l.b16 %v268
    %v328 = vunpack.c.h.b16 %v268
    %v329 = vpack.c.b16 %v299, %v297
    %v330 = vpack.c.b16 %v300, %v298
    %v331 = vpack.c.b16 %v303, %v301
    %v332 = vpack.c.b16 %v304, %v302
    %v333 = vpack.c.b16 %v307, %v305
    %v334 = vpack.c.b16 %v308, %v306
    %v335 = vpack.c.b16 %v311, %v309
    %v336 = vpack.c.b16 %v312, %v310
    %v337 = vpack.c.b16 %v315, %v313
    %v338 = vpack.c.b16 %v316, %v314
    %v339 = vpack.c.b16 %v319, %v317
    %v340 = vpack.c.b16 %v320, %v318
    %v341 = vpack.c.b16 %v323, %v321
    %v342 = vpack.c.b16 %v324, %v322
    %v343 = vpack.c.b16 %v327, %v325
    %v344 = vpack.c.b16 %v328, %v326
    %361 = vmatprep.subr.bf16.mxu0 %v330
    %362 = vmatpush1.bf16.msra.mxu0 %v329
    %363 = vmatprep.subr.bf16.mxu0 %v332
    %364 = vmatpush1.bf16.msra.mxu0 %v331
    %365 = vmatprep.subr.bf16.mxu0 %v334
    %366 = vmatpush1.bf16.msra.mxu0 %v333
    %367 = vmatprep.subr.bf16.mxu0 %v336
    %368 = vmatpush1.bf16.msra.mxu0 %v335
    %369 = vmatprep.subr.bf16.mxu0 %v338
    %370 = vmatpush1.bf16.msra.mxu0 %v337
    %371 = vmatprep.subr.bf16.mxu0 %v340
    %372 = vmatpush1.bf16.msra.mxu0 %v339
    %373 = vmatprep.subr.bf16.mxu0 %v342
    %374 = vmatpush1.bf16.msra.mxu0 %v341
    %375 = vmatprep.subr.bf16.mxu0 %v344
    %376 = vmatpush1.bf16.msra.mxu0 %v343
    %377 = vmatprep.subr.bf16.mxu0 0
    %378 = vmatpush1.bf16.msra.mxu0 0
    %379 = vmatprep.subr.bf16.mxu0 0
    %380 = vmatpush1.bf16.msra.mxu0 0
    %381 = vmatprep.subr.bf16.mxu0 0
    %382 = vmatpush1.bf16.msra.mxu0 0
    %383 = vmatprep.subr.bf16.mxu0 0
    %384 = vmatpush1.bf16.msra.mxu0 0
    %385 = vmatprep.subr.bf16.mxu0 0
    %386 = vmatpush1.bf16.msra.mxu0 0
    %387 = vmatprep.subr.bf16.mxu0 0
    %388 = vmatpush1.bf16.msra.mxu0 0
    %389 = vmatprep.subr.bf16.mxu0 0
    %390 = vmatpush1.bf16.msra.mxu0 0
    %391 = vmatprep.subr.bf16.mxu0 0
    %392 = vmatpush1.bf16.msra.mxu0 0
    %393 = vmatprep.mubr.bf16.mxu0 0
    %394 = vmatmul.mubr.bf16.gmra.mrb[0].mxu0 %v252
    %v395 = vpop.f32.mrb[0].mxu0
    %v396 = vadd.f32 %v274, %v395
    %v397 = vpop.f32.mrb[0].mxu0
    %v398 = vadd.f32 %v278, %v397
    %v399 = vpop.f32.mrb[0].mxu0
    %v400 = vpop.f32.mrb[0].mxu0
    %401 = vdwg.mxu0
    %v402 = vmax.f32 %v396, 0.0
    %v403 = vmax.f32 %v398, 0.0
    %v404 = vpack.c.bf16 %v402, %v402
    %v405 = vpack.c.bf16 %v403, %v403
    %v406 = vld [vmem:[#allocation10] sm:$0xff]
    %v407 = vld [vmem:[#allocation10 + $0x8] sm:$0xff]
    %v408 = vld [vmem:[#allocation10 + $0x10] sm:$0xff]
    %v409 = vld [vmem:[#allocation10 + $0x18] sm:$0xff]
    %v410 = vld [vmem:[#allocation10 + $0x20] sm:$0xff]
    %v411 = vld [vmem:[#allocation10 + $0x28] sm:$0xff]
    %v412 = vld [vmem:[#allocation10 + $0x30] sm:$0xff]
    %v413 = vld [vmem:[#allocation10 + $0x38] sm:$0xff]
    %v414 = vld [vmem:[#allocation10 + $0x40] sm:$0xff]
    %v415 = vld [vmem:[#allocation10 + $0x48] sm:$0xff]
    %v416 = vld [vmem:[#allocation10 + $0x50] sm:$0xff]
    %v417 = vld [vmem:[#allocation10 + $0x58] sm:$0xff]
    %v418 = vld [vmem:[#allocation10 + $0x60] sm:$0xff]
    %v419 = vld [vmem:[#allocation10 + $0x68] sm:$0xff]
    %v420 = vld [vmem:[#allocation10 + $0x70] sm:$0xff]
    %v421 = vld [vmem:[#allocation10 + $0x78] sm:$0xff]
    %v422 = vld [vmem:[#allocation10 + $0x80] sm:$0xff]
    %v423 = vld [vmem:[#allocation10 + $0x88] sm:$0xff]
    %v424 = vld [vmem:[#allocation10 + $0x90] sm:$0xff]
    %v425 = vld [vmem:[#allocation10 + $0x98] sm:$0xff]
    %v426 = vld [vmem:[#allocation10 + $0xa0] sm:$0xff]
    %v427 = vld [vmem:[#allocation10 + $0xa8] sm:$0xff]
    %v428 = vld [vmem:[#allocation10 + $0xb0] sm:$0xff]
    %v429 = vld [vmem:[#allocation10 + $0xb8] sm:$0xff]
    %v430 = vld [vmem:[#allocation10 + $0xc0] sm:$0xff]
    %v431 = vld [vmem:[#allocation10 + $0xc8] sm:$0xff]
    %v432 = vld [vmem:[#allocation10 + $0xd0] sm:$0xff]
    %v433 = vld [vmem:[#allocation10 + $0xd8] sm:$0xff]
    %v434 = vld [vmem:[#allocation10 + $0xe0] sm:$0xff]
    %v435 = vld [vmem:[#allocation10 + $0xe8] sm:$0xff]
    %v436 = vld [vmem:[#allocation10 + $0xf0] sm:$0xff]
    %v437 = vld [vmem:[#allocation10 + $0xf8] sm:$0xff]
    %v438 = vld [vmem:[#allocation10 + $0x100] sm:$0xff]
    %v439 = vld [vmem:[#allocation10 + $0x108] sm:$0xff]
    %v440 = vld [vmem:[#allocation10 + $0x110] sm:$0xff]
    %v441 = vld [vmem:[#allocation10 + $0x118] sm:$0xff]
    %v442 = vld [vmem:[#allocation10 + $0x120] sm:$0xff]
    %v443 = vld [vmem:[#allocation10 + $0x128] sm:$0xff]
    %v444 = vld [vmem:[#allocation10 + $0x130] sm:$0xff]
    %v445 = vld [vmem:[#allocation10 + $0x138] sm:$0xff]
    %v446 = vld [vmem:[#allocation10 + $0x140] sm:$0xff]
    %v447 = vld [vmem:[#allocation10 + $0x148] sm:$0xff]
    %v448 = vld [vmem:[#allocation10 + $0x150] sm:$0xff]
    %v449 = vld [vmem:[#allocation10 + $0x158] sm:$0xff]
    %v450 = vld [vmem:[#allocation10 + $0x160] sm:$0xff]
    %v451 = vld [vmem:[#allocation10 + $0x168] sm:$0xff]
    %v452 = vld [vmem:[#allocation10 + $0x170] sm:$0xff]
    %v453 = vld [vmem:[#allocation10 + $0x178] sm:$0xff]
    %v454 = vld [vmem:[#allocation10 + $0x180] sm:$0xff]
    %v455 = vld [vmem:[#allocation10 + $0x188] sm:$0xff]
    %v456 = vld [vmem:[#allocation10 + $0x190] sm:$0xff]
    %v457 = vld [vmem:[#allocation10 + $0x198] sm:$0xff]
    %v458 = vld [vmem:[#allocation10 + $0x1a0] sm:$0xff]
    %v459 = vld [vmem:[#allocation10 + $0x1a8] sm:$0xff]
    %v460 = vld [vmem:[#allocation10 + $0x1b0] sm:$0xff]
    %v461 = vld [vmem:[#allocation10 + $0x1b8] sm:$0xff]
    %v462 = vld [vmem:[#allocation10 + $0x1c0] sm:$0xff]
    %v463 = vld [vmem:[#allocation10 + $0x1c8] sm:$0xff]
    %v464 = vld [vmem:[#allocation10 + $0x1d0] sm:$0xff]
    %v465 = vld [vmem:[#allocation10 + $0x1d8] sm:$0xff]
    %v466 = vld [vmem:[#allocation10 + $0x1e0] sm:$0xff]
    %v467 = vld [vmem:[#allocation10 + $0x1e8] sm:$0xff]
    %v468 = vld [vmem:[#allocation10 + $0x1f0] sm:$0xff]
    %v469 = vld [vmem:[#allocation10 + $0x1f8] sm:$0xff]
    %v470 = vld [vmem:[#allocation11] sm:$0xf]
    %v472 = vlaneseq
    %v473 = vshrl.u32 %v472, 7
    %v474 = vsub.s32 0, %v473
    %v475 = vrot.slane %v470, %v474
    %v476 = vlaneseq
    %v477 = vshrl.u32 %v476, 7
    %v478 = vsub.s32 1, %v477
    %v479 = vrot.slane %v470, %v478
    %v480 = vlaneseq
    %v481 = vshrl.u32 %v480, 7
    %v482 = vsub.s32 2, %v481
    %v483 = vrot.slane %v470, %v482
    %v484 = vlaneseq
    %v485 = vshrl.u32 %v484, 7
    %v486 = vsub.s32 3, %v485
    %v487 = vrot.slane %v470, %v486
    %v556 = vunpack.c.l.b16 %v406
    %v557 = vunpack.c.h.b16 %v406
    %v558 = vunpack.c.l.b16 %v407
    %v559 = vunpack.c.h.b16 %v407
    %v560 = vunpack.c.l.b16 %v408
    %v561 = vunpack.c.h.b16 %v408
    %v562 = vunpack.c.l.b16 %v409
    %v563 = vunpack.c.h.b16 %v409
    %v564 = vunpack.c.l.b16 %v410
    %v565 = vunpack.c.h.b16 %v410
    %v566 = vunpack.c.l.b16 %v411
    %v567 = vunpack.c.h.b16 %v411
    %v568 = vunpack.c.l.b16 %v412
    %v569 = vunpack.c.h.b16 %v412
    %v570 = vunpack.c.l.b16 %v413
    %v571 = vunpack.c.h.b16 %v413
    %v572 = vunpack.c.l.b16 %v414
    %v573 = vunpack.c.h.b16 %v414
    %v574 = vunpack.c.l.b16 %v415
    %v575 = vunpack.c.h.b16 %v415
    %v576 = vunpack.c.l.b16 %v416
    %v577 = vunpack.c.h.b16 %v416
    %v578 = vunpack.c.l.b16 %v417
    %v579 = vunpack.c.h.b16 %v417
    %v580 = vunpack.c.l.b16 %v418
    %v581 = vunpack.c.h.b16 %v418
    %v582 = vunpack.c.l.b16 %v419
    %v583 = vunpack.c.h.b16 %v419
    %v584 = vunpack.c.l.b16 %v420
    %v585 = vunpack.c.h.b16 %v420
    %v586 = vunpack.c.l.b16 %v421
    %v587 = vunpack.c.h.b16 %v421
    %v588 = vunpack.c.l.b16 %v422
    %v589 = vunpack.c.h.b16 %v422
    %v590 = vunpack.c.l.b16 %v423
    %v591 = vunpack.c.h.b16 %v423
    %v592 = vunpack.c.l.b16 %v424
    %v593 = vunpack.c.h.b16 %v424
    %v594 = vunpack.c.l.b16 %v425
    %v595 = vunpack.c.h.b16 %v425
    %v596 = vunpack.c.l.b16 %v426
    %v597 = vunpack.c.h.b16 %v426
    %v598 = vunpack.c.l.b16 %v427
    %v599 = vunpack.c.h.b16 %v427
    %v600 = vunpack.c.l.b16 %v428
    %v601 = vunpack.c.h.b16 %v428
    %v602 = vunpack.c.l.b16 %v429
    %v603 = vunpack.c.h.b16 %v429
    %v604 = vunpack.c.l.b16 %v430
    %v605 = vunpack.c.h.b16 %v430
    %v606 = vunpack.c.l.b16 %v431
    %v607 = vunpack.c.h.b16 %v431
    %v608 = vunpack.c.l.b16 %v432
    %v609 = vunpack.c.h.b16 %v432
    %v610 = vunpack.c.l.b16 %v433
    %v611 = vunpack.c.h.b16 %v433
    %v612 = vunpack.c.l.b16 %v434
    %v613 = vunpack.c.h.b16 %v434
    %v614 = vunpack.c.l.b16 %v435
    %v615 = vunpack.c.h.b16 %v435
    %v616 = vunpack.c.l.b16 %v436
    %v617 = vunpack.c.h.b16 %v436
    %v618 = vunpack.c.l.b16 %v437
    %v619 = vunpack.c.h.b16 %v437
    %v620 = vunpack.c.l.b16 %v438
    %v621 = vunpack.c.h.b16 %v438
    %v622 = vunpack.c.l.b16 %v439
    %v623 = vunpack.c.h.b16 %v439
    %v624 = vunpack.c.l.b16 %v440
    %v625 = vunpack.c.h.b16 %v440
    %v626 = vunpack.c.l.b16 %v441
    %v627 = vunpack.c.h.b16 %v441
    %v628 = vunpack.c.l.b16 %v442
    %v629 = vunpack.c.h.b16 %v442
    %v630 = vunpack.c.l.b16 %v443
    %v631 = vunpack.c.h.b16 %v443
    %v632 = vunpack.c.l.b16 %v444
    %v633 = vunpack.c.h.b16 %v444
    %v634 = vunpack.c.l.b16 %v445
    %v635 = vunpack.c.h.b16 %v445
    %v636 = vunpack.c.l.b16 %v446
    %v637 = vunpack.c.h.b16 %v446
    %v638 = vunpack.c.l.b16 %v447
    %v639 = vunpack.c.h.b16 %v447
    %v640 = vunpack.c.l.b16 %v448
    %v641 = vunpack.c.h.b16 %v448
    %v642 = vunpack.c.l.b16 %v449
    %v643 = vunpack.c.h.b16 %v449
    %v644 = vunpack.c.l.b16 %v450
    %v645 = vunpack.c.h.b16 %v450
    %v646 = vunpack.c.l.b16 %v451
    %v647 = vunpack.c.h.b16 %v451
    %v648 = vunpack.c.l.b16 %v452
    %v649 = vunpack.c.h.b16 %v452
    %v650 = vunpack.c.l.b16 %v453
    %v651 = vunpack.c.h.b16 %v453
    %v652 = vunpack.c.l.b16 %v454
    %v653 = vunpack.c.h.b16 %v454
    %v654 = vunpack.c.l.b16 %v455
    %v655 = vunpack.c.h.b16 %v455
    %v656 = vunpack.c.l.b16 %v456
    %v657 = vunpack.c.h.b16 %v456
    %v658 = vunpack.c.l.b16 %v457
    %v659 = vunpack.c.h.b16 %v457
    %v660 = vunpack.c.l.b16 %v458
    %v661 = vunpack.c.h.b16 %v458
    %v662 = vunpack.c.l.b16 %v459
    %v663 = vunpack.c.h.b16 %v459
    %v664 = vunpack.c.l.b16 %v460
    %v665 = vunpack.c.h.b16 %v460
    %v666 = vunpack.c.l.b16 %v461
    %v667 = vunpack.c.h.b16 %v461
    %v668 = vunpack.c.l.b16 %v462
    %v669 = vunpack.c.h.b16 %v462
    %v670 = vunpack.c.l.b16 %v463
    %v671 = vunpack.c.h.b16 %v463
    %v672 = vunpack.c.l.b16 %v464
    %v673 = vunpack.c.h.b16 %v464
    %v674 = vunpack.c.l.b16 %v465
    %v675 = vunpack.c.h.b16 %v465
    %v676 = vunpack.c.l.b16 %v466
    %v677 = vunpack.c.h.b16 %v466
    %v678 = vunpack.c.l.b16 %v467
    %v679 = vunpack.c.h.b16 %v467
    %v680 = vunpack.c.l.b16 %v468
    %v681 = vunpack.c.h.b16 %v468
    %v682 = vunpack.c.l.b16 %v469
    %v683 = vunpack.c.h.b16 %v469
    %v684 = vpack.c.b16 %v560, %v556
    %v685 = vpack.c.b16 %v561, %v557
    %v686 = vpack.c.b16 %v562, %v558
    %v687 = vpack.c.b16 %v563, %v559
    %v688 = vpack.c.b16 %v568, %v564
    %v689 = vpack.c.b16 %v569, %v565
    %v690 = vpack.c.b16 %v570, %v566
    %v691 = vpack.c.b16 %v571, %v567
    %v692 = vpack.c.b16 %v576, %v572
    %v693 = vpack.c.b16 %v577, %v573
    %v694 = vpack.c.b16 %v578, %v574
    %v695 = vpack.c.b16 %v579, %v575
    %v696 = vpack.c.b16 %v584, %v580
    %v697 = vpack.c.b16 %v585, %v581
    %v698 = vpack.c.b16 %v586, %v582
    %v699 = vpack.c.b16 %v587, %v583
    %v700 = vpack.c.b16 %v592, %v588
    %v701 = vpack.c.b16 %v593, %v589
    %v702 = vpack.c.b16 %v594, %v590
    %v703 = vpack.c.b16 %v595, %v591
    %v704 = vpack.c.b16 %v600, %v596
    %v705 = vpack.c.b16 %v601, %v597
    %v706 = vpack.c.b16 %v602, %v598
    %v707 = vpack.c.b16 %v603, %v599
    %v708 = vpack.c.b16 %v608, %v604
    %v709 = vpack.c.b16 %v609, %v605
    %v710 = vpack.c.b16 %v610, %v606
    %v711 = vpack.c.b16 %v611, %v607
    %v712 = vpack.c.b16 %v616, %v612
    %v713 = vpack.c.b16 %v617, %v613
    %v714 = vpack.c.b16 %v618, %v614
    %v715 = vpack.c.b16 %v619, %v615
    %v716 = vpack.c.b16 %v624, %v620
    %v717 = vpack.c.b16 %v625, %v621
    %v718 = vpack.c.b16 %v626, %v622
    %v719 = vpack.c.b16 %v627, %v623
    %v720 = vpack.c.b16 %v632, %v628
    %v721 = vpack.c.b16 %v633, %v629
    %v722 = vpack.c.b16 %v634, %v630
    %v723 = vpack.c.b16 %v635, %v631
    %v724 = vpack.c.b16 %v640, %v636
    %v725 = vpack.c.b16 %v641, %v637
    %v726 = vpack.c.b16 %v642, %v638
    %v727 = vpack.c.b16 %v643, %v639
    %v728 = vpack.c.b16 %v648, %v644
    %v729 = vpack.c.b16 %v649, %v645
    %v730 = vpack.c.b16 %v650, %v646
    %v731 = vpack.c.b16 %v651, %v647
    %v732 = vpack.c.b16 %v656, %v652
    %v733 = vpack.c.b16 %v657, %v653
    %v734 = vpack.c.b16 %v658, %v654
    %v735 = vpack.c.b16 %v659, %v655
    %v736 = vpack.c.b16 %v664, %v660
    %v737 = vpack.c.b16 %v665, %v661
    %v738 = vpack.c.b16 %v666, %v662
    %v739 = vpack.c.b16 %v667, %v663
    %v740 = vpack.c.b16 %v672, %v668
    %v741 = vpack.c.b16 %v673, %v669
    %v742 = vpack.c.b16 %v674, %v670
    %v743 = vpack.c.b16 %v675, %v671
    %v744 = vpack.c.b16 %v680, %v676
    %v745 = vpack.c.b16 %v681, %v677
    %v746 = vpack.c.b16 %v682, %v678
    %v747 = vpack.c.b16 %v683, %v679
    %812 = vmatprep.subr.bf16.mxu0 %v685
    %813 = vmatpush1.bf16.msra.mxu0 %v684
    %814 = vmatprep.subr.bf16.mxu0 %v689
    %815 = vmatpush1.bf16.msra.mxu0 %v688
    %816 = vmatprep.subr.bf16.mxu0 %v693
    %817 = vmatpush1.bf16.msra.mxu0 %v692
    %818 = vmatprep.subr.bf16.mxu0 %v697
    %819 = vmatpush1.bf16.msra.mxu0 %v696
    %820 = vmatprep.subr.bf16.mxu0 %v701
    %821 = vmatpush1.bf16.msra.mxu0 %v700
    %822 = vmatprep.subr.bf16.mxu0 %v705
    %823 = vmatpush1.bf16.msra.mxu0 %v704
    %824 = vmatprep.subr.bf16.mxu0 %v709
    %825 = vmatpush1.bf16.msra.mxu0 %v708
    %826 = vmatprep.subr.bf16.mxu0 %v713
    %827 = vmatpush1.bf16.msra.mxu0 %v712
    %828 = vmatprep.subr.bf16.mxu0 %v717
    %829 = vmatpush1.bf16.msra.mxu0 %v716
    %830 = vmatprep.subr.bf16.mxu0 %v721
    %831 = vmatpush1.bf16.msra.mxu0 %v720
    %832 = vmatprep.subr.bf16.mxu0 %v725
    %833 = vmatpush1.bf16.msra.mxu0 %v724
    %834 = vmatprep.subr.bf16.mxu0 %v729
    %835 = vmatpush1.bf16.msra.mxu0 %v728
    %836 = vmatprep.subr.bf16.mxu0 %v733
    %837 = vmatpush1.bf16.msra.mxu0 %v732
    %838 = vmatprep.subr.bf16.mxu0 %v737
    %839 = vmatpush1.bf16.msra.mxu0 %v736
    %840 = vmatprep.subr.bf16.mxu0 %v741
    %841 = vmatpush1.bf16.msra.mxu0 %v740
    %842 = vmatprep.subr.bf16.mxu0 %v745
    %843 = vmatpush1.bf16.msra.mxu0 %v744
    %844 = vmatprep.mubr.bf16.mxu0 %v405
    %845 = vmatmul.mubr.bf16.gmra.mrb[0].mxu0 %v404
    %v846 = vpop.f32.mrb[0].mxu0
    %v847 = vadd.f32 %v475, %v846
    %v848 = vpop.f32.mrb[0].mxu0
    %v849 = vadd.f32 %v479, %v848
    %v850 = vpop.f32.mrb[0].mxu0
    %v851 = vpop.f32.mrb[0].mxu0
    %852 = vdwg.mxu0
    %853 = vmatprep.subr.bf16.mxu0 %v687
    %854 = vmatpush1.bf16.msra.mxu0 %v686
    %855 = vmatprep.subr.bf16.mxu0 %v691
    %856 = vmatpush1.bf16.msra.mxu0 %v690
    %857 = vmatprep.subr.bf16.mxu0 %v695
    %858 = vmatpush1.bf16.msra.mxu0 %v694
    %859 = vmatprep.subr.bf16.mxu0 %v699
    %860 = vmatpush1.bf16.msra.mxu0 %v698
    %861 = vmatprep.subr.bf16.mxu0 %v703
    %862 = vmatpush1.bf16.msra.mxu0 %v702
    %863 = vmatprep.subr.bf16.mxu0 %v707
    %864 = vmatpush1.bf16.msra.mxu0 %v706
    %865 = vmatprep.subr.bf16.mxu0 %v711
    %866 = vmatpush1.bf16.msra.mxu0 %v710
    %867 = vmatprep.subr.bf16.mxu0 %v715
    %868 = vmatpush1.bf16.msra.mxu0 %v714
    %869 = vmatprep.subr.bf16.mxu0 %v719
    %870 = vmatpush1.bf16.msra.mxu0 %v718
    %871 = vmatprep.subr.bf16.mxu0 %v723
    %872 = vmatpush1.bf16.msra.mxu0 %v722
    %873 = vmatprep.subr.bf16.mxu0 %v727
    %874 = vmatpush1.bf16.msra.mxu0 %v726
    %875 = vmatprep.subr.bf16.mxu0 %v731
    %876 = vmatpush1.bf16.msra.mxu0 %v730
    %877 = vmatprep.subr.bf16.mxu0 %v735
    %878 = vmatpush1.bf16.msra.mxu0 %v734
    %879 = vmatprep.subr.bf16.mxu0 %v739
    %880 = vmatpush1.bf16.msra.mxu0 %v738
    %881 = vmatprep.subr.bf16.mxu0 %v743
    %882 = vmatpush1.bf16.msra.mxu0 %v742
    %883 = vmatprep.subr.bf16.mxu0 %v747
    %884 = vmatpush1.bf16.msra.mxu0 %v746
    %885 = vmatprep.mubr.bf16.mxu0 %v405
    %886 = vmatmul.mubr.bf16.gmra.mrb[0].mxu0 %v404
    %v887 = vpop.f32.mrb[0].mxu0
    %v888 = vadd.f32 %v483, %v887
    %v889 = vpop.f32.mrb[0].mxu0
    %v890 = vadd.f32 %v487, %v889
    %v891 = vpop.f32.mrb[0].mxu0
    %v892 = vpop.f32.mrb[0].mxu0
    %893 = vdwg.mxu0
    %v894 = vmax.f32 %v847, 0.0
    %v895 = vmax.f32 %v849, 0.0
    %v896 = vmax.f32 %v888, 0.0
    %v897 = vmax.f32 %v890, 0.0
    %v898 = vpack.c.bf16 %v894, %v894
    %v899 = vpack.c.bf16 %v895, %v895
    %v900 = vpack.c.bf16 %v896, %v896
    %v901 = vpack.c.bf16 %v897, %v897
    %v902 = vld [vmem:[#allocation13] sm:$0xff]
    %v903 = vld [vmem:[#allocation13 + $0x8] sm:$0xff]
    %v904 = vld [vmem:[#allocation13 + $0x10] sm:$0xff]
    %v905 = vld [vmem:[#allocation13 + $0x18] sm:$0xff]
    %v906 = vld [vmem:[#allocation13 + $0x20] sm:$0xff]
    %v907 = vld [vmem:[#allocation13 + $0x28] sm:$0xff]
    %v908 = vld [vmem:[#allocation13 + $0x30] sm:$0xff]
    %v909 = vld [vmem:[#allocation13 + $0x38] sm:$0xff]
    %v910 = vld [vmem:[#allocation13 + $0x40] sm:$0xff]
    %v911 = vld [vmem:[#allocation13 + $0x48] sm:$0xff]
    %v912 = vld [vmem:[#allocation13 + $0x50] sm:$0xff]
    %v913 = vld [vmem:[#allocation13 + $0x58] sm:$0xff]
    %v914 = vld [vmem:[#allocation13 + $0x60] sm:$0xff]
    %v915 = vld [vmem:[#allocation13 + $0x68] sm:$0xff]
    %v916 = vld [vmem:[#allocation13 + $0x70] sm:$0xff]
    %v917 = vld [vmem:[#allocation13 + $0x78] sm:$0xff]
    %v918 = vld [vmem:[#allocation13 + $0x80] sm:$0xff]
    %v919 = vld [vmem:[#allocation13 + $0x88] sm:$0xff]
    %v920 = vld [vmem:[#allocation13 + $0x90] sm:$0xff]
    %v921 = vld [vmem:[#allocation13 + $0x98] sm:$0xff]
    %v922 = vld [vmem:[#allocation13 + $0xa0] sm:$0xff]
    %v923 = vld [vmem:[#allocation13 + $0xa8] sm:$0xff]
    %v924 = vld [vmem:[#allocation13 + $0xb0] sm:$0xff]
    %v925 = vld [vmem:[#allocation13 + $0xb8] sm:$0xff]
    %v926 = vld [vmem:[#allocation13 + $0xc0] sm:$0xff]
    %v927 = vld [vmem:[#allocation13 + $0xc8] sm:$0xff]
    %v928 = vld [vmem:[#allocation13 + $0xd0] sm:$0xff]
    %v929 = vld [vmem:[#allocation13 + $0xd8] sm:$0xff]
    %v930 = vld [vmem:[#allocation13 + $0xe0] sm:$0xff]
    %v931 = vld [vmem:[#allocation13 + $0xe8] sm:$0xff]
    %v932 = vld [vmem:[#allocation13 + $0xf0] sm:$0xff]
    %v933 = vld [vmem:[#allocation13 + $0xf8] sm:$0xff]
    %v934 = vld [vmem:[#allocation13 + $0x100] sm:$0xff]
    %v935 = vld [vmem:[#allocation13 + $0x108] sm:$0xff]
    %v936 = vld [vmem:[#allocation13 + $0x110] sm:$0xff]
    %v937 = vld [vmem:[#allocation13 + $0x118] sm:$0xff]
    %v938 = vld [vmem:[#allocation13 + $0x120] sm:$0xff]
    %v939 = vld [vmem:[#allocation13 + $0x128] sm:$0xff]
    %v940 = vld [vmem:[#allocation13 + $0x130] sm:$0xff]
    %v941 = vld [vmem:[#allocation13 + $0x138] sm:$0xff]
    %v942 = vld [vmem:[#allocation13 + $0x140] sm:$0xff]
    %v943 = vld [vmem:[#allocation13 + $0x148] sm:$0xff]
    %v944 = vld [vmem:[#allocation13 + $0x150] sm:$0xff]
    %v945 = vld [vmem:[#allocation13 + $0x158] sm:$0xff]
    %v946 = vld [vmem:[#allocation13 + $0x160] sm:$0xff]
    %v947 = vld [vmem:[#allocation13 + $0x168] sm:$0xff]
    %v948 = vld [vmem:[#allocation13 + $0x170] sm:$0xff]
    %v949 = vld [vmem:[#allocation13 + $0x178] sm:$0xff]
    %v950 = vld [vmem:[#allocation13 + $0x180] sm:$0xff]
    %v951 = vld [vmem:[#allocation13 + $0x188] sm:$0xff]
    %v952 = vld [vmem:[#allocation13 + $0x190] sm:$0xff]
    %v953 = vld [vmem:[#allocation13 + $0x198] sm:$0xff]
    %v954 = vld [vmem:[#allocation13 + $0x1a0] sm:$0xff]
    %v955 = vld [vmem:[#allocation13 + $0x1a8] sm:$0xff]
    %v956 = vld [vmem:[#allocation13 + $0x1b0] sm:$0xff]
    %v957 = vld [vmem:[#allocation13 + $0x1b8] sm:$0xff]
    %v958 = vld [vmem:[#allocation13 + $0x1c0] sm:$0xff]
    %v959 = vld [vmem:[#allocation13 + $0x1c8] sm:$0xff]
    %v960 = vld [vmem:[#allocation13 + $0x1d0] sm:$0xff]
    %v961 = vld [vmem:[#allocation13 + $0x1d8] sm:$0xff]
    %v962 = vld [vmem:[#allocation13 + $0x1e0] sm:$0xff]
    %v963 = vld [vmem:[#allocation13 + $0x1e8] sm:$0xff]
    %v964 = vld [vmem:[#allocation13 + $0x1f0] sm:$0xff]
    %v965 = vld [vmem:[#allocation13 + $0x1f8] sm:$0xff]
    %v966 = vld [vmem:[#allocation13 + $0x200] sm:$0xff]
    %v967 = vld [vmem:[#allocation13 + $0x208] sm:$0xff]
    %v968 = vld [vmem:[#allocation13 + $0x210] sm:$0xff]
    %v969 = vld [vmem:[#allocation13 + $0x218] sm:$0xff]
    %v970 = vld [vmem:[#allocation13 + $0x220] sm:$0xff]
    %v971 = vld [vmem:[#allocation13 + $0x228] sm:$0xff]
    %v972 = vld [vmem:[#allocation13 + $0x230] sm:$0xff]
    %v973 = vld [vmem:[#allocation13 + $0x238] sm:$0xff]
    %v974 = vld [vmem:[#allocation13 + $0x240] sm:$0xff]
    %v975 = vld [vmem:[#allocation13 + $0x248] sm:$0xff]
    %v976 = vld [vmem:[#allocation13 + $0x250] sm:$0xff]
    %v977 = vld [vmem:[#allocation13 + $0x258] sm:$0xff]
    %v978 = vld [vmem:[#allocation13 + $0x260] sm:$0xff]
    %v979 = vld [vmem:[#allocation13 + $0x268] sm:$0xff]
    %v980 = vld [vmem:[#allocation13 + $0x270] sm:$0xff]
    %v981 = vld [vmem:[#allocation13 + $0x278] sm:$0xff]
    %v982 = vld [vmem:[#allocation13 + $0x280] sm:$0xff]
    %v983 = vld [vmem:[#allocation13 + $0x288] sm:$0xff]
    %v984 = vld [vmem:[#allocation13 + $0x290] sm:$0xff]
    %v985 = vld [vmem:[#allocation13 + $0x298] sm:$0xff]
    %v986 = vld [vmem:[#allocation13 + $0x2a0] sm:$0xff]
    %v987 = vld [vmem:[#allocation13 + $0x2a8] sm:$0xff]
    %v988 = vld [vmem:[#allocation13 + $0x2b0] sm:$0xff]
    %v989 = vld [vmem:[#allocation13 + $0x2b8] sm:$0xff]
    %v990 = vld [vmem:[#allocation13 + $0x2c0] sm:$0xff]
    %v991 = vld [vmem:[#allocation13 + $0x2c8] sm:$0xff]
    %v992 = vld [vmem:[#allocation13 + $0x2d0] sm:$0xff]
    %v993 = vld [vmem:[#allocation13 + $0x2d8] sm:$0xff]
    %v994 = vld [vmem:[#allocation13 + $0x2e0] sm:$0xff]
    %v995 = vld [vmem:[#allocation13 + $0x2e8] sm:$0xff]
    %v996 = vld [vmem:[#allocation13 + $0x2f0] sm:$0xff]
    %v997 = vld [vmem:[#allocation13 + $0x2f8] sm:$0xff]
    %v998 = vld [vmem:[#allocation13 + $0x300] sm:$0xff]
    %v999 = vld [vmem:[#allocation13 + $0x308] sm:$0xff]
    %v1000 = vld [vmem:[#allocation13 + $0x310] sm:$0xff]
    %v1001 = vld [vmem:[#allocation13 + $0x318] sm:$0xff]
    %v1002 = vld [vmem:[#allocation13 + $0x320] sm:$0xff]
    %v1003 = vld [vmem:[#allocation13 + $0x328] sm:$0xff]
    %v1004 = vld [vmem:[#allocation13 + $0x330] sm:$0xff]
    %v1005 = vld [vmem:[#allocation13 + $0x338] sm:$0xff]
    %v1006 = vld [vmem:[#allocation13 + $0x340] sm:$0xff]
    %v1007 = vld [vmem:[#allocation13 + $0x348] sm:$0xff]
    %v1008 = vld [vmem:[#allocation13 + $0x350] sm:$0xff]
    %v1009 = vld [vmem:[#allocation13 + $0x358] sm:$0xff]
    %v1010 = vld [vmem:[#allocation13 + $0x360] sm:$0xff]
    %v1011 = vld [vmem:[#allocation13 + $0x368] sm:$0xff]
    %v1012 = vld [vmem:[#allocation13 + $0x370] sm:$0xff]
    %v1013 = vld [vmem:[#allocation13 + $0x378] sm:$0xff]
    %v1014 = vld [vmem:[#allocation13 + $0x380] sm:$0xff]
    %v1015 = vld [vmem:[#allocation13 + $0x388] sm:$0xff]
    %v1016 = vld [vmem:[#allocation13 + $0x390] sm:$0xff]
    %v1017 = vld [vmem:[#allocation13 + $0x398] sm:$0xff]
    %v1018 = vld [vmem:[#allocation13 + $0x3a0] sm:$0xff]
    %v1019 = vld [vmem:[#allocation13 + $0x3a8] sm:$0xff]
    %v1020 = vld [vmem:[#allocation13 + $0x3b0] sm:$0xff]
    %v1021 = vld [vmem:[#allocation13 + $0x3b8] sm:$0xff]
    %v1022 = vld [vmem:[#allocation13 + $0x3c0] sm:$0xff]
    %v1023 = vld [vmem:[#allocation13 + $0x3c8] sm:$0xff]
    %v1024 = vld [vmem:[#allocation13 + $0x3d0] sm:$0xff]
    %v1025 = vld [vmem:[#allocation13 + $0x3d8] sm:$0xff]
    %v1026 = vld [vmem:[#allocation13 + $0x3e0] sm:$0xff]
    %v1027 = vld [vmem:[#allocation13 + $0x3e8] sm:$0xff]
    %v1028 = vld [vmem:[#allocation13 + $0x3f0] sm:$0xff]
    %v1029 = vld [vmem:[#allocation13 + $0x3f8] sm:$0xff]
    %v1030 = vld [vmem:[#allocation13 + $0x400] sm:$0xff]
    %v1031 = vld [vmem:[#allocation13 + $0x408] sm:$0xff]
    %v1032 = vld [vmem:[#allocation13 + $0x410] sm:$0xff]
    %v1033 = vld [vmem:[#allocation13 + $0x418] sm:$0xff]
    %v1034 = vld [vmem:[#allocation13 + $0x420] sm:$0xff]
    %v1035 = vld [vmem:[#allocation13 + $0x428] sm:$0xff]
    %v1036 = vld [vmem:[#allocation13 + $0x430] sm:$0xff]
    %v1037 = vld [vmem:[#allocation13 + $0x438] sm:$0xff]
    %v1038 = vld [vmem:[#allocation13 + $0x440] sm:$0xff]
    %v1039 = vld [vmem:[#allocation13 + $0x448] sm:$0xff]
    %v1040 = vld [vmem:[#allocation13 + $0x450] sm:$0xff]
    %v1041 = vld [vmem:[#allocation13 + $0x458] sm:$0xff]
    %v1042 = vld [vmem:[#allocation13 + $0x460] sm:$0xff]
    %v1043 = vld [vmem:[#allocation13 + $0x468] sm:$0xff]
    %v1044 = vld [vmem:[#allocation13 + $0x470] sm:$0xff]
    %v1045 = vld [vmem:[#allocation13 + $0x478] sm:$0xff]
    %v1046 = vld [vmem:[#allocation13 + $0x480] sm:$0xff]
    %v1047 = vld [vmem:[#allocation13 + $0x488] sm:$0xff]
    %v1048 = vld [vmem:[#allocation13 + $0x490] sm:$0xff]
    %v1049 = vld [vmem:[#allocation13 + $0x498] sm:$0xff]
    %v1050 = vld [vmem:[#allocation13 + $0x4a0] sm:$0xff]
    %v1051 = vld [vmem:[#allocation13 + $0x4a8] sm:$0xff]
    %v1052 = vld [vmem:[#allocation13 + $0x4b0] sm:$0xff]
    %v1053 = vld [vmem:[#allocation13 + $0x4b8] sm:$0xff]
    %v1054 = vld [vmem:[#allocation13 + $0x4c0] sm:$0xff]
    %v1055 = vld [vmem:[#allocation13 + $0x4c8] sm:$0xff]
    %v1056 = vld [vmem:[#allocation13 + $0x4d0] sm:$0xff]
    %v1057 = vld [vmem:[#allocation13 + $0x4d8] sm:$0xff]
    %v1058 = vld [vmem:[#allocation13 + $0x4e0] sm:$0xff]
    %v1059 = vld [vmem:[#allocation13 + $0x4e8] sm:$0xff]
    %v1060 = vld [vmem:[#allocation13 + $0x4f0] sm:$0xff]
    %v1061 = vld [vmem:[#allocation13 + $0x4f8] sm:$0xff]
    %v1062 = vld [vmem:[#allocation13 + $0x500] sm:$0xff]
    %v1063 = vld [vmem:[#allocation13 + $0x508] sm:$0xff]
    %v1064 = vld [vmem:[#allocation13 + $0x510] sm:$0xff]
    %v1065 = vld [vmem:[#allocation13 + $0x518] sm:$0xff]
    %v1066 = vld [vmem:[#allocation13 + $0x520] sm:$0xff]
    %v1067 = vld [vmem:[#allocation13 + $0x528] sm:$0xff]
    %v1068 = vld [vmem:[#allocation13 + $0x530] sm:$0xff]
    %v1069 = vld [vmem:[#allocation13 + $0x538] sm:$0xff]
    %v1070 = vld [vmem:[#allocation13 + $0x540] sm:$0xff]
    %v1071 = vld [vmem:[#allocation13 + $0x548] sm:$0xff]
    %v1072 = vld [vmem:[#allocation13 + $0x550] sm:$0xff]
    %v1073 = vld [vmem:[#allocation13 + $0x558] sm:$0xff]
    %v1074 = vld [vmem:[#allocation13 + $0x560] sm:$0xff]
    %v1075 = vld [vmem:[#allocation13 + $0x568] sm:$0xff]
    %v1076 = vld [vmem:[#allocation13 + $0x570] sm:$0xff]
    %v1077 = vld [vmem:[#allocation13 + $0x578] sm:$0xff]
    %v1078 = vld [vmem:[#allocation13 + $0x580] sm:$0xff]
    %v1079 = vld [vmem:[#allocation13 + $0x588] sm:$0xff]
    %v1080 = vld [vmem:[#allocation13 + $0x590] sm:$0xff]
    %v1081 = vld [vmem:[#allocation13 + $0x598] sm:$0xff]
    %v1082 = vld [vmem:[#allocation13 + $0x5a0] sm:$0xff]
    %v1083 = vld [vmem:[#allocation13 + $0x5a8] sm:$0xff]
    %v1084 = vld [vmem:[#allocation13 + $0x5b0] sm:$0xff]
    %v1085 = vld [vmem:[#allocation13 + $0x5b8] sm:$0xff]
    %v1086 = vld [vmem:[#allocation13 + $0x5c0] sm:$0xff]
    %v1087 = vld [vmem:[#allocation13 + $0x5c8] sm:$0xff]
    %v1088 = vld [vmem:[#allocation13 + $0x5d0] sm:$0xff]
    %v1089 = vld [vmem:[#allocation13 + $0x5d8] sm:$0xff]
    %v1090 = vld [vmem:[#allocation13 + $0x5e0] sm:$0xff]
    %v1091 = vld [vmem:[#allocation13 + $0x5e8] sm:$0xff]
    %v1092 = vld [vmem:[#allocation13 + $0x5f0] sm:$0xff]
    %v1093 = vld [vmem:[#allocation13 + $0x5f8] sm:$0xff]
    %v1094 = vld [vmem:[#allocation13 + $0x600] sm:$0xff]
    %v1095 = vld [vmem:[#allocation13 + $0x608] sm:$0xff]
    %v1096 = vld [vmem:[#allocation13 + $0x610] sm:$0xff]
    %v1097 = vld [vmem:[#allocation13 + $0x618] sm:$0xff]
    %v1098 = vld [vmem:[#allocation13 + $0x620] sm:$0xff]
    %v1099 = vld [vmem:[#allocation13 + $0x628] sm:$0xff]
    %v1100 = vld [vmem:[#allocation13 + $0x630] sm:$0xff]
    %v1101 = vld [vmem:[#allocation13 + $0x638] sm:$0xff]
    %v1102 = vld [vmem:[#allocation13 + $0x640] sm:$0xff]
    %v1103 = vld [vmem:[#allocation13 + $0x648] sm:$0xff]
    %v1104 = vld [vmem:[#allocation13 + $0x650] sm:$0xff]
    %v1105 = vld [vmem:[#allocation13 + $0x658] sm:$0xff]
    %v1106 = vld [vmem:[#allocation13 + $0x660] sm:$0xff]
    %v1107 = vld [vmem:[#allocation13 + $0x668] sm:$0xff]
    %v1108 = vld [vmem:[#allocation13 + $0x670] sm:$0xff]
    %v1109 = vld [vmem:[#allocation13 + $0x678] sm:$0xff]
    %v1110 = vld [vmem:[#allocation13 + $0x680] sm:$0xff]
    %v1111 = vld [vmem:[#allocation13 + $0x688] sm:$0xff]
    %v1112 = vld [vmem:[#allocation13 + $0x690] sm:$0xff]
    %v1113 = vld [vmem:[#allocation13 + $0x698] sm:$0xff]
    %v1114 = vld [vmem:[#allocation13 + $0x6a0] sm:$0xff]
    %v1115 = vld [vmem:[#allocation13 + $0x6a8] sm:$0xff]
    %v1116 = vld [vmem:[#allocation13 + $0x6b0] sm:$0xff]
    %v1117 = vld [vmem:[#allocation13 + $0x6b8] sm:$0xff]
    %v1118 = vld [vmem:[#allocation13 + $0x6c0] sm:$0xff]
    %v1119 = vld [vmem:[#allocation13 + $0x6c8] sm:$0xff]
    %v1120 = vld [vmem:[#allocation13 + $0x6d0] sm:$0xff]
    %v1121 = vld [vmem:[#allocation13 + $0x6d8] sm:$0xff]
    %v1122 = vld [vmem:[#allocation13 + $0x6e0] sm:$0xff]
    %v1123 = vld [vmem:[#allocation13 + $0x6e8] sm:$0xff]
    %v1124 = vld [vmem:[#allocation13 + $0x6f0] sm:$0xff]
    %v1125 = vld [vmem:[#allocation13 + $0x6f8] sm:$0xff]
    %v1126 = vld [vmem:[#allocation13 + $0x700] sm:$0xff]
    %v1127 = vld [vmem:[#allocation13 + $0x708] sm:$0xff]
    %v1128 = vld [vmem:[#allocation13 + $0x710] sm:$0xff]
    %v1129 = vld [vmem:[#allocation13 + $0x718] sm:$0xff]
    %v1130 = vld [vmem:[#allocation13 + $0x720] sm:$0xff]
    %v1131 = vld [vmem:[#allocation13 + $0x728] sm:$0xff]
    %v1132 = vld [vmem:[#allocation13 + $0x730] sm:$0xff]
    %v1133 = vld [vmem:[#allocation13 + $0x738] sm:$0xff]
    %v1134 = vld [vmem:[#allocation13 + $0x740] sm:$0xff]
    %v1135 = vld [vmem:[#allocation13 + $0x748] sm:$0xff]
    %v1136 = vld [vmem:[#allocation13 + $0x750] sm:$0xff]
    %v1137 = vld [vmem:[#allocation13 + $0x758] sm:$0xff]
    %v1138 = vld [vmem:[#allocation13 + $0x760] sm:$0xff]
    %v1139 = vld [vmem:[#allocation13 + $0x768] sm:$0xff]
    %v1140 = vld [vmem:[#allocation13 + $0x770] sm:$0xff]
    %v1141 = vld [vmem:[#allocation13 + $0x778] sm:$0xff]
    %v1142 = vld [vmem:[#allocation13 + $0x780] sm:$0xff]
    %v1143 = vld [vmem:[#allocation13 + $0x788] sm:$0xff]
    %v1144 = vld [vmem:[#allocation13 + $0x790] sm:$0xff]
    %v1145 = vld [vmem:[#allocation13 + $0x798] sm:$0xff]
    %v1146 = vld [vmem:[#allocation13 + $0x7a0] sm:$0xff]
    %v1147 = vld [vmem:[#allocation13 + $0x7a8] sm:$0xff]
    %v1148 = vld [vmem:[#allocation13 + $0x7b0] sm:$0xff]
    %v1149 = vld [vmem:[#allocation13 + $0x7b8] sm:$0xff]
    %v1150 = vld [vmem:[#allocation13 + $0x7c0] sm:$0xff]
    %v1151 = vld [vmem:[#allocation13 + $0x7c8] sm:$0xff]
    %v1152 = vld [vmem:[#allocation13 + $0x7d0] sm:$0xff]
    %v1153 = vld [vmem:[#allocation13 + $0x7d8] sm:$0xff]
    %v1154 = vld [vmem:[#allocation13 + $0x7e0] sm:$0xff]
    %v1155 = vld [vmem:[#allocation13 + $0x7e8] sm:$0xff]
    %v1156 = vld [vmem:[#allocation13 + $0x7f0] sm:$0xff]
    %v1157 = vld [vmem:[#allocation13 + $0x7f8] sm:$0xff]
    %v1158 = vld [vmem:[#allocation14] sm:$0xff]
    %v1160 = vlaneseq
    %v1161 = vshrl.u32 %v1160, 7
    %v1162 = vsub.s32 0, %v1161
    %v1163 = vrot.slane %v1158, %v1162
    %v1164 = vlaneseq
    %v1165 = vshrl.u32 %v1164, 7
    %v1166 = vsub.s32 1, %v1165
    %v1167 = vrot.slane %v1158, %v1166
    %v1168 = vlaneseq
    %v1169 = vshrl.u32 %v1168, 7
    %v1170 = vsub.s32 2, %v1169
    %v1171 = vrot.slane %v1158, %v1170
    %v1172 = vlaneseq
    %v1173 = vshrl.u32 %v1172, 7
    %v1174 = vsub.s32 3, %v1173
    %v1175 = vrot.slane %v1158, %v1174
    %v1176 = vlaneseq
    %v1177 = vshrl.u32 %v1176, 7
    %v1178 = vsub.s32 4, %v1177
    %v1179 = vrot.slane %v1158, %v1178
    %v1180 = vlaneseq
    %v1181 = vshrl.u32 %v1180, 7
    %v1182 = vsub.s32 5, %v1181
    %v1183 = vrot.slane %v1158, %v1182
    %v1184 = vlaneseq
    %v1185 = vshrl.u32 %v1184, 7
    %v1186 = vsub.s32 6, %v1185
    %v1187 = vrot.slane %v1158, %v1186
    %v1188 = vlaneseq
    %v1189 = vshrl.u32 %v1188, 7
    %v1190 = vsub.s32 7, %v1189
    %v1191 = vrot.slane %v1158, %v1190
    %v1456 = vunpack.c.l.b16 %v902
    %v1457 = vunpack.c.h.b16 %v902
    %v1458 = vunpack.c.l.b16 %v903
    %v1459 = vunpack.c.h.b16 %v903
    %v1460 = vunpack.c.l.b16 %v904
    %v1461 = vunpack.c.h.b16 %v904
    %v1462 = vunpack.c.l.b16 %v905
    %v1463 = vunpack.c.h.b16 %v905
    %v1464 = vunpack.c.l.b16 %v906
    %v1465 = vunpack.c.h.b16 %v906
    %v1466 = vunpack.c.l.b16 %v907
    %v1467 = vunpack.c.h.b16 %v907
    %v1468 = vunpack.c.l.b16 %v908
    %v1469 = vunpack.c.h.b16 %v908
    %v1470 = vunpack.c.l.b16 %v909
    %v1471 = vunpack.c.h.b16 %v909
    %v1472 = vunpack.c.l.b16 %v910
    %v1473 = vunpack.c.h.b16 %v910
    %v1474 = vunpack.c.l.b16 %v911
    %v1475 = vunpack.c.h.b16 %v911
    %v1476 = vunpack.c.l.b16 %v912
    %v1477 = vunpack.c.h.b16 %v912
    %v1478 = vunpack.c.l.b16 %v913
    %v1479 = vunpack.c.h.b16 %v913
    %v1480 = vunpack.c.l.b16 %v914
    %v1481 = vunpack.c.h.b16 %v914
    %v1482 = vunpack.c.l.b16 %v915
    %v1483 = vunpack.c.h.b16 %v915
    %v1484 = vunpack.c.l.b16 %v916
    %v1485 = vunpack.c.h.b16 %v916
    %v1486 = vunpack.c.l.b16 %v917
    %v1487 = vunpack.c.h.b16 %v917
    %v1488 = vunpack.c.l.b16 %v918
    %v1489 = vunpack.c.h.b16 %v918
    %v1490 = vunpack.c.l.b16 %v919
    %v1491 = vunpack.c.h.b16 %v919
    %v1492 = vunpack.c.l.b16 %v920
    %v1493 = vunpack.c.h.b16 %v920
    %v1494 = vunpack.c.l.b16 %v921
    %v1495 = vunpack.c.h.b16 %v921
    %v1496 = vunpack.c.l.b16 %v922
    %v1497 = vunpack.c.h.b16 %v922
    %v1498 = vunpack.c.l.b16 %v923
    %v1499 = vunpack.c.h.b16 %v923
    %v1500 = vunpack.c.l.b16 %v924
    %v1501 = vunpack.c.h.b16 %v924
    %v1502 = vunpack.c.l.b16 %v925
    %v1503 = vunpack.c.h.b16 %v925
    %v1504 = vunpack.c.l.b16 %v926
    %v1505 = vunpack.c.h.b16 %v926
    %v1506 = vunpack.c.l.b16 %v927
    %v1507 = vunpack.c.h.b16 %v927
    %v1508 = vunpack.c.l.b16 %v928
    %v1509 = vunpack.c.h.b16 %v928
    %v1510 = vunpack.c.l.b16 %v929
    %v1511 = vunpack.c.h.b16 %v929
    %v1512 = vunpack.c.l.b16 %v930
    %v1513 = vunpack.c.h.b16 %v930
    %v1514 = vunpack.c.l.b16 %v931
    %v1515 = vunpack.c.h.b16 %v931
    %v1516 = vunpack.c.l.b16 %v932
    %v1517 = vunpack.c.h.b16 %v932
    %v1518 = vunpack.c.l.b16 %v933
    %v1519 = vunpack.c.h.b16 %v933
    %v1520 = vunpack.c.l.b16 %v934
    %v1521 = vunpack.c.h.b16 %v934
    %v1522 = vunpack.c.l.b16 %v935
    %v1523 = vunpack.c.h.b16 %v935
    %v1524 = vunpack.c.l.b16 %v936
    %v1525 = vunpack.c.h.b16 %v936
    %v1526 = vunpack.c.l.b16 %v937
    %v1527 = vunpack.c.h.b16 %v937
    %v1528 = vunpack.c.l.b16 %v938
    %v1529 = vunpack.c.h.b16 %v938
    %v1530 = vunpack.c.l.b16 %v939
    %v1531 = vunpack.c.h.b16 %v939
    %v1532 = vunpack.c.l.b16 %v940
    %v1533 = vunpack.c.h.b16 %v940
    %v1534 = vunpack.c.l.b16 %v941
    %v1535 = vunpack.c.h.b16 %v941
    %v1536 = vunpack.c.l.b16 %v942
    %v1537 = vunpack.c.h.b16 %v942
    %v1538 = vunpack.c.l.b16 %v943
    %v1539 = vunpack.c.h.b16 %v943
    %v1540 = vunpack.c.l.b16 %v944
    %v1541 = vunpack.c.h.b16 %v944
    %v1542 = vunpack.c.l.b16 %v945
    %v1543 = vunpack.c.h.b16 %v945
    %v1544 = vunpack.c.l.b16 %v946
    %v1545 = vunpack.c.h.b16 %v946
    %v1546 = vunpack.c.l.b16 %v947
    %v1547 = vunpack.c.h.b16 %v947
    %v1548 = vunpack.c.l.b16 %v948
    %v1549 = vunpack.c.h.b16 %v948
    %v1550 = vunpack.c.l.b16 %v949
    %v1551 = vunpack.c.h.b16 %v949
    %v1552 = vunpack.c.l.b16 %v950
    %v1553 = vunpack.c.h.b16 %v950
    %v1554 = vunpack.c.l.b16 %v951
    %v1555 = vunpack.c.h.b16 %v951
    %v1556 = vunpack.c.l.b16 %v952
    %v1557 = vunpack.c.h.b16 %v952
    %v1558 = vunpack.c.l.b16 %v953
    %v1559 = vunpack.c.h.b16 %v953
    %v1560 = vunpack.c.l.b16 %v954
    %v1561 = vunpack.c.h.b16 %v954
    %v1562 = vunpack.c.l.b16 %v955
    %v1563 = vunpack.c.h.b16 %v955
    %v1564 = vunpack.c.l.b16 %v956
    %v1565 = vunpack.c.h.b16 %v956
    %v1566 = vunpack.c.l.b16 %v957
    %v1567 = vunpack.c.h.b16 %v957
    %v1568 = vunpack.c.l.b16 %v958
    %v1569 = vunpack.c.h.b16 %v958
    %v1570 = vunpack.c.l.b16 %v959
    %v1571 = vunpack.c.h.b16 %v959
    %v1572 = vunpack.c.l.b16 %v960
    %v1573 = vunpack.c.h.b16 %v960
    %v1574 = vunpack.c.l.b16 %v961
    %v1575 = vunpack.c.h.b16 %v961
    %v1576 = vunpack.c.l.b16 %v962
    %v1577 = vunpack.c.h.b16 %v962
    %v1578 = vunpack.c.l.b16 %v963
    %v1579 = vunpack.c.h.b16 %v963
    %v1580 = vunpack.c.l.b16 %v964
    %v1581 = vunpack.c.h.b16 %v964
    %v1582 = vunpack.c.l.b16 %v965
    %v1583 = vunpack.c.h.b16 %v965
    %v1584 = vunpack.c.l.b16 %v966
    %v1585 = vunpack.c.h.b16 %v966
    %v1586 = vunpack.c.l.b16 %v967
    %v1587 = vunpack.c.h.b16 %v967
    %v1588 = vunpack.c.l.b16 %v968
    %v1589 = vunpack.c.h.b16 %v968
    %v1590 = vunpack.c.l.b16 %v969
    %v1591 = vunpack.c.h.b16 %v969
    %v1592 = vunpack.c.l.b16 %v970
    %v1593 = vunpack.c.h.b16 %v970
    %v1594 = vunpack.c.l.b16 %v971
    %v1595 = vunpack.c.h.b16 %v971
    %v1596 = vunpack.c.l.b16 %v972
    %v1597 = vunpack.c.h.b16 %v972
    %v1598 = vunpack.c.l.b16 %v973
    %v1599 = vunpack.c.h.b16 %v973
    %v1600 = vunpack.c.l.b16 %v974
    %v1601 = vunpack.c.h.b16 %v974
    %v1602 = vunpack.c.l.b16 %v975
    %v1603 = vunpack.c.h.b16 %v975
    %v1604 = vunpack.c.l.b16 %v976
    %v1605 = vunpack.c.h.b16 %v976
    %v1606 = vunpack.c.l.b16 %v977
    %v1607 = vunpack.c.h.b16 %v977
    %v1608 = vunpack.c.l.b16 %v978
    %v1609 = vunpack.c.h.b16 %v978
    %v1610 = vunpack.c.l.b16 %v979
    %v1611 = vunpack.c.h.b16 %v979
    %v1612 = vunpack.c.l.b16 %v980
    %v1613 = vunpack.c.h.b16 %v980
    %v1614 = vunpack.c.l.b16 %v981
    %v1615 = vunpack.c.h.b16 %v981
    %v1616 = vunpack.c.l.b16 %v982
    %v1617 = vunpack.c.h.b16 %v982
    %v1618 = vunpack.c.l.b16 %v983
    %v1619 = vunpack.c.h.b16 %v983
    %v1620 = vunpack.c.l.b16 %v984
    %v1621 = vunpack.c.h.b16 %v984
    %v1622 = vunpack.c.l.b16 %v985
    %v1623 = vunpack.c.h.b16 %v985
    %v1624 = vunpack.c.l.b16 %v986
    %v1625 = vunpack.c.h.b16 %v986
    %v1626 = vunpack.c.l.b16 %v987
    %v1627 = vunpack.c.h.b16 %v987
    %v1628 = vunpack.c.l.b16 %v988
    %v1629 = vunpack.c.h.b16 %v988
    %v1630 = vunpack.c.l.b16 %v989
    %v1631 = vunpack.c.h.b16 %v989
    %v1632 = vunpack.c.l.b16 %v990
    %v1633 = vunpack.c.h.b16 %v990
    %v1634 = vunpack.c.l.b16 %v991
    %v1635 = vunpack.c.h.b16 %v991
    %v1636 = vunpack.c.l.b16 %v992
    %v1637 = vunpack.c.h.b16 %v992
    %v1638 = vunpack.c.l.b16 %v993
    %v1639 = vunpack.c.h.b16 %v993
    %v1640 = vunpack.c.l.b16 %v994
    %v1641 = vunpack.c.h.b16 %v994
    %v1642 = vunpack.c.l.b16 %v995
    %v1643 = vunpack.c.h.b16 %v995
    %v1644 = vunpack.c.l.b16 %v996
    %v1645 = vunpack.c.h.b16 %v996
    %v1646 = vunpack.c.l.b16 %v997
    %v1647 = vunpack.c.h.b16 %v997
    %v1648 = vunpack.c.l.b16 %v998
    %v1649 = vunpack.c.h.b16 %v998
    %v1650 = vunpack.c.l.b16 %v999
    %v1651 = vunpack.c.h.b16 %v999
    %v1652 = vunpack.c.l.b16 %v1000
    %v1653 = vunpack.c.h.b16 %v1000
    %v1654 = vunpack.c.l.b16 %v1001
    %v1655 = vunpack.c.h.b16 %v1001
    %v1656 = vunpack.c.l.b16 %v1002
    %v1657 = vunpack.c.h.b16 %v1002
    %v1658 = vunpack.c.l.b16 %v1003
    %v1659 = vunpack.c.h.b16 %v1003
    %v1660 = vunpack.c.l.b16 %v1004
    %v1661 = vunpack.c.h.b16 %v1004
    %v1662 = vunpack.c.l.b16 %v1005
    %v1663 = vunpack.c.h.b16 %v1005
    %v1664 = vunpack.c.l.b16 %v1006
    %v1665 = vunpack.c.h.b16 %v1006
    %v1666 = vunpack.c.l.b16 %v1007
    %v1667 = vunpack.c.h.b16 %v1007
    %v1668 = vunpack.c.l.b16 %v1008
    %v1669 = vunpack.c.h.b16 %v1008
    %v1670 = vunpack.c.l.b16 %v1009
    %v1671 = vunpack.c.h.b16 %v1009
    %v1672 = vunpack.c.l.b16 %v1010
    %v1673 = vunpack.c.h.b16 %v1010
    %v1674 = vunpack.c.l.b16 %v1011
    %v1675 = vunpack.c.h.b16 %v1011
    %v1676 = vunpack.c.l.b16 %v1012
    %v1677 = vunpack.c.h.b16 %v1012
    %v1678 = vunpack.c.l.b16 %v1013
    %v1679 = vunpack.c.h.b16 %v1013
    %v1680 = vunpack.c.l.b16 %v1014
    %v1681 = vunpack.c.h.b16 %v1014
    %v1682 = vunpack.c.l.b16 %v1015
    %v1683 = vunpack.c.h.b16 %v1015
    %v1684 = vunpack.c.l.b16 %v1016
    %v1685 = vunpack.c.h.b16 %v1016
    %v1686 = vunpack.c.l.b16 %v1017
    %v1687 = vunpack.c.h.b16 %v1017
    %v1688 = vunpack.c.l.b16 %v1018
    %v1689 = vunpack.c.h.b16 %v1018
    %v1690 = vunpack.c.l.b16 %v1019
    %v1691 = vunpack.c.h.b16 %v1019
    %v1692 = vunpack.c.l.b16 %v1020
    %v1693 = vunpack.c.h.b16 %v1020
    %v1694 = vunpack.c.l.b16 %v1021
    %v1695 = vunpack.c.h.b16 %v1021
    %v1696 = vunpack.c.l.b16 %v1022
    %v1697 = vunpack.c.h.b16 %v1022
    %v1698 = vunpack.c.l.b16 %v1023
    %v1699 = vunpack.c.h.b16 %v1023
    %v1700 = vunpack.c.l.b16 %v1024
    %v1701 = vunpack.c.h.b16 %v1024
    %v1702 = vunpack.c.l.b16 %v1025
    %v1703 = vunpack.c.h.b16 %v1025
    %v1704 = vunpack.c.l.b16 %v1026
    %v1705 = vunpack.c.h.b16 %v1026
    %v1706 = vunpack.c.l.b16 %v1027
    %v1707 = vunpack.c.h.b16 %v1027
    %v1708 = vunpack.c.l.b16 %v1028
    %v1709 = vunpack.c.h.b16 %v1028
    %v1710 = vunpack.c.l.b16 %v1029
    %v1711 = vunpack.c.h.b16 %v1029
    %v1712 = vunpack.c.l.b16 %v1030
    %v1713 = vunpack.c.h.b16 %v1030
    %v1714 = vunpack.c.l.b16 %v1031
    %v1715 = vunpack.c.h.b16 %v1031
    %v1716 = vunpack.c.l.b16 %v1032
    %v1717 = vunpack.c.h.b16 %v1032
    %v1718 = vunpack.c.l.b16 %v1033
    %v1719 = vunpack.c.h.b16 %v1033
    %v1720 = vunpack.c.l.b16 %v1034
    %v1721 = vunpack.c.h.b16 %v1034
    %v1722 = vunpack.c.l.b16 %v1035
    %v1723 = vunpack.c.h.b16 %v1035
    %v1724 = vunpack.c.l.b16 %v1036
    %v1725 = vunpack.c.h.b16 %v1036
    %v1726 = vunpack.c.l.b16 %v1037
    %v1727 = vunpack.c.h.b16 %v1037
    %v1728 = vunpack.c.l.b16 %v1038
    %v1729 = vunpack.c.h.b16 %v1038
    %v1730 = vunpack.c.l.b16 %v1039
    %v1731 = vunpack.c.h.b16 %v1039
    %v1732 = vunpack.c.l.b16 %v1040
    %v1733 = vunpack.c.h.b16 %v1040
    %v1734 = vunpack.c.l.b16 %v1041
    %v1735 = vunpack.c.h.b16 %v1041
    %v1736 = vunpack.c.l.b16 %v1042
    %v1737 = vunpack.c.h.b16 %v1042
    %v1738 = vunpack.c.l.b16 %v1043
    %v1739 = vunpack.c.h.b16 %v1043
    %v1740 = vunpack.c.l.b16 %v1044
    %v1741 = vunpack.c.h.b16 %v1044
    %v1742 = vunpack.c.l.b16 %v1045
    %v1743 = vunpack.c.h.b16 %v1045
    %v1744 = vunpack.c.l.b16 %v1046
    %v1745 = vunpack.c.h.b16 %v1046
    %v1746 = vunpack.c.l.b16 %v1047
    %v1747 = vunpack.c.h.b16 %v1047
    %v1748 = vunpack.c.l.b16 %v1048
    %v1749 = vunpack.c.h.b16 %v1048
    %v1750 = vunpack.c.l.b16 %v1049
    %v1751 = vunpack.c.h.b16 %v1049
    %v1752 = vunpack.c.l.b16 %v1050
    %v1753 = vunpack.c.h.b16 %v1050
    %v1754 = vunpack.c.l.b16 %v1051
    %v1755 = vunpack.c.h.b16 %v1051
    %v1756 = vunpack.c.l.b16 %v1052
    %v1757 = vunpack.c.h.b16 %v1052
    %v1758 = vunpack.c.l.b16 %v1053
    %v1759 = vunpack.c.h.b16 %v1053
    %v1760 = vunpack.c.l.b16 %v1054
    %v1761 = vunpack.c.h.b16 %v1054
    %v1762 = vunpack.c.l.b16 %v1055
    %v1763 = vunpack.c.h.b16 %v1055
    %v1764 = vunpack.c.l.b16 %v1056
    %v1765 = vunpack.c.h.b16 %v1056
    %v1766 = vunpack.c.l.b16 %v1057
    %v1767 = vunpack.c.h.b16 %v1057
    %v1768 = vunpack.c.l.b16 %v1058
    %v1769 = vunpack.c.h.b16 %v1058
    %v1770 = vunpack.c.l.b16 %v1059
    %v1771 = vunpack.c.h.b16 %v1059
    %v1772 = vunpack.c.l.b16 %v1060
    %v1773 = vunpack.c.h.b16 %v1060
    %v1774 = vunpack.c.l.b16 %v1061
    %v1775 = vunpack.c.h.b16 %v1061
    %v1776 = vunpack.c.l.b16 %v1062
    %v1777 = vunpack.c.h.b16 %v1062
    %v1778 = vunpack.c.l.b16 %v1063
    %v1779 = vunpack.c.h.b16 %v1063
    %v1780 = vunpack.c.l.b16 %v1064
    %v1781 = vunpack.c.h.b16 %v1064
    %v1782 = vunpack.c.l.b16 %v1065
    %v1783 = vunpack.c.h.b16 %v1065
    %v1784 = vunpack.c.l.b16 %v1066
    %v1785 = vunpack.c.h.b16 %v1066
    %v1786 = vunpack.c.l.b16 %v1067
    %v1787 = vunpack.c.h.b16 %v1067
    %v1788 = vunpack.c.l.b16 %v1068
    %v1789 = vunpack.c.h.b16 %v1068
    %v1790 = vunpack.c.l.b16 %v1069
    %v1791 = vunpack.c.h.b16 %v1069
    %v1792 = vunpack.c.l.b16 %v1070
    %v1793 = vunpack.c.h.b16 %v1070
    %v1794 = vunpack.c.l.b16 %v1071
    %v1795 = vunpack.c.h.b16 %v1071
    %v1796 = vunpack.c.l.b16 %v1072
    %v1797 = vunpack.c.h.b16 %v1072
    %v1798 = vunpack.c.l.b16 %v1073
    %v1799 = vunpack.c.h.b16 %v1073
    %v1800 = vunpack.c.l.b16 %v1074
    %v1801 = vunpack.c.h.b16 %v1074
    %v1802 = vunpack.c.l.b16 %v1075
    %v1803 = vunpack.c.h.b16 %v1075
    %v1804 = vunpack.c.l.b16 %v1076
    %v1805 = vunpack.c.h.b16 %v1076
    %v1806 = vunpack.c.l.b16 %v1077
    %v1807 = vunpack.c.h.b16 %v1077
    %v1808 = vunpack.c.l.b16 %v1078
    %v1809 = vunpack.c.h.b16 %v1078
    %v1810 = vunpack.c.l.b16 %v1079
    %v1811 = vunpack.c.h.b16 %v1079
    %v1812 = vunpack.c.l.b16 %v1080
    %v1813 = vunpack.c.h.b16 %v1080
    %v1814 = vunpack.c.l.b16 %v1081
    %v1815 = vunpack.c.h.b16 %v1081
    %v1816 = vunpack.c.l.b16 %v1082
    %v1817 = vunpack.c.h.b16 %v1082
    %v1818 = vunpack.c.l.b16 %v1083
    %v1819 = vunpack.c.h.b16 %v1083
    %v1820 = vunpack.c.l.b16 %v1084
    %v1821 = vunpack.c.h.b16 %v1084
    %v1822 = vunpack.c.l.b16 %v1085
    %v1823 = vunpack.c.h.b16 %v1085
    %v1824 = vunpack.c.l.b16 %v1086
    %v1825 = vunpack.c.h.b16 %v1086
    %v1826 = vunpack.c.l.b16 %v1087
    %v1827 = vunpack.c.h.b16 %v1087
    %v1828 = vunpack.c.l.b16 %v1088
    %v1829 = vunpack.c.h.b16 %v1088
    %v1830 = vunpack.c.l.b16 %v1089
    %v1831 = vunpack.c.h.b16 %v1089
    %v1832 = vunpack.c.l.b16 %v1090
    %v1833 = vunpack.c.h.b16 %v1090
    %v1834 = vunpack.c.l.b16 %v1091
    %v1835 = vunpack.c.h.b16 %v1091
    %v1836 = vunpack.c.l.b16 %v1092
    %v1837 = vunpack.c.h.b16 %v1092
    %v1838 = vunpack.c.l.b16 %v1093
    %v1839 = vunpack.c.h.b16 %v1093
    %v1840 = vunpack.c.l.b16 %v1094
    %v1841 = vunpack.c.h.b16 %v1094
    %v1842 = vunpack.c.l.b16 %v1095
    %v1843 = vunpack.c.h.b16 %v1095
    %v1844 = vunpack.c.l.b16 %v1096
    %v1845 = vunpack.c.h.b16 %v1096
    %v1846 = vunpack.c.l.b16 %v1097
    %v1847 = vunpack.c.h.b16 %v1097
    %v1848 = vunpack.c.l.b16 %v1098
    %v1849 = vunpack.c.h.b16 %v1098
    %v1850 = vunpack.c.l.b16 %v1099
    %v1851 = vunpack.c.h.b16 %v1099
    %v1852 = vunpack.c.l.b16 %v1100
    %v1853 = vunpack.c.h.b16 %v1100
    %v1854 = vunpack.c.l.b16 %v1101
    %v1855 = vunpack.c.h.b16 %v1101
    %v1856 = vunpack.c.l.b16 %v1102
    %v1857 = vunpack.c.h.b16 %v1102
    %v1858 = vunpack.c.l.b16 %v1103
    %v1859 = vunpack.c.h.b16 %v1103
    %v1860 = vunpack.c.l.b16 %v1104
    %v1861 = vunpack.c.h.b16 %v1104
    %v1862 = vunpack.c.l.b16 %v1105
    %v1863 = vunpack.c.h.b16 %v1105
    %v1864 = vunpack.c.l.b16 %v1106
    %v1865 = vunpack.c.h.b16 %v1106
    %v1866 = vunpack.c.l.b16 %v1107
    %v1867 = vunpack.c.h.b16 %v1107
    %v1868 = vunpack.c.l.b16 %v1108
    %v1869 = vunpack.c.h.b16 %v1108
    %v1870 = vunpack.c.l.b16 %v1109
    %v1871 = vunpack.c.h.b16 %v1109
    %v1872 = vunpack.c.l.b16 %v1110
    %v1873 = vunpack.c.h.b16 %v1110
    %v1874 = vunpack.c.l.b16 %v1111
    %v1875 = vunpack.c.h.b16 %v1111
    %v1876 = vunpack.c.l.b16 %v1112
    %v1877 = vunpack.c.h.b16 %v1112
    %v1878 = vunpack.c.l.b16 %v1113
    %v1879 = vunpack.c.h.b16 %v1113
    %v1880 = vunpack.c.l.b16 %v1114
    %v1881 = vunpack.c.h.b16 %v1114
    %v1882 = vunpack.c.l.b16 %v1115
    %v1883 = vunpack.c.h.b16 %v1115
    %v1884 = vunpack.c.l.b16 %v1116
    %v1885 = vunpack.c.h.b16 %v1116
    %v1886 = vunpack.c.l.b16 %v1117
    %v1887 = vunpack.c.h.b16 %v1117
    %v1888 = vunpack.c.l.b16 %v1118
    %v1889 = vunpack.c.h.b16 %v1118
    %v1890 = vunpack.c.l.b16 %v1119
    %v1891 = vunpack.c.h.b16 %v1119
    %v1892 = vunpack.c.l.b16 %v1120
    %v1893 = vunpack.c.h.b16 %v1120
    %v1894 = vunpack.c.l.b16 %v1121
    %v1895 = vunpack.c.h.b16 %v1121
    %v1896 = vunpack.c.l.b16 %v1122
    %v1897 = vunpack.c.h.b16 %v1122
    %v1898 = vunpack.c.l.b16 %v1123
    %v1899 = vunpack.c.h.b16 %v1123
    %v1900 = vunpack.c.l.b16 %v1124
    %v1901 = vunpack.c.h.b16 %v1124
    %v1902 = vunpack.c.l.b16 %v1125
    %v1903 = vunpack.c.h.b16 %v1125
    %v1904 = vunpack.c.l.b16 %v1126
    %v1905 = vunpack.c.h.b16 %v1126
    %v1906 = vunpack.c.l.b16 %v1127
    %v1907 = vunpack.c.h.b16 %v1127
    %v1908 = vunpack.c.l.b16 %v1128
    %v1909 = vunpack.c.h.b16 %v1128
    %v1910 = vunpack.c.l.b16 %v1129
    %v1911 = vunpack.c.h.b16 %v1129
    %v1912 = vunpack.c.l.b16 %v1130
    %v1913 = vunpack.c.h.b16 %v1130
    %v1914 = vunpack.c.l.b16 %v1131
    %v1915 = vunpack.c.h.b16 %v1131
    %v1916 = vunpack.c.l.b16 %v1132
    %v1917 = vunpack.c.h.b16 %v1132
    %v1918 = vunpack.c.l.b16 %v1133
    %v1919 = vunpack.c.h.b16 %v1133
    %v1920 = vunpack.c.l.b16 %v1134
    %v1921 = vunpack.c.h.b16 %v1134
    %v1922 = vunpack.c.l.b16 %v1135
    %v1923 = vunpack.c.h.b16 %v1135
    %v1924 = vunpack.c.l.b16 %v1136
    %v1925 = vunpack.c.h.b16 %v1136
    %v1926 = vunpack.c.l.b16 %v1137
    %v1927 = vunpack.c.h.b16 %v1137
    %v1928 = vunpack.c.l.b16 %v1138
    %v1929 = vunpack.c.h.b16 %v1138
    %v1930 = vunpack.c.l.b16 %v1139
    %v1931 = vunpack.c.h.b16 %v1139
    %v1932 = vunpack.c.l.b16 %v1140
    %v1933 = vunpack.c.h.b16 %v1140
    %v1934 = vunpack.c.l.b16 %v1141
    %v1935 = vunpack.c.h.b16 %v1141
    %v1936 = vunpack.c.l.b16 %v1142
    %v1937 = vunpack.c.h.b16 %v1142
    %v1938 = vunpack.c.l.b16 %v1143
    %v1939 = vunpack.c.h.b16 %v1143
    %v1940 = vunpack.c.l.b16 %v1144
    %v1941 = vunpack.c.h.b16 %v1144
    %v1942 = vunpack.c.l.b16 %v1145
    %v1943 = vunpack.c.h.b16 %v1145
    %v1944 = vunpack.c.l.b16 %v1146
    %v1945 = vunpack.c.h.b16 %v1146
    %v1946 = vunpack.c.l.b16 %v1147
    %v1947 = vunpack.c.h.b16 %v1147
    %v1948 = vunpack.c.l.b16 %v1148
    %v1949 = vunpack.c.h.b16 %v1148
    %v1950 = vunpack.c.l.b16 %v1149
    %v1951 = vunpack.c.h.b16 %v1149
    %v1952 = vunpack.c.l.b16 %v1150
    %v1953 = vunpack.c.h.b16 %v1150
    %v1954 = vunpack.c.l.b16 %v1151
    %v1955 = vunpack.c.h.b16 %v1151
    %v1956 = vunpack.c.l.b16 %v1152
    %v1957 = vunpack.c.h.b16 %v1152
    %v1958 = vunpack.c.l.b16 %v1153
    %v1959 = vunpack.c.h.b16 %v1153
    %v1960 = vunpack.c.l.b16 %v1154
    %v1961 = vunpack.c.h.b16 %v1154
    %v1962 = vunpack.c.l.b16 %v1155
    %v1963 = vunpack.c.h.b16 %v1155
    %v1964 = vunpack.c.l.b16 %v1156
    %v1965 = vunpack.c.h.b16 %v1156
    %v1966 = vunpack.c.l.b16 %v1157
    %v1967 = vunpack.c.h.b16 %v1157
    %v1968 = vpack.c.b16 %v1464, %v1456
    %v1969 = vpack.c.b16 %v1465, %v1457
    %v1970 = vpack.c.b16 %v1466, %v1458
    %v1971 = vpack.c.b16 %v1467, %v1459
    %v1972 = vpack.c.b16 %v1468, %v1460
    %v1973 = vpack.c.b16 %v1469, %v1461
    %v1974 = vpack.c.b16 %v1470, %v1462
    %v1975 = vpack.c.b16 %v1471, %v1463
    %v1976 = vpack.c.b16 %v1480, %v1472
    %v1977 = vpack.c.b16 %v1481, %v1473
    %v1978 = vpack.c.b16 %v1482, %v1474
    %v1979 = vpack.c.b16 %v1483, %v1475
    %v1980 = vpack.c.b16 %v1484, %v1476
    %v1981 = vpack.c.b16 %v1485, %v1477
    %v1982 = vpack.c.b16 %v1486, %v1478
    %v1983 = vpack.c.b16 %v1487, %v1479
    %v1984 = vpack.c.b16 %v1496, %v1488
    %v1985 = vpack.c.b16 %v1497, %v1489
    %v1986 = vpack.c.b16 %v1498, %v1490
    %v1987 = vpack.c.b16 %v1499, %v1491
    %v1988 = vpack.c.b16 %v1500, %v1492
    %v1989 = vpack.c.b16 %v1501, %v1493
    %v1990 = vpack.c.b16 %v1502, %v1494
    %v1991 = vpack.c.b16 %v1503, %v1495
    %v1992 = vpack.c.b16 %v1512, %v1504
    %v1993 = vpack.c.b16 %v1513, %v1505
    %v1994 = vpack.c.b16 %v1514, %v1506
    %v1995 = vpack.c.b16 %v1515, %v1507
    %v1996 = vpack.c.b16 %v1516, %v1508
    %v1997 = vpack.c.b16 %v1517, %v1509
    %v1998 = vpack.c.b16 %v1518, %v1510
    %v1999 = vpack.c.b16 %v1519, %v1511
    %v2000 = vpack.c.b16 %v1528, %v1520
    %v2001 = vpack.c.b16 %v1529, %v1521
    %v2002 = vpack.c.b16 %v1530, %v1522
    %v2003 = vpack.c.b16 %v1531, %v1523
    %v2004 = vpack.c.b16 %v1532, %v1524
    %v2005 = vpack.c.b16 %v1533, %v1525
    %v2006 = vpack.c.b16 %v1534, %v1526
    %v2007 = vpack.c.b16 %v1535, %v1527
    %v2008 = vpack.c.b16 %v1544, %v1536
    %v2009 = vpack.c.b16 %v1545, %v1537
    %v2010 = vpack.c.b16 %v1546, %v1538
    %v2011 = vpack.c.b16 %v1547, %v1539
    %v2012 = vpack.c.b16 %v1548, %v1540
    %v2013 = vpack.c.b16 %v1549, %v1541
    %v2014 = vpack.c.b16 %v1550, %v1542
    %v2015 = vpack.c.b16 %v1551, %v1543
    %v2016 = vpack.c.b16 %v1560, %v1552
    %v2017 = vpack.c.b16 %v1561, %v1553
    %v2018 = vpack.c.b16 %v1562, %v1554
    %v2019 = vpack.c.b16 %v1563, %v1555
    %v2020 = vpack.c.b16 %v1564, %v1556
    %v2021 = vpack.c.b16 %v1565, %v1557
    %v2022 = vpack.c.b16 %v1566, %v1558
    %v2023 = vpack.c.b16 %v1567, %v1559
    %v2024 = vpack.c.b16 %v1576, %v1568
    %v2025 = vpack.c.b16 %v1577, %v1569
    %v2026 = vpack.c.b16 %v1578, %v1570
    %v2027 = vpack.c.b16 %v1579, %v1571
    %v2028 = vpack.c.b16 %v1580, %v1572
    %v2029 = vpack.c.b16 %v1581, %v1573
    %v2030 = vpack.c.b16 %v1582, %v1574
    %v2031 = vpack.c.b16 %v1583, %v1575
    %v2032 = vpack.c.b16 %v1592, %v1584
    %v2033 = vpack.c.b16 %v1593, %v1585
    %v2034 = vpack.c.b16 %v1594, %v1586
    %v2035 = vpack.c.b16 %v1595, %v1587
    %v2036 = vpack.c.b16 %v1596, %v1588
    %v2037 = vpack.c.b16 %v1597, %v1589
    %v2038 = vpack.c.b16 %v1598, %v1590
    %v2039 = vpack.c.b16 %v1599, %v1591
    %v2040 = vpack.c.b16 %v1608, %v1600
    %v2041 = vpack.c.b16 %v1609, %v1601
    %v2042 = vpack.c.b16 %v1610, %v1602
    %v2043 = vpack.c.b16 %v1611, %v1603
    %v2044 = vpack.c.b16 %v1612, %v1604
    %v2045 = vpack.c.b16 %v1613, %v1605
    %v2046 = vpack.c.b16 %v1614, %v1606
    %v2047 = vpack.c.b16 %v1615, %v1607
    %v2048 = vpack.c.b16 %v1624, %v1616
    %v2049 = vpack.c.b16 %v1625, %v1617
    %v2050 = vpack.c.b16 %v1626, %v1618
    %v2051 = vpack.c.b16 %v1627, %v1619
    %v2052 = vpack.c.b16 %v1628, %v1620
    %v2053 = vpack.c.b16 %v1629, %v1621
    %v2054 = vpack.c.b16 %v1630, %v1622
    %v2055 = vpack.c.b16 %v1631, %v1623
    %v2056 = vpack.c.b16 %v1640, %v1632
    %v2057 = vpack.c.b16 %v1641, %v1633
    %v2058 = vpack.c.b16 %v1642, %v1634
    %v2059 = vpack.c.b16 %v1643, %v1635
    %v2060 = vpack.c.b16 %v1644, %v1636
    %v2061 = vpack.c.b16 %v1645, %v1637
    %v2062 = vpack.c.b16 %v1646, %v1638
    %v2063 = vpack.c.b16 %v1647, %v1639
    %v2064 = vpack.c.b16 %v1656, %v1648
    %v2065 = vpack.c.b16 %v1657, %v1649
    %v2066 = vpack.c.b16 %v1658, %v1650
    %v2067 = vpack.c.b16 %v1659, %v1651
    %v2068 = vpack.c.b16 %v1660, %v1652
    %v2069 = vpack.c.b16 %v1661, %v1653
    %v2070 = vpack.c.b16 %v1662, %v1654
    %v2071 = vpack.c.b16 %v1663, %v1655
    %v2072 = vpack.c.b16 %v1672, %v1664
    %v2073 = vpack.c.b16 %v1673, %v1665
    %v2074 = vpack.c.b16 %v1674, %v1666
    %v2075 = vpack.c.b16 %v1675, %v1667
    %v2076 = vpack.c.b16 %v1676, %v1668
    %v2077 = vpack.c.b16 %v1677, %v1669
    %v2078 = vpack.c.b16 %v1678, %v1670
    %v2079 = vpack.c.b16 %v1679, %v1671
    %v2080 = vpack.c.b16 %v1688, %v1680
    %v2081 = vpack.c.b16 %v1689, %v1681
    %v2082 = vpack.c.b16 %v1690, %v1682
    %v2083 = vpack.c.b16 %v1691, %v1683
    %v2084 = vpack.c.b16 %v1692, %v1684
    %v2085 = vpack.c.b16 %v1693, %v1685
    %v2086 = vpack.c.b16 %v1694, %v1686
    %v2087 = vpack.c.b16 %v1695, %v1687
    %v2088 = vpack.c.b16 %v1704, %v1696
    %v2089 = vpack.c.b16 %v1705, %v1697
    %v2090 = vpack.c.b16 %v1706, %v1698
    %v2091 = vpack.c.b16 %v1707, %v1699
    %v2092 = vpack.c.b16 %v1708, %v1700
    %v2093 = vpack.c.b16 %v1709, %v1701
    %v2094 = vpack.c.b16 %v1710, %v1702
    %v2095 = vpack.c.b16 %v1711, %v1703
    %v2096 = vpack.c.b16 %v1720, %v1712
    %v2097 = vpack.c.b16 %v1721, %v1713
    %v2098 = vpack.c.b16 %v1722, %v1714
    %v2099 = vpack.c.b16 %v1723, %v1715
    %v2100 = vpack.c.b16 %v1724, %v1716
    %v2101 = vpack.c.b16 %v1725, %v1717
    %v2102 = vpack.c.b16 %v1726, %v1718
    %v2103 = vpack.c.b16 %v1727, %v1719
    %v2104 = vpack.c.b16 %v1736, %v1728
    %v2105 = vpack.c.b16 %v1737, %v1729
    %v2106 = vpack.c.b16 %v1738, %v1730
    %v2107 = vpack.c.b16 %v1739, %v1731
    %v2108 = vpack.c.b16 %v1740, %v1732
    %v2109 = vpack.c.b16 %v1741, %v1733
    %v2110 = vpack.c.b16 %v1742, %v1734
    %v2111 = vpack.c.b16 %v1743, %v1735
    %v2112 = vpack.c.b16 %v1752, %v1744
    %v2113 = vpack.c.b16 %v1753, %v1745
    %v2114 = vpack.c.b16 %v1754, %v1746
    %v2115 = vpack.c.b16 %v1755, %v1747
    %v2116 = vpack.c.b16 %v1756, %v1748
    %v2117 = vpack.c.b16 %v1757, %v1749
    %v2118 = vpack.c.b16 %v1758, %v1750
    %v2119 = vpack.c.b16 %v1759, %v1751
    %v2120 = vpack.c.b16 %v1768, %v1760
    %v2121 = vpack.c.b16 %v1769, %v1761
    %v2122 = vpack.c.b16 %v1770, %v1762
    %v2123 = vpack.c.b16 %v1771, %v1763
    %v2124 = vpack.c.b16 %v1772, %v1764
    %v2125 = vpack.c.b16 %v1773, %v1765
    %v2126 = vpack.c.b16 %v1774, %v1766
    %v2127 = vpack.c.b16 %v1775, %v1767
    %v2128 = vpack.c.b16 %v1784, %v1776
    %v2129 = vpack.c.b16 %v1785, %v1777
    %v2130 = vpack.c.b16 %v1786, %v1778
    %v2131 = vpack.c.b16 %v1787, %v1779
    %v2132 = vpack.c.b16 %v1788, %v1780
    %v2133 = vpack.c.b16 %v1789, %v1781
    %v2134 = vpack.c.b16 %v1790, %v1782
    %v2135 = vpack.c.b16 %v1791, %v1783
    %v2136 = vpack.c.b16 %v1800, %v1792
    %v2137 = vpack.c.b16 %v1801, %v1793
    %v2138 = vpack.c.b16 %v1802, %v1794
    %v2139 = vpack.c.b16 %v1803, %v1795
    %v2140 = vpack.c.b16 %v1804, %v1796
    %v2141 = vpack.c.b16 %v1805, %v1797
    %v2142 = vpack.c.b16 %v1806, %v1798
    %v2143 = vpack.c.b16 %v1807, %v1799
    %v2144 = vpack.c.b16 %v1816, %v1808
    %v2145 = vpack.c.b16 %v1817, %v1809
    %v2146 = vpack.c.b16 %v1818, %v1810
    %v2147 = vpack.c.b16 %v1819, %v1811
    %v2148 = vpack.c.b16 %v1820, %v1812
    %v2149 = vpack.c.b16 %v1821, %v1813
    %v2150 = vpack.c.b16 %v1822, %v1814
    %v2151 = vpack.c.b16 %v1823, %v1815
    %v2152 = vpack.c.b16 %v1832, %v1824
    %v2153 = vpack.c.b16 %v1833, %v1825
    %v2154 = vpack.c.b16 %v1834, %v1826
    %v2155 = vpack.c.b16 %v1835, %v1827
    %v2156 = vpack.c.b16 %v1836, %v1828
    %v2157 = vpack.c.b16 %v1837, %v1829
    %v2158 = vpack.c.b16 %v1838, %v1830
    %v2159 = vpack.c.b16 %v1839, %v1831
    %v2160 = vpack.c.b16 %v1848, %v1840
    %v2161 = vpack.c.b16 %v1849, %v1841
    %v2162 = vpack.c.b16 %v1850, %v1842
    %v2163 = vpack.c.b16 %v1851, %v1843
    %v2164 = vpack.c.b16 %v1852, %v1844
    %v2165 = vpack.c.b16 %v1853, %v1845
    %v2166 = vpack.c.b16 %v1854, %v1846
    %v2167 = vpack.c.b16 %v1855, %v1847
    %v2168 = vpack.c.b16 %v1864, %v1856
    %v2169 = vpack.c.b16 %v1865, %v1857
    %v2170 = vpack.c.b16 %v1866, %v1858
    %v2171 = vpack.c.b16 %v1867, %v1859
    %v2172 = vpack.c.b16 %v1868, %v1860
    %v2173 = vpack.c.b16 %v1869, %v1861
    %v2174 = vpack.c.b16 %v1870, %v1862
    %v2175 = vpack.c.b16 %v1871, %v1863
    %v2176 = vpack.c.b16 %v1880, %v1872
    %v2177 = vpack.c.b16 %v1881, %v1873
    %v2178 = vpack.c.b16 %v1882, %v1874
    %v2179 = vpack.c.b16 %v1883, %v1875
    %v2180 = vpack.c.b16 %v1884, %v1876
    %v2181 = vpack.c.b16 %v1885, %v1877
    %v2182 = vpack.c.b16 %v1886, %v1878
    %v2183 = vpack.c.b16 %v1887, %v1879
    %v2184 = vpack.c.b16 %v1896, %v1888
    %v2185 = vpack.c.b16 %v1897, %v1889
    %v2186 = vpack.c.b16 %v1898, %v1890
    %v2187 = vpack.c.b16 %v1899, %v1891
    %v2188 = vpack.c.b16 %v1900, %v1892
    %v2189 = vpack.c.b16 %v1901, %v1893
    %v2190 = vpack.c.b16 %v1902, %v1894
    %v2191 = vpack.c.b16 %v1903, %v1895
    %v2192 = vpack.c.b16 %v1912, %v1904
    %v2193 = vpack.c.b16 %v1913, %v1905
    %v2194 = vpack.c.b16 %v1914, %v1906
    %v2195 = vpack.c.b16 %v1915, %v1907
    %v2196 = vpack.c.b16 %v1916, %v1908
    %v2197 = vpack.c.b16 %v1917, %v1909
    %v2198 = vpack.c.b16 %v1918, %v1910
    %v2199 = vpack.c.b16 %v1919, %v1911
    %v2200 = vpack.c.b16 %v1928, %v1920
    %v2201 = vpack.c.b16 %v1929, %v1921
    %v2202 = vpack.c.b16 %v1930, %v1922
    %v2203 = vpack.c.b16 %v1931, %v1923
    %v2204 = vpack.c.b16 %v1932, %v1924
    %v2205 = vpack.c.b16 %v1933, %v1925
    %v2206 = vpack.c.b16 %v1934, %v1926
    %v2207 = vpack.c.b16 %v1935, %v1927
    %v2208 = vpack.c.b16 %v1944, %v1936
    %v2209 = vpack.c.b16 %v1945, %v1937
    %v2210 = vpack.c.b16 %v1946, %v1938
    %v2211 = vpack.c.b16 %v1947, %v1939
    %v2212 = vpack.c.b16 %v1948, %v1940
    %v2213 = vpack.c.b16 %v1949, %v1941
    %v2214 = vpack.c.b16 %v1950, %v1942
    %v2215 = vpack.c.b16 %v1951, %v1943
    %v2216 = vpack.c.b16 %v1960, %v1952
    %v2217 = vpack.c.b16 %v1961, %v1953
    %v2218 = vpack.c.b16 %v1962, %v1954
    %v2219 = vpack.c.b16 %v1963, %v1955
    %v2220 = vpack.c.b16 %v1964, %v1956
    %v2221 = vpack.c.b16 %v1965, %v1957
    %v2222 = vpack.c.b16 %v1966, %v1958
    %v2223 = vpack.c.b16 %v1967, %v1959
    %2480 = vmatprep.subr.bf16.mxu0 %v1969
    %2481 = vmatpush1.bf16.msra.mxu0 %v1968
    %2482 = vmatprep.subr.bf16.mxu0 %v1977
    %2483 = vmatpush1.bf16.msra.mxu0 %v1976
    %2484 = vmatprep.subr.bf16.mxu0 %v1985
    %2485 = vmatpush1.bf16.msra.mxu0 %v1984
    %2486 = vmatprep.subr.bf16.mxu0 %v1993
    %2487 = vmatpush1.bf16.msra.mxu0 %v1992
    %2488 = vmatprep.subr.bf16.mxu0 %v2001
    %2489 = vmatpush1.bf16.msra.mxu0 %v2000
    %2490 = vmatprep.subr.bf16.mxu0 %v2009
    %2491 = vmatpush1.bf16.msra.mxu0 %v2008
    %2492 = vmatprep.subr.bf16.mxu0 %v2017
    %2493 = vmatpush1.bf16.msra.mxu0 %v2016
    %2494 = vmatprep.subr.bf16.mxu0 %v2025
    %2495 = vmatpush1.bf16.msra.mxu0 %v2024
    %2496 = vmatprep.subr.bf16.mxu0 %v2033
    %2497 = vmatpush1.bf16.msra.mxu0 %v2032
    %2498 = vmatprep.subr.bf16.mxu0 %v2041
    %2499 = vmatpush1.bf16.msra.mxu0 %v2040
    %2500 = vmatprep.subr.bf16.mxu0 %v2049
    %2501 = vmatpush1.bf16.msra.mxu0 %v2048
    %2502 = vmatprep.subr.bf16.mxu0 %v2057
    %2503 = vmatpush1.bf16.msra.mxu0 %v2056
    %2504 = vmatprep.subr.bf16.mxu0 %v2065
    %2505 = vmatpush1.bf16.msra.mxu0 %v2064
    %2506 = vmatprep.subr.bf16.mxu0 %v2073
    %2507 = vmatpush1.bf16.msra.mxu0 %v2072
    %2508 = vmatprep.subr.bf16.mxu0 %v2081
    %2509 = vmatpush1.bf16.msra.mxu0 %v2080
    %2510 = vmatprep.subr.bf16.mxu0 %v2089
    %2511 = vmatpush1.bf16.msra.mxu0 %v2088
    %2512 = vmatprep.mubr.bf16.mxu0 %v899
    %2513 = vmatmul.mubr.bf16.gmra.mrb[0].mxu0 %v898
    %v2514 = vpop.f32.mrb[0].mxu0
    %v2515 = vadd.f32 %v1163, %v2514
    %v2516 = vpop.f32.mrb[0].mxu0
    %v2517 = vadd.f32 %v1167, %v2516
    %v2518 = vpop.f32.mrb[0].mxu0
    %v2519 = vpop.f32.mrb[0].mxu0
    %2520 = vdwg.mxu0
    %2521 = vmatprep.subr.bf16.mxu0 %v2097
    %2522 = vmatpush1.bf16.msra.mxu0 %v2096
    %2523 = vmatprep.subr.bf16.mxu0 %v2105
    %2524 = vmatpush1.bf16.msra.mxu0 %v2104
    %2525 = vmatprep.subr.bf16.mxu0 %v2113
    %2526 = vmatpush1.bf16.msra.mxu0 %v2112
    %2527 = vmatprep.subr.bf16.mxu0 %v2121
    %2528 = vmatpush1.bf16.msra.mxu0 %v2120
    %2529 = vmatprep.subr.bf16.mxu0 %v2129
    %2530 = vmatpush1.bf16.msra.mxu0 %v2128
    %2531 = vmatprep.subr.bf16.mxu0 %v2137
    %2532 = vmatpush1.bf16.msra.mxu0 %v2136
    %2533 = vmatprep.subr.bf16.mxu0 %v2145
    %2534 = vmatpush1.bf16.msra.mxu0 %v2144
    %2535 = vmatprep.subr.bf16.mxu0 %v2153
    %2536 = vmatpush1.bf16.msra.mxu0 %v2152
    %2537 = vmatprep.subr.bf16.mxu0 %v2161
    %2538 = vmatpush1.bf16.msra.mxu0 %v2160
    %2539 = vmatprep.subr.bf16.mxu0 %v2169
    %2540 = vmatpush1.bf16.msra.mxu0 %v2168
    %2541 = vmatprep.subr.bf16.mxu0 %v2177
    %2542 = vmatpush1.bf16.msra.mxu0 %v2176
    %2543 = vmatprep.subr.bf16.mxu0 %v2185
    %2544 = vmatpush1.bf16.msra.mxu0 %v2184
    %2545 = vmatprep.subr.bf16.mxu0 %v2193
    %2546 = vmatpush1.bf16.msra.mxu0 %v2192
    %2547 = vmatprep.subr.bf16.mxu0 %v2201
    %2548 = vmatpush1.bf16.msra.mxu0 %v2200
    %2549 = vmatprep.subr.bf16.mxu0 %v2209
    %2550 = vmatpush1.bf16.msra.mxu0 %v2208
    %2551 = vmatprep.subr.bf16.mxu0 %v2217
    %2552 = vmatpush1.bf16.msra.mxu0 %v2216
    %2553 = vmatprep.mubr.bf16.mxu0 %v901
    %2554 = vmatmul.mubr.bf16.gmra.mrb[0].mxu0 %v900
    %v2555 = vpop.f32.mrb[0].mxu0
    %v2556 = vadd.f32 %v2515, %v2555
    %v2557 = vpop.f32.mrb[0].mxu0
    %v2558 = vadd.f32 %v2517, %v2557
    %v2559 = vpop.f32.mrb[0].mxu0
    %v2560 = vpop.f32.mrb[0].mxu0
    %2561 = vdwg.mxu0
    %2562 = vmatprep.subr.bf16.mxu0 %v1971
    %2563 = vmatpush1.bf16.msra.mxu0 %v1970
    %2564 = vmatprep.subr.bf16.mxu0 %v1979
    %2565 = vmatpush1.bf16.msra.mxu0 %v1978
    %2566 = vmatprep.subr.bf16.mxu0 %v1987
    %2567 = vmatpush1.bf16.msra.mxu0 %v1986
    %2568 = vmatprep.subr.bf16.mxu0 %v1995
    %2569 = vmatpush1.bf16.msra.mxu0 %v1994
    %2570 = vmatprep.subr.bf16.mxu0 %v2003
    %2571 = vmatpush1.bf16.msra.mxu0 %v2002
    %2572 = vmatprep.subr.bf16.mxu0 %v2011
    %2573 = vmatpush1.bf16.msra.mxu0 %v2010
    %2574 = vmatprep.subr.bf16.mxu0 %v2019
    %2575 = vmatpush1.bf16.msra.mxu0 %v2018
    %2576 = vmatprep.subr.bf16.mxu0 %v2027
    %2577 = vmatpush1.bf16.msra.mxu0 %v2026
    %2578 = vmatprep.subr.bf16.mxu0 %v2035
    %2579 = vmatpush1.bf16.msra.mxu0 %v2034
    %2580 = vmatprep.subr.bf16.mxu0 %v2043
    %2581 = vmatpush1.bf16.msra.mxu0 %v2042
    %2582 = vmatprep.subr.bf16.mxu0 %v2051
    %2583 = vmatpush1.bf16.msra.mxu0 %v2050
    %2584 = vmatprep.subr.bf16.mxu0 %v2059
    %2585 = vmatpush1.bf16.msra.mxu0 %v2058
    %2586 = vmatprep.subr.bf16.mxu0 %v2067
    %2587 = vmatpush1.bf16.msra.mxu0 %v2066
    %2588 = vmatprep.subr.bf16.mxu0 %v2075
    %2589 = vmatpush1.bf16.msra.mxu0 %v2074
    %2590 = vmatprep.subr.bf16.mxu0 %v2083
    %2591 = vmatpush1.bf16.msra.mxu0 %v2082
    %2592 = vmatprep.subr.bf16.mxu0 %v2091
    %2593 = vmatpush1.bf16.msra.mxu0 %v2090
    %2594 = vmatprep.mubr.bf16.mxu0 %v899
    %2595 = vmatmul.mubr.bf16.gmra.mrb[0].mxu0 %v898
    %v2596 = vpop.f32.mrb[0].mxu0
    %v2597 = vadd.f32 %v1171, %v2596
    %v2598 = vpop.f32.mrb[0].mxu0
    %v2599 = vadd.f32 %v1175, %v2598
    %v2600 = vpop.f32.mrb[0].mxu0
    %v2601 = vpop.f32.mrb[0].mxu0
    %2602 = vdwg.mxu0
    %2603 = vmatprep.subr.bf16.mxu0 %v2099
    %2604 = vmatpush1.bf16.msra.mxu0 %v2098
    %2605 = vmatprep.subr.bf16.mxu0 %v2107
    %2606 = vmatpush1.bf16.msra.mxu0 %v2106
    %2607 = vmatprep.subr.bf16.mxu0 %v2115
    %2608 = vmatpush1.bf16.msra.mxu0 %v2114
    %2609 = vmatprep.subr.bf16.mxu0 %v2123
    %2610 = vmatpush1.bf16.msra.mxu0 %v2122
    %2611 = vmatprep.subr.bf16.mxu0 %v2131
    %2612 = vmatpush1.bf16.msra.mxu0 %v2130
    %2613 = vmatprep.subr.bf16.mxu0 %v2139
    %2614 = vmatpush1.bf16.msra.mxu0 %v2138
    %2615 = vmatprep.subr.bf16.mxu0 %v2147
    %2616 = vmatpush1.bf16.msra.mxu0 %v2146
    %2617 = vmatprep.subr.bf16.mxu0 %v2155
    %2618 = vmatpush1.bf16.msra.mxu0 %v2154
    %2619 = vmatprep.subr.bf16.mxu0 %v2163
    %2620 = vmatpush1.bf16.msra.mxu0 %v2162
    %2621 = vmatprep.subr.bf16.mxu0 %v2171
    %2622 = vmatpush1.bf16.msra.mxu0 %v2170
    %2623 = vmatprep.subr.bf16.mxu0 %v2179
    %2624 = vmatpush1.bf16.msra.mxu0 %v2178
    %2625 = vmatprep.subr.bf16.mxu0 %v2187
    %2626 = vmatpush1.bf16.msra.mxu0 %v2186
    %2627 = vmatprep.subr.bf16.mxu0 %v2195
    %2628 = vmatpush1.bf16.msra.mxu0 %v2194
    %2629 = vmatprep.subr.bf16.mxu0 %v2203
    %2630 = vmatpush1.bf16.msra.mxu0 %v2202
    %2631 = vmatprep.subr.bf16.mxu0 %v2211
    %2632 = vmatpush1.bf16.msra.mxu0 %v2210
    %2633 = vmatprep.subr.bf16.mxu0 %v2219
    %2634 = vmatpush1.bf16.msra.mxu0 %v2218
    %2635 = vmatprep.mubr.bf16.mxu0 %v901
    %2636 = vmatmul.mubr.bf16.gmra.mrb[0].mxu0 %v900
    %v2637 = vpop.f32.mrb[0].mxu0
    %v2638 = vadd.f32 %v2597, %v2637
    %v2639 = vpop.f32.mrb[0].mxu0
    %v2640 = vadd.f32 %v2599, %v2639
    %v2641 = vpop.f32.mrb[0].mxu0
    %v2642 = vpop.f32.mrb[0].mxu0
    %2643 = vdwg.mxu0
    %2644 = vmatprep.subr.bf16.mxu0 %v1973
    %2645 = vmatpush1.bf16.msra.mxu0 %v1972
    %2646 = vmatprep.subr.bf16.mxu0 %v1981
    %2647 = vmatpush1.bf16.msra.mxu0 %v1980
    %2648 = vmatprep.subr.bf16.mxu0 %v1989
    %2649 = vmatpush1.bf16.msra.mxu0 %v1988
    %2650 = vmatprep.subr.bf16.mxu0 %v1997
    %2651 = vmatpush1.bf16.msra.mxu0 %v1996
    %2652 = vmatprep.subr.bf16.mxu0 %v2005
    %2653 = vmatpush1.bf16.msra.mxu0 %v2004
    %2654 = vmatprep.subr.bf16.mxu0 %v2013
    %2655 = vmatpush1.bf16.msra.mxu0 %v2012
    %2656 = vmatprep.subr.bf16.mxu0 %v2021
    %2657 = vmatpush1.bf16.msra.mxu0 %v2020
    %2658 = vmatprep.subr.bf16.mxu0 %v2029
    %2659 = vmatpush1.bf16.msra.mxu0 %v2028
    %2660 = vmatprep.subr.bf16.mxu0 %v2037
    %2661 = vmatpush1.bf16.msra.mxu0 %v2036
    %2662 = vmatprep.subr.bf16.mxu0 %v2045
    %2663 = vmatpush1.bf16.msra.mxu0 %v2044
    %2664 = vmatprep.subr.bf16.mxu0 %v2053
    %2665 = vmatpush1.bf16.msra.mxu0 %v2052
    %2666 = vmatprep.subr.bf16.mxu0 %v2061
    %2667 = vmatpush1.bf16.msra.mxu0 %v2060
    %2668 = vmatprep.subr.bf16.mxu0 %v2069
    %2669 = vmatpush1.bf16.msra.mxu0 %v2068
    %2670 = vmatprep.subr.bf16.mxu0 %v2077
    %2671 = vmatpush1.bf16.msra.mxu0 %v2076
    %2672 = vmatprep.subr.bf16.mxu0 %v2085
    %2673 = vmatpush1.bf16.msra.mxu0 %v2084
    %2674 = vmatprep.subr.bf16.mxu0 %v2093
    %2675 = vmatpush1.bf16.msra.mxu0 %v2092
    %2676 = vmatprep.mubr.bf16.mxu0 %v899
    %2677 = vmatmul.mubr.bf16.gmra.mrb[0].mxu0 %v898
    %v2678 = vpop.f32.mrb[0].mxu0
    %v2679 = vadd.f32 %v1179, %v2678
    %v2680 = vpop.f32.mrb[0].mxu0
    %v2681 = vadd.f32 %v1183, %v2680
    %v2682 = vpop.f32.mrb[0].mxu0
    %v2683 = vpop.f32.mrb[0].mxu0
    %2684 = vdwg.mxu0
    %2685 = vmatprep.subr.bf16.mxu0 %v2101
    %2686 = vmatpush1.bf16.msra.mxu0 %v2100
    %2687 = vmatprep.subr.bf16.mxu0 %v2109
    %2688 = vmatpush1.bf16.msra.mxu0 %v2108
    %2689 = vmatprep.subr.bf16.mxu0 %v2117
    %2690 = vmatpush1.bf16.msra.mxu0 %v2116
    %2691 = vmatprep.subr.bf16.mxu0 %v2125
    %2692 = vmatpush1.bf16.msra.mxu0 %v2124
    %2693 = vmatprep.subr.bf16.mxu0 %v2133
    %2694 = vmatpush1.bf16.msra.mxu0 %v2132
    %2695 = vmatprep.subr.bf16.mxu0 %v2141
    %2696 = vmatpush1.bf16.msra.mxu0 %v2140
    %2697 = vmatprep.subr.bf16.mxu0 %v2149
    %2698 = vmatpush1.bf16.msra.mxu0 %v2148
    %2699 = vmatprep.subr.bf16.mxu0 %v2157
    %2700 = vmatpush1.bf16.msra.mxu0 %v2156
    %2701 = vmatprep.subr.bf16.mxu0 %v2165
    %2702 = vmatpush1.bf16.msra.mxu0 %v2164
    %2703 = vmatprep.subr.bf16.mxu0 %v2173
    %2704 = vmatpush1.bf16.msra.mxu0 %v2172
    %2705 = vmatprep.subr.bf16.mxu0 %v2181
    %2706 = vmatpush1.bf16.msra.mxu0 %v2180
    %2707 = vmatprep.subr.bf16.mxu0 %v2189
    %2708 = vmatpush1.bf16.msra.mxu0 %v2188
    %2709 = vmatprep.subr.bf16.mxu0 %v2197
    %2710 = vmatpush1.bf16.msra.mxu0 %v2196
    %2711 = vmatprep.subr.bf16.mxu0 %v2205
    %2712 = vmatpush1.bf16.msra.mxu0 %v2204
    %2713 = vmatprep.subr.bf16.mxu0 %v2213
    %2714 = vmatpush1.bf16.msra.mxu0 %v2212
    %2715 = vmatprep.subr.bf16.mxu0 %v2221
    %2716 = vmatpush1.bf16.msra.mxu0 %v2220
    %2717 = vmatprep.mubr.bf16.mxu0 %v901
    %2718 = vmatmul.mubr.bf16.gmra.mrb[0].mxu0 %v900
    %v2719 = vpop.f32.mrb[0].mxu0
    %v2720 = vadd.f32 %v2679, %v2719
    %v2721 = vpop.f32.mrb[0].mxu0
    %v2722 = vadd.f32 %v2681, %v2721
    %v2723 = vpop.f32.mrb[0].mxu0
    %v2724 = vpop.f32.mrb[0].mxu0
    %2725 = vdwg.mxu0
    %2726 = vmatprep.subr.bf16.mxu0 %v1975
    %2727 = vmatpush1.bf16.msra.mxu0 %v1974
    %2728 = vmatprep.subr.bf16.mxu0 %v1983
    %2729 = vmatpush1.bf16.msra.mxu0 %v1982
    %2730 = vmatprep.subr.bf16.mxu0 %v1991
    %2731 = vmatpush1.bf16.msra.mxu0 %v1990
    %2732 = vmatprep.subr.bf16.mxu0 %v1999
    %2733 = vmatpush1.bf16.msra.mxu0 %v1998
    %2734 = vmatprep.subr.bf16.mxu0 %v2007
    %2735 = vmatpush1.bf16.msra.mxu0 %v2006
    %2736 = vmatprep.subr.bf16.mxu0 %v2015
    %2737 = vmatpush1.bf16.msra.mxu0 %v2014
    %2738 = vmatprep.subr.bf16.mxu0 %v2023
    %2739 = vmatpush1.bf16.msra.mxu0 %v2022
    %2740 = vmatprep.subr.bf16.mxu0 %v2031
    %2741 = vmatpush1.bf16.msra.mxu0 %v2030
    %2742 = vmatprep.subr.bf16.mxu0 %v2039
    %2743 = vmatpush1.bf16.msra.mxu0 %v2038
    %2744 = vmatprep.subr.bf16.mxu0 %v2047
    %2745 = vmatpush1.bf16.msra.mxu0 %v2046
    %2746 = vmatprep.subr.bf16.mxu0 %v2055
    %2747 = vmatpush1.bf16.msra.mxu0 %v2054
    %2748 = vmatprep.subr.bf16.mxu0 %v2063
    %2749 = vmatpush1.bf16.msra.mxu0 %v2062
    %2750 = vmatprep.subr.bf16.mxu0 %v2071
    %2751 = vmatpush1.bf16.msra.mxu0 %v2070
    %2752 = vmatprep.subr.bf16.mxu0 %v2079
    %2753 = vmatpush1.bf16.msra.mxu0 %v2078
    %2754 = vmatprep.subr.bf16.mxu0 %v2087
    %2755 = vmatpush1.bf16.msra.mxu0 %v2086
    %2756 = vmatprep.subr.bf16.mxu0 %v2095
    %2757 = vmatpush1.bf16.msra.mxu0 %v2094
    %2758 = vmatprep.mubr.bf16.mxu0 %v899
    %2759 = vmatmul.mubr.bf16.gmra.mrb[0].mxu0 %v898
    %v2760 = vpop.f32.mrb[0].mxu0
    %v2761 = vadd.f32 %v1187, %v2760
    %v2762 = vpop.f32.mrb[0].mxu0
    %v2763 = vadd.f32 %v1191, %v2762
    %v2764 = vpop.f32.mrb[0].mxu0
    %v2765 = vpop.f32.mrb[0].mxu0
    %2766 = vdwg.mxu0
    %2767 = vmatprep.subr.bf16.mxu0 %v2103
    %2768 = vmatpush1.bf16.msra.mxu0 %v2102
    %2769 = vmatprep.subr.bf16.mxu0 %v2111
    %2770 = vmatpush1.bf16.msra.mxu0 %v2110
    %2771 = vmatprep.subr.bf16.mxu0 %v2119
    %2772 = vmatpush1.bf16.msra.mxu0 %v2118
    %2773 = vmatprep.subr.bf16.mxu0 %v2127
    %2774 = vmatpush1.bf16.msra.mxu0 %v2126
    %2775 = vmatprep.subr.bf16.mxu0 %v2135
    %2776 = vmatpush1.bf16.msra.mxu0 %v2134
    %2777 = vmatprep.subr.bf16.mxu0 %v2143
    %2778 = vmatpush1.bf16.msra.mxu0 %v2142
    %2779 = vmatprep.subr.bf16.mxu0 %v2151
    %2780 = vmatpush1.bf16.msra.mxu0 %v2150
    %2781 = vmatprep.subr.bf16.mxu0 %v2159
    %2782 = vmatpush1.bf16.msra.mxu0 %v2158
    %2783 = vmatprep.subr.bf16.mxu0 %v2167
    %2784 = vmatpush1.bf16.msra.mxu0 %v2166
    %2785 = vmatprep.subr.bf16.mxu0 %v2175
    %2786 = vmatpush1.bf16.msra.mxu0 %v2174
    %2787 = vmatprep.subr.bf16.mxu0 %v2183
    %2788 = vmatpush1.bf16.msra.mxu0 %v2182
    %2789 = vmatprep.subr.bf16.mxu0 %v2191
    %2790 = vmatpush1.bf16.msra.mxu0 %v2190
    %2791 = vmatprep.subr.bf16.mxu0 %v2199
    %2792 = vmatpush1.bf16.msra.mxu0 %v2198
    %2793 = vmatprep.subr.bf16.mxu0 %v2207
    %2794 = vmatpush1.bf16.msra.mxu0 %v2206
    %2795 = vmatprep.subr.bf16.mxu0 %v2215
    %2796 = vmatpush1.bf16.msra.mxu0 %v2214
    %2797 = vmatprep.subr.bf16.mxu0 %v2223
    %2798 = vmatpush1.bf16.msra.mxu0 %v2222
    %2799 = vmatprep.mubr.bf16.mxu0 %v901
    %2800 = vmatmul.mubr.bf16.gmra.mrb[0].mxu0 %v900
    %v2801 = vpop.f32.mrb[0].mxu0
    %v2802 = vadd.f32 %v2761, %v2801
    %v2803 = vpop.f32.mrb[0].mxu0
    %v2804 = vadd.f32 %v2763, %v2803
    %v2805 = vpop.f32.mrb[0].mxu0
    %v2806 = vpop.f32.mrb[0].mxu0
    %2807 = vdwg.mxu0
    %v2808 = vmax.f32 %v2556, 0.0
    %v2809 = vmax.f32 %v2558, 0.0
    %v2810 = vmax.f32 %v2638, 0.0
    %v2811 = vmax.f32 %v2640, 0.0
    %v2812 = vmax.f32 %v2720, 0.0
    %v2813 = vmax.f32 %v2722, 0.0
    %v2814 = vmax.f32 %v2802, 0.0
    %v2815 = vmax.f32 %v2804, 0.0
    %v2816 = vpack.c.bf16 %v2808, %v2808
    %v2817 = vpack.c.bf16 %v2809, %v2809
    %v2818 = vpack.c.bf16 %v2810, %v2810
    %v2819 = vpack.c.bf16 %v2811, %v2811
    %v2820 = vpack.c.bf16 %v2812, %v2812
    %v2821 = vpack.c.bf16 %v2813, %v2813
    %v2822 = vpack.c.bf16 %v2814, %v2814
    %v2823 = vpack.c.bf16 %v2815, %v2815
    %v2832 = vcombine.low %v2816, %v2817
    %v2833 = vcombine.low %v2818, %v2819
    %v2834 = vcombine.low %v2820, %v2821
    %v2835 = vcombine.low %v2822, %v2823
    %v2837 = vunpack.c.l.s4 1966171168
    %v2838 = vunpack.c.0.s8 %v2837
    %v2839 = vlaneseq
    %v2840 = vshrl.u32 %v2839, 7
    %v2841 = vsub.s32 %v2838, %v2840
    %v2842 = vrot.slane %v2832, %v2841
    %v2844 = vunpack.c.l.s4 1966171168
    %v2845 = vunpack.c.0.s8 %v2844
    %v2846 = vlaneseq
    %v2847 = vshrl.u32 %v2846, 7
    %v2848 = vsub.s32 %v2845, %v2847
    %v2849 = vrot.slane %v2833, %v2848
    %v2851 = vunpack.c.l.s4 1966171168
    %v2852 = vunpack.c.0.s8 %v2851
    %v2853 = vlaneseq
    %v2854 = vshrl.u32 %v2853, 7
    %v2855 = vsub.s32 %v2852, %v2854
    %v2856 = vrot.slane %v2834, %v2855
    %v2858 = vunpack.c.l.s4 1966171168
    %v2859 = vunpack.c.0.s8 %v2858
    %v2860 = vlaneseq
    %v2861 = vshrl.u32 %v2860, 7
    %v2862 = vsub.s32 %v2859, %v2861
    %v2863 = vrot.slane %v2835, %v2862
    %v2864 = vcombine.low %v2842, %v2849
    %v2865 = vcombine.low %v2856, %v2863
    %v2867 = vunpack.c.l.s4 1966171168
    %v2868 = vunpack.c.0.s8 %v2867
    %v2869 = vlaneseq
    %v2870 = vshrl.u32 %v2869, 7
    %v2871 = vsub.s32 %v2868, %v2870
    %v2872 = vrot.slane %v2864, %v2871
    %v2874 = vunpack.c.l.s4 1966171168
    %v2875 = vunpack.c.0.s8 %v2874
    %v2876 = vlaneseq
    %v2877 = vshrl.u32 %v2876, 7
    %v2878 = vsub.s32 %v2875, %v2877
    %v2879 = vrot.slane %v2865, %v2878
    %v2880 = vcombine.low %v2872, %v2879
    %2882 = vst [vmem:[%s10] sm:$0xff] %v2880
    // Predicated region
    $region70: #{pointnet_fcae_forward.4} parent=1 // pred_check
      _
    $region71: #{pointnet_fcae_forward.4} parent=1 // pred_check_branch
      %2884 = sbr.rel (0) target = $region73
    $region72: #{pointnet_fcae_forward.4} parent=1 // pred_region
      %s2886 = ssub.s32 32, 32
      %2887 = vsyncadd [#allocation4], %s2886
      %s2889 = sshll.u32 [#allocation16], 4
      %s2890 = int_to_ptr.vmem [resolvable:$true] %s2889
      %2892 = dma.vmem_to_hbm [thread:$0]  %s2890, 32, %s9, [#allocation4]
    $region73: #{pointnet_fcae_forward.4} parent=1 // pred_fallthru
      _
    // Predicated region
    $region74: #{pointnet_fcae_forward.4} parent=1 // pred_check
      _
    $region75: #{pointnet_fcae_forward.4} parent=1 // pred_check_branch
      %2894 = sbr.rel (0) target = $region77
    $region76: #{pointnet_fcae_forward.4} parent=1 // pred_region
      _
    $region77: #{pointnet_fcae_forward.4} parent=1 // pred_fallthru
      _
    // Predicated region
    $region78: #{pointnet_fcae_forward.4} parent=1 // pred_check
      _
    $region79: #{pointnet_fcae_forward.4} parent=1 // pred_check_branch
      %2896 = sbr.rel (0) target = $region81
    $region80: #{pointnet_fcae_forward.4} parent=1 // pred_region
      %2897 = dma.done [#allocation4], 32
    $region81: #{pointnet_fcae_forward.4} parent=1 // pred_fallthru
      _
    // Predicated region
    $region82: #{pointnet_fcae_forward.4} parent=1 // pred_check
      _
    $region83: #{pointnet_fcae_forward.4} parent=1 // pred_check_branch
      %2899 = sbr.rel (0) target = $region85
    $region84: #{pointnet_fcae_forward.4} parent=1 // pred_region
      _
    $region85: #{pointnet_fcae_forward.4} parent=1 // pred_fallthru
      _
    %2900 = vsyncpa [#allocation3], 1
    %2901 = vsyncpa [#allocation6], 1
    %2902 = vsyncpa [#allocation9], 1
    %2903 = vsyncpa [#allocation12], 1
    %2904 = vsyncpa [#allocation15], 1
    %2905 = vsyncpa [#allocation4], 1

// kernel: pointnet_fcae_forward.5
$region0: #{pointnet_fcae_forward.5}
  #allocation0 [shape = 'u32[]', space=smem, size = 0x4, offset = 0x4, fixed_abs, tag = 'smem constant byte address 0x4 - core index']
  #allocation1 [shape = 'u32[144,128]{1,0:T(1,128)}', space=vmem, size = 0x12000, scoped, tag = 'internal scratch']
  %s0 = inlined_call_operand.vmem [shape: bf16[2,1024], index: 0, kind: input, shape index: {}]
  %s1 = inlined_call_operand.hbm [shape: bf16[1024,1536], index: 1, kind: input, shape index: {}]
  %s2 = inlined_call_operand.hbm [shape: f32[1,1536], index: 2, kind: input, shape index: {}]
  %s3 = inlined_call_operand.vmem [shape: f32[2,1536], index: 3, kind: output, shape index: {}]
  %s4 = sld [smem:[#allocation0]]
  $region30: #{pointnet_fcae_forward.5} parent=0
    _
  %s6 = ssub.s32 1, %s4
  %s7 = scalar_select 0, %s6, %s4
  $region1: #{pointnet_fcae_forward.5} parent=0
    #allocation2 [shape = 'u8[3145728]{0}', space=vmem, size = 0x300000, scoped, tag = 'input window, operand 1, single buffered']
    #allocation3 [shape = 's32[1]{0}', space=sflag, size = 0x4, scoped, tag = 'scoped memory for pointnet_fcae_forward.5']
    #allocation4 [shape = 'u8[6144]{0}', space=vmem, size = 0x1800, scoped, tag = 'input window, operand 2, single buffered']
    #allocation5 [shape = 's32[1]{0}', space=sflag, size = 0x4, scoped, tag = 'scoped memory for pointnet_fcae_forward.5']
    %8 = vsyncpa [#allocation3], 0
    %9 = vsyncpa [#allocation5], 0
    // Predicated region
    $region2: #{pointnet_fcae_forward.5} parent=1 // pred_check
      _
    $region3: #{pointnet_fcae_forward.5} parent=1 // pred_check_branch
      %11 = sbr.rel (0) target = $region5
    $region4: #{pointnet_fcae_forward.5} parent=1 // pred_region
      _
    $region5: #{pointnet_fcae_forward.5} parent=1 // pred_fallthru
      _
    // Predicated region
    $region6: #{pointnet_fcae_forward.5} parent=1 // pred_check
      _
    $region7: #{pointnet_fcae_forward.5} parent=1 // pred_check_branch
      %13 = sbr.rel (0) target = $region9
    $region8: #{pointnet_fcae_forward.5} parent=1 // pred_region
      %s15 = ssub.s32 98304, 98304
      %16 = vsyncadd [#allocation3], %s15
      %s17 = sshll.u32 [#allocation2], 4
      %s18 = int_to_ptr.vmem [resolvable:$true] %s17
      %23 = dma.hbm_to_vmem [thread:$0]  %s1, 98304, %s18, [#allocation3], 768, 768, 48
    $region9: #{pointnet_fcae_forward.5} parent=1 // pred_fallthru
      _
    // Predicated region
    $region10: #{pointnet_fcae_forward.5} parent=1 // pred_check
      _
    $region11: #{pointnet_fcae_forward.5} parent=1 // pred_check_branch
      %25 = sbr.rel (0) target = $region13
    $region12: #{pointnet_fcae_forward.5} parent=1 // pred_region
      %s27 = ssub.s32 192, 192
      %28 = vsyncadd [#allocation5], %s27
      %s30 = sshll.u32 [#allocation4], 4
      %s31 = int_to_ptr.vmem [resolvable:$true] %s30
      %33 = dma.hbm_to_vmem [thread:$0]  %s2, 192, %s31, [#allocation5]
    $region13: #{pointnet_fcae_forward.5} parent=1 // pred_fallthru
      _
    // Predicated region
    $region14: #{pointnet_fcae_forward.5} parent=1 // pred_check
      _
    $region15: #{pointnet_fcae_forward.5} parent=1 // pred_check_branch
      %35 = sbr.rel (0) target = $region17
    $region16: #{pointnet_fcae_forward.5} parent=1 // pred_region
      %36 = dma.done [#allocation3], 98304
    $region17: #{pointnet_fcae_forward.5} parent=1 // pred_fallthru
      _
    // Predicated region
    $region18: #{pointnet_fcae_forward.5} parent=1 // pred_check
      _
    $region19: #{pointnet_fcae_forward.5} parent=1 // pred_check_branch
      %38 = sbr.rel (0) target = $region21
    $region20: #{pointnet_fcae_forward.5} parent=1 // pred_region
      %39 = dma.done [#allocation5], 192
    $region21: #{pointnet_fcae_forward.5} parent=1 // pred_fallthru
      _
    %v40 = vld [vmem:[%s0] sm:$0xff]
    %v41 = vld [vmem:[#allocation2] sm:$0xff]
    %v42 = vld [vmem:[#allocation2 + $0x8] sm:$0xff]
    %v43 = vld [vmem:[#allocation2 + $0x10] sm:$0xff]
    %v44 = vld [vmem:[#allocation2 + $0x18] sm:$0xff]
    %v45 = vld [vmem:[#allocation2 + $0x20] sm:$0xff]
    %v46 = vld [vmem:[#allocation2 + $0x28] sm:$0xff]
    %v47 = vld [vmem:[#allocation2 + $0x30] sm:$0xff]
    %v48 = vld [vmem:[#allocation2 + $0x38] sm:$0xff]
    %v49 = vld [vmem:[#allocation2 + $0x40] sm:$0xff]
    %v50 = vld [vmem:[#allocation2 + $0x48] sm:$0xff]
    %v51 = vld [vmem:[#allocation2 + $0x50] sm:$0xff]
    %v52 = vld [vmem:[#allocation2 + $0x58] sm:$0xff]
    %v53 = vld [vmem:[#allocation2 + $0x60] sm:$0xff]
    %v54 = vld [vmem:[#allocation2 + $0x68] sm:$0xff]
    %v55 = vld [vmem:[#allocation2 + $0x70] sm:$0xff]
    %v56 = vld [vmem:[#allocation2 + $0x78] sm:$0xff]
    %v57 = vld [vmem:[#allocation2 + $0x80] sm:$0xff]
    %v58 = vld [vmem:[#allocation2 + $0x88] sm:$0xff]
    %v59 = vld [vmem:[#allocation2 + $0x90] sm:$0xff]
    %v60 = vld [vmem:[#allocation2 + $0x98] sm:$0xff]
    %v61 = vld [vmem:[#allocation2 + $0xa0] sm:$0xff]
    %v62 = vld [vmem:[#allocation2 + $0xa8] sm:$0xff]
    %v63 = vld [vmem:[#allocation2 + $0xb0] sm:$0xff]
    %v64 = vld [vmem:[#allocation2 + $0xb8] sm:$0xff]
    %v65 = vld [vmem:[#allocation2 + $0xc0] sm:$0xff]
    %v66 = vld [vmem:[#allocation2 + $0xc8] sm:$0xff]
    %v67 = vld [vmem:[#allocation2 + $0xd0] sm:$0xff]
    %v68 = vld [vmem:[#allocation2 + $0xd8] sm:$0xff]
    %v69 = vld [vmem:[#allocation2 + $0xe0] sm:$0xff]
    %v70 = vld [vmem:[#allocation2 + $0xe8] sm:$0xff]
    %v71 = vld [vmem:[#allocation2 + $0xf0] sm:$0xff]
    %v72 = vld [vmem:[#allocation2 + $0xf8] sm:$0xff]
    %v73 = vld [vmem:[#allocation2 + $0x100] sm:$0xff]
    %v74 = vld [vmem:[#allocation2 + $0x108] sm:$0xff]
    %v75 = vld [vmem:[#allocation2 + $0x110] sm:$0xff]
    %v76 = vld [vmem:[#allocation2 + $0x118] sm:$0xff]
    %v77 = vld [vmem:[#allocation2 + $0x120] sm:$0xff]
    %v78 = vld [vmem:[#allocation2 + $0x128] sm:$0xff]
    %v79 = vld [vmem:[#allocation2 + $0x130] sm:$0xff]
    %v80 = vld [vmem:[#allocation2 + $0x138] sm:$0xff]
    %v81 = vld [vmem:[#allocation2 + $0x140] sm:$0xff]
    %v82 = vld [vmem:[#allocation2 + $0x148] sm:$0xff]
    %v83 = vld [vmem:[#allocation2 + $0x150] sm:$0xff]
    %v84 = vld [vmem:[#allocation2 + $0x158] sm:$0xff]
    %v85 = vld [vmem:[#allocation2 + $0x160] sm:$0xff]
    %v86 = vld [vmem:[#allocation2 + $0x168] sm:$0xff]
    %v87 = vld [vmem:[#allocation2 + $0x170] sm:$0xff]
    %v88 = vld [vmem:[#allocation2 + $0x178] sm:$0xff]
    %v89 = vld [vmem:[#allocation2 + $0x180] sm:$0xff]
    %v90 = vld [vmem:[#allocation2 + $0x188] sm:$0xff]
    %v91 = vld [vmem:[#allocation2 + $0x190] sm:$0xff]
    %v92 = vld [vmem:[#allocation2 + $0x198] sm:$0xff]
    %v93 = vld [vmem:[#allocation2 + $0x1a0] sm:$0xff]
    %v94 = vld [vmem:[#allocation2 + $0x1a8] sm:$0xff]
    %v95 = vld [vmem:[#allocation2 + $0x1b0] sm:$0xff]
    %v96 = vld [vmem:[#allocation2 + $0x1b8] sm:$0xff]
    %v97 = vld [vmem:[#allocation2 + $0x1c0] sm:$0xff]
    %v98 = vld [vmem:[#allocation2 + $0x1c8] sm:$0xff]
    %v99 = vld [vmem:[#allocation2 + $0x1d0] sm:$0xff]
    %v100 = vld [vmem:[#allocation2 + $0x1d8] sm:$0xff]
    %v101 = vld [vmem:[#allocation2 + $0x1e0] sm:$0xff]
    %v102 = vld [vmem:[#allocation2 + $0x1e8] sm:$0xff]
    %v103 = vld [vmem:[#allocation2 + $0x1f0] sm:$0xff]
    %v104 = vld [vmem:[#allocation2 + $0x1f8] sm:$0xff]
    %v105 = vld [vmem:[#allocation2 + $0x200] sm:$0xff]
    %v106 = vld [vmem:[#allocation2 + $0x208] sm:$0xff]
    %v107 = vld [vmem:[#allocation2 + $0x210] sm:$0xff]
    %v108 = vld [vmem:[#allocation2 + $0x218] sm:$0xff]
    %v109 = vld [vmem:[#allocation2 + $0x220] sm:$0xff]
    %v110 = vld [vmem:[#allocation2 + $0x228] sm:$0xff]
    %v111 = vld [vmem:[#allocation2 + $0x230] sm:$0xff]
    %v112 = vld [vmem:[#allocation2 + $0x238] sm:$0xff]
    %v113 = vld [vmem:[#allocation2 + $0x240] sm:$0xff]
    %v114 = vld [vmem:[#allocation2 + $0x248] sm:$0xff]
    %v115 = vld [vmem:[#allocation2 + $0x250] sm:$0xff]
    %v116 = vld [vmem:[#allocation2 + $0x258] sm:$0xff]
    %v117 = vld [vmem:[#allocation2 + $0x260] sm:$0xff]
    %v118 = vld [vmem:[#allocation2 + $0x268] sm:$0xff]
    %v119 = vld [vmem:[#allocation2 + $0x270] sm:$0xff]
    %v120 = vld [vmem:[#allocation2 + $0x278] sm:$0xff]
    %v121 = vld [vmem:[#allocation2 + $0x280] sm:$0xff]
    %v122 = vld [vmem:[#allocation2 + $0x288] sm:$0xff]
    %v123 = vld [vmem:[#allocation2 + $0x290] sm:$0xff]
    %v124 = vld [vmem:[#allocation2 + $0x298] sm:$0xff]
    %v125 = vld [vmem:[#allocation2 + $0x2a0] sm:$0xff]
    %v126 = vld [vmem:[#allocation2 + $0x2a8] sm:$0xff]
    %v127 = vld [vmem:[#allocation2 + $0x2b0] sm:$0xff]
    %v128 = vld [vmem:[#allocation2 + $0x2b8] sm:$0xff]
    %v129 = vld [vmem:[#allocation2 + $0x2c0] sm:$0xff]
    %v130 = vld [vmem:[#allocation2 + $0x2c8] sm:$0xff]
    %v131 = vld [vmem:[#allocation2 + $0x2d0] sm:$0xff]
    %v132 = vld [vmem:[#allocation2 + $0x2d8] sm:$0xff]
    %v133 = vld [vmem:[#allocation2 + $0x2e0] sm:$0xff]
    %v134 = vld [vmem:[#allocation2 + $0x2e8] sm:$0xff]
    %v135 = vld [vmem:[#allocation2 + $0x2f0] sm:$0xff]
    %v136 = vld [vmem:[#allocation2 + $0x2f8] sm:$0xff]
    %v137 = vld [vmem:[#allocation2 + $0x300] sm:$0xff]
    %v138 = vld [vmem:[#allocation2 + $0x308] sm:$0xff]
    %v139 = vld [vmem:[#allocation2 + $0x310] sm:$0xff]
    %v140 = vld [vmem:[#allocation2 + $0x318] sm:$0xff]
    %v141 = vld [vmem:[#allocation2 + $0x320] sm:$0xff]
    %v142 = vld [vmem:[#allocation2 + $0x328] sm:$0xff]
    %v143 = vld [vmem:[#allocation2 + $0x330] sm:$0xff]
    %v144 = vld [vmem:[#allocation2 + $0x338] sm:$0xff]
    %v145 = vld [vmem:[#allocation2 + $0x340] sm:$0xff]
    %v146 = vld [vmem:[#allocation2 + $0x348] sm:$0xff]
    %v147 = vld [vmem:[#allocation2 + $0x350] sm:$0xff]
    %v148 = vld [vmem:[#allocation2 + $0x358] sm:$0xff]
    %v149 = vld [vmem:[#allocation2 + $0x360] sm:$0xff]
    %v150 = vld [vmem:[#allocation2 + $0x368] sm:$0xff]
    %v151 = vld [vmem:[#allocation2 + $0x370] sm:$0xff]
    %v152 = vld [vmem:[#allocation2 + $0x378] sm:$0xff]
    %v153 = vld [vmem:[#allocation2 + $0x380] sm:$0xff]
    %v154 = vld [vmem:[#allocation2 + $0x388] sm:$0xff]
    %v155 = vld [vmem:[#allocation2 + $0x390] sm:$0xff]
    %v156 = vld [vmem:[#allocation2 + $0x398] sm:$0xff]
    %v157 = vld [vmem:[#allocation2 + $0x3a0] sm:$0xff]
    %v158 = vld [vmem:[#allocation2 + $0x3a8] sm:$0xff]
    %v159 = vld [vmem:[#allocation2 + $0x3b0] sm:$0xff]
    %v160 = vld [vmem:[#allocation2 + $0x3b8] sm:$0xff]
    %v161 = vld [vmem:[#allocation2 + $0x3c0] sm:$0xff]
    %v162 = vld [vmem:[#allocation2 + $0x3c8] sm:$0xff]
    %v163 = vld [vmem:[#allocation2 + $0x3d0] sm:$0xff]
    %v164 = vld [vmem:[#allocation2 + $0x3d8] sm:$0xff]
    %v165 = vld [vmem:[#allocation2 + $0x3e0] sm:$0xff]
    %v166 = vld [vmem:[#allocation2 + $0x3e8] sm:$0xff]
    %v167 = vld [vmem:[#allocation2 + $0x3f0] sm:$0xff]
    %v168 = vld [vmem:[#allocation2 + $0x3f8] sm:$0xff]
    %v169 = vld [vmem:[#allocation2 + $0x400] sm:$0xff]
    %v170 = vld [vmem:[#allocation2 + $0x408] sm:$0xff]
    %v171 = vld [vmem:[#allocation2 + $0x410] sm:$0xff]
    %v172 = vld [vmem:[#allocation2 + $0x418] sm:$0xff]
    %v173 = vld [vmem:[#allocation2 + $0x420] sm:$0xff]
    %v174 = vld [vmem:[#allocation2 + $0x428] sm:$0xff]
    %v175 = vld [vmem:[#allocation2 + $0x430] sm:$0xff]
    %v176 = vld [vmem:[#allocation2 + $0x438] sm:$0xff]
    %v177 = vld [vmem:[#allocation2 + $0x440] sm:$0xff]
    %v178 = vld [vmem:[#allocation2 + $0x448] sm:$0xff]
    %v179 = vld [vmem:[#allocation2 + $0x450] sm:$0xff]
    %v180 = vld [vmem:[#allocation2 + $0x458] sm:$0xff]
    %v181 = vld [vmem:[#allocation2 + $0x460] sm:$0xff]
    %v182 = vld [vmem:[#allocation2 + $0x468] sm:$0xff]
    %v183 = vld [vmem:[#allocation2 + $0x470] sm:$0xff]
    %v184 = vld [vmem:[#allocation2 + $0x478] sm:$0xff]
    %v185 = vld [vmem:[#allocation2 + $0x480] sm:$0xff]
    %v186 = vld [vmem:[#allocation2 + $0x488] sm:$0xff]
    %v187 = vld [vmem:[#allocation2 + $0x490] sm:$0xff]
    %v188 = vld [vmem:[#allocation2 + $0x498] sm:$0xff]
    %v189 = vld [vmem:[#allocation2 + $0x4a0] sm:$0xff]
    %v190 = vld [vmem:[#allocation2 + $0x4a8] sm:$0xff]
    %v191 = vld [vmem:[#allocation2 + $0x4b0] sm:$0xff]
    %v192 = vld [vmem:[#allocation2 + $0x4b8] sm:$0xff]
    %v193 = vld [vmem:[#allocation2 + $0x4c0] sm:$0xff]
    %v194 = vld [vmem:[#allocation2 + $0x4c8] sm:$0xff]
    %v195 = vld [vmem:[#allocation2 + $0x4d0] sm:$0xff]
    %v196 = vld [vmem:[#allocation2 + $0x4d8] sm:$0xff]
    %v197 = vld [vmem:[#allocation2 + $0x4e0] sm:$0xff]
    %v198 = vld [vmem:[#allocation2 + $0x4e8] sm:$0xff]
    %v199 = vld [vmem:[#allocation2 + $0x4f0] sm:$0xff]
    %v200 = vld [vmem:[#allocation2 + $0x4f8] sm:$0xff]
    %v201 = vld [vmem:[#allocation2 + $0x500] sm:$0xff]
    %v202 = vld [vmem:[#allocation2 + $0x508] sm:$0xff]
    %v203 = vld [vmem:[#allocation2 + $0x510] sm:$0xff]
    %v204 = vld [vmem:[#allocation2 + $0x518] sm:$0xff]
    %v205 = vld [vmem:[#allocation2 + $0x520] sm:$0xff]
    %v206 = vld [vmem:[#allocation2 + $0x528] sm:$0xff]
    %v207 = vld [vmem:[#allocation2 + $0x530] sm:$0xff]
    %v208 = vld [vmem:[#allocation2 + $0x538] sm:$0xff]
    %v209 = vld [vmem:[#allocation2 + $0x540] sm:$0xff]
    %v210 = vld [vmem:[#allocation2 + $0x548] sm:$0xff]
    %v211 = vld [vmem:[#allocation2 + $0x550] sm:$0xff]
    %v212 = vld [vmem:[#allocation2 + $0x558] sm:$0xff]
    %v213 = vld [vmem:[#allocation2 + $0x560] sm:$0xff]
    %v214 = vld [vmem:[#allocation2 + $0x568] sm:$0xff]
    %v215 = vld [vmem:[#allocation2 + $0x570] sm:$0xff]
    %v216 = vld [vmem:[#allocation2 + $0x578] sm:$0xff]
    %v217 = vld [vmem:[#allocation2 + $0x580] sm:$0xff]
    %v218 = vld [vmem:[#allocation2 + $0x588] sm:$0xff]
    %v219 = vld [vmem:[#allocation2 + $0x590] sm:$0xff]
    %v220 = vld [vmem:[#allocation2 + $0x598] sm:$0xff]
    %v221 = vld [vmem:[#allocation2 + $0x5a0] sm:$0xff]
    %v222 = vld [vmem:[#allocation2 + $0x5a8] sm:$0xff]
    %v223 = vld [vmem:[#allocation2 + $0x5b0] sm:$0xff]
    %v224 = vld [vmem:[#allocation2 + $0x5b8] sm:$0xff]
    %v225 = vld [vmem:[#allocation2 + $0x5c0] sm:$0xff]
    %v226 = vld [vmem:[#allocation2 + $0x5c8] sm:$0xff]
    %v227 = vld [vmem:[#allocation2 + $0x5d0] sm:$0xff]
    %v228 = vld [vmem:[#allocation2 + $0x5d8] sm:$0xff]
    %v229 = vld [vmem:[#allocation2 + $0x5e0] sm:$0xff]
    %v230 = vld [vmem:[#allocation2 + $0x5e8] sm:$0xff]
    %v231 = vld [vmem:[#allocation2 + $0x5f0] sm:$0xff]
    %v232 = vld [vmem:[#allocation2 + $0x5f8] sm:$0xff]
    %v233 = vld [vmem:[#allocation2 + $0x600] sm:$0xff]
    %v234 = vld [vmem:[#allocation2 + $0x608] sm:$0xff]
    %v235 = vld [vmem:[#allocation2 + $0x610] sm:$0xff]
    %v236 = vld [vmem:[#allocation2 + $0x618] sm:$0xff]
    %v237 = vld [vmem:[#allocation2 + $0x620] sm:$0xff]
    %v238 = vld [vmem:[#allocation2 + $0x628] sm:$0xff]
    %v239 = vld [vmem:[#allocation2 + $0x630] sm:$0xff]
    %v240 = vld [vmem:[#allocation2 + $0x638] sm:$0xff]
    %v241 = vld [vmem:[#allocation2 + $0x640] sm:$0xff]
    %v242 = vld [vmem:[#allocation2 + $0x648] sm:$0xff]
    %v243 = vld [vmem:[#allocation2 + $0x650] sm:$0xff]
    %v244 = vld [vmem:[#allocation2 + $0x658] sm:$0xff]
    %v245 = vld [vmem:[#allocation2 + $0x660] sm:$0xff]
    %v246 = vld [vmem:[#allocation2 + $0x668] sm:$0xff]
    %v247 = vld [vmem:[#allocation2 + $0x670] sm:$0xff]
    %v248 = vld [vmem:[#allocation2 + $0x678] sm:$0xff]
    %v249 = vld [vmem:[#allocation2 + $0x680] sm:$0xff]
    %v250 = vld [vmem:[#allocation2 + $0x688] sm:$0xff]
    %v251 = vld [vmem:[#allocation2 + $0x690] sm:$0xff]
    %v252 = vld [vmem:[#allocation2 + $0x698] sm:$0xff]
    %v253 = vld [vmem:[#allocation2 + $0x6a0] sm:$0xff]
    %v254 = vld [vmem:[#allocation2 + $0x6a8] sm:$0xff]
    %v255 = vld [vmem:[#allocation2 + $0x6b0] sm:$0xff]
    %v256 = vld [vmem:[#allocation2 + $0x6b8] sm:$0xff]
    %v257 = vld [vmem:[#allocation2 + $0x6c0] sm:$0xff]
    %v258 = vld [vmem:[#allocation2 + $0x6c8] sm:$0xff]
    %v259 = vld [vmem:[#allocation2 + $0x6d0] sm:$0xff]
    %v260 = vld [vmem:[#allocation2 + $0x6d8] sm:$0xff]
    %v261 = vld [vmem:[#allocation2 + $0x6e0] sm:$0xff]
    %v262 = vld [vmem:[#allocation2 + $0x6e8] sm:$0xff]
    %v263 = vld [vmem:[#allocation2 + $0x6f0] sm:$0xff]
    %v264 = vld [vmem:[#allocation2 + $0x6f8] sm:$0xff]
    %v265 = vld [vmem:[#allocation2 + $0x700] sm:$0xff]
    %v266 = vld [vmem:[#allocation2 + $0x708] sm:$0xff]
    %v267 = vld [vmem:[#allocation2 + $0x710] sm:$0xff]
    %v268 = vld [vmem:[#allocation2 + $0x718] sm:$0xff]
    %v269 = vld [vmem:[#allocation2 + $0x720] sm:$0xff]
    %v270 = vld [vmem:[#allocation2 + $0x728] sm:$0xff]
    %v271 = vld [vmem:[#allocation2 + $0x730] sm:$0xff]
    %v272 = vld [vmem:[#allocation2 + $0x738] sm:$0xff]
    %v273 = vld [vmem:[#allocation2 + $0x740] sm:$0xff]
    %v274 = vld [vmem:[#allocation2 + $0x748] sm:$0xff]
    %v275 = vld [vmem:[#allocation2 + $0x750] sm:$0xff]
    %v276 = vld [vmem:[#allocation2 + $0x758] sm:$0xff]
    %v277 = vld [vmem:[#allocation2 + $0x760] sm:$0xff]
    %v278 = vld [vmem:[#allocation2 + $0x768] sm:$0xff]
    %v279 = vld [vmem:[#allocation2 + $0x770] sm:$0xff]
    %v280 = vld [vmem:[#allocation2 + $0x778] sm:$0xff]
    %v281 = vld [vmem:[#allocation2 + $0x780] sm:$0xff]
    %v282 = vld [vmem:[#allocation2 + $0x788] sm:$0xff]
    %v283 = vld [vmem:[#allocation2 + $0x790] sm:$0xff]
    %v284 = vld [vmem:[#allocation2 + $0x798] sm:$0xff]
    %v285 = vld [vmem:[#allocation2 + $0x7a0] sm:$0xff]
    %v286 = vld [vmem:[#allocation2 + $0x7a8] sm:$0xff]
    %v287 = vld [vmem:[#allocation2 + $0x7b0] sm:$0xff]
    %v288 = vld [vmem:[#allocation2 + $0x7b8] sm:$0xff]
    %v289 = vld [vmem:[#allocation2 + $0x7c0] sm:$0xff]
    %v290 = vld [vmem:[#allocation2 + $0x7c8] sm:$0xff]
    %v291 = vld [vmem:[#allocation2 + $0x7d0] sm:$0xff]
    %v292 = vld [vmem:[#allocation2 + $0x7d8] sm:$0xff]
    %v293 = vld [vmem:[#allocation2 + $0x7e0] sm:$0xff]
    %v294 = vld [vmem:[#allocation2 + $0x7e8] sm:$0xff]
    %v295 = vld [vmem:[#allocation2 + $0x7f0] sm:$0xff]
    %v296 = vld [vmem:[#allocation2 + $0x7f8] sm:$0xff]
    %v297 = vld [vmem:[#allocation2 + $0x800] sm:$0xff]
    %v298 = vld [vmem:[#allocation2 + $0x808] sm:$0xff]
    %v299 = vld [vmem:[#allocation2 + $0x810] sm:$0xff]
    %v300 = vld [vmem:[#allocation2 + $0x818] sm:$0xff]
    %v301 = vld [vmem:[#allocation2 + $0x820] sm:$0xff]
    %v302 = vld [vmem:[#allocation2 + $0x828] sm:$0xff]
    %v303 = vld [vmem:[#allocation2 + $0x830] sm:$0xff]
    %v304 = vld [vmem:[#allocation2 + $0x838] sm:$0xff]
    %v305 = vld [vmem:[#allocation2 + $0x840] sm:$0xff]
    %v306 = vld [vmem:[#allocation2 + $0x848] sm:$0xff]
    %v307 = vld [vmem:[#allocation2 + $0x850] sm:$0xff]
    %v308 = vld [vmem:[#allocation2 + $0x858] sm:$0xff]
    %v309 = vld [vmem:[#allocation2 + $0x860] sm:$0xff]
    %v310 = vld [vmem:[#allocation2 + $0x868] sm:$0xff]
    %v311 = vld [vmem:[#allocation2 + $0x870] sm:$0xff]
    %v312 = vld [vmem:[#allocation2 + $0x878] sm:$0xff]
    %v313 = vld [vmem:[#allocation2 + $0x880] sm:$0xff]
    %v314 = vld [vmem:[#allocation2 + $0x888] sm:$0xff]
    %v315 = vld [vmem:[#allocation2 + $0x890] sm:$0xff]
    %v316 = vld [vmem:[#allocation2 + $0x898] sm:$0xff]
    %v317 = vld [vmem:[#allocation2 + $0x8a0] sm:$0xff]
    %v318 = vld [vmem:[#allocation2 + $0x8a8] sm:$0xff]
    %v319 = vld [vmem:[#allocation2 + $0x8b0] sm:$0xff]
    %v320 = vld [vmem:[#allocation2 + $0x8b8] sm:$0xff]
    %v321 = vld [vmem:[#allocation2 + $0x8c0] sm:$0xff]
    %v322 = vld [vmem:[#allocation2 + $0x8c8] sm:$0xff]
    %v323 = vld [vmem:[#allocation2 + $0x8d0] sm:$0xff]
    %v324 = vld [vmem:[#allocation2 + $0x8d8] sm:$0xff]
    %v325 = vld [vmem:[#allocation2 + $0x8e0] sm:$0xff]
    %v326 = vld [vmem:[#allocation2 + $0x8e8] sm:$0xff]
    %v327 = vld [vmem:[#allocation2 + $0x8f0] sm:$0xff]
    %v328 = vld [vmem:[#allocation2 + $0x8f8] sm:$0xff]
    %v329 = vld [vmem:[#allocation2 + $0x900] sm:$0xff]
    %v330 = vld [vmem:[#allocation2 + $0x908] sm:$0xff]
    %v331 = vld [vmem:[#allocation2 + $0x910] sm:$0xff]
    %v332 = vld [vmem:[#allocation2 + $0x918] sm:$0xff]
    %v333 = vld [vmem:[#allocation2 + $0x920] sm:$0xff]
    %v334 = vld [vmem:[#allocation2 + $0x928] sm:$0xff]
    %v335 = vld [vmem:[#allocation2 + $0x930] sm:$0xff]
    %v336 = vld [vmem:[#allocation2 + $0x938] sm:$0xff]
    %v337 = vld [vmem:[#allocation2 + $0x940] sm:$0xff]
    %v338 = vld [vmem:[#allocation2 + $0x948] sm:$0xff]
    %v339 = vld [vmem:[#allocation2 + $0x950] sm:$0xff]
    %v340 = vld [vmem:[#allocation2 + $0x958] sm:$0xff]
    %v341 = vld [vmem:[#allocation2 + $0x960] sm:$0xff]
    %v342 = vld [vmem:[#allocation2 + $0x968] sm:$0xff]
    %v343 = vld [vmem:[#allocation2 + $0x970] sm:$0xff]
    %v344 = vld [vmem:[#allocation2 + $0x978] sm:$0xff]
    %v345 = vld [vmem:[#allocation2 + $0x980] sm:$0xff]
    %v346 = vld [vmem:[#allocation2 + $0x988] sm:$0xff]
    %v347 = vld [vmem:[#allocation2 + $0x990] sm:$0xff]
    %v348 = vld [vmem:[#allocation2 + $0x998] sm:$0xff]
    %v349 = vld [vmem:[#allocation2 + $0x9a0] sm:$0xff]
    %v350 = vld [vmem:[#allocation2 + $0x9a8] sm:$0xff]
    %v351 = vld [vmem:[#allocation2 + $0x9b0] sm:$0xff]
    %v352 = vld [vmem:[#allocation2 + $0x9b8] sm:$0xff]
    %v353 = vld [vmem:[#allocation2 + $0x9c0] sm:$0xff]
    %v354 = vld [vmem:[#allocation2 + $0x9c8] sm:$0xff]
    %v355 = vld [vmem:[#allocation2 + $0x9d0] sm:$0xff]
    %v356 = vld [vmem:[#allocation2 + $0x9d8] sm:$0xff]
    %v357 = vld [vmem:[#allocation2 + $0x9e0] sm:$0xff]
    %v358 = vld [vmem:[#allocation2 + $0x9e8] sm:$0xff]
    %v359 = vld [vmem:[#allocation2 + $0x9f0] sm:$0xff]
    %v360 = vld [vmem:[#allocation2 + $0x9f8] sm:$0xff]
    %v361 = vld [vmem:[#allocation2 + $0xa00] sm:$0xff]
    %v362 = vld [vmem:[#allocation2 + $0xa08] sm:$0xff]
    %v363 = vld [vmem:[#allocation2 + $0xa10] sm:$0xff]
    %v364 = vld [vmem:[#allocation2 + $0xa18] sm:$0xff]
    %v365 = vld [vmem:[#allocation2 + $0xa20] sm:$0xff]
    %v366 = vld [vmem:[#allocation2 + $0xa28] sm:$0xff]
    %v367 = vld [vmem:[#allocation2 + $0xa30] sm:$0xff]
    %v368 = vld [vmem:[#allocation2 + $0xa38] sm:$0xff]
    %v369 = vld [vmem:[#allocation2 + $0xa40] sm:$0xff]
    %v370 = vld [vmem:[#allocation2 + $0xa48] sm:$0xff]
    %v371 = vld [vmem:[#allocation2 + $0xa50] sm:$0xff]
    %v372 = vld [vmem:[#allocation2 + $0xa58] sm:$0xff]
    %v373 = vld [vmem:[#allocation2 + $0xa60] sm:$0xff]
    %v374 = vld [vmem:[#allocation2 + $0xa68] sm:$0xff]
    %v375 = vld [vmem:[#allocation2 + $0xa70] sm:$0xff]
    %v376 = vld [vmem:[#allocation2 + $0xa78] sm:$0xff]
    %v377 = vld [vmem:[#allocation2 + $0xa80] sm:$0xff]
    %v378 = vld [vmem:[#allocation2 + $0xa88] sm:$0xff]
    %v379 = vld [vmem:[#allocation2 + $0xa90] sm:$0xff]
    %v380 = vld [vmem:[#allocation2 + $0xa98] sm:$0xff]
    %v381 = vld [vmem:[#allocation2 + $0xaa0] sm:$0xff]
    %v382 = vld [vmem:[#allocation2 + $0xaa8] sm:$0xff]
    %v383 = vld [vmem:[#allocation2 + $0xab0] sm:$0xff]
    %v384 = vld [vmem:[#allocation2 + $0xab8] sm:$0xff]
    %v385 = vld [vmem:[#allocation2 + $0xac0] sm:$0xff]
    %v386 = vld [vmem:[#allocation2 + $0xac8] sm:$0xff]
    %v387 = vld [vmem:[#allocation2 + $0xad0] sm:$0xff]
    %v388 = vld [vmem:[#allocation2 + $0xad8] sm:$0xff]
    %v389 = vld [vmem:[#allocation2 + $0xae0] sm:$0xff]
    %v390 = vld [vmem:[#allocation2 + $0xae8] sm:$0xff]
    %v391 = vld [vmem:[#allocation2 + $0xaf0] sm:$0xff]
    %v392 = vld [vmem:[#allocation2 + $0xaf8] sm:$0xff]
    %v393 = vld [vmem:[#allocation2 + $0xb00] sm:$0xff]
    %v394 = vld [vmem:[#allocation2 + $0xb08] sm:$0xff]
    %v395 = vld [vmem:[#allocation2 + $0xb10] sm:$0xff]
    %v396 = vld [vmem:[#allocation2 + $0xb18] sm:$0xff]
    %v397 = vld [vmem:[#allocation2 + $0xb20] sm:$0xff]
    %v398 = vld [vmem:[#allocation2 + $0xb28] sm:$0xff]
    %v399 = vld [vmem:[#allocation2 + $0xb30] sm:$0xff]
    %v400 = vld [vmem:[#allocation2 + $0xb38] sm:$0xff]
    %v401 = vld [vmem:[#allocation2 + $0xb40] sm:$0xff]
    %v402 = vld [vmem:[#allocation2 + $0xb48] sm:$0xff]
    %v403 = vld [vmem:[#allocation2 + $0xb50] sm:$0xff]
    %v404 = vld [vmem:[#allocation2 + $0xb58] sm:$0xff]
    %v405 = vld [vmem:[#allocation2 + $0xb60] sm:$0xff]
    %v406 = vld [vmem:[#allocation2 + $0xb68] sm:$0xff]
    %v407 = vld [vmem:[#allocation2 + $0xb70] sm:$0xff]
    %v408 = vld [vmem:[#allocation2 + $0xb78] sm:$0xff]
    %v409 = vld [vmem:[#allocation2 + $0xb80] sm:$0xff]
    %v410 = vld [vmem:[#allocation2 + $0xb88] sm:$0xff]
    %v411 = vld [vmem:[#allocation2 + $0xb90] sm:$0xff]
    %v412 = vld [vmem:[#allocation2 + $0xb98] sm:$0xff]
    %v413 = vld [vmem:[#allocation2 + $0xba0] sm:$0xff]
    %v414 = vld [vmem:[#allocation2 + $0xba8] sm:$0xff]
    %v415 = vld [vmem:[#allocation2 + $0xbb0] sm:$0xff]
    %v416 = vld [vmem:[#allocation2 + $0xbb8] sm:$0xff]
    %v417 = vld [vmem:[#allocation2 + $0xbc0] sm:$0xff]
    %v418 = vld [vmem:[#allocation2 + $0xbc8] sm:$0xff]
    %v419 = vld [vmem:[#allocation2 + $0xbd0] sm:$0xff]
    %v420 = vld [vmem:[#allocation2 + $0xbd8] sm:$0xff]
    %v421 = vld [vmem:[#allocation2 + $0xbe0] sm:$0xff]
    %v422 = vld [vmem:[#allocation2 + $0xbe8] sm:$0xff]
    %v423 = vld [vmem:[#allocation2 + $0xbf0] sm:$0xff]
    %v424 = vld [vmem:[#allocation2 + $0xbf8] sm:$0xff]
    %v425 = vld [vmem:[#allocation2 + $0xc00] sm:$0xff]
    %v426 = vld [vmem:[#allocation2 + $0xc08] sm:$0xff]
    %v427 = vld [vmem:[#allocation2 + $0xc10] sm:$0xff]
    %v428 = vld [vmem:[#allocation2 + $0xc18] sm:$0xff]
    %v429 = vld [vmem:[#allocation2 + $0xc20] sm:$0xff]
    %v430 = vld [vmem:[#allocation2 + $0xc28] sm:$0xff]
    %v431 = vld [vmem:[#allocation2 + $0xc30] sm:$0xff]
    %v432 = vld [vmem:[#allocation2 + $0xc38] sm:$0xff]
    %v433 = vld [vmem:[#allocation2 + $0xc40] sm:$0xff]
    %v434 = vld [vmem:[#allocation2 + $0xc48] sm:$0xff]
    %v435 = vld [vmem:[#allocation2 + $0xc50] sm:$0xff]
    %v436 = vld [vmem:[#allocation2 + $0xc58] sm:$0xff]
    %v437 = vld [vmem:[#allocation2 + $0xc60] sm:$0xff]
    %v438 = vld [vmem:[#allocation2 + $0xc68] sm:$0xff]
    %v439 = vld [vmem:[#allocation2 + $0xc70] sm:$0xff]
    %v440 = vld [vmem:[#allocation2 + $0xc78] sm:$0xff]
    %v441 = vld [vmem:[#allocation2 + $0xc80] sm:$0xff]
    %v442 = vld [vmem:[#allocation2 + $0xc88] sm:$0xff]
    %v443 = vld [vmem:[#allocation2 + $0xc90] sm:$0xff]
    %v444 = vld [vmem:[#allocation2 + $0xc98] sm:$0xff]
    %v445 = vld [vmem:[#allocation2 + $0xca0] sm:$0xff]
    %v446 = vld [vmem:[#allocation2 + $0xca8] sm:$0xff]
    %v447 = vld [vmem:[#allocation2 + $0xcb0] sm:$0xff]
    %v448 = vld [vmem:[#allocation2 + $0xcb8] sm:$0xff]
    %v449 = vld [vmem:[#allocation2 + $0xcc0] sm:$0xff]
    %v450 = vld [vmem:[#allocation2 + $0xcc8] sm:$0xff]
    %v451 = vld [vmem:[#allocation2 + $0xcd0] sm:$0xff]
    %v452 = vld [vmem:[#allocation2 + $0xcd8] sm:$0xff]
    %v453 = vld [vmem:[#allocation2 + $0xce0] sm:$0xff]
    %v454 = vld [vmem:[#allocation2 + $0xce8] sm:$0xff]
    %v455 = vld [vmem:[#allocation2 + $0xcf0] sm:$0xff]
    %v456 = vld [vmem:[#allocation2 + $0xcf8] sm:$0xff]
    %v457 = vld [vmem:[#allocation2 + $0xd00] sm:$0xff]
    %v458 = vld [vmem:[#allocation2 + $0xd08] sm:$0xff]
    %v459 = vld [vmem:[#allocation2 + $0xd10] sm:$0xff]
    %v460 = vld [vmem:[#allocation2 + $0xd18] sm:$0xff]
    %v461 = vld [vmem:[#allocation2 + $0xd20] sm:$0xff]
    %v462 = vld [vmem:[#allocation2 + $0xd28] sm:$0xff]
    %v463 = vld [vmem:[#allocation2 + $0xd30] sm:$0xff]
    %v464 = vld [vmem:[#allocation2 + $0xd38] sm:$0xff]
    %v465 = vld [vmem:[#allocation2 + $0xd40] sm:$0xff]
    %v466 = vld [vmem:[#allocation2 + $0xd48] sm:$0xff]
    %v467 = vld [vmem:[#allocation2 + $0xd50] sm:$0xff]
    %v468 = vld [vmem:[#allocation2 + $0xd58] sm:$0xff]
    %v469 = vld [vmem:[#allocation2 + $0xd60] sm:$0xff]
    %v470 = vld [vmem:[#allocation2 + $0xd68] sm:$0xff]
    %v471 = vld [vmem:[#allocation2 + $0xd70] sm:$0xff]
    %v472 = vld [vmem:[#allocation2 + $0xd78] sm:$0xff]
    %v473 = vld [vmem:[#allocation2 + $0xd80] sm:$0xff]
    %v474 = vld [vmem:[#allocation2 + $0xd88] sm:$0xff]
    %v475 = vld [vmem:[#allocation2 + $0xd90] sm:$0xff]
    %v476 = vld [vmem:[#allocation2 + $0xd98] sm:$0xff]
    %v477 = vld [vmem:[#allocation2 + $0xda0] sm:$0xff]
    %v478 = vld [vmem:[#allocation2 + $0xda8] sm:$0xff]
    %v479 = vld [vmem:[#allocation2 + $0xdb0] sm:$0xff]
    %v480 = vld [vmem:[#allocation2 + $0xdb8] sm:$0xff]
    %v481 = vld [vmem:[#allocation2 + $0xdc0] sm:$0xff]
    %v482 = vld [vmem:[#allocation2 + $0xdc8] sm:$0xff]
    %v483 = vld [vmem:[#allocation2 + $0xdd0] sm:$0xff]
    %v484 = vld [vmem:[#allocation2 + $0xdd8] sm:$0xff]
    %v485 = vld [vmem:[#allocation2 + $0xde0] sm:$0xff]
    %v486 = vld [vmem:[#allocation2 + $0xde8] sm:$0xff]
    %v487 = vld [vmem:[#allocation2 + $0xdf0] sm:$0xff]
    %v488 = vld [vmem:[#allocation2 + $0xdf8] sm:$0xff]
    %v489 = vld [vmem:[#allocation2 + $0xe00] sm:$0xff]
    %v490 = vld [vmem:[#allocation2 + $0xe08] sm:$0xff]
    %v491 = vld [vmem:[#allocation2 + $0xe10] sm:$0xff]
    %v492 = vld [vmem:[#allocation2 + $0xe18] sm:$0xff]
    %v493 = vld [vmem:[#allocation2 + $0xe20] sm:$0xff]
    %v494 = vld [vmem:[#allocation2 + $0xe28] sm:$0xff]
    %v495 = vld [vmem:[#allocation2 + $0xe30] sm:$0xff]
    %v496 = vld [vmem:[#allocation2 + $0xe38] sm:$0xff]
    %v497 = vld [vmem:[#allocation2 + $0xe40] sm:$0xff]
    %v498 = vld [vmem:[#allocation2 + $0xe48] sm:$0xff]
    %v499 = vld [vmem:[#allocation2 + $0xe50] sm:$0xff]
    %v500 = vld [vmem:[#allocation2 + $0xe58] sm:$0xff]
    %v501 = vld [vmem:[#allocation2 + $0xe60] sm:$0xff]
    %v502 = vld [vmem:[#allocation2 + $0xe68] sm:$0xff]
    %v503 = vld [vmem:[#allocation2 + $0xe70] sm:$0xff]
    %v504 = vld [vmem:[#allocation2 + $0xe78] sm:$0xff]
    %v505 = vld [vmem:[#allocation2 + $0xe80] sm:$0xff]
    %v506 = vld [vmem:[#allocation2 + $0xe88] sm:$0xff]
    %v507 = vld [vmem:[#allocation2 + $0xe90] sm:$0xff]
    %v508 = vld [vmem:[#allocation2 + $0xe98] sm:$0xff]
    %v509 = vld [vmem:[#allocation2 + $0xea0] sm:$0xff]
    %v510 = vld [vmem:[#allocation2 + $0xea8] sm:$0xff]
    %v511 = vld [vmem:[#allocation2 + $0xeb0] sm:$0xff]
    %v512 = vld [vmem:[#allocation2 + $0xeb8] sm:$0xff]
    %v513 = vld [vmem:[#allocation2 + $0xec0] sm:$0xff]
    %v514 = vld [vmem:[#allocation2 + $0xec8] sm:$0xff]
    %v515 = vld [vmem:[#allocation2 + $0xed0] sm:$0xff]
    %v516 = vld [vmem:[#allocation2 + $0xed8] sm:$0xff]
    %v517 = vld [vmem:[#allocation2 + $0xee0] sm:$0xff]
    %v518 = vld [vmem:[#allocation2 + $0xee8] sm:$0xff]
    %v519 = vld [vmem:[#allocation2 + $0xef0] sm:$0xff]
    %v520 = vld [vmem:[#allocation2 + $0xef8] sm:$0xff]
    %v521 = vld [vmem:[#allocation2 + $0xf00] sm:$0xff]
    %v522 = vld [vmem:[#allocation2 + $0xf08] sm:$0xff]
    %v523 = vld [vmem:[#allocation2 + $0xf10] sm:$0xff]
    %v524 = vld [vmem:[#allocation2 + $0xf18] sm:$0xff]
    %v525 = vld [vmem:[#allocation2 + $0xf20] sm:$0xff]
    %v526 = vld [vmem:[#allocation2 + $0xf28] sm:$0xff]
    %v527 = vld [vmem:[#allocation2 + $0xf30] sm:$0xff]
    %v528 = vld [vmem:[#allocation2 + $0xf38] sm:$0xff]
    %v529 = vld [vmem:[#allocation2 + $0xf40] sm:$0xff]
    %v530 = vld [vmem:[#allocation2 + $0xf48] sm:$0xff]
    %v531 = vld [vmem:[#allocation2 + $0xf50] sm:$0xff]
    %v532 = vld [vmem:[#allocation2 + $0xf58] sm:$0xff]
    %v533 = vld [vmem:[#allocation2 + $0xf60] sm:$0xff]
    %v534 = vld [vmem:[#allocation2 + $0xf68] sm:$0xff]
    %v535 = vld [vmem:[#allocation2 + $0xf70] sm:$0xff]
    %v536 = vld [vmem:[#allocation2 + $0xf78] sm:$0xff]
    %v537 = vld [vmem:[#allocation2 + $0xf80] sm:$0xff]
    %v538 = vld [vmem:[#allocation2 + $0xf88] sm:$0xff]
    %v539 = vld [vmem:[#allocation2 + $0xf90] sm:$0xff]
    %v540 = vld [vmem:[#allocation2 + $0xf98] sm:$0xff]
    %v541 = vld [vmem:[#allocation2 + $0xfa0] sm:$0xff]
    %v542 = vld [vmem:[#allocation2 + $0xfa8] sm:$0xff]
    %v543 = vld [vmem:[#allocation2 + $0xfb0] sm:$0xff]
    %v544 = vld [vmem:[#allocation2 + $0xfb8] sm:$0xff]
    %v545 = vld [vmem:[#allocation2 + $0xfc0] sm:$0xff]
    %v546 = vld [vmem:[#allocation2 + $0xfc8] sm:$0xff]
    %v547 = vld [vmem:[#allocation2 + $0xfd0] sm:$0xff]
    %v548 = vld [vmem:[#allocation2 + $0xfd8] sm:$0xff]
    %v549 = vld [vmem:[#allocation2 + $0xfe0] sm:$0xff]
    %v550 = vld [vmem:[#allocation2 + $0xfe8] sm:$0xff]
    %v551 = vld [vmem:[#allocation2 + $0xff0] sm:$0xff]
    %v552 = vld [vmem:[#allocation2 + $0xff8] sm:$0xff]
    %v553 = vld [vmem:[#allocation2 + $0x1000] sm:$0xff]
    %v554 = vld [vmem:[#allocation2 + $0x1008] sm:$0xff]
    %v555 = vld [vmem:[#allocation2 + $0x1010] sm:$0xff]
    %v556 = vld [vmem:[#allocation2 + $0x1018] sm:$0xff]
    %v557 = vld [vmem:[#allocation2 + $0x1020] sm:$0xff]
    %v558 = vld [vmem:[#allocation2 + $0x1028] sm:$0xff]
    %v559 = vld [vmem:[#allocation2 + $0x1030] sm:$0xff]
    %v560 = vld [vmem:[#allocation2 + $0x1038] sm:$0xff]
    %v561 = vld [vmem:[#allocation2 + $0x1040] sm:$0xff]
    %v562 = vld [vmem:[#allocation2 + $0x1048] sm:$0xff]
    %v563 = vld [vmem:[#allocation2 + $0x1050] sm:$0xff]
    %v564 = vld [vmem:[#allocation2 + $0x1058] sm:$0xff]
    %v565 = vld [vmem:[#allocation2 + $0x1060] sm:$0xff]
    %v566 = vld [vmem:[#allocation2 + $0x1068] sm:$0xff]
    %v567 = vld [vmem:[#allocation2 + $0x1070] sm:$0xff]
    %v568 = vld [vmem:[#allocation2 + $0x1078] sm:$0xff]
    %v569 = vld [vmem:[#allocation2 + $0x1080] sm:$0xff]
    %v570 = vld [vmem:[#allocation2 + $0x1088] sm:$0xff]
    %v571 = vld [vmem:[#allocation2 + $0x1090] sm:$0xff]
    %v572 = vld [vmem:[#allocation2 + $0x1098] sm:$0xff]
    %v573 = vld [vmem:[#allocation2 + $0x10a0] sm:$0xff]
    %v574 = vld [vmem:[#allocation2 + $0x10a8] sm:$0xff]
    %v575 = vld [vmem:[#allocation2 + $0x10b0] sm:$0xff]
    %v576 = vld [vmem:[#allocation2 + $0x10b8] sm:$0xff]
    %v577 = vld [vmem:[#allocation2 + $0x10c0] sm:$0xff]
    %v578 = vld [vmem:[#allocation2 + $0x10c8] sm:$0xff]
    %v579 = vld [vmem:[#allocation2 + $0x10d0] sm:$0xff]
    %v580 = vld [vmem:[#allocation2 + $0x10d8] sm:$0xff]
    %v581 = vld [vmem:[#allocation2 + $0x10e0] sm:$0xff]
    %v582 = vld [vmem:[#allocation2 + $0x10e8] sm:$0xff]
    %v583 = vld [vmem:[#allocation2 + $0x10f0] sm:$0xff]
    %v584 = vld [vmem:[#allocation2 + $0x10f8] sm:$0xff]
    %v585 = vld [vmem:[#allocation2 + $0x1100] sm:$0xff]
    %v586 = vld [vmem:[#allocation2 + $0x1108] sm:$0xff]
    %v587 = vld [vmem:[#allocation2 + $0x1110] sm:$0xff]
    %v588 = vld [vmem:[#allocation2 + $0x1118] sm:$0xff]
    %v589 = vld [vmem:[#allocation2 + $0x1120] sm:$0xff]
    %v590 = vld [vmem:[#allocation2 + $0x1128] sm:$0xff]
    %v591 = vld [vmem:[#allocation2 + $0x1130] sm:$0xff]
    %v592 = vld [vmem:[#allocation2 + $0x1138] sm:$0xff]
    %v593 = vld [vmem:[#allocation2 + $0x1140] sm:$0xff]
    %v594 = vld [vmem:[#allocation2 + $0x1148] sm:$0xff]
    %v595 = vld [vmem:[#allocation2 + $0x1150] sm:$0xff]
    %v596 = vld [vmem:[#allocation2 + $0x1158] sm:$0xff]
    %v597 = vld [vmem:[#allocation2 + $0x1160] sm:$0xff]
    %v598 = vld [vmem:[#allocation2 + $0x1168] sm:$0xff]
    %v599 = vld [vmem:[#allocation2 + $0x1170] sm:$0xff]
    %v600 = vld [vmem:[#allocation2 + $0x1178] sm:$0xff]
    %v601 = vld [vmem:[#allocation2 + $0x1180] sm:$0xff]
    %v602 = vld [vmem:[#allocation2 + $0x1188] sm:$0xff]
    %v603 = vld [vmem:[#allocation2 + $0x1190] sm:$0xff]
    %v604 = vld [vmem:[#allocation2 + $0x1198] sm:$0xff]
    %v605 = vld [vmem:[#allocation2 + $0x11a0] sm:$0xff]
    %v606 = vld [vmem:[#allocation2 + $0x11a8] sm:$0xff]
    %v607 = vld [vmem:[#allocation2 + $0x11b0] sm:$0xff]
    %v608 = vld [vmem:[#allocation2 + $0x11b8] sm:$0xff]
    %v609 = vld [vmem:[#allocation2 + $0x11c0] sm:$0xff]
    %v610 = vld [vmem:[#allocation2 + $0x11c8] sm:$0xff]
    %v611 = vld [vmem:[#allocation2 + $0x11d0] sm:$0xff]
    %v612 = vld [vmem:[#allocation2 + $0x11d8] sm:$0xff]
    %v613 = vld [vmem:[#allocation2 + $0x11e0] sm:$0xff]
    %v614 = vld [vmem:[#allocation2 + $0x11e8] sm:$0xff]
    %v615 = vld [vmem:[#allocation2 + $0x11f0] sm:$0xff]
    %v616 = vld [vmem:[#allocation2 + $0x11f8] sm:$0xff]
    %v617 = vld [vmem:[#allocation2 + $0x1200] sm:$0xff]
    %v618 = vld [vmem:[#allocation2 + $0x1208] sm:$0xff]
    %v619 = vld [vmem:[#allocation2 + $0x1210] sm:$0xff]
    %v620 = vld [vmem:[#allocation2 + $0x1218] sm:$0xff]
    %v621 = vld [vmem:[#allocation2 + $0x1220] sm:$0xff]
    %v622 = vld [vmem:[#allocation2 + $0x1228] sm:$0xff]
    %v623 = vld [vmem:[#allocation2 + $0x1230] sm:$0xff]
    %v624 = vld [vmem:[#allocation2 + $0x1238] sm:$0xff]
    %v625 = vld [vmem:[#allocation2 + $0x1240] sm:$0xff]
    %v626 = vld [vmem:[#allocation2 + $0x1248] sm:$0xff]
    %v627 = vld [vmem:[#allocation2 + $0x1250] sm:$0xff]
    %v628 = vld [vmem:[#allocation2 + $0x1258] sm:$0xff]
    %v629 = vld [vmem:[#allocation2 + $0x1260] sm:$0xff]
    %v630 = vld [vmem:[#allocation2 + $0x1268] sm:$0xff]
    %v631 = vld [vmem:[#allocation2 + $0x1270] sm:$0xff]
    %v632 = vld [vmem:[#allocation2 + $0x1278] sm:$0xff]
    %v633 = vld [vmem:[#allocation2 + $0x1280] sm:$0xff]
    %v634 = vld [vmem:[#allocation2 + $0x1288] sm:$0xff]
    %v635 = vld [vmem:[#allocation2 + $0x1290] sm:$0xff]
    %v636 = vld [vmem:[#allocation2 + $0x1298] sm:$0xff]
    %v637 = vld [vmem:[#allocation2 + $0x12a0] sm:$0xff]
    %v638 = vld [vmem:[#allocation2 + $0x12a8] sm:$0xff]
    %v639 = vld [vmem:[#allocation2 + $0x12b0] sm:$0xff]
    %v640 = vld [vmem:[#allocation2 + $0x12b8] sm:$0xff]
    %v641 = vld [vmem:[#allocation2 + $0x12c0] sm:$0xff]
    %v642 = vld [vmem:[#allocation2 + $0x12c8] sm:$0xff]
    %v643 = vld [vmem:[#allocation2 + $0x12d0] sm:$0xff]
    %v644 = vld [vmem:[#allocation2 + $0x12d8] sm:$0xff]
    %v645 = vld [vmem:[#allocation2 + $0x12e0] sm:$0xff]
    %v646 = vld [vmem:[#allocation2 + $0x12e8] sm:$0xff]
    %v647 = vld [vmem:[#allocation2 + $0x12f0] sm:$0xff]
    %v648 = vld [vmem:[#allocation2 + $0x12f8] sm:$0xff]
    %v649 = vld [vmem:[#allocation2 + $0x1300] sm:$0xff]
    %v650 = vld [vmem:[#allocation2 + $0x1308] sm:$0xff]
    %v651 = vld [vmem:[#allocation2 + $0x1310] sm:$0xff]
    %v652 = vld [vmem:[#allocation2 + $0x1318] sm:$0xff]
    %v653 = vld [vmem:[#allocation2 + $0x1320] sm:$0xff]
    %v654 = vld [vmem:[#allocation2 + $0x1328] sm:$0xff]
    %v655 = vld [vmem:[#allocation2 + $0x1330] sm:$0xff]
    %v656 = vld [vmem:[#allocation2 + $0x1338] sm:$0xff]
    %v657 = vld [vmem:[#allocation2 + $0x1340] sm:$0xff]
    %v658 = vld [vmem:[#allocation2 + $0x1348] sm:$0xff]
    %v659 = vld [vmem:[#allocation2 + $0x1350] sm:$0xff]
    %v660 = vld [vmem:[#allocation2 + $0x1358] sm:$0xff]
    %v661 = vld [vmem:[#allocation2 + $0x1360] sm:$0xff]
    %v662 = vld [vmem:[#allocation2 + $0x1368] sm:$0xff]
    %v663 = vld [vmem:[#allocation2 + $0x1370] sm:$0xff]
    %v664 = vld [vmem:[#allocation2 + $0x1378] sm:$0xff]
    %v665 = vld [vmem:[#allocation2 + $0x1380] sm:$0xff]
    %v666 = vld [vmem:[#allocation2 + $0x1388] sm:$0xff]
    %v667 = vld [vmem:[#allocation2 + $0x1390] sm:$0xff]
    %v668 = vld [vmem:[#allocation2 + $0x1398] sm:$0xff]
    %v669 = vld [vmem:[#allocation2 + $0x13a0] sm:$0xff]
    %v670 = vld [vmem:[#allocation2 + $0x13a8] sm:$0xff]
    %v671 = vld [vmem:[#allocation2 + $0x13b0] sm:$0xff]
    %v672 = vld [vmem:[#allocation2 + $0x13b8] sm:$0xff]
    %v673 = vld [vmem:[#allocation2 + $0x13c0] sm:$0xff]
    %v674 = vld [vmem:[#allocation2 + $0x13c8] sm:$0xff]
    %v675 = vld [vmem:[#allocation2 + $0x13d0] sm:$0xff]
    %v676 = vld [vmem:[#allocation2 + $0x13d8] sm:$0xff]
    %v677 = vld [vmem:[#allocation2 + $0x13e0] sm:$0xff]
    %v678 = vld [vmem:[#allocation2 + $0x13e8] sm:$0xff]
    %v679 = vld [vmem:[#allocation2 + $0x13f0] sm:$0xff]
    %v680 = vld [vmem:[#allocation2 + $0x13f8] sm:$0xff]
    %v681 = vld [vmem:[#allocation2 + $0x1400] sm:$0xff]
    %v682 = vld [vmem:[#allocation2 + $0x1408] sm:$0xff]
    %v683 = vld [vmem:[#allocation2 + $0x1410] sm:$0xff]
    %v684 = vld [vmem:[#allocation2 + $0x1418] sm:$0xff]
    %v685 = vld [vmem:[#allocation2 + $0x1420] sm:$0xff]
    %v686 = vld [vmem:[#allocation2 + $0x1428] sm:$0xff]
    %v687 = vld [vmem:[#allocation2 + $0x1430] sm:$0xff]
    %v688 = vld [vmem:[#allocation2 + $0x1438] sm:$0xff]
    %v689 = vld [vmem:[#allocation2 + $0x1440] sm:$0xff]
    %v690 = vld [vmem:[#allocation2 + $0x1448] sm:$0xff]
    %v691 = vld [vmem:[#allocation2 + $0x1450] sm:$0xff]
    %v692 = vld [vmem:[#allocation2 + $0x1458] sm:$0xff]
    %v693 = vld [vmem:[#allocation2 + $0x1460] sm:$0xff]
    %v694 = vld [vmem:[#allocation2 + $0x1468] sm:$0xff]
    %v695 = vld [vmem:[#allocation2 + $0x1470] sm:$0xff]
    %v696 = vld [vmem:[#allocation2 + $0x1478] sm:$0xff]
    %v697 = vld [vmem:[#allocation2 + $0x1480] sm:$0xff]
    %v698 = vld [vmem:[#allocation2 + $0x1488] sm:$0xff]
    %v699 = vld [vmem:[#allocation2 + $0x1490] sm:$0xff]
    %v700 = vld [vmem:[#allocation2 + $0x1498] sm:$0xff]
    %v701 = vld [vmem:[#allocation2 + $0x14a0] sm:$0xff]
    %v702 = vld [vmem:[#allocation2 + $0x14a8] sm:$0xff]
    %v703 = vld [vmem:[#allocation2 + $0x14b0] sm:$0xff]
    %v704 = vld [vmem:[#allocation2 + $0x14b8] sm:$0xff]
    %v705 = vld [vmem:[#allocation2 + $0x14c0] sm:$0xff]
    %v706 = vld [vmem:[#allocation2 + $0x14c8] sm:$0xff]
    %v707 = vld [vmem:[#allocation2 + $0x14d0] sm:$0xff]
    %v708 = vld [vmem:[#allocation2 + $0x14d8] sm:$0xff]
    %v709 = vld [vmem:[#allocation2 + $0x14e0] sm:$0xff]
    %v710 = vld [vmem:[#allocation2 + $0x14e8] sm:$0xff]
    %v711 = vld [vmem:[#allocation2 + $0x14f0] sm:$0xff]
    %v712 = vld [vmem:[#allocation2 + $0x14f8] sm:$0xff]
    %v713 = vld [vmem:[#allocation2 + $0x1500] sm:$0xff]
    %v714 = vld [vmem:[#allocation2 + $0x1508] sm:$0xff]
    %v715 = vld [vmem:[#allocation2 + $0x1510] sm:$0xff]
    %v716 = vld [vmem:[#allocation2 + $0x1518] sm:$0xff]
    %v717 = vld [vmem:[#allocation2 + $0x1520] sm:$0xff]
    %v718 = vld [vmem:[#allocation2 + $0x1528] sm:$0xff]
    %v719 = vld [vmem:[#allocation2 + $0x1530] sm:$0xff]
    %v720 = vld [vmem:[#allocation2 + $0x1538] sm:$0xff]
    %v721 = vld [vmem:[#allocation2 + $0x1540] sm:$0xff]
    %v722 = vld [vmem:[#allocation2 + $0x1548] sm:$0xff]
    %v723 = vld [vmem:[#allocation2 + $0x1550] sm:$0xff]
    %v724 = vld [vmem:[#allocation2 + $0x1558] sm:$0xff]
    %v725 = vld [vmem:[#allocation2 + $0x1560] sm:$0xff]
    %v726 = vld [vmem:[#allocation2 + $0x1568] sm:$0xff]
    %v727 = vld [vmem:[#allocation2 + $0x1570] sm:$0xff]
    %v728 = vld [vmem:[#allocation2 + $0x1578] sm:$0xff]
    %v729 = vld [vmem:[#allocation2 + $0x1580] sm:$0xff]
    %v730 = vld [vmem:[#allocation2 + $0x1588] sm:$0xff]
    %v731 = vld [vmem:[#allocation2 + $0x1590] sm:$0xff]
    %v732 = vld [vmem:[#allocation2 + $0x1598] sm:$0xff]
    %v733 = vld [vmem:[#allocation2 + $0x15a0] sm:$0xff]
    %v734 = vld [vmem:[#allocation2 + $0x15a8] sm:$0xff]
    %v735 = vld [vmem:[#allocation2 + $0x15b0] sm:$0xff]
    %v736 = vld [vmem:[#allocation2 + $0x15b8] sm:$0xff]
    %v737 = vld [vmem:[#allocation2 + $0x15c0] sm:$0xff]
    %v738 = vld [vmem:[#allocation2 + $0x15c8] sm:$0xff]
    %v739 = vld [vmem:[#allocation2 + $0x15d0] sm:$0xff]
    %v740 = vld [vmem:[#allocation2 + $0x15d8] sm:$0xff]
    %v741 = vld [vmem:[#allocation2 + $0x15e0] sm:$0xff]
    %v742 = vld [vmem:[#allocation2 + $0x15e8] sm:$0xff]
    %v743 = vld [vmem:[#allocation2 + $0x15f0] sm:$0xff]
    %v744 = vld [vmem:[#allocation2 + $0x15f8] sm:$0xff]
    %v745 = vld [vmem:[#allocation2 + $0x1600] sm:$0xff]
    %v746 = vld [vmem:[#allocation2 + $0x1608] sm:$0xff]
    %v747 = vld [vmem:[#allocation2 + $0x1610] sm:$0xff]
    %v748 = vld [vmem:[#allocation2 + $0x1618] sm:$0xff]
    %v749 = vld [vmem:[#allocation2 + $0x1620] sm:$0xff]
    %v750 = vld [vmem:[#allocation2 + $0x1628] sm:$0xff]
    %v751 = vld [vmem:[#allocation2 + $0x1630] sm:$0xff]
    %v752 = vld [vmem:[#allocation2 + $0x1638] sm:$0xff]
    %v753 = vld [vmem:[#allocation2 + $0x1640] sm:$0xff]
    %v754 = vld [vmem:[#allocation2 + $0x1648] sm:$0xff]
    %v755 = vld [vmem:[#allocation2 + $0x1650] sm:$0xff]
    %v756 = vld [vmem:[#allocation2 + $0x1658] sm:$0xff]
    %v757 = vld [vmem:[#allocation2 + $0x1660] sm:$0xff]
    %v758 = vld [vmem:[#allocation2 + $0x1668] sm:$0xff]
    %v759 = vld [vmem:[#allocation2 + $0x1670] sm:$0xff]
    %v760 = vld [vmem:[#allocation2 + $0x1678] sm:$0xff]
    %v761 = vld [vmem:[#allocation2 + $0x1680] sm:$0xff]
    %v762 = vld [vmem:[#allocation2 + $0x1688] sm:$0xff]
    %v763 = vld [vmem:[#allocation2 + $0x1690] sm:$0xff]
    %v764 = vld [vmem:[#allocation2 + $0x1698] sm:$0xff]
    %v765 = vld [vmem:[#allocation2 + $0x16a0] sm:$0xff]
    %v766 = vld [vmem:[#allocation2 + $0x16a8] sm:$0xff]
    %v767 = vld [vmem:[#allocation2 + $0x16b0] sm:$0xff]
    %v768 = vld [vmem:[#allocation2 + $0x16b8] sm:$0xff]
    %v769 = vld [vmem:[#allocation2 + $0x16c0] sm:$0xff]
    %v770 = vld [vmem:[#allocation2 + $0x16c8] sm:$0xff]
    %v771 = vld [vmem:[#allocation2 + $0x16d0] sm:$0xff]
    %v772 = vld [vmem:[#allocation2 + $0x16d8] sm:$0xff]
    %v773 = vld [vmem:[#allocation2 + $0x16e0] sm:$0xff]
    %v774 = vld [vmem:[#allocation2 + $0x16e8] sm:$0xff]
    %v775 = vld [vmem:[#allocation2 + $0x16f0] sm:$0xff]
    %v776 = vld [vmem:[#allocation2 + $0x16f8] sm:$0xff]
    %v777 = vld [vmem:[#allocation2 + $0x1700] sm:$0xff]
    %v778 = vld [vmem:[#allocation2 + $0x1708] sm:$0xff]
    %v779 = vld [vmem:[#allocation2 + $0x1710] sm:$0xff]
    %v780 = vld [vmem:[#allocation2 + $0x1718] sm:$0xff]
    %v781 = vld [vmem:[#allocation2 + $0x1720] sm:$0xff]
    %v782 = vld [vmem:[#allocation2 + $0x1728] sm:$0xff]
    %v783 = vld [vmem:[#allocation2 + $0x1730] sm:$0xff]
    %v784 = vld [vmem:[#allocation2 + $0x1738] sm:$0xff]
    %v785 = vld [vmem:[#allocation2 + $0x1740] sm:$0xff]
    %v786 = vld [vmem:[#allocation2 + $0x1748] sm:$0xff]
    %v787 = vld [vmem:[#allocation2 + $0x1750] sm:$0xff]
    %v788 = vld [vmem:[#allocation2 + $0x1758] sm:$0xff]
    %v789 = vld [vmem:[#allocation2 + $0x1760] sm:$0xff]
    %v790 = vld [vmem:[#allocation2 + $0x1768] sm:$0xff]
    %v791 = vld [vmem:[#allocation2 + $0x1770] sm:$0xff]
    %v792 = vld [vmem:[#allocation2 + $0x1778] sm:$0xff]
    %v793 = vld [vmem:[#allocation2 + $0x1780] sm:$0xff]
    %v794 = vld [vmem:[#allocation2 + $0x1788] sm:$0xff]
    %v795 = vld [vmem:[#allocation2 + $0x1790] sm:$0xff]
    %v796 = vld [vmem:[#allocation2 + $0x1798] sm:$0xff]
    %v797 = vld [vmem:[#allocation2 + $0x17a0] sm:$0xff]
    %v798 = vld [vmem:[#allocation2 + $0x17a8] sm:$0xff]
    %v799 = vld [vmem:[#allocation2 + $0x17b0] sm:$0xff]
    %v800 = vld [vmem:[#allocation2 + $0x17b8] sm:$0xff]
    %v801 = vld [vmem:[#allocation2 + $0x17c0] sm:$0xff]
    %v802 = vld [vmem:[#allocation2 + $0x17c8] sm:$0xff]
    %v803 = vld [vmem:[#allocation2 + $0x17d0] sm:$0xff]
    %v804 = vld [vmem:[#allocation2 + $0x17d8] sm:$0xff]
    %v805 = vld [vmem:[#allocation2 + $0x17e0] sm:$0xff]
    %v806 = vld [vmem:[#allocation2 + $0x17e8] sm:$0xff]
    %v807 = vld [vmem:[#allocation2 + $0x17f0] sm:$0xff]
    %v808 = vld [vmem:[#allocation2 + $0x17f8] sm:$0xff]
    %v809 = vld [vmem:[#allocation4] sm:$0xff]
    %v810 = vld [vmem:[#allocation4 + $0x8] sm:$0xf]
    %v813 = vlaneseq
    %v814 = vshrl.u32 %v813, 7
    %v815 = vsub.s32 0, %v814
    %v816 = vrot.slane %v809, %v815
    %v817 = vlaneseq
    %v818 = vshrl.u32 %v817, 7
    %v819 = vsub.s32 1, %v818
    %v820 = vrot.slane %v809, %v819
    %v821 = vlaneseq
    %v822 = vshrl.u32 %v821, 7
    %v823 = vsub.s32 2, %v822
    %v824 = vrot.slane %v809, %v823
    %v825 = vlaneseq
    %v826 = vshrl.u32 %v825, 7
    %v827 = vsub.s32 3, %v826
    %v828 = vrot.slane %v809, %v827
    %v829 = vlaneseq
    %v830 = vshrl.u32 %v829, 7
    %v831 = vsub.s32 4, %v830
    %v832 = vrot.slane %v809, %v831
    %v833 = vlaneseq
    %v834 = vshrl.u32 %v833, 7
    %v835 = vsub.s32 5, %v834
    %v836 = vrot.slane %v809, %v835
    %v837 = vlaneseq
    %v838 = vshrl.u32 %v837, 7
    %v839 = vsub.s32 6, %v838
    %v840 = vrot.slane %v809, %v839
    %v841 = vlaneseq
    %v842 = vshrl.u32 %v841, 7
    %v843 = vsub.s32 7, %v842
    %v844 = vrot.slane %v809, %v843
    %v845 = vlaneseq
    %v846 = vshrl.u32 %v845, 7
    %v847 = vsub.s32 0, %v846
    %v848 = vrot.slane %v810, %v847
    %v849 = vlaneseq
    %v850 = vshrl.u32 %v849, 7
    %v851 = vsub.s32 1, %v850
    %v852 = vrot.slane %v810, %v851
    %v853 = vlaneseq
    %v854 = vshrl.u32 %v853, 7
    %v855 = vsub.s32 2, %v854
    %v856 = vrot.slane %v810, %v855
    %v857 = vlaneseq
    %v858 = vshrl.u32 %v857, 7
    %v859 = vsub.s32 3, %v858
    %v860 = vrot.slane %v810, %v859
    %v874 = vcombine.high %v40, %v40
    %v876 = vunpack.c.l.s4 1966171168
    %v877 = vunpack.c.0.s8 %v876
    %v878 = vlaneseq
    %v879 = vshrl.u32 %v878, 7
    %v880 = vsub.s32 %v877, %v879
    %v881 = vrot.slane %v40, %v880
    %v883 = vunpack.c.l.s4 1966171168
    %v884 = vunpack.c.0.s8 %v883
    %v885 = vlaneseq
    %v886 = vshrl.u32 %v885, 7
    %v887 = vsub.s32 %v884, %v886
    %v888 = vrot.slane %v874, %v887
    %v889 = vcombine.high %v881, %v881
    %v890 = vcombine.high %v888, %v888
    %v892 = vunpack.c.l.s4 1966171168
    %v893 = vunpack.c.0.s8 %v892
    %v894 = vlaneseq
    %v895 = vshrl.u32 %v894, 7
    %v896 = vsub.s32 %v893, %v895
    %v897 = vrot.slane %v881, %v896
    %v899 = vunpack.c.l.s4 1966171168
    %v900 = vunpack.c.0.s8 %v899
    %v901 = vlaneseq
    %v902 = vshrl.u32 %v901, 7
    %v903 = vsub.s32 %v900, %v902
    %v904 = vrot.slane %v888, %v903
    %v906 = vunpack.c.l.s4 1966171168
    %v907 = vunpack.c.0.s8 %v906
    %v908 = vlaneseq
    %v909 = vshrl.u32 %v908, 7
    %v910 = vsub.s32 %v907, %v909
    %v911 = vrot.slane %v889, %v910
    %v913 = vunpack.c.l.s4 1966171168
    %v914 = vunpack.c.0.s8 %v913
    %v915 = vlaneseq
    %v916 = vshrl.u32 %v915, 7
    %v917 = vsub.s32 %v914, %v916
    %v918 = vrot.slane %v890, %v917
    %v919 = vcombine.high %v897, %v897
    %v920 = vcombine.high %v904, %v904
    %v921 = vcombine.high %v911, %v911
    %v922 = vcombine.high %v918, %v918
    %v1699 = vunpack.c.l.b16 %v41
    %v1700 = vunpack.c.h.b16 %v41
    %v1701 = vunpack.c.l.b16 %v42
    %v1702 = vunpack.c.h.b16 %v42
    %v1703 = vunpack.c.l.b16 %v43
    %v1704 = vunpack.c.h.b16 %v43
    %v1705 = vunpack.c.l.b16 %v44
    %v1706 = vunpack.c.h.b16 %v44
    %v1707 = vunpack.c.l.b16 %v45
    %v1708 = vunpack.c.h.b16 %v45
    %v1709 = vunpack.c.l.b16 %v46
    %v1710 = vunpack.c.h.b16 %v46
    %v1711 = vunpack.c.l.b16 %v47
    %v1712 = vunpack.c.h.b16 %v47
    %v1713 = vunpack.c.l.b16 %v48
    %v1714 = vunpack.c.h.b16 %v48
    %v1715 = vunpack.c.l.b16 %v49
    %v1716 = vunpack.c.h.b16 %v49
    %v1717 = vunpack.c.l.b16 %v50
    %v1718 = vunpack.c.h.b16 %v50
    %v1719 = vunpack.c.l.b16 %v51
    %v1720 = vunpack.c.h.b16 %v51
    %v1721 = vunpack.c.l.b16 %v52
    %v1722 = vunpack.c.h.b16 %v52
    %v1723 = vunpack.c.l.b16 %v53
    %v1724 = vunpack.c.h.b16 %v53
    %v1725 = vunpack.c.l.b16 %v54
    %v1726 = vunpack.c.h.b16 %v54
    %v1727 = vunpack.c.l.b16 %v55
    %v1728 = vunpack.c.h.b16 %v55
    %v1729 = vunpack.c.l.b16 %v56
    %v1730 = vunpack.c.h.b16 %v56
    %v1731 = vunpack.c.l.b16 %v57
    %v1732 = vunpack.c.h.b16 %v57
    %v1733 = vunpack.c.l.b16 %v58
    %v1734 = vunpack.c.h.b16 %v58
    %v1735 = vunpack.c.l.b16 %v59
    %v1736 = vunpack.c.h.b16 %v59
    %v1737 = vunpack.c.l.b16 %v60
    %v1738 = vunpack.c.h.b16 %v60
    %v1739 = vunpack.c.l.b16 %v61
    %v1740 = vunpack.c.h.b16 %v61
    %v1741 = vunpack.c.l.b16 %v62
    %v1742 = vunpack.c.h.b16 %v62
    %v1743 = vunpack.c.l.b16 %v63
    %v1744 = vunpack.c.h.b16 %v63
    %v1745 = vunpack.c.l.b16 %v64
    %v1746 = vunpack.c.h.b16 %v64
    %v1747 = vunpack.c.l.b16 %v65
    %v1748 = vunpack.c.h.b16 %v65
    %v1749 = vunpack.c.l.b16 %v66
    %v1750 = vunpack.c.h.b16 %v66
    %v1751 = vunpack.c.l.b16 %v67
    %v1752 = vunpack.c.h.b16 %v67
    %v1753 = vunpack.c.l.b16 %v68
    %v1754 = vunpack.c.h.b16 %v68
    %v1755 = vunpack.c.l.b16 %v69
    %v1756 = vunpack.c.h.b16 %v69
    %v1757 = vunpack.c.l.b16 %v70
    %v1758 = vunpack.c.h.b16 %v70
    %v1759 = vunpack.c.l.b16 %v71
    %v1760 = vunpack.c.h.b16 %v71
    %v1761 = vunpack.c.l.b16 %v72
    %v1762 = vunpack.c.h.b16 %v72
    %v1763 = vunpack.c.l.b16 %v73
    %v1764 = vunpack.c.h.b16 %v73
    %v1765 = vunpack.c.l.b16 %v74
    %v1766 = vunpack.c.h.b16 %v74
    %v1767 = vunpack.c.l.b16 %v75
    %v1768 = vunpack.c.h.b16 %v75
    %v1769 = vunpack.c.l.b16 %v76
    %v1770 = vunpack.c.h.b16 %v76
    %v1771 = vunpack.c.l.b16 %v77
    %v1772 = vunpack.c.h.b16 %v77
    %v1773 = vunpack.c.l.b16 %v78
    %v1774 = vunpack.c.h.b16 %v78
    %v1775 = vunpack.c.l.b16 %v79
    %v1776 = vunpack.c.h.b16 %v79
    %v1777 = vunpack.c.l.b16 %v80
    %v1778 = vunpack.c.h.b16 %v80
    %v1779 = vunpack.c.l.b16 %v81
    %v1780 = vunpack.c.h.b16 %v81
    %v1781 = vunpack.c.l.b16 %v82
    %v1782 = vunpack.c.h.b16 %v82
    %v1783 = vunpack.c.l.b16 %v83
    %v1784 = vunpack.c.h.b16 %v83
    %v1785 = vunpack.c.l.b16 %v84
    %v1786 = vunpack.c.h.b16 %v84
    %v1787 = vunpack.c.l.b16 %v85
    %v1788 = vunpack.c.h.b16 %v85
    %v1789 = vunpack.c.l.b16 %v86
    %v1790 = vunpack.c.h.b16 %v86
    %v1791 = vunpack.c.l.b16 %v87
    %v1792 = vunpack.c.h.b16 %v87
    %v1793 = vunpack.c.l.b16 %v88
    %v1794 = vunpack.c.h.b16 %v88
    %v1795 = vunpack.c.l.b16 %v89
    %v1796 = vunpack.c.h.b16 %v89
    %v1797 = vunpack.c.l.b16 %v90
    %v1798 = vunpack.c.h.b16 %v90
    %v1799 = vunpack.c.l.b16 %v91
    %v1800 = vunpack.c.h.b16 %v91
    %v1801 = vunpack.c.l.b16 %v92
    %v1802 = vunpack.c.h.b16 %v92
    %v1803 = vunpack.c.l.b16 %v93
    %v1804 = vunpack.c.h.b16 %v93
    %v1805 = vunpack.c.l.b16 %v94
    %v1806 = vunpack.c.h.b16 %v94
    %v1807 = vunpack.c.l.b16 %v95
    %v1808 = vunpack.c.h.b16 %v95
    %v1809 = vunpack.c.l.b16 %v96
    %v1810 = vunpack.c.h.b16 %v96
    %v1811 = vunpack.c.l.b16 %v97
    %v1812 = vunpack.c.h.b16 %v97
    %v1813 = vunpack.c.l.b16 %v98
    %v1814 = vunpack.c.h.b16 %v98
    %v1815 = vunpack.c.l.b16 %v99
    %v1816 = vunpack.c.h.b16 %v99
    %v1817 = vunpack.c.l.b16 %v100
    %v1818 = vunpack.c.h.b16 %v100
    %v1819 = vunpack.c.l.b16 %v101
    %v1820 = vunpack.c.h.b16 %v101
    %v1821 = vunpack.c.l.b16 %v102
    %v1822 = vunpack.c.h.b16 %v102
    %v1823 = vunpack.c.l.b16 %v103
    %v1824 = vunpack.c.h.b16 %v103
    %v1825 = vunpack.c.l.b16 %v104
    %v1826 = vunpack.c.h.b16 %v104
    %v1827 = vunpack.c.l.b16 %v105
    %v1828 = vunpack.c.h.b16 %v105
    %v1829 = vunpack.c.l.b16 %v106
    %v1830 = vunpack.c.h.b16 %v106
    %v1831 = vunpack.c.l.b16 %v107
    %v1832 = vunpack.c.h.b16 %v107
    %v1833 = vunpack.c.l.b16 %v108
    %v1834 = vunpack.c.h.b16 %v108
    %v1835 = vunpack.c.l.b16 %v109
    %v1836 = vunpack.c.h.b16 %v109
    %v1837 = vunpack.c.l.b16 %v110
    %v1838 = vunpack.c.h.b16 %v110
    %v1839 = vunpack.c.l.b16 %v111
    %v1840 = vunpack.c.h.b16 %v111
    %v1841 = vunpack.c.l.b16 %v112
    %v1842 = vunpack.c.h.b16 %v112
    %v1843 = vunpack.c.l.b16 %v113
    %v1844 = vunpack.c.h.b16 %v113
    %v1845 = vunpack.c.l.b16 %v114
    %v1846 = vunpack.c.h.b16 %v114
    %v1847 = vunpack.c.l.b16 %v115
    %v1848 = vunpack.c.h.b16 %v115
    %v1849 = vunpack.c.l.b16 %v116
    %v1850 = vunpack.c.h.b16 %v116
    %v1851 = vunpack.c.l.b16 %v117
    %v1852 = vunpack.c.h.b16 %v117
    %v1853 = vunpack.c.l.b16 %v118
    %v1854 = vunpack.c.h.b16 %v118
    %v1855 = vunpack.c.l.b16 %v119
    %v1856 = vunpack.c.h.b16 %v119
    %v1857 = vunpack.c.l.b16 %v120
    %v1858 = vunpack.c.h.b16 %v120
    %v1859 = vunpack.c.l.b16 %v121
    %v1860 = vunpack.c.h.b16 %v121
    %v1861 = vunpack.c.l.b16 %v122
    %v1862 = vunpack.c.h.b16 %v122
    %v1863 = vunpack.c.l.b16 %v123
    %v1864 = vunpack.c.h.b16 %v123
    %v1865 = vunpack.c.l.b16 %v124
    %v1866 = vunpack.c.h.b16 %v124
    %v1867 = vunpack.c.l.b16 %v125
    %v1868 = vunpack.c.h.b16 %v125
    %v1869 = vunpack.c.l.b16 %v126
    %v1870 = vunpack.c.h.b16 %v126
    %v1871 = vunpack.c.l.b16 %v127
    %v1872 = vunpack.c.h.b16 %v127
    %v1873 = vunpack.c.l.b16 %v128
    %v1874 = vunpack.c.h.b16 %v128
    %v1875 = vunpack.c.l.b16 %v129
    %v1876 = vunpack.c.h.b16 %v129
    %v1877 = vunpack.c.l.b16 %v130
    %v1878 = vunpack.c.h.b16 %v130
    %v1879 = vunpack.c.l.b16 %v131
    %v1880 = vunpack.c.h.b16 %v131
    %v1881 = vunpack.c.l.b16 %v132
    %v1882 = vunpack.c.h.b16 %v132
    %v1883 = vunpack.c.l.b16 %v133
    %v1884 = vunpack.c.h.b16 %v133
    %v1885 = vunpack.c.l.b16 %v134
    %v1886 = vunpack.c.h.b16 %v134
    %v1887 = vunpack.c.l.b16 %v135
    %v1888 = vunpack.c.h.b16 %v135
    %v1889 = vunpack.c.l.b16 %v136
    %v1890 = vunpack.c.h.b16 %v136
    %v1891 = vunpack.c.l.b16 %v137
    %v1892 = vunpack.c.h.b16 %v137
    %v1893 = vunpack.c.l.b16 %v138
    %v1894 = vunpack.c.h.b16 %v138
    %v1895 = vunpack.c.l.b16 %v139
    %v1896 = vunpack.c.h.b16 %v139
    %v1897 = vunpack.c.l.b16 %v140
    %v1898 = vunpack.c.h.b16 %v140
    %v1899 = vunpack.c.l.b16 %v141
    %v1900 = vunpack.c.h.b16 %v141
    %v1901 = vunpack.c.l.b16 %v142
    %v1902 = vunpack.c.h.b16 %v142
    %v1903 = vunpack.c.l.b16 %v143
    %v1904 = vunpack.c.h.b16 %v143
    %v1905 = vunpack.c.l.b16 %v144
    %v1906 = vunpack.c.h.b16 %v144
    %v1907 = vunpack.c.l.b16 %v145
    %v1908 = vunpack.c.h.b16 %v145
    %v1909 = vunpack.c.l.b16 %v146
    %v1910 = vunpack.c.h.b16 %v146
    %v1911 = vunpack.c.l.b16 %v147
    %v1912 = vunpack.c.h.b16 %v147
    %v1913 = vunpack.c.l.b16 %v148
    %v1914 = vunpack.c.h.b16 %v148
    %v1915 = vunpack.c.l.b16 %v149
    %v1916 = vunpack.c.h.b16 %v149
    %v1917 = vunpack.c.l.b16 %v150
    %v1918 = vunpack.c.h.b16 %v150
    %v1919 = vunpack.c.l.b16 %v151
    %v1920 = vunpack.c.h.b16 %v151
    %v1921 = vunpack.c.l.b16 %v152
    %v1922 = vunpack.c.h.b16 %v152
    %v1923 = vunpack.c.l.b16 %v153
    %v1924 = vunpack.c.h.b16 %v153
    %v1925 = vunpack.c.l.b16 %v154
    %v1926 = vunpack.c.h.b16 %v154
    %v1927 = vunpack.c.l.b16 %v155
    %v1928 = vunpack.c.h.b16 %v155
    %v1929 = vunpack.c.l.b16 %v156
    %v1930 = vunpack.c.h.b16 %v156
    %v1931 = vunpack.c.l.b16 %v157
    %v1932 = vunpack.c.h.b16 %v157
    %v1933 = vunpack.c.l.b16 %v158
    %v1934 = vunpack.c.h.b16 %v158
    %v1935 = vunpack.c.l.b16 %v159
    %v1936 = vunpack.c.h.b16 %v159
    %v1937 = vunpack.c.l.b16 %v160
    %v1938 = vunpack.c.h.b16 %v160
    %v1939 = vunpack.c.l.b16 %v161
    %v1940 = vunpack.c.h.b16 %v161
    %v1941 = vunpack.c.l.b16 %v162
    %v1942 = vunpack.c.h.b16 %v162
    %v1943 = vunpack.c.l.b16 %v163
    %v1944 = vunpack.c.h.b16 %v163
    %v1945 = vunpack.c.l.b16 %v164
    %v1946 = vunpack.c.h.b16 %v164
    %v1947 = vunpack.c.l.b16 %v165
    %v1948 = vunpack.c.h.b16 %v165
    %v1949 = vunpack.c.l.b16 %v166
    %v1950 = vunpack.c.h.b16 %v166
    %v1951 = vunpack.c.l.b16 %v167
    %v1952 = vunpack.c.h.b16 %v167
    %v1953 = vunpack.c.l.b16 %v168
    %v1954 = vunpack.c.h.b16 %v168
    %v1955 = vunpack.c.l.b16 %v169
    %v1956 = vunpack.c.h.b16 %v169
    %v1957 = vunpack.c.l.b16 %v170
    %v1958 = vunpack.c.h.b16 %v170
    %v1959 = vunpack.c.l.b16 %v171
    %v1960 = vunpack.c.h.b16 %v171
    %v1961 = vunpack.c.l.b16 %v172
    %v1962 = vunpack.c.h.b16 %v172
    %v1963 = vunpack.c.l.b16 %v173
    %v1964 = vunpack.c.h.b16 %v173
    %v1965 = vunpack.c.l.b16 %v174
    %v1966 = vunpack.c.h.b16 %v174
    %v1967 = vunpack.c.l.b16 %v175
    %v1968 = vunpack.c.h.b16 %v175
    %v1969 = vunpack.c.l.b16 %v176
    %v1970 = vunpack.c.h.b16 %v176
    %v1971 = vunpack.c.l.b16 %v177
    %v1972 = vunpack.c.h.b16 %v177
    %v1973 = vunpack.c.l.b16 %v178
    %v1974 = vunpack.c.h.b16 %v178
    %v1975 = vunpack.c.l.b16 %v179
    %v1976 = vunpack.c.h.b16 %v179
    %v1977 = vunpack.c.l.b16 %v180
    %v1978 = vunpack.c.h.b16 %v180
    %v1979 = vunpack.c.l.b16 %v181
    %v1980 = vunpack.c.h.b16 %v181
    %v1981 = vunpack.c.l.b16 %v182
    %v1982 = vunpack.c.h.b16 %v182
    %v1983 = vunpack.c.l.b16 %v183
    %v1984 = vunpack.c.h.b16 %v183
    %v1985 = vunpack.c.l.b16 %v184
    %v1986 = vunpack.c.h.b16 %v184
    %v1987 = vunpack.c.l.b16 %v185
    %v1988 = vunpack.c.h.b16 %v185
    %v1989 = vunpack.c.l.b16 %v186
    %v1990 = vunpack.c.h.b16 %v186
    %v1991 = vunpack.c.l.b16 %v187
    %v1992 = vunpack.c.h.b16 %v187
    %v1993 = vunpack.c.l.b16 %v188
    %v1994 = vunpack.c.h.b16 %v188
    %v1995 = vunpack.c.l.b16 %v189
    %v1996 = vunpack.c.h.b16 %v189
    %v1997 = vunpack.c.l.b16 %v190
    %v1998 = vunpack.c.h.b16 %v190
    %v1999 = vunpack.c.l.b16 %v191
    %v2000 = vunpack.c.h.b16 %v191
    %v2001 = vunpack.c.l.b16 %v192
    %v2002 = vunpack.c.h.b16 %v192
    %v2003 = vunpack.c.l.b16 %v193
    %v2004 = vunpack.c.h.b16 %v193
    %v2005 = vunpack.c.l.b16 %v194
    %v2006 = vunpack.c.h.b16 %v194
    %v2007 = vunpack.c.l.b16 %v195
    %v2008 = vunpack.c.h.b16 %v195
    %v2009 = vunpack.c.l.b16 %v196
    %v2010 = vunpack.c.h.b16 %v196
    %v2011 = vunpack.c.l.b16 %v197
    %v2012 = vunpack.c.h.b16 %v197
    %v2013 = vunpack.c.l.b16 %v198
    %v2014 = vunpack.c.h.b16 %v198
    %v2015 = vunpack.c.l.b16 %v199
    %v2016 = vunpack.c.h.b16 %v199
    %v2017 = vunpack.c.l.b16 %v200
    %v2018 = vunpack.c.h.b16 %v200
    %v2019 = vunpack.c.l.b16 %v201
    %v2020 = vunpack.c.h.b16 %v201
    %v2021 = vunpack.c.l.b16 %v202
    %v2022 = vunpack.c.h.b16 %v202
    %v2023 = vunpack.c.l.b16 %v203
    %v2024 = vunpack.c.h.b16 %v203
    %v2025 = vunpack.c.l.b16 %v204
    %v2026 = vunpack.c.h.b16 %v204
    %v2027 = vunpack.c.l.b16 %v205
    %v2028 = vunpack.c.h.b16 %v205
    %v2029 = vunpack.c.l.b16 %v206
    %v2030 = vunpack.c.h.b16 %v206
    %v2031 = vunpack.c.l.b16 %v207
    %v2032 = vunpack.c.h.b16 %v207
    %v2033 = vunpack.c.l.b16 %v208
    %v2034 = vunpack.c.h.b16 %v208
    %v2035 = vunpack.c.l.b16 %v209
    %v2036 = vunpack.c.h.b16 %v209
    %v2037 = vunpack.c.l.b16 %v210
    %v2038 = vunpack.c.h.b16 %v210
    %v2039 = vunpack.c.l.b16 %v211
    %v2040 = vunpack.c.h.b16 %v211
    %v2041 = vunpack.c.l.b16 %v212
    %v2042 = vunpack.c.h.b16 %v212
    %v2043 = vunpack.c.l.b16 %v213
    %v2044 = vunpack.c.h.b16 %v213
    %v2045 = vunpack.c.l.b16 %v214
    %v2046 = vunpack.c.h.b16 %v214
    %v2047 = vunpack.c.l.b16 %v215
    %v2048 = vunpack.c.h.b16 %v215
    %v2049 = vunpack.c.l.b16 %v216
    %v2050 = vunpack.c.h.b16 %v216
    %v2051 = vunpack.c.l.b16 %v217
    %v2052 = vunpack.c.h.b16 %v217
    %v2053 = vunpack.c.l.b16 %v218
    %v2054 = vunpack.c.h.b16 %v218
    %v2055 = vunpack.c.l.b16 %v219
    %v2056 = vunpack.c.h.b16 %v219
    %v2057 = vunpack.c.l.b16 %v220
    %v2058 = vunpack.c.h.b16 %v220
    %v2059 = vunpack.c.l.b16 %v221
    %v2060 = vunpack.c.h.b16 %v221
    %v2061 = vunpack.c.l.b16 %v222
    %v2062 = vunpack.c.h.b16 %v222
    %v2063 = vunpack.c.l.b16 %v223
    %v2064 = vunpack.c.h.b16 %v223
    %v2065 = vunpack.c.l.b16 %v224
    %v2066 = vunpack.c.h.b16 %v224
    %v2067 = vunpack.c.l.b16 %v225
    %v2068 = vunpack.c.h.b16 %v225
    %v2069 = vunpack.c.l.b16 %v226
    %v2070 = vunpack.c.h.b16 %v226
    %v2071 = vunpack.c.l.b16 %v227
    %v2072 = vunpack.c.h.b16 %v227
    %v2073 = vunpack.c.l.b16 %v228
    %v2074 = vunpack.c.h.b16 %v228
    %v2075 = vunpack.c.l.b16 %v229
    %v2076 = vunpack.c.h.b16 %v229
    %v2077 = vunpack.c.l.b16 %v230
    %v2078 = vunpack.c.h.b16 %v230
    %v2079 = vunpack.c.l.b16 %v231
    %v2080 = vunpack.c.h.b16 %v231
    %v2081 = vunpack.c.l.b16 %v232
    %v2082 = vunpack.c.h.b16 %v232
    %v2083 = vunpack.c.l.b16 %v233
    %v2084 = vunpack.c.h.b16 %v233
    %v2085 = vunpack.c.l.b16 %v234
    %v2086 = vunpack.c.h.b16 %v234
    %v2087 = vunpack.c.l.b16 %v235
    %v2088 = vunpack.c.h.b16 %v235
    %v2089 = vunpack.c.l.b16 %v236
    %v2090 = vunpack.c.h.b16 %v236
    %v2091 = vunpack.c.l.b16 %v237
    %v2092 = vunpack.c.h.b16 %v237
    %v2093 = vunpack.c.l.b16 %v238
    %v2094 = vunpack.c.h.b16 %v238
    %v2095 = vunpack.c.l.b16 %v239
    %v2096 = vunpack.c.h.b16 %v239
    %v2097 = vunpack.c.l.b16 %v240
    %v2098 = vunpack.c.h.b16 %v240
    %v2099 = vunpack.c.l.b16 %v241
    %v2100 = vunpack.c.h.b16 %v241
    %v2101 = vunpack.c.l.b16 %v242
    %v2102 = vunpack.c.h.b16 %v242
    %v2103 = vunpack.c.l.b16 %v243
    %v2104 = vunpack.c.h.b16 %v243
    %v2105 = vunpack.c.l.b16 %v244
    %v2106 = vunpack.c.h.b16 %v244
    %v2107 = vunpack.c.l.b16 %v245
    %v2108 = vunpack.c.h.b16 %v245
    %v2109 = vunpack.c.l.b16 %v246
    %v2110 = vunpack.c.h.b16 %v246
    %v2111 = vunpack.c.l.b16 %v247
    %v2112 = vunpack.c.h.b16 %v247
    %v2113 = vunpack.c.l.b16 %v248
    %v2114 = vunpack.c.h.b16 %v248
    %v2115 = vunpack.c.l.b16 %v249
    %v2116 = vunpack.c.h.b16 %v249
    %v2117 = vunpack.c.l.b16 %v250
    %v2118 = vunpack.c.h.b16 %v250
    %v2119 = vunpack.c.l.b16 %v251
    %v2120 = vunpack.c.h.b16 %v251
    %v2121 = vunpack.c.l.b16 %v252
    %v2122 = vunpack.c.h.b16 %v252
    %v2123 = vunpack.c.l.b16 %v253
    %v2124 = vunpack.c.h.b16 %v253
    %v2125 = vunpack.c.l.b16 %v254
    %v2126 = vunpack.c.h.b16 %v254
    %v2127 = vunpack.c.l.b16 %v255
    %v2128 = vunpack.c.h.b16 %v255
    %v2129 = vunpack.c.l.b16 %v256
    %v2130 = vunpack.c.h.b16 %v256
    %v2131 = vunpack.c.l.b16 %v257
    %v2132 = vunpack.c.h.b16 %v257
    %v2133 = vunpack.c.l.b16 %v258
    %v2134 = vunpack.c.h.b16 %v258
    %v2135 = vunpack.c.l.b16 %v259
    %v2136 = vunpack.c.h.b16 %v259
    %v2137 = vunpack.c.l.b16 %v260
    %v2138 = vunpack.c.h.b16 %v260
    %v2139 = vunpack.c.l.b16 %v261
    %v2140 = vunpack.c.h.b16 %v261
    %v2141 = vunpack.c.l.b16 %v262
    %v2142 = vunpack.c.h.b16 %v262
    %v2143 = vunpack.c.l.b16 %v263
    %v2144 = vunpack.c.h.b16 %v263
    %v2145 = vunpack.c.l.b16 %v264
    %v2146 = vunpack.c.h.b16 %v264
    %v2147 = vunpack.c.l.b16 %v265
    %v2148 = vunpack.c.h.b16 %v265
    %v2149 = vunpack.c.l.b16 %v266
    %v2150 = vunpack.c.h.b16 %v266
    %v2151 = vunpack.c.l.b16 %v267
    %v2152 = vunpack.c.h.b16 %v267
    %v2153 = vunpack.c.l.b16 %v268
    %v2154 = vunpack.c.h.b16 %v268
    %v2155 = vunpack.c.l.b16 %v269
    %v2156 = vunpack.c.h.b16 %v269
    %v2157 = vunpack.c.l.b16 %v270
    %v2158 = vunpack.c.h.b16 %v270
    %v2159 = vunpack.c.l.b16 %v271
    %v2160 = vunpack.c.h.b16 %v271
    %v2161 = vunpack.c.l.b16 %v272
    %v2162 = vunpack.c.h.b16 %v272
    %v2163 = vunpack.c.l.b16 %v273
    %v2164 = vunpack.c.h.b16 %v273
    %v2165 = vunpack.c.l.b16 %v274
    %v2166 = vunpack.c.h.b16 %v274
    %v2167 = vunpack.c.l.b16 %v275
    %v2168 = vunpack.c.h.b16 %v275
    %v2169 = vunpack.c.l.b16 %v276
    %v2170 = vunpack.c.h.b16 %v276
    %v2171 = vunpack.c.l.b16 %v277
    %v2172 = vunpack.c.h.b16 %v277
    %v2173 = vunpack.c.l.b16 %v278
    %v2174 = vunpack.c.h.b16 %v278
    %v2175 = vunpack.c.l.b16 %v279
    %v2176 = vunpack.c.h.b16 %v279
    %v2177 = vunpack.c.l.b16 %v280
    %v2178 = vunpack.c.h.b16 %v280
    %v2179 = vunpack.c.l.b16 %v281
    %v2180 = vunpack.c.h.b16 %v281
    %v2181 = vunpack.c.l.b16 %v282
    %v2182 = vunpack.c.h.b16 %v282
    %v2183 = vunpack.c.l.b16 %v283
    %v2184 = vunpack.c.h.b16 %v283
    %v2185 = vunpack.c.l.b16 %v284
    %v2186 = vunpack.c.h.b16 %v284
    %v2187 = vunpack.c.l.b16 %v285
    %v2188 = vunpack.c.h.b16 %v285
    %v2189 = vunpack.c.l.b16 %v286
    %v2190 = vunpack.c.h.b16 %v286
    %v2191 = vunpack.c.l.b16 %v287
    %v2192 = vunpack.c.h.b16 %v287
    %v2193 = vunpack.c.l.b16 %v288
    %v2194 = vunpack.c.h.b16 %v288
    %v2195 = vunpack.c.l.b16 %v289
    %v2196 = vunpack.c.h.b16 %v289
    %v2197 = vunpack.c.l.b16 %v290
    %v2198 = vunpack.c.h.b16 %v290
    %v2199 = vunpack.c.l.b16 %v291
    %v2200 = vunpack.c.h.b16 %v291
    %v2201 = vunpack.c.l.b16 %v292
    %v2202 = vunpack.c.h.b16 %v292
    %v2203 = vunpack.c.l.b16 %v293
    %v2204 = vunpack.c.h.b16 %v293
    %v2205 = vunpack.c.l.b16 %v294
    %v2206 = vunpack.c.h.b16 %v294
    %v2207 = vunpack.c.l.b16 %v295
    %v2208 = vunpack.c.h.b16 %v295
    %v2209 = vunpack.c.l.b16 %v296
    %v2210 = vunpack.c.h.b16 %v296
    %v2211 = vunpack.c.l.b16 %v297
    %v2212 = vunpack.c.h.b16 %v297
    %v2213 = vunpack.c.l.b16 %v298
    %v2214 = vunpack.c.h.b16 %v298
    %v2215 = vunpack.c.l.b16 %v299
    %v2216 = vunpack.c.h.b16 %v299
    %v2217 = vunpack.c.l.b16 %v300
    %v2218 = vunpack.c.h.b16 %v300
    %v2219 = vunpack.c.l.b16 %v301
    %v2220 = vunpack.c.h.b16 %v301
    %v2221 = vunpack.c.l.b16 %v302
    %v2222 = vunpack.c.h.b16 %v302
    %v2223 = vunpack.c.l.b16 %v303
    %v2224 = vunpack.c.h.b16 %v303
    %v2225 = vunpack.c.l.b16 %v304
    %v2226 = vunpack.c.h.b16 %v304
    %v2227 = vunpack.c.l.b16 %v305
    %v2228 = vunpack.c.h.b16 %v305
    %v2229 = vunpack.c.l.b16 %v306
    %v2230 = vunpack.c.h.b16 %v306
    %v2231 = vunpack.c.l.b16 %v307
    %v2232 = vunpack.c.h.b16 %v307
    %v2233 = vunpack.c.l.b16 %v308
    %v2234 = vunpack.c.h.b16 %v308
    %v2235 = vunpack.c.l.b16 %v309
    %v2236 = vunpack.c.h.b16 %v309
    %v2237 = vunpack.c.l.b16 %v310
    %v2238 = vunpack.c.h.b16 %v310
    %v2239 = vunpack.c.l.b16 %v311
    %v2240 = vunpack.c.h.b16 %v311
    %v2241 = vunpack.c.l.b16 %v312
    %v2242 = vunpack.c.h.b16 %v312
    %v2243 = vunpack.c.l.b16 %v313
    %v2244 = vunpack.c.h.b16 %v313
    %v2245 = vunpack.c.l.b16 %v314
    %v2246 = vunpack.c.h.b16 %v314
    %v2247 = vunpack.c.l.b16 %v315
    %v2248 = vunpack.c.h.b16 %v315
    %v2249 = vunpack.c.l.b16 %v316
    %v2250 = vunpack.c.h.b16 %v316
    %v2251 = vunpack.c.l.b16 %v317
    %v2252 = vunpack.c.h.b16 %v317
    %v2253 = vunpack.c.l.b16 %v318
    %v2254 = vunpack.c.h.b16 %v318
    %v2255 = vunpack.c.l.b16 %v319
    %v2256 = vunpack.c.h.b16 %v319
    %v2257 = vunpack.c.l.b16 %v320
    %v2258 = vunpack.c.h.b16 %v320
    %v2259 = vunpack.c.l.b16 %v321
    %v2260 = vunpack.c.h.b16 %v321
    %v2261 = vunpack.c.l.b16 %v322
    %v2262 = vunpack.c.h.b16 %v322
    %v2263 = vunpack.c.l.b16 %v323
    %v2264 = vunpack.c.h.b16 %v323
    %v2265 = vunpack.c.l.b16 %v324
    %v2266 = vunpack.c.h.b16 %v324
    %v2267 = vunpack.c.l.b16 %v325
    %v2268 = vunpack.c.h.b16 %v325
    %v2269 = vunpack.c.l.b16 %v326
    %v2270 = vunpack.c.h.b16 %v326
    %v2271 = vunpack.c.l.b16 %v327
    %v2272 = vunpack.c.h.b16 %v327
    %v2273 = vunpack.c.l.b16 %v328
    %v2274 = vunpack.c.h.b16 %v328
    %v2275 = vunpack.c.l.b16 %v329
    %v2276 = vunpack.c.h.b16 %v329
    %v2277 = vunpack.c.l.b16 %v330
    %v2278 = vunpack.c.h.b16 %v330
    %v2279 = vunpack.c.l.b16 %v331
    %v2280 = vunpack.c.h.b16 %v331
    %v2281 = vunpack.c.l.b16 %v332
    %v2282 = vunpack.c.h.b16 %v332
    %v2283 = vunpack.c.l.b16 %v333
    %v2284 = vunpack.c.h.b16 %v333
    %v2285 = vunpack.c.l.b16 %v334
    %v2286 = vunpack.c.h.b16 %v334
    %v2287 = vunpack.c.l.b16 %v335
    %v2288 = vunpack.c.h.b16 %v335
    %v2289 = vunpack.c.l.b16 %v336
    %v2290 = vunpack.c.h.b16 %v336
    %v2291 = vunpack.c.l.b16 %v337
    %v2292 = vunpack.c.h.b16 %v337
    %v2293 = vunpack.c.l.b16 %v338
    %v2294 = vunpack.c.h.b16 %v338
    %v2295 = vunpack.c.l.b16 %v339
    %v2296 = vunpack.c.h.b16 %v339
    %v2297 = vunpack.c.l.b16 %v340
    %v2298 = vunpack.c.h.b16 %v340
    %v2299 = vunpack.c.l.b16 %v341
    %v2300 = vunpack.c.h.b16 %v341
    %v2301 = vunpack.c.l.b16 %v342
    %v2302 = vunpack.c.h.b16 %v342
    %v2303 = vunpack.c.l.b16 %v343
    %v2304 = vunpack.c.h.b16 %v343
    %v2305 = vunpack.c.l.b16 %v344
    %v2306 = vunpack.c.h.b16 %v344
    %v2307 = vunpack.c.l.b16 %v345
    %v2308 = vunpack.c.h.b16 %v345
    %v2309 = vunpack.c.l.b16 %v346
    %v2310 = vunpack.c.h.b16 %v346
    %v2311 = vunpack.c.l.b16 %v347
    %v2312 = vunpack.c.h.b16 %v347
    %v2313 = vunpack.c.l.b16 %v348
    %v2314 = vunpack.c.h.b16 %v348
    %v2315 = vunpack.c.l.b16 %v349
    %v2316 = vunpack.c.h.b16 %v349
    %v2317 = vunpack.c.l.b16 %v350
    %v2318 = vunpack.c.h.b16 %v350
    %v2319 = vunpack.c.l.b16 %v351
    %v2320 = vunpack.c.h.b16 %v351
    %v2321 = vunpack.c.l.b16 %v352
    %v2322 = vunpack.c.h.b16 %v352
    %v2323 = vunpack.c.l.b16 %v353
    %v2324 = vunpack.c.h.b16 %v353
    %v2325 = vunpack.c.l.b16 %v354
    %v2326 = vunpack.c.h.b16 %v354
    %v2327 = vunpack.c.l.b16 %v355
    %v2328 = vunpack.c.h.b16 %v355
    %v2329 = vunpack.c.l.b16 %v356
    %v2330 = vunpack.c.h.b16 %v356
    %v2331 = vunpack.c.l.b16 %v357
    %v2332 = vunpack.c.h.b16 %v357
    %v2333 = vunpack.c.l.b16 %v358
    %v2334 = vunpack.c.h.b16 %v358
    %v2335 = vunpack.c.l.b16 %v359
    %v2336 = vunpack.c.h.b16 %v359
    %v2337 = vunpack.c.l.b16 %v360
    %v2338 = vunpack.c.h.b16 %v360
    %v2339 = vunpack.c.l.b16 %v361
    %v2340 = vunpack.c.h.b16 %v361
    %v2341 = vunpack.c.l.b16 %v362
    %v2342 = vunpack.c.h.b16 %v362
    %v2343 = vunpack.c.l.b16 %v363
    %v2344 = vunpack.c.h.b16 %v363
    %v2345 = vunpack.c.l.b16 %v364
    %v2346 = vunpack.c.h.b16 %v364
    %v2347 = vunpack.c.l.b16 %v365
    %v2348 = vunpack.c.h.b16 %v365
    %v2349 = vunpack.c.l.b16 %v366
    %v2350 = vunpack.c.h.b16 %v366
    %v2351 = vunpack.c.l.b16 %v367
    %v2352 = vunpack.c.h.b16 %v367
    %v2353 = vunpack.c.l.b16 %v368
    %v2354 = vunpack.c.h.b16 %v368
    %v2355 = vunpack.c.l.b16 %v369
    %v2356 = vunpack.c.h.b16 %v369
    %v2357 = vunpack.c.l.b16 %v370
    %v2358 = vunpack.c.h.b16 %v370
    %v2359 = vunpack.c.l.b16 %v371
    %v2360 = vunpack.c.h.b16 %v371
    %v2361 = vunpack.c.l.b16 %v372
    %v2362 = vunpack.c.h.b16 %v372
    %v2363 = vunpack.c.l.b16 %v373
    %v2364 = vunpack.c.h.b16 %v373
    %v2365 = vunpack.c.l.b16 %v374
    %v2366 = vunpack.c.h.b16 %v374
    %v2367 = vunpack.c.l.b16 %v375
    %v2368 = vunpack.c.h.b16 %v375
    %v2369 = vunpack.c.l.b16 %v376
    %v2370 = vunpack.c.h.b16 %v376
    %v2371 = vunpack.c.l.b16 %v377
    %v2372 = vunpack.c.h.b16 %v377
    %v2373 = vunpack.c.l.b16 %v378
    %v2374 = vunpack.c.h.b16 %v378
    %v2375 = vunpack.c.l.b16 %v379
    %v2376 = vunpack.c.h.b16 %v379
    %v2377 = vunpack.c.l.b16 %v380
    %v2378 = vunpack.c.h.b16 %v380
    %v2379 = vunpack.c.l.b16 %v381
    %v2380 = vunpack.c.h.b16 %v381
    %v2381 = vunpack.c.l.b16 %v382
    %v2382 = vunpack.c.h.b16 %v382
    %v2383 = vunpack.c.l.b16 %v383
    %v2384 = vunpack.c.h.b16 %v383
    %v2385 = vunpack.c.l.b16 %v384
    %v2386 = vunpack.c.h.b16 %v384
    %v2387 = vunpack.c.l.b16 %v385
    %v2388 = vunpack.c.h.b16 %v385
    %v2389 = vunpack.c.l.b16 %v386
    %v2390 = vunpack.c.h.b16 %v386
    %v2391 = vunpack.c.l.b16 %v387
    %v2392 = vunpack.c.h.b16 %v387
    %v2393 = vunpack.c.l.b16 %v388
    %v2394 = vunpack.c.h.b16 %v388
    %v2395 = vunpack.c.l.b16 %v389
    %v2396 = vunpack.c.h.b16 %v389
    %v2397 = vunpack.c.l.b16 %v390
    %v2398 = vunpack.c.h.b16 %v390
    %v2399 = vunpack.c.l.b16 %v391
    %v2400 = vunpack.c.h.b16 %v391
    %v2401 = vunpack.c.l.b16 %v392
    %v2402 = vunpack.c.h.b16 %v392
    %v2403 = vunpack.c.l.b16 %v393
    %v2404 = vunpack.c.h.b16 %v393
    %v2405 = vunpack.c.l.b16 %v394
    %v2406 = vunpack.c.h.b16 %v394
    %v2407 = vunpack.c.l.b16 %v395
    %v2408 = vunpack.c.h.b16 %v395
    %v2409 = vunpack.c.l.b16 %v396
    %v2410 = vunpack.c.h.b16 %v396
    %v2411 = vunpack.c.l.b16 %v397
    %v2412 = vunpack.c.h.b16 %v397
    %v2413 = vunpack.c.l.b16 %v398
    %v2414 = vunpack.c.h.b16 %v398
    %v2415 = vunpack.c.l.b16 %v399
    %v2416 = vunpack.c.h.b16 %v399
    %v2417 = vunpack.c.l.b16 %v400
    %v2418 = vunpack.c.h.b16 %v400
    %v2419 = vunpack.c.l.b16 %v401
    %v2420 = vunpack.c.h.b16 %v401
    %v2421 = vunpack.c.l.b16 %v402
    %v2422 = vunpack.c.h.b16 %v402
    %v2423 = vunpack.c.l.b16 %v403
    %v2424 = vunpack.c.h.b16 %v403
    %v2425 = vunpack.c.l.b16 %v404
    %v2426 = vunpack.c.h.b16 %v404
    %v2427 = vunpack.c.l.b16 %v405
    %v2428 = vunpack.c.h.b16 %v405
    %v2429 = vunpack.c.l.b16 %v406
    %v2430 = vunpack.c.h.b16 %v406
    %v2431 = vunpack.c.l.b16 %v407
    %v2432 = vunpack.c.h.b16 %v407
    %v2433 = vunpack.c.l.b16 %v408
    %v2434 = vunpack.c.h.b16 %v408
    %v2435 = vunpack.c.l.b16 %v409
    %v2436 = vunpack.c.h.b16 %v409
    %v2437 = vunpack.c.l.b16 %v410
    %v2438 = vunpack.c.h.b16 %v410
    %v2439 = vunpack.c.l.b16 %v411
    %v2440 = vunpack.c.h.b16 %v411
    %v2441 = vunpack.c.l.b16 %v412
    %v2442 = vunpack.c.h.b16 %v412
    %v2443 = vunpack.c.l.b16 %v413
    %v2444 = vunpack.c.h.b16 %v413
    %v2445 = vunpack.c.l.b16 %v414
    %v2446 = vunpack.c.h.b16 %v414
    %v2447 = vunpack.c.l.b16 %v415
    %v2448 = vunpack.c.h.b16 %v415
    %v2449 = vunpack.c.l.b16 %v416
    %v2450 = vunpack.c.h.b16 %v416
    %v2451 = vunpack.c.l.b16 %v417
    %v2452 = vunpack.c.h.b16 %v417
    %v2453 = vunpack.c.l.b16 %v418
    %v2454 = vunpack.c.h.b16 %v418
    %v2455 = vunpack.c.l.b16 %v419
    %v2456 = vunpack.c.h.b16 %v419
    %v2457 = vunpack.c.l.b16 %v420
    %v2458 = vunpack.c.h.b16 %v420
    %v2459 = vunpack.c.l.b16 %v421
    %v2460 = vunpack.c.h.b16 %v421
    %v2461 = vunpack.c.l.b16 %v422
    %v2462 = vunpack.c.h.b16 %v422
    %v2463 = vunpack.c.l.b16 %v423
    %v2464 = vunpack.c.h.b16 %v423
    %v2465 = vunpack.c.l.b16 %v424
    %v2466 = vunpack.c.h.b16 %v424
    %v2467 = vunpack.c.l.b16 %v425
    %v2468 = vunpack.c.h.b16 %v425
    %v2469 = vunpack.c.l.b16 %v426
    %v2470 = vunpack.c.h.b16 %v426
    %v2471 = vunpack.c.l.b16 %v427
    %v2472 = vunpack.c.h.b16 %v427
    %v2473 = vunpack.c.l.b16 %v428
    %v2474 = vunpack.c.h.b16 %v428
    %v2475 = vunpack.c.l.b16 %v429
    %v2476 = vunpack.c.h.b16 %v429
    %v2477 = vunpack.c.l.b16 %v430
    %v2478 = vunpack.c.h.b16 %v430
    %v2479 = vunpack.c.l.b16 %v431
    %v2480 = vunpack.c.h.b16 %v431
    %v2481 = vunpack.c.l.b16 %v432
    %v2482 = vunpack.c.h.b16 %v432
    %v2483 = vunpack.c.l.b16 %v433
    %v2484 = vunpack.c.h.b16 %v433
    %v2485 = vunpack.c.l.b16 %v434
    %v2486 = vunpack.c.h.b16 %v434
    %v2487 = vunpack.c.l.b16 %v435
    %v2488 = vunpack.c.h.b16 %v435
    %v2489 = vunpack.c.l.b16 %v436
    %v2490 = vunpack.c.h.b16 %v436
    %v2491 = vunpack.c.l.b16 %v437
    %v2492 = vunpack.c.h.b16 %v437
    %v2493 = vunpack.c.l.b16 %v438
    %v2494 = vunpack.c.h.b16 %v438
    %v2495 = vunpack.c.l.b16 %v439
    %v2496 = vunpack.c.h.b16 %v439
    %v2497 = vunpack.c.l.b16 %v440
    %v2498 = vunpack.c.h.b16 %v440
    %v2499 = vunpack.c.l.b16 %v441
    %v2500 = vunpack.c.h.b16 %v441
    %v2501 = vunpack.c.l.b16 %v442
    %v2502 = vunpack.c.h.b16 %v442
    %v2503 = vunpack.c.l.b16 %v443
    %v2504 = vunpack.c.h.b16 %v443
    %v2505 = vunpack.c.l.b16 %v444
    %v2506 = vunpack.c.h.b16 %v444
    %v2507 = vunpack.c.l.b16 %v445
    %v2508 = vunpack.c.h.b16 %v445
    %v2509 = vunpack.c.l.b16 %v446
    %v2510 = vunpack.c.h.b16 %v446
    %v2511 = vunpack.c.l.b16 %v447
    %v2512 = vunpack.c.h.b16 %v447
    %v2513 = vunpack.c.l.b16 %v448
    %v2514 = vunpack.c.h.b16 %v448
    %v2515 = vunpack.c.l.b16 %v449
    %v2516 = vunpack.c.h.b16 %v449
    %v2517 = vunpack.c.l.b16 %v450
    %v2518 = vunpack.c.h.b16 %v450
    %v2519 = vunpack.c.l.b16 %v451
    %v2520 = vunpack.c.h.b16 %v451
    %v2521 = vunpack.c.l.b16 %v452
    %v2522 = vunpack.c.h.b16 %v452
    %v2523 = vunpack.c.l.b16 %v453
    %v2524 = vunpack.c.h.b16 %v453
    %v2525 = vunpack.c.l.b16 %v454
    %v2526 = vunpack.c.h.b16 %v454
    %v2527 = vunpack.c.l.b16 %v455
    %v2528 = vunpack.c.h.b16 %v455
    %v2529 = vunpack.c.l.b16 %v456
    %v2530 = vunpack.c.h.b16 %v456
    %v2531 = vunpack.c.l.b16 %v457
    %v2532 = vunpack.c.h.b16 %v457
    %v2533 = vunpack.c.l.b16 %v458
    %v2534 = vunpack.c.h.b16 %v458
    %v2535 = vunpack.c.l.b16 %v459
    %v2536 = vunpack.c.h.b16 %v459
    %v2537 = vunpack.c.l.b16 %v460
    %v2538 = vunpack.c.h.b16 %v460
    %v2539 = vunpack.c.l.b16 %v461
    %v2540 = vunpack.c.h.b16 %v461
    %v2541 = vunpack.c.l.b16 %v462
    %v2542 = vunpack.c.h.b16 %v462
    %v2543 = vunpack.c.l.b16 %v463
    %v2544 = vunpack.c.h.b16 %v463
    %v2545 = vunpack.c.l.b16 %v464
    %v2546 = vunpack.c.h.b16 %v464
    %v2547 = vunpack.c.l.b16 %v465
    %v2548 = vunpack.c.h.b16 %v465
    %v2549 = vunpack.c.l.b16 %v466
    %v2550 = vunpack.c.h.b16 %v466
    %v2551 = vunpack.c.l.b16 %v467
    %v2552 = vunpack.c.h.b16 %v467
    %v2553 = vunpack.c.l.b16 %v468
    %v2554 = vunpack.c.h.b16 %v468
    %v2555 = vunpack.c.l.b16 %v469
    %v2556 = vunpack.c.h.b16 %v469
    %v2557 = vunpack.c.l.b16 %v470
    %v2558 = vunpack.c.h.b16 %v470
    %v2559 = vunpack.c.l.b16 %v471
    %v2560 = vunpack.c.h.b16 %v471
    %v2561 = vunpack.c.l.b16 %v472
    %v2562 = vunpack.c.h.b16 %v472
    %v2563 = vunpack.c.l.b16 %v473
    %v2564 = vunpack.c.h.b16 %v473
    %v2565 = vunpack.c.l.b16 %v474
    %v2566 = vunpack.c.h.b16 %v474
    %v2567 = vunpack.c.l.b16 %v475
    %v2568 = vunpack.c.h.b16 %v475
    %v2569 = vunpack.c.l.b16 %v476
    %v2570 = vunpack.c.h.b16 %v476
    %v2571 = vunpack.c.l.b16 %v477
    %v2572 = vunpack.c.h.b16 %v477
    %v2573 = vunpack.c.l.b16 %v478
    %v2574 = vunpack.c.h.b16 %v478
    %v2575 = vunpack.c.l.b16 %v479
    %v2576 = vunpack.c.h.b16 %v479
    %v2577 = vunpack.c.l.b16 %v480
    %v2578 = vunpack.c.h.b16 %v480
    %v2579 = vunpack.c.l.b16 %v481
    %v2580 = vunpack.c.h.b16 %v481
    %v2581 = vunpack.c.l.b16 %v482
    %v2582 = vunpack.c.h.b16 %v482
    %v2583 = vunpack.c.l.b16 %v483
    %v2584 = vunpack.c.h.b16 %v483
    %v2585 = vunpack.c.l.b16 %v484
    %v2586 = vunpack.c.h.b16 %v484
    %v2587 = vunpack.c.l.b16 %v485
    %v2588 = vunpack.c.h.b16 %v485
    %v2589 = vunpack.c.l.b16 %v486
    %v2590 = vunpack.c.h.b16 %v486
    %v2591 = vunpack.c.l.b16 %v487
    %v2592 = vunpack.c.h.b16 %v487
    %v2593 = vunpack.c.l.b16 %v488
    %v2594 = vunpack.c.h.b16 %v488
    %v2595 = vunpack.c.l.b16 %v489
    %v2596 = vunpack.c.h.b16 %v489
    %v2597 = vunpack.c.l.b16 %v490
    %v2598 = vunpack.c.h.b16 %v490
    %v2599 = vunpack.c.l.b16 %v491
    %v2600 = vunpack.c.h.b16 %v491
    %v2601 = vunpack.c.l.b16 %v492
    %v2602 = vunpack.c.h.b16 %v492
    %v2603 = vunpack.c.l.b16 %v493
    %v2604 = vunpack.c.h.b16 %v493
    %v2605 = vunpack.c.l.b16 %v494
    %v2606 = vunpack.c.h.b16 %v494
    %v2607 = vunpack.c.l.b16 %v495
    %v2608 = vunpack.c.h.b16 %v495
    %v2609 = vunpack.c.l.b16 %v496
    %v2610 = vunpack.c.h.b16 %v496
    %v2611 = vunpack.c.l.b16 %v497
    %v2612 = vunpack.c.h.b16 %v497
    %v2613 = vunpack.c.l.b16 %v498
    %v2614 = vunpack.c.h.b16 %v498
    %v2615 = vunpack.c.l.b16 %v499
    %v2616 = vunpack.c.h.b16 %v499
    %v2617 = vunpack.c.l.b16 %v500
    %v2618 = vunpack.c.h.b16 %v500
    %v2619 = vunpack.c.l.b16 %v501
    %v2620 = vunpack.c.h.b16 %v501
    %v2621 = vunpack.c.l.b16 %v502
    %v2622 = vunpack.c.h.b16 %v502
    %v2623 = vunpack.c.l.b16 %v503
    %v2624 = vunpack.c.h.b16 %v503
    %v2625 = vunpack.c.l.b16 %v504
    %v2626 = vunpack.c.h.b16 %v504
    %v2627 = vunpack.c.l.b16 %v505
    %v2628 = vunpack.c.h.b16 %v505
    %v2629 = vunpack.c.l.b16 %v506
    %v2630 = vunpack.c.h.b16 %v506
    %v2631 = vunpack.c.l.b16 %v507
    %v2632 = vunpack.c.h.b16 %v507
    %v2633 = vunpack.c.l.b16 %v508
    %v2634 = vunpack.c.h.b16 %v508
    %v2635 = vunpack.c.l.b16 %v509
    %v2636 = vunpack.c.h.b16 %v509
    %v2637 = vunpack.c.l.b16 %v510
    %v2638 = vunpack.c.h.b16 %v510
    %v2639 = vunpack.c.l.b16 %v511
    %v2640 = vunpack.c.h.b16 %v511
    %v2641 = vunpack.c.l.b16 %v512
    %v2642 = vunpack.c.h.b16 %v512
    %v2643 = vunpack.c.l.b16 %v513
    %v2644 = vunpack.c.h.b16 %v513
    %v2645 = vunpack.c.l.b16 %v514
    %v2646 = vunpack.c.h.b16 %v514
    %v2647 = vunpack.c.l.b16 %v515
    %v2648 = vunpack.c.h.b16 %v515
    %v2649 = vunpack.c.l.b16 %v516
    %v2650 = vunpack.c.h.b16 %v516
    %v2651 = vunpack.c.l.b16 %v517
    %v2652 = vunpack.c.h.b16 %v517
    %v2653 = vunpack.c.l.b16 %v518
    %v2654 = vunpack.c.h.b16 %v518
    %v2655 = vunpack.c.l.b16 %v519
    %v2656 = vunpack.c.h.b16 %v519
    %v2657 = vunpack.c.l.b16 %v520
    %v2658 = vunpack.c.h.b16 %v520
    %v2659 = vunpack.c.l.b16 %v521
    %v2660 = vunpack.c.h.b16 %v521
    %v2661 = vunpack.c.l.b16 %v522
    %v2662 = vunpack.c.h.b16 %v522
    %v2663 = vunpack.c.l.b16 %v523
    %v2664 = vunpack.c.h.b16 %v523
    %v2665 = vunpack.c.l.b16 %v524
    %v2666 = vunpack.c.h.b16 %v524
    %v2667 = vunpack.c.l.b16 %v525
    %v2668 = vunpack.c.h.b16 %v525
    %v2669 = vunpack.c.l.b16 %v526
    %v2670 = vunpack.c.h.b16 %v526
    %v2671 = vunpack.c.l.b16 %v527
    %v2672 = vunpack.c.h.b16 %v527
    %v2673 = vunpack.c.l.b16 %v528
    %v2674 = vunpack.c.h.b16 %v528
    %v2675 = vunpack.c.l.b16 %v529
    %v2676 = vunpack.c.h.b16 %v529
    %v2677 = vunpack.c.l.b16 %v530
    %v2678 = vunpack.c.h.b16 %v530
    %v2679 = vunpack.c.l.b16 %v531
    %v2680 = vunpack.c.h.b16 %v531
    %v2681 = vunpack.c.l.b16 %v532
    %v2682 = vunpack.c.h.b16 %v532
    %v2683 = vunpack.c.l.b16 %v533
    %v2684 = vunpack.c.h.b16 %v533
    %v2685 = vunpack.c.l.b16 %v534
    %v2686 = vunpack.c.h.b16 %v534
    %v2687 = vunpack.c.l.b16 %v535
    %v2688 = vunpack.c.h.b16 %v535
    %v2689 = vunpack.c.l.b16 %v536
    %v2690 = vunpack.c.h.b16 %v536
    %v2691 = vunpack.c.l.b16 %v537
    %v2692 = vunpack.c.h.b16 %v537
    %v2693 = vunpack.c.l.b16 %v538
    %v2694 = vunpack.c.h.b16 %v538
    %v2695 = vunpack.c.l.b16 %v539
    %v2696 = vunpack.c.h.b16 %v539
    %v2697 = vunpack.c.l.b16 %v540
    %v2698 = vunpack.c.h.b16 %v540
    %v2699 = vunpack.c.l.b16 %v541
    %v2700 = vunpack.c.h.b16 %v541
    %v2701 = vunpack.c.l.b16 %v542
    %v2702 = vunpack.c.h.b16 %v542
    %v2703 = vunpack.c.l.b16 %v543
    %v2704 = vunpack.c.h.b16 %v543
    %v2705 = vunpack.c.l.b16 %v544
    %v2706 = vunpack.c.h.b16 %v544
    %v2707 = vunpack.c.l.b16 %v545
    %v2708 = vunpack.c.h.b16 %v545
    %v2709 = vunpack.c.l.b16 %v546
    %v2710 = vunpack.c.h.b16 %v546
    %v2711 = vunpack.c.l.b16 %v547
    %v2712 = vunpack.c.h.b16 %v547
    %v2713 = vunpack.c.l.b16 %v548
    %v2714 = vunpack.c.h.b16 %v548
    %v2715 = vunpack.c.l.b16 %v549
    %v2716 = vunpack.c.h.b16 %v549
    %v2717 = vunpack.c.l.b16 %v550
    %v2718 = vunpack.c.h.b16 %v550
    %v2719 = vunpack.c.l.b16 %v551
    %v2720 = vunpack.c.h.b16 %v551
    %v2721 = vunpack.c.l.b16 %v552
    %v2722 = vunpack.c.h.b16 %v552
    %v2723 = vunpack.c.l.b16 %v553
    %v2724 = vunpack.c.h.b16 %v553
    %v2725 = vunpack.c.l.b16 %v554
    %v2726 = vunpack.c.h.b16 %v554
    %v2727 = vunpack.c.l.b16 %v555
    %v2728 = vunpack.c.h.b16 %v555
    %v2729 = vunpack.c.l.b16 %v556
    %v2730 = vunpack.c.h.b16 %v556
    %v2731 = vunpack.c.l.b16 %v557
    %v2732 = vunpack.c.h.b16 %v557
    %v2733 = vunpack.c.l.b16 %v558
    %v2734 = vunpack.c.h.b16 %v558
    %v2735 = vunpack.c.l.b16 %v559
    %v2736 = vunpack.c.h.b16 %v559
    %v2737 = vunpack.c.l.b16 %v560
    %v2738 = vunpack.c.h.b16 %v560
    %v2739 = vunpack.c.l.b16 %v561
    %v2740 = vunpack.c.h.b16 %v561
    %v2741 = vunpack.c.l.b16 %v562
    %v2742 = vunpack.c.h.b16 %v562
    %v2743 = vunpack.c.l.b16 %v563
    %v2744 = vunpack.c.h.b16 %v563
    %v2745 = vunpack.c.l.b16 %v564
    %v2746 = vunpack.c.h.b16 %v564
    %v2747 = vunpack.c.l.b16 %v565
    %v2748 = vunpack.c.h.b16 %v565
    %v2749 = vunpack.c.l.b16 %v566
    %v2750 = vunpack.c.h.b16 %v566
    %v2751 = vunpack.c.l.b16 %v567
    %v2752 = vunpack.c.h.b16 %v567
    %v2753 = vunpack.c.l.b16 %v568
    %v2754 = vunpack.c.h.b16 %v568
    %v2755 = vunpack.c.l.b16 %v569
    %v2756 = vunpack.c.h.b16 %v569
    %v2757 = vunpack.c.l.b16 %v570
    %v2758 = vunpack.c.h.b16 %v570
    %v2759 = vunpack.c.l.b16 %v571
    %v2760 = vunpack.c.h.b16 %v571
    %v2761 = vunpack.c.l.b16 %v572
    %v2762 = vunpack.c.h.b16 %v572
    %v2763 = vunpack.c.l.b16 %v573
    %v2764 = vunpack.c.h.b16 %v573
    %v2765 = vunpack.c.l.b16 %v574
    %v2766 = vunpack.c.h.b16 %v574
    %v2767 = vunpack.c.l.b16 %v575
    %v2768 = vunpack.c.h.b16 %v575
    %v2769 = vunpack.c.l.b16 %v576
    %v2770 = vunpack.c.h.b16 %v576
    %v2771 = vunpack.c.l.b16 %v577
    %v2772 = vunpack.c.h.b16 %v577
    %v2773 = vunpack.c.l.b16 %v578
    %v2774 = vunpack.c.h.b16 %v578
    %v2775 = vunpack.c.l.b16 %v579
    %v2776 = vunpack.c.h.b16 %v579
    %v2777 = vunpack.c.l.b16 %v580
    %v2778 = vunpack.c.h.b16 %v580
    %v2779 = vunpack.c.l.b16 %v581
    %v2780 = vunpack.c.h.b16 %v581
    %v2781 = vunpack.c.l.b16 %v582
    %v2782 = vunpack.c.h.b16 %v582
    %v2783 = vunpack.c.l.b16 %v583
    %v2784 = vunpack.c.h.b16 %v583
    %v2785 = vunpack.c.l.b16 %v584
    %v2786 = vunpack.c.h.b16 %v584
    %v2787 = vunpack.c.l.b16 %v585
    %v2788 = vunpack.c.h.b16 %v585
    %v2789 = vunpack.c.l.b16 %v586
    %v2790 = vunpack.c.h.b16 %v586
    %v2791 = vunpack.c.l.b16 %v587
    %v2792 = vunpack.c.h.b16 %v587
    %v2793 = vunpack.c.l.b16 %v588
    %v2794 = vunpack.c.h.b16 %v588
    %v2795 = vunpack.c.l.b16 %v589
    %v2796 = vunpack.c.h.b16 %v589
    %v2797 = vunpack.c.l.b16 %v590
    %v2798 = vunpack.c.h.b16 %v590
    %v2799 = vunpack.c.l.b16 %v591
    %v2800 = vunpack.c.h.b16 %v591
    %v2801 = vunpack.c.l.b16 %v592
    %v2802 = vunpack.c.h.b16 %v592
    %v2803 = vunpack.c.l.b16 %v593
    %v2804 = vunpack.c.h.b16 %v593
    %v2805 = vunpack.c.l.b16 %v594
    %v2806 = vunpack.c.h.b16 %v594
    %v2807 = vunpack.c.l.b16 %v595
    %v2808 = vunpack.c.h.b16 %v595
    %v2809 = vunpack.c.l.b16 %v596
    %v2810 = vunpack.c.h.b16 %v596
    %v2811 = vunpack.c.l.b16 %v597
    %v2812 = vunpack.c.h.b16 %v597
    %v2813 = vunpack.c.l.b16 %v598
    %v2814 = vunpack.c.h.b16 %v598
    %v2815 = vunpack.c.l.b16 %v599
    %v2816 = vunpack.c.h.b16 %v599
    %v2817 = vunpack.c.l.b16 %v600
    %v2818 = vunpack.c.h.b16 %v600
    %v2819 = vunpack.c.l.b16 %v601
    %v2820 = vunpack.c.h.b16 %v601
    %v2821 = vunpack.c.l.b16 %v602
    %v2822 = vunpack.c.h.b16 %v602
    %v2823 = vunpack.c.l.b16 %v603
    %v2824 = vunpack.c.h.b16 %v603
    %v2825 = vunpack.c.l.b16 %v604
    %v2826 = vunpack.c.h.b16 %v604
    %v2827 = vunpack.c.l.b16 %v605
    %v2828 = vunpack.c.h.b16 %v605
    %v2829 = vunpack.c.l.b16 %v606
    %v2830 = vunpack.c.h.b16 %v606
    %v2831 = vunpack.c.l.b16 %v607
    %v2832 = vunpack.c.h.b16 %v607
    %v2833 = vunpack.c.l.b16 %v608
    %v2834 = vunpack.c.h.b16 %v608
    %v2835 = vunpack.c.l.b16 %v609
    %v2836 = vunpack.c.h.b16 %v609
    %v2837 = vunpack.c.l.b16 %v610
    %v2838 = vunpack.c.h.b16 %v610
    %v2839 = vunpack.c.l.b16 %v611
    %v2840 = vunpack.c.h.b16 %v611
    %v2841 = vunpack.c.l.b16 %v612
    %v2842 = vunpack.c.h.b16 %v612
    %v2843 = vunpack.c.l.b16 %v613
    %v2844 = vunpack.c.h.b16 %v613
    %v2845 = vunpack.c.l.b16 %v614
    %v2846 = vunpack.c.h.b16 %v614
    %v2847 = vunpack.c.l.b16 %v615
    %v2848 = vunpack.c.h.b16 %v615
    %v2849 = vunpack.c.l.b16 %v616
    %v2850 = vunpack.c.h.b16 %v616
    %v2851 = vunpack.c.l.b16 %v617
    %v2852 = vunpack.c.h.b16 %v617
    %v2853 = vunpack.c.l.b16 %v618
    %v2854 = vunpack.c.h.b16 %v618
    %v2855 = vunpack.c.l.b16 %v619
    %v2856 = vunpack.c.h.b16 %v619
    %v2857 = vunpack.c.l.b16 %v620
    %v2858 = vunpack.c.h.b16 %v620
    %v2859 = vunpack.c.l.b16 %v621
    %v2860 = vunpack.c.h.b16 %v621
    %v2861 = vunpack.c.l.b16 %v622
    %v2862 = vunpack.c.h.b16 %v622
    %v2863 = vunpack.c.l.b16 %v623
    %v2864 = vunpack.c.h.b16 %v623
    %v2865 = vunpack.c.l.b16 %v624
    %v2866 = vunpack.c.h.b16 %v624
    %v2867 = vunpack.c.l.b16 %v625
    %v2868 = vunpack.c.h.b16 %v625
    %v2869 = vunpack.c.l.b16 %v626
    %v2870 = vunpack.c.h.b16 %v626
    %v2871 = vunpack.c.l.b16 %v627
    %v2872 = vunpack.c.h.b16 %v627
    %v2873 = vunpack.c.l.b16 %v628
    %v2874 = vunpack.c.h.b16 %v628
    %v2875 = vunpack.c.l.b16 %v629
    %v2876 = vunpack.c.h.b16 %v629
    %v2877 = vunpack.c.l.b16 %v630
    %v2878 = vunpack.c.h.b16 %v630
    %v2879 = vunpack.c.l.b16 %v631
    %v2880 = vunpack.c.h.b16 %v631
    %v2881 = vunpack.c.l.b16 %v632
    %v2882 = vunpack.c.h.b16 %v632
    %v2883 = vunpack.c.l.b16 %v633
    %v2884 = vunpack.c.h.b16 %v633
    %v2885 = vunpack.c.l.b16 %v634
    %v2886 = vunpack.c.h.b16 %v634
    %v2887 = vunpack.c.l.b16 %v635
    %v2888 = vunpack.c.h.b16 %v635
    %v2889 = vunpack.c.l.b16 %v636
    %v2890 = vunpack.c.h.b16 %v636
    %v2891 = vunpack.c.l.b16 %v637
    %v2892 = vunpack.c.h.b16 %v637
    %v2893 = vunpack.c.l.b16 %v638
    %v2894 = vunpack.c.h.b16 %v638
    %v2895 = vunpack.c.l.b16 %v639
    %v2896 = vunpack.c.h.b16 %v639
    %v2897 = vunpack.c.l.b16 %v640
    %v2898 = vunpack.c.h.b16 %v640
    %v2899 = vunpack.c.l.b16 %v641
    %v2900 = vunpack.c.h.b16 %v641
    %v2901 = vunpack.c.l.b16 %v642
    %v2902 = vunpack.c.h.b16 %v642
    %v2903 = vunpack.c.l.b16 %v643
    %v2904 = vunpack.c.h.b16 %v643
    %v2905 = vunpack.c.l.b16 %v644
    %v2906 = vunpack.c.h.b16 %v644
    %v2907 = vunpack.c.l.b16 %v645
    %v2908 = vunpack.c.h.b16 %v645
    %v2909 = vunpack.c.l.b16 %v646
    %v2910 = vunpack.c.h.b16 %v646
    %v2911 = vunpack.c.l.b16 %v647
    %v2912 = vunpack.c.h.b16 %v647
    %v2913 = vunpack.c.l.b16 %v648
    %v2914 = vunpack.c.h.b16 %v648
    %v2915 = vunpack.c.l.b16 %v649
    %v2916 = vunpack.c.h.b16 %v649
    %v2917 = vunpack.c.l.b16 %v650
    %v2918 = vunpack.c.h.b16 %v650
    %v2919 = vunpack.c.l.b16 %v651
    %v2920 = vunpack.c.h.b16 %v651
    %v2921 = vunpack.c.l.b16 %v652
    %v2922 = vunpack.c.h.b16 %v652
    %v2923 = vunpack.c.l.b16 %v653
    %v2924 = vunpack.c.h.b16 %v653
    %v2925 = vunpack.c.l.b16 %v654
    %v2926 = vunpack.c.h.b16 %v654
    %v2927 = vunpack.c.l.b16 %v655
    %v2928 = vunpack.c.h.b16 %v655
    %v2929 = vunpack.c.l.b16 %v656
    %v2930 = vunpack.c.h.b16 %v656
    %v2931 = vunpack.c.l.b16 %v657
    %v2932 = vunpack.c.h.b16 %v657
    %v2933 = vunpack.c.l.b16 %v658
    %v2934 = vunpack.c.h.b16 %v658
    %v2935 = vunpack.c.l.b16 %v659
    %v2936 = vunpack.c.h.b16 %v659
    %v2937 = vunpack.c.l.b16 %v660
    %v2938 = vunpack.c.h.b16 %v660
    %v2939 = vunpack.c.l.b16 %v661
    %v2940 = vunpack.c.h.b16 %v661
    %v2941 = vunpack.c.l.b16 %v662
    %v2942 = vunpack.c.h.b16 %v662
    %v2943 = vunpack.c.l.b16 %v663
    %v2944 = vunpack.c.h.b16 %v663
    %v2945 = vunpack.c.l.b16 %v664
    %v2946 = vunpack.c.h.b16 %v664
    %v2947 = vunpack.c.l.b16 %v665
    %v2948 = vunpack.c.h.b16 %v665
    %v2949 = vunpack.c.l.b16 %v666
    %v2950 = vunpack.c.h.b16 %v666
    %v2951 = vunpack.c.l.b16 %v667
    %v2952 = vunpack.c.h.b16 %v667
    %v2953 = vunpack.c.l.b16 %v668
    %v2954 = vunpack.c.h.b16 %v668
    %v2955 = vunpack.c.l.b16 %v669
    %v2956 = vunpack.c.h.b16 %v669
    %v2957 = vunpack.c.l.b16 %v670
    %v2958 = vunpack.c.h.b16 %v670
    %v2959 = vunpack.c.l.b16 %v671
    %v2960 = vunpack.c.h.b16 %v671
    %v2961 = vunpack.c.l.b16 %v672
    %v2962 = vunpack.c.h.b16 %v672
    %v2963 = vunpack.c.l.b16 %v673
    %v2964 = vunpack.c.h.b16 %v673
    %v2965 = vunpack.c.l.b16 %v674
    %v2966 = vunpack.c.h.b16 %v674
    %v2967 = vunpack.c.l.b16 %v675
    %v2968 = vunpack.c.h.b16 %v675
    %v2969 = vunpack.c.l.b16 %v676
    %v2970 = vunpack.c.h.b16 %v676
    %v2971 = vunpack.c.l.b16 %v677
    %v2972 = vunpack.c.h.b16 %v677
    %v2973 = vunpack.c.l.b16 %v678
    %v2974 = vunpack.c.h.b16 %v678
    %v2975 = vunpack.c.l.b16 %v679
    %v2976 = vunpack.c.h.b16 %v679
    %v2977 = vunpack.c.l.b16 %v680
    %v2978 = vunpack.c.h.b16 %v680
    %v2979 = vunpack.c.l.b16 %v681
    %v2980 = vunpack.c.h.b16 %v681
    %v2981 = vunpack.c.l.b16 %v682
    %v2982 = vunpack.c.h.b16 %v682
    %v2983 = vunpack.c.l.b16 %v683
    %v2984 = vunpack.c.h.b16 %v683
    %v2985 = vunpack.c.l.b16 %v684
    %v2986 = vunpack.c.h.b16 %v684
    %v2987 = vunpack.c.l.b16 %v685
    %v2988 = vunpack.c.h.b16 %v685
    %v2989 = vunpack.c.l.b16 %v686
    %v2990 = vunpack.c.h.b16 %v686
    %v2991 = vunpack.c.l.b16 %v687
    %v2992 = vunpack.c.h.b16 %v687
    %v2993 = vunpack.c.l.b16 %v688
    %v2994 = vunpack.c.h.b16 %v688
    %v2995 = vunpack.c.l.b16 %v689
    %v2996 = vunpack.c.h.b16 %v689
    %v2997 = vunpack.c.l.b16 %v690
    %v2998 = vunpack.c.h.b16 %v690
    %v2999 = vunpack.c.l.b16 %v691
    %v3000 = vunpack.c.h.b16 %v691
    %v3001 = vunpack.c.l.b16 %v692
    %v3002 = vunpack.c.h.b16 %v692
    %v3003 = vunpack.c.l.b16 %v693
    %v3004 = vunpack.c.h.b16 %v693
    %v3005 = vunpack.c.l.b16 %v694
    %v3006 = vunpack.c.h.b16 %v694
    %v3007 = vunpack.c.l.b16 %v695
    %v3008 = vunpack.c.h.b16 %v695
    %v3009 = vunpack.c.l.b16 %v696
    %v3010 = vunpack.c.h.b16 %v696
    %v3011 = vunpack.c.l.b16 %v697
    %v3012 = vunpack.c.h.b16 %v697
    %v3013 = vunpack.c.l.b16 %v698
    %v3014 = vunpack.c.h.b16 %v698
    %v3015 = vunpack.c.l.b16 %v699
    %v3016 = vunpack.c.h.b16 %v699
    %v3017 = vunpack.c.l.b16 %v700
    %v3018 = vunpack.c.h.b16 %v700
    %v3019 = vunpack.c.l.b16 %v701
    %v3020 = vunpack.c.h.b16 %v701
    %v3021 = vunpack.c.l.b16 %v702
    %v3022 = vunpack.c.h.b16 %v702
    %v3023 = vunpack.c.l.b16 %v703
    %v3024 = vunpack.c.h.b16 %v703
    %v3025 = vunpack.c.l.b16 %v704
    %v3026 = vunpack.c.h.b16 %v704
    %v3027 = vunpack.c.l.b16 %v705
    %v3028 = vunpack.c.h.b16 %v705
    %v3029 = vunpack.c.l.b16 %v706
    %v3030 = vunpack.c.h.b16 %v706
    %v3031 = vunpack.c.l.b16 %v707
    %v3032 = vunpack.c.h.b16 %v707
    %v3033 = vunpack.c.l.b16 %v708
    %v3034 = vunpack.c.h.b16 %v708
    %v3035 = vunpack.c.l.b16 %v709
    %v3036 = vunpack.c.h.b16 %v709
    %v3037 = vunpack.c.l.b16 %v710
    %v3038 = vunpack.c.h.b16 %v710
    %v3039 = vunpack.c.l.b16 %v711
    %v3040 = vunpack.c.h.b16 %v711
    %v3041 = vunpack.c.l.b16 %v712
    %v3042 = vunpack.c.h.b16 %v712
    %v3043 = vunpack.c.l.b16 %v713
    %v3044 = vunpack.c.h.b16 %v713
    %v3045 = vunpack.c.l.b16 %v714
    %v3046 = vunpack.c.h.b16 %v714
    %v3047 = vunpack.c.l.b16 %v715
    %v3048 = vunpack.c.h.b16 %v715
    %v3049 = vunpack.c.l.b16 %v716
    %v3050 = vunpack.c.h.b16 %v716
    %v3051 = vunpack.c.l.b16 %v717
    %v3052 = vunpack.c.h.b16 %v717
    %v3053 = vunpack.c.l.b16 %v718
    %v3054 = vunpack.c.h.b16 %v718
    %v3055 = vunpack.c.l.b16 %v719
    %v3056 = vunpack.c.h.b16 %v719
    %v3057 = vunpack.c.l.b16 %v720
    %v3058 = vunpack.c.h.b16 %v720
    %v3059 = vunpack.c.l.b16 %v721
    %v3060 = vunpack.c.h.b16 %v721
    %v3061 = vunpack.c.l.b16 %v722
    %v3062 = vunpack.c.h.b16 %v722
    %v3063 = vunpack.c.l.b16 %v723
    %v3064 = vunpack.c.h.b16 %v723
    %v3065 = vunpack.c.l.b16 %v724
    %v3066 = vunpack.c.h.b16 %v724
    %v3067 = vunpack.c.l.b16 %v725
    %v3068 = vunpack.c.h.b16 %v725
    %v3069 = vunpack.c.l.b16 %v726
    %v3070 = vunpack.c.h.b16 %v726
    %v3071 = vunpack.c.l.b16 %v727
    %v3072 = vunpack.c.h.b16 %v727
    %v3073 = vunpack.c.l.b16 %v728
    %v3074 = vunpack.c.h.b16 %v728
    %v3075 = vunpack.c.l.b16 %v729
    %v3076 = vunpack.c.h.b16 %v729
    %v3077 = vunpack.c.l.b16 %v730
    %v3078 = vunpack.c.h.b16 %v730
    %v3079 = vunpack.c.l.b16 %v731
    %v3080 = vunpack.c.h.b16 %v731
    %v3081 = vunpack.c.l.b16 %v732
    %v3082 = vunpack.c.h.b16 %v732
    %v3083 = vunpack.c.l.b16 %v733
    %v3084 = vunpack.c.h.b16 %v733
    %v3085 = vunpack.c.l.b16 %v734
    %v3086 = vunpack.c.h.b16 %v734
    %v3087 = vunpack.c.l.b16 %v735
    %v3088 = vunpack.c.h.b16 %v735
    %v3089 = vunpack.c.l.b16 %v736
    %v3090 = vunpack.c.h.b16 %v736
    %v3091 = vunpack.c.l.b16 %v737
    %v3092 = vunpack.c.h.b16 %v737
    %v3093 = vunpack.c.l.b16 %v738
    %v3094 = vunpack.c.h.b16 %v738
    %v3095 = vunpack.c.l.b16 %v739
    %v3096 = vunpack.c.h.b16 %v739
    %v3097 = vunpack.c.l.b16 %v740
    %v3098 = vunpack.c.h.b16 %v740
    %v3099 = vunpack.c.l.b16 %v741
    %v3100 = vunpack.c.h.b16 %v741
    %v3101 = vunpack.c.l.b16 %v742
    %v3102 = vunpack.c.h.b16 %v742
    %v3103 = vunpack.c.l.b16 %v743
    %v3104 = vunpack.c.h.b16 %v743
    %v3105 = vunpack.c.l.b16 %v744
    %v3106 = vunpack.c.h.b16 %v744
    %v3107 = vunpack.c.l.b16 %v745
    %v3108 = vunpack.c.h.b16 %v745
    %v3109 = vunpack.c.l.b16 %v746
    %v3110 = vunpack.c.h.b16 %v746
    %v3111 = vunpack.c.l.b16 %v747
    %v3112 = vunpack.c.h.b16 %v747
    %v3113 = vunpack.c.l.b16 %v748
    %v3114 = vunpack.c.h.b16 %v748
    %v3115 = vunpack.c.l.b16 %v749
    %v3116 = vunpack.c.h.b16 %v749
    %v3117 = vunpack.c.l.b16 %v750
    %v3118 = vunpack.c.h.b16 %v750
    %v3119 = vunpack.c.l.b16 %v751
    %v3120 = vunpack.c.h.b16 %v751
    %v3121 = vunpack.c.l.b16 %v752
    %v3122 = vunpack.c.h.b16 %v752
    %v3123 = vunpack.c.l.b16 %v753
    %v3124 = vunpack.c.h.b16 %v753
    %v3125 = vunpack.c.l.b16 %v754
    %v3126 = vunpack.c.h.b16 %v754
    %v3127 = vunpack.c.l.b16 %v755
    %v3128 = vunpack.c.h.b16 %v755
    %v3129 = vunpack.c.l.b16 %v756
    %v3130 = vunpack.c.h.b16 %v756
    %v3131 = vunpack.c.l.b16 %v757
    %v3132 = vunpack.c.h.b16 %v757
    %v3133 = vunpack.c.l.b16 %v758
    %v3134 = vunpack.c.h.b16 %v758
    %v3135 = vunpack.c.l.b16 %v759
    %v3136 = vunpack.c.h.b16 %v759
    %v3137 = vunpack.c.l.b16 %v760
    %v3138 = vunpack.c.h.b16 %v760
    %v3139 = vunpack.c.l.b16 %v761
    %v3140 = vunpack.c.h.b16 %v761
    %v3141 = vunpack.c.l.b16 %v762
    %v3142 = vunpack.c.h.b16 %v762
    %v3143 = vunpack.c.l.b16 %v763
    %v3144 = vunpack.c.h.b16 %v763
    %v3145 = vunpack.c.l.b16 %v764
    %v3146 = vunpack.c.h.b16 %v764
    %v3147 = vunpack.c.l.b16 %v765
    %v3148 = vunpack.c.h.b16 %v765
    %v3149 = vunpack.c.l.b16 %v766
    %v3150 = vunpack.c.h.b16 %v766
    %v3151 = vunpack.c.l.b16 %v767
    %v3152 = vunpack.c.h.b16 %v767
    %v3153 = vunpack.c.l.b16 %v768
    %v3154 = vunpack.c.h.b16 %v768
    %v3155 = vunpack.c.l.b16 %v769
    %v3156 = vunpack.c.h.b16 %v769
    %v3157 = vunpack.c.l.b16 %v770
    %v3158 = vunpack.c.h.b16 %v770
    %v3159 = vunpack.c.l.b16 %v771
    %v3160 = vunpack.c.h.b16 %v771
    %v3161 = vunpack.c.l.b16 %v772
    %v3162 = vunpack.c.h.b16 %v772
    %v3163 = vunpack.c.l.b16 %v773
    %v3164 = vunpack.c.h.b16 %v773
    %v3165 = vunpack.c.l.b16 %v774
    %v3166 = vunpack.c.h.b16 %v774
    %v3167 = vunpack.c.l.b16 %v775
    %v3168 = vunpack.c.h.b16 %v775
    %v3169 = vunpack.c.l.b16 %v776
    %v3170 = vunpack.c.h.b16 %v776
    %v3171 = vunpack.c.l.b16 %v777
    %v3172 = vunpack.c.h.b16 %v777
    %v3173 = vunpack.c.l.b16 %v778
    %v3174 = vunpack.c.h.b16 %v778
    %v3175 = vunpack.c.l.b16 %v779
    %v3176 = vunpack.c.h.b16 %v779
    %v3177 = vunpack.c.l.b16 %v780
    %v3178 = vunpack.c.h.b16 %v780
    %v3179 = vunpack.c.l.b16 %v781
    %v3180 = vunpack.c.h.b16 %v781
    %v3181 = vunpack.c.l.b16 %v782
    %v3182 = vunpack.c.h.b16 %v782
    %v3183 = vunpack.c.l.b16 %v783
    %v3184 = vunpack.c.h.b16 %v783
    %v3185 = vunpack.c.l.b16 %v784
    %v3186 = vunpack.c.h.b16 %v784
    %v3187 = vunpack.c.l.b16 %v785
    %v3188 = vunpack.c.h.b16 %v785
    %v3189 = vunpack.c.l.b16 %v786
    %v3190 = vunpack.c.h.b16 %v786
    %v3191 = vunpack.c.l.b16 %v787
    %v3192 = vunpack.c.h.b16 %v787
    %v3193 = vunpack.c.l.b16 %v788
    %v3194 = vunpack.c.h.b16 %v788
    %v3195 = vunpack.c.l.b16 %v789
    %v3196 = vunpack.c.h.b16 %v789
    %v3197 = vunpack.c.l.b16 %v790
    %v3198 = vunpack.c.h.b16 %v790
    %v3199 = vunpack.c.l.b16 %v791
    %v3200 = vunpack.c.h.b16 %v791
    %v3201 = vunpack.c.l.b16 %v792
    %v3202 = vunpack.c.h.b16 %v792
    %v3203 = vunpack.c.l.b16 %v793
    %v3204 = vunpack.c.h.b16 %v793
    %v3205 = vunpack.c.l.b16 %v794
    %v3206 = vunpack.c.h.b16 %v794
    %v3207 = vunpack.c.l.b16 %v795
    %v3208 = vunpack.c.h.b16 %v795
    %v3209 = vunpack.c.l.b16 %v796
    %v3210 = vunpack.c.h.b16 %v796
    %v3211 = vunpack.c.l.b16 %v797
    %v3212 = vunpack.c.h.b16 %v797
    %v3213 = vunpack.c.l.b16 %v798
    %v3214 = vunpack.c.h.b16 %v798
    %v3215 = vunpack.c.l.b16 %v799
    %v3216 = vunpack.c.h.b16 %v799
    %v3217 = vunpack.c.l.b16 %v800
    %v3218 = vunpack.c.h.b16 %v800
    %v3219 = vunpack.c.l.b16 %v801
    %v3220 = vunpack.c.h.b16 %v801
    %v3221 = vunpack.c.l.b16 %v802
    %v3222 = vunpack.c.h.b16 %v802
    %v3223 = vunpack.c.l.b16 %v803
    %v3224 = vunpack.c.h.b16 %v803
    %v3225 = vunpack.c.l.b16 %v804
    %v3226 = vunpack.c.h.b16 %v804
    %v3227 = vunpack.c.l.b16 %v805
    %v3228 = vunpack.c.h.b16 %v805
    %v3229 = vunpack.c.l.b16 %v806
    %v3230 = vunpack.c.h.b16 %v806
    %v3231 = vunpack.c.l.b16 %v807
    %v3232 = vunpack.c.h.b16 %v807
    %v3233 = vunpack.c.l.b16 %v808
    %v3234 = vunpack.c.h.b16 %v808
    %v3235 = vpack.c.b16 %v1711, %v1699
    %v3236 = vpack.c.b16 %v1712, %v1700
    %v3237 = vpack.c.b16 %v1713, %v1701
    %v3238 = vpack.c.b16 %v1714, %v1702
    %v3239 = vpack.c.b16 %v1715, %v1703
    %v3240 = vpack.c.b16 %v1716, %v1704
    %v3241 = vpack.c.b16 %v1717, %v1705
    %v3242 = vpack.c.b16 %v1718, %v1706
    %v3243 = vpack.c.b16 %v1719, %v1707
    %v3244 = vpack.c.b16 %v1720, %v1708
    %v3245 = vpack.c.b16 %v1721, %v1709
    %v3246 = vpack.c.b16 %v1722, %v1710
    %v3247 = vpack.c.b16 %v1735, %v1723
    %v3248 = vpack.c.b16 %v1736, %v1724
    %v3249 = vpack.c.b16 %v1737, %v1725
    %v3250 = vpack.c.b16 %v1738, %v1726
    %v3251 = vpack.c.b16 %v1739, %v1727
    %v3252 = vpack.c.b16 %v1740, %v1728
    %v3253 = vpack.c.b16 %v1741, %v1729
    %v3254 = vpack.c.b16 %v1742, %v1730
    %v3255 = vpack.c.b16 %v1743, %v1731
    %v3256 = vpack.c.b16 %v1744, %v1732
    %v3257 = vpack.c.b16 %v1745, %v1733
    %v3258 = vpack.c.b16 %v1746, %v1734
    %v3259 = vpack.c.b16 %v1759, %v1747
    %v3260 = vpack.c.b16 %v1760, %v1748
    %v3261 = vpack.c.b16 %v1761, %v1749
    %v3262 = vpack.c.b16 %v1762, %v1750
    %v3263 = vpack.c.b16 %v1763, %v1751
    %v3264 = vpack.c.b16 %v1764, %v1752
    %v3265 = vpack.c.b16 %v1765, %v1753
    %v3266 = vpack.c.b16 %v1766, %v1754
    %v3267 = vpack.c.b16 %v1767, %v1755
    %v3268 = vpack.c.b16 %v1768, %v1756
    %v3269 = vpack.c.b16 %v1769, %v1757
    %v3270 = vpack.c.b16 %v1770, %v1758
    %v3271 = vpack.c.b16 %v1783, %v1771
    %v3272 = vpack.c.b16 %v1784, %v1772
    %v3273 = vpack.c.b16 %v1785, %v1773
    %v3274 = vpack.c.b16 %v1786, %v1774
    %v3275 = vpack.c.b16 %v1787, %v1775
    %v3276 = vpack.c.b16 %v1788, %v1776
    %v3277 = vpack.c.b16 %v1789, %v1777
    %v3278 = vpack.c.b16 %v1790, %v1778
    %v3279 = vpack.c.b16 %v1791, %v1779
    %v3280 = vpack.c.b16 %v1792, %v1780
    %v3281 = vpack.c.b16 %v1793, %v1781
    %v3282 = vpack.c.b16 %v1794, %v1782
    %v3283 = vpack.c.b16 %v1807, %v1795
    %v3284 = vpack.c.b16 %v1808, %v1796
    %v3285 = vpack.c.b16 %v1809, %v1797
    %v3286 = vpack.c.b16 %v1810, %v1798
    %v3287 = vpack.c.b16 %v1811, %v1799
    %v3288 = vpack.c.b16 %v1812, %v1800
    %v3289 = vpack.c.b16 %v1813, %v1801
    %v3290 = vpack.c.b16 %v1814, %v1802
    %v3291 = vpack.c.b16 %v1815, %v1803
    %v3292 = vpack.c.b16 %v1816, %v1804
    %v3293 = vpack.c.b16 %v1817, %v1805
    %v3294 = vpack.c.b16 %v1818, %v1806
    %v3295 = vpack.c.b16 %v1831, %v1819
    %v3296 = vpack.c.b16 %v1832, %v1820
    %v3297 = vpack.c.b16 %v1833, %v1821
    %v3298 = vpack.c.b16 %v1834, %v1822
    %v3299 = vpack.c.b16 %v1835, %v1823
    %v3300 = vpack.c.b16 %v1836, %v1824
    %v3301 = vpack.c.b16 %v1837, %v1825
    %v3302 = vpack.c.b16 %v1838, %v1826
    %v3303 = vpack.c.b16 %v1839, %v1827
    %v3304 = vpack.c.b16 %v1840, %v1828
    %v3305 = vpack.c.b16 %v1841, %v1829
    %v3306 = vpack.c.b16 %v1842, %v1830
    %v3307 = vpack.c.b16 %v1855, %v1843
    %v3308 = vpack.c.b16 %v1856, %v1844
    %v3309 = vpack.c.b16 %v1857, %v1845
    %v3310 = vpack.c.b16 %v1858, %v1846
    %v3311 = vpack.c.b16 %v1859, %v1847
    %v3312 = vpack.c.b16 %v1860, %v1848
    %v3313 = vpack.c.b16 %v1861, %v1849
    %v3314 = vpack.c.b16 %v1862, %v1850
    %v3315 = vpack.c.b16 %v1863, %v1851
    %v3316 = vpack.c.b16 %v1864, %v1852
    %v3317 = vpack.c.b16 %v1865, %v1853
    %v3318 = vpack.c.b16 %v1866, %v1854
    %v3319 = vpack.c.b16 %v1879, %v1867
    %v3320 = vpack.c.b16 %v1880, %v1868
    %v3321 = vpack.c.b16 %v1881, %v1869
    %v3322 = vpack.c.b16 %v1882, %v1870
    %v3323 = vpack.c.b16 %v1883, %v1871
    %v3324 = vpack.c.b16 %v1884, %v1872
    %v3325 = vpack.c.b16 %v1885, %v1873
    %v3326 = vpack.c.b16 %v1886, %v1874
    %v3327 = vpack.c.b16 %v1887, %v1875
    %v3328 = vpack.c.b16 %v1888, %v1876
    %v3329 = vpack.c.b16 %v1889, %v1877
    %v3330 = vpack.c.b16 %v1890, %v1878
    %v3331 = vpack.c.b16 %v1903, %v1891
    %v3332 = vpack.c.b16 %v1904, %v1892
    %v3333 = vpack.c.b16 %v1905, %v1893
    %v3334 = vpack.c.b16 %v1906, %v1894
    %v3335 = vpack.c.b16 %v1907, %v1895
    %v3336 = vpack.c.b16 %v1908, %v1896
    %v3337 = vpack.c.b16 %v1909, %v1897
    %v3338 = vpack.c.b16 %v1910, %v1898
    %v3339 = vpack.c.b16 %v1911, %v1899
    %v3340 = vpack.c.b16 %v1912, %v1900
    %v3341 = vpack.c.b16 %v1913, %v1901
    %v3342 = vpack.c.b16 %v1914, %v1902
    %v3343 = vpack.c.b16 %v1927, %v1915
    %v3344 = vpack.c.b16 %v1928, %v1916
    %v3345 = vpack.c.b16 %v1929, %v1917
    %v3346 = vpack.c.b16 %v1930, %v1918
    %v3347 = vpack.c.b16 %v1931, %v1919
    %v3348 = vpack.c.b16 %v1932, %v1920
    %v3349 = vpack.c.b16 %v1933, %v1921
    %v3350 = vpack.c.b16 %v1934, %v1922
    %v3351 = vpack.c.b16 %v1935, %v1923
    %v3352 = vpack.c.b16 %v1936, %v1924
    %v3353 = vpack.c.b16 %v1937, %v1925
    %v3354 = vpack.c.b16 %v1938, %v1926
    %v3355 = vpack.c.b16 %v1951, %v1939
    %v3356 = vpack.c.b16 %v1952, %v1940
    %v3357 = vpack.c.b16 %v1953, %v1941
    %v3358 = vpack.c.b16 %v1954, %v1942
    %v3359 = vpack.c.b16 %v1955, %v1943
    %v3360 = vpack.c.b16 %v1956, %v1944
    %v3361 = vpack.c.b16 %v1957, %v1945
    %v3362 = vpack.c.b16 %v1958, %v1946
    %v3363 = vpack.c.b16 %v1959, %v1947
    %v3364 = vpack.c.b16 %v1960, %v1948
    %v3365 = vpack.c.b16 %v1961, %v1949
    %v3366 = vpack.c.b16 %v1962, %v1950
    %v3367 = vpack.c.b16 %v1975, %v1963
    %v3368 = vpack.c.b16 %v1976, %v1964
    %v3369 = vpack.c.b16 %v1977, %v1965
    %v3370 = vpack.c.b16 %v1978, %v1966
    %v3371 = vpack.c.b16 %v1979, %v1967
    %v3372 = vpack.c.b16 %v1980, %v1968
    %v3373 = vpack.c.b16 %v1981, %v1969
    %v3374 = vpack.c.b16 %v1982, %v1970
    %v3375 = vpack.c.b16 %v1983, %v1971
    %v3376 = vpack.c.b16 %v1984, %v1972
    %v3377 = vpack.c.b16 %v1985, %v1973
    %v3378 = vpack.c.b16 %v1986, %v1974
    %v3379 = vpack.c.b16 %v1999, %v1987
    %v3380 = vpack.c.b16 %v2000, %v1988
    %v3381 = vpack.c.b16 %v2001, %v1989
    %v3382 = vpack.c.b16 %v2002, %v1990
    %v3383 = vpack.c.b16 %v2003, %v1991
    %v3384 = vpack.c.b16 %v2004, %v1992
    %v3385 = vpack.c.b16 %v2005, %v1993
    %v3386 = vpack.c.b16 %v2006, %v1994
    %v3387 = vpack.c.b16 %v2007, %v1995
    %v3388 = vpack.c.b16 %v2008, %v1996
    %v3389 = vpack.c.b16 %v2009, %v1997
    %v3390 = vpack.c.b16 %v2010, %v1998
    %v3391 = vpack.c.b16 %v2023, %v2011
    %v3392 = vpack.c.b16 %v2024, %v2012
    %v3393 = vpack.c.b16 %v2025, %v2013
    %v3394 = vpack.c.b16 %v2026, %v2014
    %v3395 = vpack.c.b16 %v2027, %v2015
    %v3396 = vpack.c.b16 %v2028, %v2016
    %v3397 = vpack.c.b16 %v2029, %v2017
    %v3398 = vpack.c.b16 %v2030, %v2018
    %v3399 = vpack.c.b16 %v2031, %v2019
    %v3400 = vpack.c.b16 %v2032, %v2020
    %v3401 = vpack.c.b16 %v2033, %v2021
    %v3402 = vpack.c.b16 %v2034, %v2022
    %v3403 = vpack.c.b16 %v2047, %v2035
    %v3404 = vpack.c.b16 %v2048, %v2036
    %v3405 = vpack.c.b16 %v2049, %v2037
    %v3406 = vpack.c.b16 %v2050, %v2038
    %v3407 = vpack.c.b16 %v2051, %v2039
    %v3408 = vpack.c.b16 %v2052, %v2040
    %v3409 = vpack.c.b16 %v2053, %v2041
    %v3410 = vpack.c.b16 %v2054, %v2042
    %v3411 = vpack.c.b16 %v2055, %v2043
    %v3412 = vpack.c.b16 %v2056, %v2044
    %v3413 = vpack.c.b16 %v2057, %v2045
    %v3414 = vpack.c.b16 %v2058, %v2046
    %v3415 = vpack.c.b16 %v2071, %v2059
    %v3416 = vpack.c.b16 %v2072, %v2060
    %v3417 = vpack.c.b16 %v2073, %v2061
    %v3418 = vpack.c.b16 %v2074, %v2062
    %v3419 = vpack.c.b16 %v2075, %v2063
    %v3420 = vpack.c.b16 %v2076, %v2064
    %v3421 = vpack.c.b16 %v2077, %v2065
    %v3422 = vpack.c.b16 %v2078, %v2066
    %v3423 = vpack.c.b16 %v2079, %v2067
    %v3424 = vpack.c.b16 %v2080, %v2068
    %v3425 = vpack.c.b16 %v2081, %v2069
    %v3426 = vpack.c.b16 %v2082, %v2070
    %v3427 = vpack.c.b16 %v2095, %v2083
    %v3428 = vpack.c.b16 %v2096, %v2084
    %v3429 = vpack.c.b16 %v2097, %v2085
    %v3430 = vpack.c.b16 %v2098, %v2086
    %v3431 = vpack.c.b16 %v2099, %v2087
    %v3432 = vpack.c.b16 %v2100, %v2088
    %v3433 = vpack.c.b16 %v2101, %v2089
    %v3434 = vpack.c.b16 %v2102, %v2090
    %v3435 = vpack.c.b16 %v2103, %v2091
    %v3436 = vpack.c.b16 %v2104, %v2092
    %v3437 = vpack.c.b16 %v2105, %v2093
    %v3438 = vpack.c.b16 %v2106, %v2094
    %v3439 = vpack.c.b16 %v2119, %v2107
    %v3440 = vpack.c.b16 %v2120, %v2108
    %v3441 = vpack.c.b16 %v2121, %v2109
    %v3442 = vpack.c.b16 %v2122, %v2110
    %v3443 = vpack.c.b16 %v2123, %v2111
    %v3444 = vpack.c.b16 %v2124, %v2112
    %v3445 = vpack.c.b16 %v2125, %v2113
    %v3446 = vpack.c.b16 %v2126, %v2114
    %v3447 = vpack.c.b16 %v2127, %v2115
    %v3448 = vpack.c.b16 %v2128, %v2116
    %v3449 = vpack.c.b16 %v2129, %v2117
    %v3450 = vpack.c.b16 %v2130, %v2118
    %v3451 = vpack.c.b16 %v2143, %v2131
    %v3452 = vpack.c.b16 %v2144, %v2132
    %v3453 = vpack.c.b16 %v2145, %v2133
    %v3454 = vpack.c.b16 %v2146, %v2134
    %v3455 = vpack.c.b16 %v2147, %v2135
    %v3456 = vpack.c.b16 %v2148, %v2136
    %v3457 = vpack.c.b16 %v2149, %v2137
    %v3458 = vpack.c.b16 %v2150, %v2138
    %v3459 = vpack.c.b16 %v2151, %v2139
    %v3460 = vpack.c.b16 %v2152, %v2140
    %v3461 = vpack.c.b16 %v2153, %v2141
    %v3462 = vpack.c.b16 %v2154, %v2142
    %v3463 = vpack.c.b16 %v2167, %v2155
    %v3464 = vpack.c.b16 %v2168, %v2156
    %v3465 = vpack.c.b16 %v2169, %v2157
    %v3466 = vpack.c.b16 %v2170, %v2158
    %v3467 = vpack.c.b16 %v2171, %v2159
    %v3468 = vpack.c.b16 %v2172, %v2160
    %v3469 = vpack.c.b16 %v2173, %v2161
    %v3470 = vpack.c.b16 %v2174, %v2162
    %v3471 = vpack.c.b16 %v2175, %v2163
    %v3472 = vpack.c.b16 %v2176, %v2164
    %v3473 = vpack.c.b16 %v2177, %v2165
    %v3474 = vpack.c.b16 %v2178, %v2166
    %v3475 = vpack.c.b16 %v2191, %v2179
    %v3476 = vpack.c.b16 %v2192, %v2180
    %v3477 = vpack.c.b16 %v2193, %v2181
    %v3478 = vpack.c.b16 %v2194, %v2182
    %v3479 = vpack.c.b16 %v2195, %v2183
    %v3480 = vpack.c.b16 %v2196, %v2184
    %v3481 = vpack.c.b16 %v2197, %v2185
    %v3482 = vpack.c.b16 %v2198, %v2186
    %v3483 = vpack.c.b16 %v2199, %v2187
    %v3484 = vpack.c.b16 %v2200, %v2188
    %v3485 = vpack.c.b16 %v2201, %v2189
    %v3486 = vpack.c.b16 %v2202, %v2190
    %v3487 = vpack.c.b16 %v2215, %v2203
    %v3488 = vpack.c.b16 %v2216, %v2204
    %v3489 = vpack.c.b16 %v2217, %v2205
    %v3490 = vpack.c.b16 %v2218, %v2206
    %v3491 = vpack.c.b16 %v2219, %v2207
    %v3492 = vpack.c.b16 %v2220, %v2208
    %v3493 = vpack.c.b16 %v2221, %v2209
    %v3494 = vpack.c.b16 %v2222, %v2210
    %v3495 = vpack.c.b16 %v2223, %v2211
    %v3496 = vpack.c.b16 %v2224, %v2212
    %v3497 = vpack.c.b16 %v2225, %v2213
    %v3498 = vpack.c.b16 %v2226, %v2214
    %v3499 = vpack.c.b16 %v2239, %v2227
    %v3500 = vpack.c.b16 %v2240, %v2228
    %v3501 = vpack.c.b16 %v2241, %v2229
    %v3502 = vpack.c.b16 %v2242, %v2230
    %v3503 = vpack.c.b16 %v2243, %v2231
    %v3504 = vpack.c.b16 %v2244, %v2232
    %v3505 = vpack.c.b16 %v2245, %v2233
    %v3506 = vpack.c.b16 %v2246, %v2234
    %v3507 = vpack.c.b16 %v2247, %v2235
    %v3508 = vpack.c.b16 %v2248, %v2236
    %v3509 = vpack.c.b16 %v2249, %v2237
    %v3510 = vpack.c.b16 %v2250, %v2238
    %v3511 = vpack.c.b16 %v2263, %v2251
    %v3512 = vpack.c.b16 %v2264, %v2252
    %v3513 = vpack.c.b16 %v2265, %v2253
    %v3514 = vpack.c.b16 %v2266, %v2254
    %v3515 = vpack.c.b16 %v2267, %v2255
    %v3516 = vpack.c.b16 %v2268, %v2256
    %v3517 = vpack.c.b16 %v2269, %v2257
    %v3518 = vpack.c.b16 %v2270, %v2258
    %v3519 = vpack.c.b16 %v2271, %v2259
    %v3520 = vpack.c.b16 %v2272, %v2260
    %v3521 = vpack.c.b16 %v2273, %v2261
    %v3522 = vpack.c.b16 %v2274, %v2262
    %v3523 = vpack.c.b16 %v2287, %v2275
    %v3524 = vpack.c.b16 %v2288, %v2276
    %v3525 = vpack.c.b16 %v2289, %v2277
    %v3526 = vpack.c.b16 %v2290, %v2278
    %v3527 = vpack.c.b16 %v2291, %v2279
    %v3528 = vpack.c.b16 %v2292, %v2280
    %v3529 = vpack.c.b16 %v2293, %v2281
    %v3530 = vpack.c.b16 %v2294, %v2282
    %v3531 = vpack.c.b16 %v2295, %v2283
    %v3532 = vpack.c.b16 %v2296, %v2284
    %v3533 = vpack.c.b16 %v2297, %v2285
    %v3534 = vpack.c.b16 %v2298, %v2286
    %v3535 = vpack.c.b16 %v2311, %v2299
    %v3536 = vpack.c.b16 %v2312, %v2300
    %v3537 = vpack.c.b16 %v2313, %v2301
    %v3538 = vpack.c.b16 %v2314, %v2302
    %v3539 = vpack.c.b16 %v2315, %v2303
    %v3540 = vpack.c.b16 %v2316, %v2304
    %v3541 = vpack.c.b16 %v2317, %v2305
    %v3542 = vpack.c.b16 %v2318, %v2306
    %v3543 = vpack.c.b16 %v2319, %v2307
    %v3544 = vpack.c.b16 %v2320, %v2308
    %v3545 = vpack.c.b16 %v2321, %v2309
    %v3546 = vpack.c.b16 %v2322, %v2310
    %v3547 = vpack.c.b16 %v2335, %v2323
    %v3548 = vpack.c.b16 %v2336, %v2324
    %v3549 = vpack.c.b16 %v2337, %v2325
    %v3550 = vpack.c.b16 %v2338, %v2326
    %v3551 = vpack.c.b16 %v2339, %v2327
    %v3552 = vpack.c.b16 %v2340, %v2328
    %v3553 = vpack.c.b16 %v2341, %v2329
    %v3554 = vpack.c.b16 %v2342, %v2330
    %v3555 = vpack.c.b16 %v2343, %v2331
    %v3556 = vpack.c.b16 %v2344, %v2332
    %v3557 = vpack.c.b16 %v2345, %v2333
    %v3558 = vpack.c.b16 %v2346, %v2334
    %v3559 = vpack.c.b16 %v2359, %v2347
    %v3560 = vpack.c.b16 %v2360, %v2348
    %v3561 = vpack.c.b16 %v2361, %v2349
    %v3562 = vpack.c.b16 %v2362, %v2350
    %v3563 = vpack.c.b16 %v2363, %v2351
    %v3564 = vpack.c.b16 %v2364, %v2352
    %v3565 = vpack.c.b16 %v2365, %v2353
    %v3566 = vpack.c.b16 %v2366, %v2354
    %v3567 = vpack.c.b16 %v2367, %v2355
    %v3568 = vpack.c.b16 %v2368, %v2356
    %v3569 = vpack.c.b16 %v2369, %v2357
    %v3570 = vpack.c.b16 %v2370, %v2358
    %v3571 = vpack.c.b16 %v2383, %v2371
    %v3572 = vpack.c.b16 %v2384, %v2372
    %v3573 = vpack.c.b16 %v2385, %v2373
    %v3574 = vpack.c.b16 %v2386, %v2374
    %v3575 = vpack.c.b16 %v2387, %v2375
    %v3576 = vpack.c.b16 %v2388, %v2376
    %v3577 = vpack.c.b16 %v2389, %v2377
    %v3578 = vpack.c.b16 %v2390, %v2378
    %v3579 = vpack.c.b16 %v2391, %v2379
    %v3580 = vpack.c.b16 %v2392, %v2380
    %v3581 = vpack.c.b16 %v2393, %v2381
    %v3582 = vpack.c.b16 %v2394, %v2382
    %v3583 = vpack.c.b16 %v2407, %v2395
    %v3584 = vpack.c.b16 %v2408, %v2396
    %v3585 = vpack.c.b16 %v2409, %v2397
    %v3586 = vpack.c.b16 %v2410, %v2398
    %v3587 = vpack.c.b16 %v2411, %v2399
    %v3588 = vpack.c.b16 %v2412, %v2400
    %v3589 = vpack.c.b16 %v2413, %v2401
    %v3590 = vpack.c.b16 %v2414, %v2402
    %v3591 = vpack.c.b16 %v2415, %v2403
    %v3592 = vpack.c.b16 %v2416, %v2404
    %v3593 = vpack.c.b16 %v2417, %v2405
    %v3594 = vpack.c.b16 %v2418, %v2406
    %v3595 = vpack.c.b16 %v2431, %v2419
    %v3596 = vpack.c.b16 %v2432, %v2420
    %v3597 = vpack.c.b16 %v2433, %v2421
    %v3598 = vpack.c.b16 %v2434, %v2422
    %v3599 = vpack.c.b16 %v2435, %v2423
    %v3600 = vpack.c.b16 %v2436, %v2424
    %v3601 = vpack.c.b16 %v2437, %v2425
    %v3602 = vpack.c.b16 %v2438, %v2426
    %v3603 = vpack.c.b16 %v2439, %v2427
    %v3604 = vpack.c.b16 %v2440, %v2428
    %v3605 = vpack.c.b16 %v2441, %v2429
    %v3606 = vpack.c.b16 %v2442, %v2430
    %v3607 = vpack.c.b16 %v2455, %v2443
    %v3608 = vpack.c.b16 %v2456, %v2444
    %v3609 = vpack.c.b16 %v2457, %v2445
    %v3610 = vpack.c.b16 %v2458, %v2446
    %v3611 = vpack.c.b16 %v2459, %v2447
    %v3612 = vpack.c.b16 %v2460, %v2448
    %v3613 = vpack.c.b16 %v2461, %v2449
    %v3614 = vpack.c.b16 %v2462, %v2450
    %v3615 = vpack.c.b16 %v2463, %v2451
    %v3616 = vpack.c.b16 %v2464, %v2452
    %v3617 = vpack.c.b16 %v2465, %v2453
    %v3618 = vpack.c.b16 %v2466, %v2454
    %v3619 = vpack.c.b16 %v2479, %v2467
    %v3620 = vpack.c.b16 %v2480, %v2468
    %v3621 = vpack.c.b16 %v2481, %v2469
    %v3622 = vpack.c.b16 %v2482, %v2470
    %v3623 = vpack.c.b16 %v2483, %v2471
    %v3624 = vpack.c.b16 %v2484, %v2472
    %v3625 = vpack.c.b16 %v2485, %v2473
    %v3626 = vpack.c.b16 %v2486, %v2474
    %v3627 = vpack.c.b16 %v2487, %v2475
    %v3628 = vpack.c.b16 %v2488, %v2476
    %v3629 = vpack.c.b16 %v2489, %v2477
    %v3630 = vpack.c.b16 %v2490, %v2478
    %v3631 = vpack.c.b16 %v2503, %v2491
    %v3632 = vpack.c.b16 %v2504, %v2492
    %v3633 = vpack.c.b16 %v2505, %v2493
    %v3634 = vpack.c.b16 %v2506, %v2494
    %v3635 = vpack.c.b16 %v2507, %v2495
    %v3636 = vpack.c.b16 %v2508, %v2496
    %v3637 = vpack.c.b16 %v2509, %v2497
    %v3638 = vpack.c.b16 %v2510, %v2498
    %v3639 = vpack.c.b16 %v2511, %v2499
    %v3640 = vpack.c.b16 %v2512, %v2500
    %v3641 = vpack.c.b16 %v2513, %v2501
    %v3642 = vpack.c.b16 %v2514, %v2502
    %v3643 = vpack.c.b16 %v2527, %v2515
    %v3644 = vpack.c.b16 %v2528, %v2516
    %v3645 = vpack.c.b16 %v2529, %v2517
    %v3646 = vpack.c.b16 %v2530, %v2518
    %v3647 = vpack.c.b16 %v2531, %v2519
    %v3648 = vpack.c.b16 %v2532, %v2520
    %v3649 = vpack.c.b16 %v2533, %v2521
    %v3650 = vpack.c.b16 %v2534, %v2522
    %v3651 = vpack.c.b16 %v2535, %v2523
    %v3652 = vpack.c.b16 %v2536, %v2524
    %v3653 = vpack.c.b16 %v2537, %v2525
    %v3654 = vpack.c.b16 %v2538, %v2526
    %v3655 = vpack.c.b16 %v2551, %v2539
    %v3656 = vpack.c.b16 %v2552, %v2540
    %v3657 = vpack.c.b16 %v2553, %v2541
    %v3658 = vpack.c.b16 %v2554, %v2542
    %v3659 = vpack.c.b16 %v2555, %v2543
    %v3660 = vpack.c.b16 %v2556, %v2544
    %v3661 = vpack.c.b16 %v2557, %v2545
    %v3662 = vpack.c.b16 %v2558, %v2546
    %v3663 = vpack.c.b16 %v2559, %v2547
    %v3664 = vpack.c.b16 %v2560, %v2548
    %v3665 = vpack.c.b16 %v2561, %v2549
    %v3666 = vpack.c.b16 %v2562, %v2550
    %v3667 = vpack.c.b16 %v2575, %v2563
    %v3668 = vpack.c.b16 %v2576, %v2564
    %v3669 = vpack.c.b16 %v2577, %v2565
    %v3670 = vpack.c.b16 %v2578, %v2566
    %v3671 = vpack.c.b16 %v2579, %v2567
    %v3672 = vpack.c.b16 %v2580, %v2568
    %v3673 = vpack.c.b16 %v2581, %v2569
    %v3674 = vpack.c.b16 %v2582, %v2570
    %v3675 = vpack.c.b16 %v2583, %v2571
    %v3676 = vpack.c.b16 %v2584, %v2572
    %v3677 = vpack.c.b16 %v2585, %v2573
    %v3678 = vpack.c.b16 %v2586, %v2574
    %v3679 = vpack.c.b16 %v2599, %v2587
    %v3680 = vpack.c.b16 %v2600, %v2588
    %v3681 = vpack.c.b16 %v2601, %v2589
    %v3682 = vpack.c.b16 %v2602, %v2590
    %v3683 = vpack.c.b16 %v2603, %v2591
    %v3684 = vpack.c.b16 %v2604, %v2592
    %v3685 = vpack.c.b16 %v2605, %v2593
    %v3686 = vpack.c.b16 %v2606, %v2594
    %v3687 = vpack.c.b16 %v2607, %v2595
    %v3688 = vpack.c.b16 %v2608, %v2596
    %v3689 = vpack.c.b16 %v2609, %v2597
    %v3690 = vpack.c.b16 %v2610, %v2598
    %v3691 = vpack.c.b16 %v2623, %v2611
    %v3692 = vpack.c.b16 %v2624, %v2612
    %v3693 = vpack.c.b16 %v2625, %v2613
    %v3694 = vpack.c.b16 %v2626, %v2614
    %v3695 = vpack.c.b16 %v2627, %v2615
    %v3696 = vpack.c.b16 %v2628, %v2616
    %v3697 = vpack.c.b16 %v2629, %v2617
    %v3698 = vpack.c.b16 %v2630, %v2618
    %v3699 = vpack.c.b16 %v2631, %v2619
    %v3700 = vpack.c.b16 %v2632, %v2620
    %v3701 = vpack.c.b16 %v2633, %v2621
    %v3702 = vpack.c.b16 %v2634, %v2622
    %v3703 = vpack.c.b16 %v2647, %v2635
    %v3704 = vpack.c.b16 %v2648, %v2636
    %v3705 = vpack.c.b16 %v2649, %v2637
    %v3706 = vpack.c.b16 %v2650, %v2638
    %v3707 = vpack.c.b16 %v2651, %v2639
    %v3708 = vpack.c.b16 %v2652, %v2640
    %v3709 = vpack.c.b16 %v2653, %v2641
    %v3710 = vpack.c.b16 %v2654, %v2642
    %v3711 = vpack.c.b16 %v2655, %v2643
    %v3712 = vpack.c.b16 %v2656, %v2644
    %v3713 = vpack.c.b16 %v2657, %v2645
    %v3714 = vpack.c.b16 %v2658, %v2646
    %v3715 = vpack.c.b16 %v2671, %v2659
    %v3716 = vpack.c.b16 %v2672, %v2660
    %v3717 = vpack.c.b16 %v2673, %v2661
    %v3718 = vpack.c.b16 %v2674, %v2662
    %v3719 = vpack.c.b16 %v2675, %v2663
    %v3720 = vpack.c.b16 %v2676, %v2664
    %v3721 = vpack.c.b16 %v2677, %v2665
    %v3722 = vpack.c.b16 %v2678, %v2666
    %v3723 = vpack.c.b16 %v2679, %v2667
    %v3724 = vpack.c.b16 %v2680, %v2668
    %v3725 = vpack.c.b16 %v2681, %v2669
    %v3726 = vpack.c.b16 %v2682, %v2670
    %v3727 = vpack.c.b16 %v2695, %v2683
    %v3728 = vpack.c.b16 %v2696, %v2684
    %v3729 = vpack.c.b16 %v2697, %v2685
    %v3730 = vpack.c.b16 %v2698, %v2686
    %v3731 = vpack.c.b16 %v2699, %v2687
    %v3732 = vpack.c.b16 %v2700, %v2688
    %v3733 = vpack.c.b16 %v2701, %v2689
    %v3734 = vpack.c.b16 %v2702, %v2690
    %v3735 = vpack.c.b16 %v2703, %v2691
    %v3736 = vpack.c.b16 %v2704, %v2692
    %v3737 = vpack.c.b16 %v2705, %v2693
    %v3738 = vpack.c.b16 %v2706, %v2694
    %v3739 = vpack.c.b16 %v2719, %v2707
    %v3740 = vpack.c.b16 %v2720, %v2708
    %v3741 = vpack.c.b16 %v2721, %v2709
    %v3742 = vpack.c.b16 %v2722, %v2710
    %v3743 = vpack.c.b16 %v2723, %v2711
    %v3744 = vpack.c.b16 %v2724, %v2712
    %v3745 = vpack.c.b16 %v2725, %v2713
    %v3746 = vpack.c.b16 %v2726, %v2714
    %v3747 = vpack.c.b16 %v2727, %v2715
    %v3748 = vpack.c.b16 %v2728, %v2716
    %v3749 = vpack.c.b16 %v2729, %v2717
    %v3750 = vpack.c.b16 %v2730, %v2718
    %v3751 = vpack.c.b16 %v2743, %v2731
    %v3752 = vpack.c.b16 %v2744, %v2732
    %v3753 = vpack.c.b16 %v2745, %v2733
    %v3754 = vpack.c.b16 %v2746, %v2734
    %v3755 = vpack.c.b16 %v2747, %v2735
    %v3756 = vpack.c.b16 %v2748, %v2736
    %v3757 = vpack.c.b16 %v2749, %v2737
    %v3758 = vpack.c.b16 %v2750, %v2738
    %v3759 = vpack.c.b16 %v2751, %v2739
    %v3760 = vpack.c.b16 %v2752, %v2740
    %v3761 = vpack.c.b16 %v2753, %v2741
    %v3762 = vpack.c.b16 %v2754, %v2742
    %v3763 = vpack.c.b16 %v2767, %v2755
    %v3764 = vpack.c.b16 %v2768, %v2756
    %v3765 = vpack.c.b16 %v2769, %v2757
    %v3766 = vpack.c.b16 %v2770, %v2758
    %v3767 = vpack.c.b16 %v2771, %v2759
    %v3768 = vpack.c.b16 %v2772, %v2760
    %v3769 = vpack.c.b16 %v2773, %v2761
    %v3770 = vpack.c.b16 %v2774, %v2762
    %v3771 = vpack.c.b16 %v2775, %v2763
    %v3772 = vpack.c.b16 %v2776, %v2764
    %v3773 = vpack.c.b16 %v2777, %v2765
    %v3774 = vpack.c.b16 %v2778, %v2766
    %v3775 = vpack.c.b16 %v2791, %v2779
    %v3776 = vpack.c.b16 %v2792, %v2780
    %v3777 = vpack.c.b16 %v2793, %v2781
    %v3778 = vpack.c.b16 %v2794, %v2782
    %v3779 = vpack.c.b16 %v2795, %v2783
    %v3780 = vpack.c.b16 %v2796, %v2784
    %v3781 = vpack.c.b16 %v2797, %v2785
    %v3782 = vpack.c.b16 %v2798, %v2786
    %v3783 = vpack.c.b16 %v2799, %v2787
    %v3784 = vpack.c.b16 %v2800, %v2788
    %v3785 = vpack.c.b16 %v2801, %v2789
    %v3786 = vpack.c.b16 %v2802, %v2790
    %v3787 = vpack.c.b16 %v2815, %v2803
    %v3788 = vpack.c.b16 %v2816, %v2804
    %v3789 = vpack.c.b16 %v2817, %v2805
    %v3790 = vpack.c.b16 %v2818, %v2806
    %v3791 = vpack.c.b16 %v2819, %v2807
    %v3792 = vpack.c.b16 %v2820, %v2808
    %v3793 = vpack.c.b16 %v2821, %v2809
    %v3794 = vpack.c.b16 %v2822, %v2810
    %v3795 = vpack.c.b16 %v2823, %v2811
    %v3796 = vpack.c.b16 %v2824, %v2812
    %v3797 = vpack.c.b16 %v2825, %v2813
    %v3798 = vpack.c.b16 %v2826, %v2814
    %v3799 = vpack.c.b16 %v2839, %v2827
    %v3800 = vpack.c.b16 %v2840, %v2828
    %v3801 = vpack.c.b16 %v2841, %v2829
    %v3802 = vpack.c.b16 %v2842, %v2830
    %v3803 = vpack.c.b16 %v2843, %v2831
    %v3804 = vpack.c.b16 %v2844, %v2832
    %v3805 = vpack.c.b16 %v2845, %v2833
    %v3806 = vpack.c.b16 %v2846, %v2834
    %v3807 = vpack.c.b16 %v2847, %v2835
    %v3808 = vpack.c.b16 %v2848, %v2836
    %v3809 = vpack.c.b16 %v2849, %v2837
    %v3810 = vpack.c.b16 %v2850, %v2838
    %v3811 = vpack.c.b16 %v2863, %v2851
    %v3812 = vpack.c.b16 %v2864, %v2852
    %v3813 = vpack.c.b16 %v2865, %v2853
    %v3814 = vpack.c.b16 %v2866, %v2854
    %v3815 = vpack.c.b16 %v2867, %v2855
    %v3816 = vpack.c.b16 %v2868, %v2856
    %v3817 = vpack.c.b16 %v2869, %v2857
    %v3818 = vpack.c.b16 %v2870, %v2858
    %v3819 = vpack.c.b16 %v2871, %v2859
    %v3820 = vpack.c.b16 %v2872, %v2860
    %v3821 = vpack.c.b16 %v2873, %v2861
    %v3822 = vpack.c.b16 %v2874, %v2862
    %v3823 = vpack.c.b16 %v2887, %v2875
    %v3824 = vpack.c.b16 %v2888, %v2876
    %v3825 = vpack.c.b16 %v2889, %v2877
    %v3826 = vpack.c.b16 %v2890, %v2878
    %v3827 = vpack.c.b16 %v2891, %v2879
    %v3828 = vpack.c.b16 %v2892, %v2880
    %v3829 = vpack.c.b16 %v2893, %v2881
    %v3830 = vpack.c.b16 %v2894, %v2882
    %v3831 = vpack.c.b16 %v2895, %v2883
    %v3832 = vpack.c.b16 %v2896, %v2884
    %v3833 = vpack.c.b16 %v2897, %v2885
    %v3834 = vpack.c.b16 %v2898, %v2886
    %v3835 = vpack.c.b16 %v2911, %v2899
    %v3836 = vpack.c.b16 %v2912, %v2900
    %v3837 = vpack.c.b16 %v2913, %v2901
    %v3838 = vpack.c.b16 %v2914, %v2902
    %v3839 = vpack.c.b16 %v2915, %v2903
    %v3840 = vpack.c.b16 %v2916, %v2904
    %v3841 = vpack.c.b16 %v2917, %v2905
    %v3842 = vpack.c.b16 %v2918, %v2906
    %v3843 = vpack.c.b16 %v2919, %v2907
    %v3844 = vpack.c.b16 %v2920, %v2908
    %v3845 = vpack.c.b16 %v2921, %v2909
    %v3846 = vpack.c.b16 %v2922, %v2910
    %v3847 = vpack.c.b16 %v2935, %v2923
    %v3848 = vpack.c.b16 %v2936, %v2924
    %v3849 = vpack.c.b16 %v2937, %v2925
    %v3850 = vpack.c.b16 %v2938, %v2926
    %v3851 = vpack.c.b16 %v2939, %v2927
    %v3852 = vpack.c.b16 %v2940, %v2928
    %v3853 = vpack.c.b16 %v2941, %v2929
    %v3854 = vpack.c.b16 %v2942, %v2930
    %v3855 = vpack.c.b16 %v2943, %v2931
    %v3856 = vpack.c.b16 %v2944, %v2932
    %v3857 = vpack.c.b16 %v2945, %v2933
    %v3858 = vpack.c.b16 %v2946, %v2934
    %v3859 = vpack.c.b16 %v2959, %v2947
    %v3860 = vpack.c.b16 %v2960, %v2948
    %v3861 = vpack.c.b16 %v2961, %v2949
    %v3862 = vpack.c.b16 %v2962, %v2950
    %v3863 = vpack.c.b16 %v2963, %v2951
    %v3864 = vpack.c.b16 %v2964, %v2952
    %v3865 = vpack.c.b16 %v2965, %v2953
    %v3866 = vpack.c.b16 %v2966, %v2954
    %v3867 = vpack.c.b16 %v2967, %v2955
    %v3868 = vpack.c.b16 %v2968, %v2956
    %v3869 = vpack.c.b16 %v2969, %v2957
    %v3870 = vpack.c.b16 %v2970, %v2958
    %v3871 = vpack.c.b16 %v2983, %v2971
    %v3872 = vpack.c.b16 %v2984, %v2972
    %v3873 = vpack.c.b16 %v2985, %v2973
    %v3874 = vpack.c.b16 %v2986, %v2974
    %v3875 = vpack.c.b16 %v2987, %v2975
    %v3876 = vpack.c.b16 %v2988, %v2976
    %v3877 = vpack.c.b16 %v2989, %v2977
    %v3878 = vpack.c.b16 %v2990, %v2978
    %v3879 = vpack.c.b16 %v2991, %v2979
    %v3880 = vpack.c.b16 %v2992, %v2980
    %v3881 = vpack.c.b16 %v2993, %v2981
    %v3882 = vpack.c.b16 %v2994, %v2982
    %v3883 = vpack.c.b16 %v3007, %v2995
    %v3884 = vpack.c.b16 %v3008, %v2996
    %v3885 = vpack.c.b16 %v3009, %v2997
    %v3886 = vpack.c.b16 %v3010, %v2998
    %v3887 = vpack.c.b16 %v3011, %v2999
    %v3888 = vpack.c.b16 %v3012, %v3000
    %v3889 = vpack.c.b16 %v3013, %v3001
    %v3890 = vpack.c.b16 %v3014, %v3002
    %v3891 = vpack.c.b16 %v3015, %v3003
    %v3892 = vpack.c.b16 %v3016, %v3004
    %v3893 = vpack.c.b16 %v3017, %v3005
    %v3894 = vpack.c.b16 %v3018, %v3006
    %v3895 = vpack.c.b16 %v3031, %v3019
    %v3896 = vpack.c.b16 %v3032, %v3020
    %v3897 = vpack.c.b16 %v3033, %v3021
    %v3898 = vpack.c.b16 %v3034, %v3022
    %v3899 = vpack.c.b16 %v3035, %v3023
    %v3900 = vpack.c.b16 %v3036, %v3024
    %v3901 = vpack.c.b16 %v3037, %v3025
    %v3902 = vpack.c.b16 %v3038, %v3026
    %v3903 = vpack.c.b16 %v3039, %v3027
    %v3904 = vpack.c.b16 %v3040, %v3028
    %v3905 = vpack.c.b16 %v3041, %v3029
    %v3906 = vpack.c.b16 %v3042, %v3030
    %v3907 = vpack.c.b16 %v3055, %v3043
    %v3908 = vpack.c.b16 %v3056, %v3044
    %v3909 = vpack.c.b16 %v3057, %v3045
    %v3910 = vpack.c.b16 %v3058, %v3046
    %v3911 = vpack.c.b16 %v3059, %v3047
    %v3912 = vpack.c.b16 %v3060, %v3048
    %v3913 = vpack.c.b16 %v3061, %v3049
    %v3914 = vpack.c.b16 %v3062, %v3050
    %v3915 = vpack.c.b16 %v3063, %v3051
    %v3916 = vpack.c.b16 %v3064, %v3052
    %v3917 = vpack.c.b16 %v3065, %v3053
    %v3918 = vpack.c.b16 %v3066, %v3054
    %v3919 = vpack.c.b16 %v3079, %v3067
    %v3920 = vpack.c.b16 %v3080, %v3068
    %v3921 = vpack.c.b16 %v3081, %v3069
    %v3922 = vpack.c.b16 %v3082, %v3070
    %v3923 = vpack.c.b16 %v3083, %v3071
    %v3924 = vpack.c.b16 %v3084, %v3072
    %v3925 = vpack.c.b16 %v3085, %v3073
    %v3926 = vpack.c.b16 %v3086, %v3074
    %v3927 = vpack.c.b16 %v3087, %v3075
    %v3928 = vpack.c.b16 %v3088, %v3076
    %v3929 = vpack.c.b16 %v3089, %v3077
    %v3930 = vpack.c.b16 %v3090, %v3078
    %v3931 = vpack.c.b16 %v3103, %v3091
    %v3932 = vpack.c.b16 %v3104, %v3092
    %v3933 = vpack.c.b16 %v3105, %v3093
    %v3934 = vpack.c.b16 %v3106, %v3094
    %v3935 = vpack.c.b16 %v3107, %v3095
    %v3936 = vpack.c.b16 %v3108, %v3096
    %v3937 = vpack.c.b16 %v3109, %v3097
    %v3938 = vpack.c.b16 %v3110, %v3098
    %v3939 = vpack.c.b16 %v3111, %v3099
    %v3940 = vpack.c.b16 %v3112, %v3100
    %v3941 = vpack.c.b16 %v3113, %v3101
    %v3942 = vpack.c.b16 %v3114, %v3102
    %v3943 = vpack.c.b16 %v3127, %v3115
    %v3944 = vpack.c.b16 %v3128, %v3116
    %v3945 = vpack.c.b16 %v3129, %v3117
    %v3946 = vpack.c.b16 %v3130, %v3118
    %v3947 = vpack.c.b16 %v3131, %v3119
    %v3948 = vpack.c.b16 %v3132, %v3120
    %v3949 = vpack.c.b16 %v3133, %v3121
    %v3950 = vpack.c.b16 %v3134, %v3122
    %v3951 = vpack.c.b16 %v3135, %v3123
    %v3952 = vpack.c.b16 %v3136, %v3124
    %v3953 = vpack.c.b16 %v3137, %v3125
    %v3954 = vpack.c.b16 %v3138, %v3126
    %v3955 = vpack.c.b16 %v3151, %v3139
    %v3956 = vpack.c.b16 %v3152, %v3140
    %v3957 = vpack.c.b16 %v3153, %v3141
    %v3958 = vpack.c.b16 %v3154, %v3142
    %v3959 = vpack.c.b16 %v3155, %v3143
    %v3960 = vpack.c.b16 %v3156, %v3144
    %v3961 = vpack.c.b16 %v3157, %v3145
    %v3962 = vpack.c.b16 %v3158, %v3146
    %v3963 = vpack.c.b16 %v3159, %v3147
    %v3964 = vpack.c.b16 %v3160, %v3148
    %v3965 = vpack.c.b16 %v3161, %v3149
    %v3966 = vpack.c.b16 %v3162, %v3150
    %v3967 = vpack.c.b16 %v3175, %v3163
    %v3968 = vpack.c.b16 %v3176, %v3164
    %v3969 = vpack.c.b16 %v3177, %v3165
    %v3970 = vpack.c.b16 %v3178, %v3166
    %v3971 = vpack.c.b16 %v3179, %v3167
    %v3972 = vpack.c.b16 %v3180, %v3168
    %v3973 = vpack.c.b16 %v3181, %v3169
    %v3974 = vpack.c.b16 %v3182, %v3170
    %v3975 = vpack.c.b16 %v3183, %v3171
    %v3976 = vpack.c.b16 %v3184, %v3172
    %v3977 = vpack.c.b16 %v3185, %v3173
    %v3978 = vpack.c.b16 %v3186, %v3174
    %v3979 = vpack.c.b16 %v3199, %v3187
    %v3980 = vpack.c.b16 %v3200, %v3188
    %v3981 = vpack.c.b16 %v3201, %v3189
    %v3982 = vpack.c.b16 %v3202, %v3190
    %v3983 = vpack.c.b16 %v3203, %v3191
    %v3984 = vpack.c.b16 %v3204, %v3192
    %v3985 = vpack.c.b16 %v3205, %v3193
    %v3986 = vpack.c.b16 %v3206, %v3194
    %v3987 = vpack.c.b16 %v3207, %v3195
    %v3988 = vpack.c.b16 %v3208, %v3196
    %v3989 = vpack.c.b16 %v3209, %v3197
    %v3990 = vpack.c.b16 %v3210, %v3198
    %v3991 = vpack.c.b16 %v3223, %v3211
    %v3992 = vpack.c.b16 %v3224, %v3212
    %v3993 = vpack.c.b16 %v3225, %v3213
    %v3994 = vpack.c.b16 %v3226, %v3214
    %v3995 = vpack.c.b16 %v3227, %v3215
    %v3996 = vpack.c.b16 %v3228, %v3216
    %v3997 = vpack.c.b16 %v3229, %v3217
    %v3998 = vpack.c.b16 %v3230, %v3218
    %v3999 = vpack.c.b16 %v3231, %v3219
    %v4000 = vpack.c.b16 %v3232, %v3220
    %v4001 = vpack.c.b16 %v3233, %v3221
    %v4002 = vpack.c.b16 %v3234, %v3222
    %4771 = vmatprep.subr.bf16.mxu0 %v3236
    %4772 = vmatpush1.bf16.msra.mxu0 %v3235
    %4773 = vmatprep.subr.bf16.mxu0 %v3248
    %4774 = vmatpush1.bf16.msra.mxu0 %v3247
    %4775 = vmatprep.subr.bf16.mxu0 %v3260
    %4776 = vmatpush1.bf16.msra.mxu0 %v3259
    %4777 = vmatprep.subr.bf16.mxu0 %v3272
    %4778 = vmatpush1.bf16.msra.mxu0 %v3271
    %4779 = vmatprep.subr.bf16.mxu0 %v3284
    %4780 = vmatpush1.bf16.msra.mxu0 %v3283
    %4781 = vmatprep.subr.bf16.mxu0 %v3296
    %4782 = vmatpush1.bf16.msra.mxu0 %v3295
    %4783 = vmatprep.subr.bf16.mxu0 %v3308
    %4784 = vmatpush1.bf16.msra.mxu0 %v3307
    %4785 = vmatprep.subr.bf16.mxu0 %v3320
    %4786 = vmatpush1.bf16.msra.mxu0 %v3319
    %4787 = vmatprep.subr.bf16.mxu0 %v3332
    %4788 = vmatpush1.bf16.msra.mxu0 %v3331
    %4789 = vmatprep.subr.bf16.mxu0 %v3344
    %4790 = vmatpush1.bf16.msra.mxu0 %v3343
    %4791 = vmatprep.subr.bf16.mxu0 %v3356
    %4792 = vmatpush1.bf16.msra.mxu0 %v3355
    %4793 = vmatprep.subr.bf16.mxu0 %v3368
    %4794 = vmatpush1.bf16.msra.mxu0 %v3367
    %4795 = vmatprep.subr.bf16.mxu0 %v3380
    %4796 = vmatpush1.bf16.msra.mxu0 %v3379
    %4797 = vmatprep.subr.bf16.mxu0 %v3392
    %4798 = vmatpush1.bf16.msra.mxu0 %v3391
    %4799 = vmatprep.subr.bf16.mxu0 %v3404
    %4800 = vmatpush1.bf16.msra.mxu0 %v3403
    %4801 = vmatprep.subr.bf16.mxu0 %v3416
    %4802 = vmatpush1.bf16.msra.mxu0 %v3415
    %4803 = vmatprep.mubr.bf16.mxu0 %v911
    %4804 = vmatmul.mubr.bf16.gmra.mrb[0].mxu0 %v897
    %v4805 = vpop.f32.mrb[0].mxu0
    %v4806 = vadd.f32 %v816, %v4805
    %v4807 = vpop.f32.mrb[0].mxu0
    %v4808 = vadd.f32 %v820, %v4807
    %v4809 = vpop.f32.mrb[0].mxu0
    %v4810 = vpop.f32.mrb[0].mxu0
    %4811 = vdwg.mxu0
    %4812 = vmatprep.subr.bf16.mxu0 %v3428
    %4813 = vmatpush1.bf16.msra.mxu0 %v3427
    %4814 = vmatprep.subr.bf16.mxu0 %v3440
    %4815 = vmatpush1.bf16.msra.mxu0 %v3439
    %4816 = vmatprep.subr.bf16.mxu0 %v3452
    %4817 = vmatpush1.bf16.msra.mxu0 %v3451
    %4818 = vmatprep.subr.bf16.mxu0 %v3464
    %4819 = vmatpush1.bf16.msra.mxu0 %v3463
    %4820 = vmatprep.subr.bf16.mxu0 %v3476
    %4821 = vmatpush1.bf16.msra.mxu0 %v3475
    %4822 = vmatprep.subr.bf16.mxu0 %v3488
    %4823 = vmatpush1.bf16.msra.mxu0 %v3487
    %4824 = vmatprep.subr.bf16.mxu0 %v3500
    %4825 = vmatpush1.bf16.msra.mxu0 %v3499
    %4826 = vmatprep.subr.bf16.mxu0 %v3512
    %4827 = vmatpush1.bf16.msra.mxu0 %v3511
    %4828 = vmatprep.subr.bf16.mxu0 %v3524
    %4829 = vmatpush1.bf16.msra.mxu0 %v3523
    %4830 = vmatprep.subr.bf16.mxu0 %v3536
    %4831 = vmatpush1.bf16.msra.mxu0 %v3535
    %4832 = vmatprep.subr.bf16.mxu0 %v3548
    %4833 = vmatpush1.bf16.msra.mxu0 %v3547
    %4834 = vmatprep.subr.bf16.mxu0 %v3560
    %4835 = vmatpush1.bf16.msra.mxu0 %v3559
    %4836 = vmatprep.subr.bf16.mxu0 %v3572
    %4837 = vmatpush1.bf16.msra.mxu0 %v3571
    %4838 = vmatprep.subr.bf16.mxu0 %v3584
    %4839 = vmatpush1.bf16.msra.mxu0 %v3583
    %4840 = vmatprep.subr.bf16.mxu0 %v3596
    %4841 = vmatpush1.bf16.msra.mxu0 %v3595
    %4842 = vmatprep.subr.bf16.mxu0 %v3608
    %4843 = vmatpush1.bf16.msra.mxu0 %v3607
    %4844 = vmatprep.mubr.bf16.mxu0 %v921
    %4845 = vmatmul.mubr.bf16.gmra.mrb[0].mxu0 %v919
    %v4846 = vpop.f32.mrb[0].mxu0
    %v4847 = vadd.f32 %v4806, %v4846
    %v4848 = vpop.f32.mrb[0].mxu0
    %v4849 = vadd.f32 %v4808, %v4848
    %v4850 = vpop.f32.mrb[0].mxu0
    %v4851 = vpop.f32.mrb[0].mxu0
    %4852 = vdwg.mxu0
    %4853 = vmatprep.subr.bf16.mxu0 %v3620
    %4854 = vmatpush1.bf16.msra.mxu0 %v3619
    %4855 = vmatprep.subr.bf16.mxu0 %v3632
    %4856 = vmatpush1.bf16.msra.mxu0 %v3631
    %4857 = vmatprep.subr.bf16.mxu0 %v3644
    %4858 = vmatpush1.bf16.msra.mxu0 %v3643
    %4859 = vmatprep.subr.bf16.mxu0 %v3656
    %4860 = vmatpush1.bf16.msra.mxu0 %v3655
    %4861 = vmatprep.subr.bf16.mxu0 %v3668
    %4862 = vmatpush1.bf16.msra.mxu0 %v3667
    %4863 = vmatprep.subr.bf16.mxu0 %v3680
    %4864 = vmatpush1.bf16.msra.mxu0 %v3679
    %4865 = vmatprep.subr.bf16.mxu0 %v3692
    %4866 = vmatpush1.bf16.msra.mxu0 %v3691
    %4867 = vmatprep.subr.bf16.mxu0 %v3704
    %4868 = vmatpush1.bf16.msra.mxu0 %v3703
    %4869 = vmatprep.subr.bf16.mxu0 %v3716
    %4870 = vmatpush1.bf16.msra.mxu0 %v3715
    %4871 = vmatprep.subr.bf16.mxu0 %v3728
    %4872 = vmatpush1.bf16.msra.mxu0 %v3727
    %4873 = vmatprep.subr.bf16.mxu0 %v3740
    %4874 = vmatpush1.bf16.msra.mxu0 %v3739
    %4875 = vmatprep.subr.bf16.mxu0 %v3752
    %4876 = vmatpush1.bf16.msra.mxu0 %v3751
    %4877 = vmatprep.subr.bf16.mxu0 %v3764
    %4878 = vmatpush1.bf16.msra.mxu0 %v3763
    %4879 = vmatprep.subr.bf16.mxu0 %v3776
    %4880 = vmatpush1.bf16.msra.mxu0 %v3775
    %4881 = vmatprep.subr.bf16.mxu0 %v3788
    %4882 = vmatpush1.bf16.msra.mxu0 %v3787
    %4883 = vmatprep.subr.bf16.mxu0 %v3800
    %4884 = vmatpush1.bf16.msra.mxu0 %v3799
    %4885 = vmatprep.mubr.bf16.mxu0 %v918
    %4886 = vmatmul.mubr.bf16.gmra.mrb[0].mxu0 %v904
    %v4887 = vpop.f32.mrb[0].mxu0
    %v4888 = vadd.f32 %v4847, %v4887
    %v4889 = vpop.f32.mrb[0].mxu0
    %v4890 = vadd.f32 %v4849, %v4889
    %v4891 = vpop.f32.mrb[0].mxu0
    %v4892 = vpop.f32.mrb[0].mxu0
    %4893 = vdwg.mxu0
    %4894 = vmatprep.subr.bf16.mxu0 %v3812
    %4895 = vmatpush1.bf16.msra.mxu0 %v3811
    %4896 = vmatprep.subr.bf16.mxu0 %v3824
    %4897 = vmatpush1.bf16.msra.mxu0 %v3823
    %4898 = vmatprep.subr.bf16.mxu0 %v3836
    %4899 = vmatpush1.bf16.msra.mxu0 %v3835
    %4900 = vmatprep.subr.bf16.mxu0 %v3848
    %4901 = vmatpush1.bf16.msra.mxu0 %v3847
    %4902 = vmatprep.subr.bf16.mxu0 %v3860
    %4903 = vmatpush1.bf16.msra.mxu0 %v3859
    %4904 = vmatprep.subr.bf16.mxu0 %v3872
    %4905 = vmatpush1.bf16.msra.mxu0 %v3871
    %4906 = vmatprep.subr.bf16.mxu0 %v3884
    %4907 = vmatpush1.bf16.msra.mxu0 %v3883
    %4908 = vmatprep.subr.bf16.mxu0 %v3896
    %4909 = vmatpush1.bf16.msra.mxu0 %v3895
    %4910 = vmatprep.subr.bf16.mxu0 %v3908
    %4911 = vmatpush1.bf16.msra.mxu0 %v3907
    %4912 = vmatprep.subr.bf16.mxu0 %v3920
    %4913 = vmatpush1.bf16.msra.mxu0 %v3919
    %4914 = vmatprep.subr.bf16.mxu0 %v3932
    %4915 = vmatpush1.bf16.msra.mxu0 %v3931
    %4916 = vmatprep.subr.bf16.mxu0 %v3944
    %4917 = vmatpush1.bf16.msra.mxu0 %v3943
    %4918 = vmatprep.subr.bf16.mxu0 %v3956
    %4919 = vmatpush1.bf16.msra.mxu0 %v3955
    %4920 = vmatprep.subr.bf16.mxu0 %v3968
    %4921 = vmatpush1.bf16.msra.mxu0 %v3967
    %4922 = vmatprep.subr.bf16.mxu0 %v3980
    %4923 = vmatpush1.bf16.msra.mxu0 %v3979
    %4924 = vmatprep.subr.bf16.mxu0 %v3992
    %4925 = vmatpush1.bf16.msra.mxu0 %v3991
    %4926 = vmatprep.mubr.bf16.mxu0 %v922
    %4927 = vmatmul.mubr.bf16.gmra.mrb[0].mxu0 %v920
    %v4928 = vpop.f32.mrb[0].mxu0
    %v4929 = vadd.f32 %v4888, %v4928
    %v4930 = vpop.f32.mrb[0].mxu0
    %v4931 = vadd.f32 %v4890, %v4930
    %v4932 = vpop.f32.mrb[0].mxu0
    %v4933 = vpop.f32.mrb[0].mxu0
    %4934 = vdwg.mxu0
    %4935 = vmatprep.subr.bf16.mxu0 %v3238
    %4936 = vmatpush1.bf16.msra.mxu0 %v3237
    %4937 = vmatprep.subr.bf16.mxu0 %v3250
    %4938 = vmatpush1.bf16.msra.mxu0 %v3249
    %4939 = vmatprep.subr.bf16.mxu0 %v3262
    %4940 = vmatpush1.bf16.msra.mxu0 %v3261
    %4941 = vmatprep.subr.bf16.mxu0 %v3274
    %4942 = vmatpush1.bf16.msra.mxu0 %v3273
    %4943 = vmatprep.subr.bf16.mxu0 %v3286
    %4944 = vmatpush1.bf16.msra.mxu0 %v3285
    %4945 = vmatprep.subr.bf16.mxu0 %v3298
    %4946 = vmatpush1.bf16.msra.mxu0 %v3297
    %4947 = vmatprep.subr.bf16.mxu0 %v3310
    %4948 = vmatpush1.bf16.msra.mxu0 %v3309
    %4949 = vmatprep.subr.bf16.mxu0 %v3322
    %4950 = vmatpush1.bf16.msra.mxu0 %v3321
    %4951 = vmatprep.subr.bf16.mxu0 %v3334
    %4952 = vmatpush1.bf16.msra.mxu0 %v3333
    %4953 = vmatprep.subr.bf16.mxu0 %v3346
    %4954 = vmatpush1.bf16.msra.mxu0 %v3345
    %4955 = vmatprep.subr.bf16.mxu0 %v3358
    %4956 = vmatpush1.bf16.msra.mxu0 %v3357
    %4957 = vmatprep.subr.bf16.mxu0 %v3370
    %4958 = vmatpush1.bf16.msra.mxu0 %v3369
    %4959 = vmatprep.subr.bf16.mxu0 %v3382
    %4960 = vmatpush1.bf16.msra.mxu0 %v3381
    %4961 = vmatprep.subr.bf16.mxu0 %v3394
    %4962 = vmatpush1.bf16.msra.mxu0 %v3393
    %4963 = vmatprep.subr.bf16.mxu0 %v3406
    %4964 = vmatpush1.bf16.msra.mxu0 %v3405
    %4965 = vmatprep.subr.bf16.mxu0 %v3418
    %4966 = vmatpush1.bf16.msra.mxu0 %v3417
    %4967 = vmatprep.mubr.bf16.mxu0 %v911
    %4968 = vmatmul.mubr.bf16.gmra.mrb[0].mxu0 %v897
    %v4969 = vpop.f32.mrb[0].mxu0
    %v4970 = vadd.f32 %v824, %v4969
    %v4971 = vpop.f32.mrb[0].mxu0
    %v4972 = vadd.f32 %v828, %v4971
    %v4973 = vpop.f32.mrb[0].mxu0
    %v4974 = vpop.f32.mrb[0].mxu0
    %4975 = vdwg.mxu0
    %4976 = vmatprep.subr.bf16.mxu0 %v3430
    %4977 = vmatpush1.bf16.msra.mxu0 %v3429
    %4978 = vmatprep.subr.bf16.mxu0 %v3442
    %4979 = vmatpush1.bf16.msra.mxu0 %v3441
    %4980 = vmatprep.subr.bf16.mxu0 %v3454
    %4981 = vmatpush1.bf16.msra.mxu0 %v3453
    %4982 = vmatprep.subr.bf16.mxu0 %v3466
    %4983 = vmatpush1.bf16.msra.mxu0 %v3465
    %4984 = vmatprep.subr.bf16.mxu0 %v3478
    %4985 = vmatpush1.bf16.msra.mxu0 %v3477
    %4986 = vmatprep.subr.bf16.mxu0 %v3490
    %4987 = vmatpush1.bf16.msra.mxu0 %v3489
    %4988 = vmatprep.subr.bf16.mxu0 %v3502
    %4989 = vmatpush1.bf16.msra.mxu0 %v3501
    %4990 = vmatprep.subr.bf16.mxu0 %v3514
    %4991 = vmatpush1.bf16.msra.mxu0 %v3513
    %4992 = vmatprep.subr.bf16.mxu0 %v3526
    %4993 = vmatpush1.bf16.msra.mxu0 %v3525
    %4994 = vmatprep.subr.bf16.mxu0 %v3538
    %4995 = vmatpush1.bf16.msra.mxu0 %v3537
    %4996 = vmatprep.subr.bf16.mxu0 %v3550
    %4997 = vmatpush1.bf16.msra.mxu0 %v3549
    %4998 = vmatprep.subr.bf16.mxu0 %v3562
    %4999 = vmatpush1.bf16.msra.mxu0 %v3561
    %5000 = vmatprep.subr.bf16.mxu0 %v3574
    %5001 = vmatpush1.bf16.msra.mxu0 %v3573
    %5002 = vmatprep.subr.bf16.mxu0 %v3586
    %5003 = vmatpush1.bf16.msra.mxu0 %v3585
    %5004 = vmatprep.subr.bf16.mxu0 %v3598
    %5005 = vmatpush1.bf16.msra.mxu0 %v3597
    %5006 = vmatprep.subr.bf16.mxu0 %v3610
    %5007 = vmatpush1.bf16.msra.mxu0 %v3609
    %5008 = vmatprep.mubr.bf16.mxu0 %v921
    %5009 = vmatmul.mubr.bf16.gmra.mrb[0].mxu0 %v919
    %v5010 = vpop.f32.mrb[0].mxu0
    %v5011 = vadd.f32 %v4970, %v5010
    %v5012 = vpop.f32.mrb[0].mxu0
    %v5013 = vadd.f32 %v4972, %v5012
    %v5014 = vpop.f32.mrb[0].mxu0
    %v5015 = vpop.f32.mrb[0].mxu0
    %5016 = vdwg.mxu0
    %5017 = vmatprep.subr.bf16.mxu0 %v3622
    %5018 = vmatpush1.bf16.msra.mxu0 %v3621
    %5019 = vmatprep.subr.bf16.mxu0 %v3634
    %5020 = vmatpush1.bf16.msra.mxu0 %v3633
    %5021 = vmatprep.subr.bf16.mxu0 %v3646
    %5022 = vmatpush1.bf16.msra.mxu0 %v3645
    %5023 = vmatprep.subr.bf16.mxu0 %v3658
    %5024 = vmatpush1.bf16.msra.mxu0 %v3657
    %5025 = vmatprep.subr.bf16.mxu0 %v3670
    %5026 = vmatpush1.bf16.msra.mxu0 %v3669
    %5027 = vmatprep.subr.bf16.mxu0 %v3682
    %5028 = vmatpush1.bf16.msra.mxu0 %v3681
    %5029 = vmatprep.subr.bf16.mxu0 %v3694
    %5030 = vmatpush1.bf16.msra.mxu0 %v3693
    %5031 = vmatprep.subr.bf16.mxu0 %v3706
    %5032 = vmatpush1.bf16.msra.mxu0 %v3705
    %5033 = vmatprep.subr.bf16.mxu0 %v3718
    %5034 = vmatpush1.bf16.msra.mxu0 %v3717
    %5035 = vmatprep.subr.bf16.mxu0 %v3730
    %5036 = vmatpush1.bf16.msra.mxu0 %v3729
    %5037 = vmatprep.subr.bf16.mxu0 %v3742
    %5038 = vmatpush1.bf16.msra.mxu0 %v3741
    %5039 = vmatprep.subr.bf16.mxu0 %v3754
    %5040 = vmatpush1.bf16.msra.mxu0 %v3753
    %5041 = vmatprep.subr.bf16.mxu0 %v3766
    %5042 = vmatpush1.bf16.msra.mxu0 %v3765
    %5043 = vmatprep.subr.bf16.mxu0 %v3778
    %5044 = vmatpush1.bf16.msra.mxu0 %v3777
    %5045 = vmatprep.subr.bf16.mxu0 %v3790
    %5046 = vmatpush1.bf16.msra.mxu0 %v3789
    %5047 = vmatprep.subr.bf16.mxu0 %v3802
    %5048 = vmatpush1.bf16.msra.mxu0 %v3801
    %5049 = vmatprep.mubr.bf16.mxu0 %v918
    %5050 = vmatmul.mubr.bf16.gmra.mrb[0].mxu0 %v904
    %v5051 = vpop.f32.mrb[0].mxu0
    %v5052 = vadd.f32 %v5011, %v5051
    %v5053 = vpop.f32.mrb[0].mxu0
    %v5054 = vadd.f32 %v5013, %v5053
    %v5055 = vpop.f32.mrb[0].mxu0
    %v5056 = vpop.f32.mrb[0].mxu0
    %5057 = vdwg.mxu0
    %5058 = vmatprep.subr.bf16.mxu0 %v3814
    %5059 = vmatpush1.bf16.msra.mxu0 %v3813
    %5060 = vmatprep.subr.bf16.mxu0 %v3826
    %5061 = vmatpush1.bf16.msra.mxu0 %v3825
    %5062 = vmatprep.subr.bf16.mxu0 %v3838
    %5063 = vmatpush1.bf16.msra.mxu0 %v3837
    %5064 = vmatprep.subr.bf16.mxu0 %v3850
    %5065 = vmatpush1.bf16.msra.mxu0 %v3849
    %5066 = vmatprep.subr.bf16.mxu0 %v3862
    %5067 = vmatpush1.bf16.msra.mxu0 %v3861
    %5068 = vmatprep.subr.bf16.mxu0 %v3874
    %5069 = vmatpush1.bf16.msra.mxu0 %v3873
    %5070 = vmatprep.subr.bf16.mxu0 %v3886
    %5071 = vmatpush1.bf16.msra.mxu0 %v3885
    %5072 = vmatprep.subr.bf16.mxu0 %v3898
    %5073 = vmatpush1.bf16.msra.mxu0 %v3897
    %5074 = vmatprep.subr.bf16.mxu0 %v3910
    %5075 = vmatpush1.bf16.msra.mxu0 %v3909
    %5076 = vmatprep.subr.bf16.mxu0 %v3922
    %5077 = vmatpush1.bf16.msra.mxu0 %v3921
    %5078 = vmatprep.subr.bf16.mxu0 %v3934
    %5079 = vmatpush1.bf16.msra.mxu0 %v3933
    %5080 = vmatprep.subr.bf16.mxu0 %v3946
    %5081 = vmatpush1.bf16.msra.mxu0 %v3945
    %5082 = vmatprep.subr.bf16.mxu0 %v3958
    %5083 = vmatpush1.bf16.msra.mxu0 %v3957
    %5084 = vmatprep.subr.bf16.mxu0 %v3970
    %5085 = vmatpush1.bf16.msra.mxu0 %v3969
    %5086 = vmatprep.subr.bf16.mxu0 %v3982
    %5087 = vmatpush1.bf16.msra.mxu0 %v3981
    %5088 = vmatprep.subr.bf16.mxu0 %v3994
    %5089 = vmatpush1.bf16.msra.mxu0 %v3993
    %5090 = vmatprep.mubr.bf16.mxu0 %v922
    %5091 = vmatmul.mubr.bf16.gmra.mrb[0].mxu0 %v920
    %v5092 = vpop.f32.mrb[0].mxu0
    %v5093 = vadd.f32 %v5052, %v5092
    %v5094 = vpop.f32.mrb[0].mxu0
    %v5095 = vadd.f32 %v5054, %v5094
    %v5096 = vpop.f32.mrb[0].mxu0
    %v5097 = vpop.f32.mrb[0].mxu0
    %5098 = vdwg.mxu0
    %5099 = vmatprep.subr.bf16.mxu0 %v3240
    %5100 = vmatpush1.bf16.msra.mxu0 %v3239
    %5101 = vmatprep.subr.bf16.mxu0 %v3252
    %5102 = vmatpush1.bf16.msra.mxu0 %v3251
    %5103 = vmatprep.subr.bf16.mxu0 %v3264
    %5104 = vmatpush1.bf16.msra.mxu0 %v3263
    %5105 = vmatprep.subr.bf16.mxu0 %v3276
    %5106 = vmatpush1.bf16.msra.mxu0 %v3275
    %5107 = vmatprep.subr.bf16.mxu0 %v3288
    %5108 = vmatpush1.bf16.msra.mxu0 %v3287
    %5109 = vmatprep.subr.bf16.mxu0 %v3300
    %5110 = vmatpush1.bf16.msra.mxu0 %v3299
    %5111 = vmatprep.subr.bf16.mxu0 %v3312
    %5112 = vmatpush1.bf16.msra.mxu0 %v3311
    %5113 = vmatprep.subr.bf16.mxu0 %v3324
    %5114 = vmatpush1.bf16.msra.mxu0 %v3323
    %5115 = vmatprep.subr.bf16.mxu0 %v3336
    %5116 = vmatpush1.bf16.msra.mxu0 %v3335
    %5117 = vmatprep.subr.bf16.mxu0 %v3348
    %5118 = vmatpush1.bf16.msra.mxu0 %v3347
    %5119 = vmatprep.subr.bf16.mxu0 %v3360
    %5120 = vmatpush1.bf16.msra.mxu0 %v3359
    %5121 = vmatprep.subr.bf16.mxu0 %v3372
    %5122 = vmatpush1.bf16.msra.mxu0 %v3371
    %5123 = vmatprep.subr.bf16.mxu0 %v3384
    %5124 = vmatpush1.bf16.msra.mxu0 %v3383
    %5125 = vmatprep.subr.bf16.mxu0 %v3396
    %5126 = vmatpush1.bf16.msra.mxu0 %v3395
    %5127 = vmatprep.subr.bf16.mxu0 %v3408
    %5128 = vmatpush1.bf16.msra.mxu0 %v3407
    %5129 = vmatprep.subr.bf16.mxu0 %v3420
    %5130 = vmatpush1.bf16.msra.mxu0 %v3419
    %5131 = vmatprep.mubr.bf16.mxu0 %v911
    %5132 = vmatmul.mubr.bf16.gmra.mrb[0].mxu0 %v897
    %v5133 = vpop.f32.mrb[0].mxu0
    %v5134 = vadd.f32 %v832, %v5133
    %v5135 = vpop.f32.mrb[0].mxu0
    %v5136 = vadd.f32 %v836, %v5135
    %v5137 = vpop.f32.mrb[0].mxu0
    %v5138 = vpop.f32.mrb[0].mxu0
    %5139 = vdwg.mxu0
    %5140 = vmatprep.subr.bf16.mxu0 %v3432
    %5141 = vmatpush1.bf16.msra.mxu0 %v3431
    %5142 = vmatprep.subr.bf16.mxu0 %v3444
    %5143 = vmatpush1.bf16.msra.mxu0 %v3443
    %5144 = vmatprep.subr.bf16.mxu0 %v3456
    %5145 = vmatpush1.bf16.msra.mxu0 %v3455
    %5146 = vmatprep.subr.bf16.mxu0 %v3468
    %5147 = vmatpush1.bf16.msra.mxu0 %v3467
    %5148 = vmatprep.subr.bf16.mxu0 %v3480
    %5149 = vmatpush1.bf16.msra.mxu0 %v3479
    %5150 = vmatprep.subr.bf16.mxu0 %v3492
    %5151 = vmatpush1.bf16.msra.mxu0 %v3491
    %5152 = vmatprep.subr.bf16.mxu0 %v3504
    %5153 = vmatpush1.bf16.msra.mxu0 %v3503
    %5154 = vmatprep.subr.bf16.mxu0 %v3516
    %5155 = vmatpush1.bf16.msra.mxu0 %v3515
    %5156 = vmatprep.subr.bf16.mxu0 %v3528
    %5157 = vmatpush1.bf16.msra.mxu0 %v3527
    %5158 = vmatprep.subr.bf16.mxu0 %v3540
    %5159 = vmatpush1.bf16.msra.mxu0 %v3539
    %5160 = vmatprep.subr.bf16.mxu0 %v3552
    %5161 = vmatpush1.bf16.msra.mxu0 %v3551
    %5162 = vmatprep.subr.bf16.mxu0 %v3564
    %5163 = vmatpush1.bf16.msra.mxu0 %v3563
    %5164 = vmatprep.subr.bf16.mxu0 %v3576
    %5165 = vmatpush1.bf16.msra.mxu0 %v3575
    %5166 = vmatprep.subr.bf16.mxu0 %v3588
    %5167 = vmatpush1.bf16.msra.mxu0 %v3587
    %5168 = vmatprep.subr.bf16.mxu0 %v3600
    %5169 = vmatpush1.bf16.msra.mxu0 %v3599
    %5170 = vmatprep.subr.bf16.mxu0 %v3612
    %5171 = vmatpush1.bf16.msra.mxu0 %v3611
    %5172 = vmatprep.mubr.bf16.mxu0 %v921
    %5173 = vmatmul.mubr.bf16.gmra.mrb[0].mxu0 %v919
    %v5174 = vpop.f32.mrb[0].mxu0
    %v5175 = vadd.f32 %v5134, %v5174
    %v5176 = vpop.f32.mrb[0].mxu0
    %v5177 = vadd.f32 %v5136, %v5176
    %v5178 = vpop.f32.mrb[0].mxu0
    %v5179 = vpop.f32.mrb[0].mxu0
    %5180 = vdwg.mxu0
    %5181 = vmatprep.subr.bf16.mxu0 %v3624
    %5182 = vmatpush1.bf16.msra.mxu0 %v3623
    %5183 = vmatprep.subr.bf16.mxu0 %v3636
    %5184 = vmatpush1.bf16.msra.mxu0 %v3635
    %5185 = vmatprep.subr.bf16.mxu0 %v3648
    %5186 = vmatpush1.bf16.msra.mxu0 %v3647
    %5187 = vmatprep.subr.bf16.mxu0 %v3660
    %5188 = vmatpush1.bf16.msra.mxu0 %v3659
    %5189 = vmatprep.subr.bf16.mxu0 %v3672
    %5190 = vmatpush1.bf16.msra.mxu0 %v3671
    %5191 = vmatprep.subr.bf16.mxu0 %v3684
    %5192 = vmatpush1.bf16.msra.mxu0 %v3683
    %5193 = vmatprep.subr.bf16.mxu0 %v3696
    %5194 = vmatpush1.bf16.msra.mxu0 %v3695
    %5195 = vmatprep.subr.bf16.mxu0 %v3708
    %5196 = vmatpush1.bf16.msra.mxu0 %v3707
    %5197 = vmatprep.subr.bf16.mxu0 %v3720
    %5198 = vmatpush1.bf16.msra.mxu0 %v3719
    %5199 = vmatprep.subr.bf16.mxu0 %v3732
    %5200 = vmatpush1.bf16.msra.mxu0 %v3731
    %5201 = vmatprep.subr.bf16.mxu0 %v3744
    %5202 = vmatpush1.bf16.msra.mxu0 %v3743
    %5203 = vmatprep.subr.bf16.mxu0 %v3756
    %5204 = vmatpush1.bf16.msra.mxu0 %v3755
    %5205 = vmatprep.subr.bf16.mxu0 %v3768
    %5206 = vmatpush1.bf16.msra.mxu0 %v3767
    %5207 = vmatprep.subr.bf16.mxu0 %v3780
    %5208 = vmatpush1.bf16.msra.mxu0 %v3779
    %5209 = vmatprep.subr.bf16.mxu0 %v3792
    %5210 = vmatpush1.bf16.msra.mxu0 %v3791
    %5211 = vmatprep.subr.bf16.mxu0 %v3804
    %5212 = vmatpush1.bf16.msra.mxu0 %v3803
    %5213 = vmatprep.mubr.bf16.mxu0 %v918
    %5214 = vmatmul.mubr.bf16.gmra.mrb[0].mxu0 %v904
    %v5215 = vpop.f32.mrb[0].mxu0
    %v5216 = vadd.f32 %v5175, %v5215
    %v5217 = vpop.f32.mrb[0].mxu0
    %v5218 = vadd.f32 %v5177, %v5217
    %v5219 = vpop.f32.mrb[0].mxu0
    %v5220 = vpop.f32.mrb[0].mxu0
    %5221 = vdwg.mxu0
    %5222 = vmatprep.subr.bf16.mxu0 %v3816
    %5223 = vmatpush1.bf16.msra.mxu0 %v3815
    %5224 = vmatprep.subr.bf16.mxu0 %v3828
    %5225 = vmatpush1.bf16.msra.mxu0 %v3827
    %5226 = vmatprep.subr.bf16.mxu0 %v3840
    %5227 = vmatpush1.bf16.msra.mxu0 %v3839
    %5228 = vmatprep.subr.bf16.mxu0 %v3852
    %5229 = vmatpush1.bf16.msra.mxu0 %v3851
    %5230 = vmatprep.subr.bf16.mxu0 %v3864
    %5231 = vmatpush1.bf16.msra.mxu0 %v3863
    %5232 = vmatprep.subr.bf16.mxu0 %v3876
    %5233 = vmatpush1.bf16.msra.mxu0 %v3875
    %5234 = vmatprep.subr.bf16.mxu0 %v3888
    %5235 = vmatpush1.bf16.msra.mxu0 %v3887
    %5236 = vmatprep.subr.bf16.mxu0 %v3900
    %5237 = vmatpush1.bf16.msra.mxu0 %v3899
    %5238 = vmatprep.subr.bf16.mxu0 %v3912
    %5239 = vmatpush1.bf16.msra.mxu0 %v3911
    %5240 = vmatprep.subr.bf16.mxu0 %v3924
    %5241 = vmatpush1.bf16.msra.mxu0 %v3923
    %5242 = vmatprep.subr.bf16.mxu0 %v3936
    %5243 = vmatpush1.bf16.msra.mxu0 %v3935
    %5244 = vmatprep.subr.bf16.mxu0 %v3948
    %5245 = vmatpush1.bf16.msra.mxu0 %v3947
    %5246 = vmatprep.subr.bf16.mxu0 %v3960
    %5247 = vmatpush1.bf16.msra.mxu0 %v3959
    %5248 = vmatprep.subr.bf16.mxu0 %v3972
    %5249 = vmatpush1.bf16.msra.mxu0 %v3971
    %5250 = vmatprep.subr.bf16.mxu0 %v3984
    %5251 = vmatpush1.bf16.msra.mxu0 %v3983
    %5252 = vmatprep.subr.bf16.mxu0 %v3996
    %5253 = vmatpush1.bf16.msra.mxu0 %v3995
    %5254 = vmatprep.mubr.bf16.mxu0 %v922
    %5255 = vmatmul.mubr.bf16.gmra.mrb[0].mxu0 %v920
    %v5256 = vpop.f32.mrb[0].mxu0
    %v5257 = vadd.f32 %v5216, %v5256
    %v5258 = vpop.f32.mrb[0].mxu0
    %v5259 = vadd.f32 %v5218, %v5258
    %v5260 = vpop.f32.mrb[0].mxu0
    %v5261 = vpop.f32.mrb[0].mxu0
    %5262 = vdwg.mxu0
    %5263 = vmatprep.subr.bf16.mxu0 %v3242
    %5264 = vmatpush1.bf16.msra.mxu0 %v3241
    %5265 = vmatprep.subr.bf16.mxu0 %v3254
    %5266 = vmatpush1.bf16.msra.mxu0 %v3253
    %5267 = vmatprep.subr.bf16.mxu0 %v3266
    %5268 = vmatpush1.bf16.msra.mxu0 %v3265
    %5269 = vmatprep.subr.bf16.mxu0 %v3278
    %5270 = vmatpush1.bf16.msra.mxu0 %v3277
    %5271 = vmatprep.subr.bf16.mxu0 %v3290
    %5272 = vmatpush1.bf16.msra.mxu0 %v3289
    %5273 = vmatprep.subr.bf16.mxu0 %v3302
    %5274 = vmatpush1.bf16.msra.mxu0 %v3301
    %5275 = vmatprep.subr.bf16.mxu0 %v3314
    %5276 = vmatpush1.bf16.msra.mxu0 %v3313
    %5277 = vmatprep.subr.bf16.mxu0 %v3326
    %5278 = vmatpush1.bf16.msra.mxu0 %v3325
    %5279 = vmatprep.subr.bf16.mxu0 %v3338
    %5280 = vmatpush1.bf16.msra.mxu0 %v3337
    %5281 = vmatprep.subr.bf16.mxu0 %v3350
    %5282 = vmatpush1.bf16.msra.mxu0 %v3349
    %5283 = vmatprep.subr.bf16.mxu0 %v3362
    %5284 = vmatpush1.bf16.msra.mxu0 %v3361
    %5285 = vmatprep.subr.bf16.mxu0 %v3374
    %5286 = vmatpush1.bf16.msra.mxu0 %v3373
    %5287 = vmatprep.subr.bf16.mxu0 %v3386
    %5288 = vmatpush1.bf16.msra.mxu0 %v3385
    %5289 = vmatprep.subr.bf16.mxu0 %v3398
    %5290 = vmatpush1.bf16.msra.mxu0 %v3397
    %5291 = vmatprep.subr.bf16.mxu0 %v3410
    %5292 = vmatpush1.bf16.msra.mxu0 %v3409
    %5293 = vmatprep.subr.bf16.mxu0 %v3422
    %5294 = vmatpush1.bf16.msra.mxu0 %v3421
    %5295 = vmatprep.mubr.bf16.mxu0 %v911
    %5296 = vmatmul.mubr.bf16.gmra.mrb[0].mxu0 %v897
    %v5297 = vpop.f32.mrb[0].mxu0
    %v5298 = vadd.f32 %v840, %v5297
    %v5299 = vpop.f32.mrb[0].mxu0
    %v5300 = vadd.f32 %v844, %v5299
    %v5301 = vpop.f32.mrb[0].mxu0
    %v5302 = vpop.f32.mrb[0].mxu0
    %5303 = vdwg.mxu0
    %5304 = vmatprep.subr.bf16.mxu0 %v3434
    %5305 = vmatpush1.bf16.msra.mxu0 %v3433
    %5306 = vmatprep.subr.bf16.mxu0 %v3446
    %5307 = vmatpush1.bf16.msra.mxu0 %v3445
    %5308 = vmatprep.subr.bf16.mxu0 %v3458
    %5309 = vmatpush1.bf16.msra.mxu0 %v3457
    %5310 = vmatprep.subr.bf16.mxu0 %v3470
    %5311 = vmatpush1.bf16.msra.mxu0 %v3469
    %5312 = vmatprep.subr.bf16.mxu0 %v3482
    %5313 = vmatpush1.bf16.msra.mxu0 %v3481
    %5314 = vmatprep.subr.bf16.mxu0 %v3494
    %5315 = vmatpush1.bf16.msra.mxu0 %v3493
    %5316 = vmatprep.subr.bf16.mxu0 %v3506
    %5317 = vmatpush1.bf16.msra.mxu0 %v3505
    %5318 = vmatprep.subr.bf16.mxu0 %v3518
    %5319 = vmatpush1.bf16.msra.mxu0 %v3517
    %5320 = vmatprep.subr.bf16.mxu0 %v3530
    %5321 = vmatpush1.bf16.msra.mxu0 %v3529
    %5322 = vmatprep.subr.bf16.mxu0 %v3542
    %5323 = vmatpush1.bf16.msra.mxu0 %v3541
    %5324 = vmatprep.subr.bf16.mxu0 %v3554
    %5325 = vmatpush1.bf16.msra.mxu0 %v3553
    %5326 = vmatprep.subr.bf16.mxu0 %v3566
    %5327 = vmatpush1.bf16.msra.mxu0 %v3565
    %5328 = vmatprep.subr.bf16.mxu0 %v3578
    %5329 = vmatpush1.bf16.msra.mxu0 %v3577
    %5330 = vmatprep.subr.bf16.mxu0 %v3590
    %5331 = vmatpush1.bf16.msra.mxu0 %v3589
    %5332 = vmatprep.subr.bf16.mxu0 %v3602
    %5333 = vmatpush1.bf16.msra.mxu0 %v3601
    %5334 = vmatprep.subr.bf16.mxu0 %v3614
    %5335 = vmatpush1.bf16.msra.mxu0 %v3613
    %5336 = vmatprep.mubr.bf16.mxu0 %v921
    %5337 = vmatmul.mubr.bf16.gmra.mrb[0].mxu0 %v919
    %v5338 = vpop.f32.mrb[0].mxu0
    %v5339 = vadd.f32 %v5298, %v5338
    %v5340 = vpop.f32.mrb[0].mxu0
    %v5341 = vadd.f32 %v5300, %v5340
    %v5342 = vpop.f32.mrb[0].mxu0
    %v5343 = vpop.f32.mrb[0].mxu0
    %5344 = vdwg.mxu0
    %5345 = vmatprep.subr.bf16.mxu0 %v3626
    %5346 = vmatpush1.bf16.msra.mxu0 %v3625
    %5347 = vmatprep.subr.bf16.mxu0 %v3638
    %5348 = vmatpush1.bf16.msra.mxu0 %v3637
    %5349 = vmatprep.subr.bf16.mxu0 %v3650
    %5350 = vmatpush1.bf16.msra.mxu0 %v3649
    %5351 = vmatprep.subr.bf16.mxu0 %v3662
    %5352 = vmatpush1.bf16.msra.mxu0 %v3661
    %5353 = vmatprep.subr.bf16.mxu0 %v3674
    %5354 = vmatpush1.bf16.msra.mxu0 %v3673
    %5355 = vmatprep.subr.bf16.mxu0 %v3686
    %5356 = vmatpush1.bf16.msra.mxu0 %v3685
    %5357 = vmatprep.subr.bf16.mxu0 %v3698
    %5358 = vmatpush1.bf16.msra.mxu0 %v3697
    %5359 = vmatprep.subr.bf16.mxu0 %v3710
    %5360 = vmatpush1.bf16.msra.mxu0 %v3709
    %5361 = vmatprep.subr.bf16.mxu0 %v3722
    %5362 = vmatpush1.bf16.msra.mxu0 %v3721
    %5363 = vmatprep.subr.bf16.mxu0 %v3734
    %5364 = vmatpush1.bf16.msra.mxu0 %v3733
    %5365 = vmatprep.subr.bf16.mxu0 %v3746
    %5366 = vmatpush1.bf16.msra.mxu0 %v3745
    %5367 = vmatprep.subr.bf16.mxu0 %v3758
    %5368 = vmatpush1.bf16.msra.mxu0 %v3757
    %5369 = vmatprep.subr.bf16.mxu0 %v3770
    %5370 = vmatpush1.bf16.msra.mxu0 %v3769
    %5371 = vmatprep.subr.bf16.mxu0 %v3782
    %5372 = vmatpush1.bf16.msra.mxu0 %v3781
    %5373 = vmatprep.subr.bf16.mxu0 %v3794
    %5374 = vmatpush1.bf16.msra.mxu0 %v3793
    %5375 = vmatprep.subr.bf16.mxu0 %v3806
    %5376 = vmatpush1.bf16.msra.mxu0 %v3805
    %5377 = vmatprep.mubr.bf16.mxu0 %v918
    %5378 = vmatmul.mubr.bf16.gmra.mrb[0].mxu0 %v904
    %v5379 = vpop.f32.mrb[0].mxu0
    %v5380 = vadd.f32 %v5339, %v5379
    %v5381 = vpop.f32.mrb[0].mxu0
    %v5382 = vadd.f32 %v5341, %v5381
    %v5383 = vpop.f32.mrb[0].mxu0
    %v5384 = vpop.f32.mrb[0].mxu0
    %5385 = vdwg.mxu0
    %5386 = vmatprep.subr.bf16.mxu0 %v3818
    %5387 = vmatpush1.bf16.msra.mxu0 %v3817
    %5388 = vmatprep.subr.bf16.mxu0 %v3830
    %5389 = vmatpush1.bf16.msra.mxu0 %v3829
    %5390 = vmatprep.subr.bf16.mxu0 %v3842
    %5391 = vmatpush1.bf16.msra.mxu0 %v3841
    %5392 = vmatprep.subr.bf16.mxu0 %v3854
    %5393 = vmatpush1.bf16.msra.mxu0 %v3853
    %5394 = vmatprep.subr.bf16.mxu0 %v3866
    %5395 = vmatpush1.bf16.msra.mxu0 %v3865
    %5396 = vmatprep.subr.bf16.mxu0 %v3878
    %5397 = vmatpush1.bf16.msra.mxu0 %v3877
    %5398 = vmatprep.subr.bf16.mxu0 %v3890
    %5399 = vmatpush1.bf16.msra.mxu0 %v3889
    %5400 = vmatprep.subr.bf16.mxu0 %v3902
    %5401 = vmatpush1.bf16.msra.mxu0 %v3901
    %5402 = vmatprep.subr.bf16.mxu0 %v3914
    %5403 = vmatpush1.bf16.msra.mxu0 %v3913
    %5404 = vmatprep.subr.bf16.mxu0 %v3926
    %5405 = vmatpush1.bf16.msra.mxu0 %v3925
    %5406 = vmatprep.subr.bf16.mxu0 %v3938
    %5407 = vmatpush1.bf16.msra.mxu0 %v3937
    %5408 = vmatprep.subr.bf16.mxu0 %v3950
    %5409 = vmatpush1.bf16.msra.mxu0 %v3949
    %5410 = vmatprep.subr.bf16.mxu0 %v3962
    %5411 = vmatpush1.bf16.msra.mxu0 %v3961
    %5412 = vmatprep.subr.bf16.mxu0 %v3974
    %5413 = vmatpush1.bf16.msra.mxu0 %v3973
    %5414 = vmatprep.subr.bf16.mxu0 %v3986
    %5415 = vmatpush1.bf16.msra.mxu0 %v3985
    %5416 = vmatprep.subr.bf16.mxu0 %v3998
    %5417 = vmatpush1.bf16.msra.mxu0 %v3997
    %5418 = vmatprep.mubr.bf16.mxu0 %v922
    %5419 = vmatmul.mubr.bf16.gmra.mrb[0].mxu0 %v920
    %v5420 = vpop.f32.mrb[0].mxu0
    %v5421 = vadd.f32 %v5380, %v5420
    %v5422 = vpop.f32.mrb[0].mxu0
    %v5423 = vadd.f32 %v5382, %v5422
    %v5424 = vpop.f32.mrb[0].mxu0
    %v5425 = vpop.f32.mrb[0].mxu0
    %5426 = vdwg.mxu0
    %5427 = vmatprep.subr.bf16.mxu0 %v3244
    %5428 = vmatpush1.bf16.msra.mxu0 %v3243
    %5429 = vmatprep.subr.bf16.mxu0 %v3256
    %5430 = vmatpush1.bf16.msra.mxu0 %v3255
    %5431 = vmatprep.subr.bf16.mxu0 %v3268
    %5432 = vmatpush1.bf16.msra.mxu0 %v3267
    %5433 = vmatprep.subr.bf16.mxu0 %v3280
    %5434 = vmatpush1.bf16.msra.mxu0 %v3279
    %5435 = vmatprep.subr.bf16.mxu0 %v3292
    %5436 = vmatpush1.bf16.msra.mxu0 %v3291
    %5437 = vmatprep.subr.bf16.mxu0 %v3304
    %5438 = vmatpush1.bf16.msra.mxu0 %v3303
    %5439 = vmatprep.subr.bf16.mxu0 %v3316
    %5440 = vmatpush1.bf16.msra.mxu0 %v3315
    %5441 = vmatprep.subr.bf16.mxu0 %v3328
    %5442 = vmatpush1.bf16.msra.mxu0 %v3327
    %5443 = vmatprep.subr.bf16.mxu0 %v3340
    %5444 = vmatpush1.bf16.msra.mxu0 %v3339
    %5445 = vmatprep.subr.bf16.mxu0 %v3352
    %5446 = vmatpush1.bf16.msra.mxu0 %v3351
    %5447 = vmatprep.subr.bf16.mxu0 %v3364
    %5448 = vmatpush1.bf16.msra.mxu0 %v3363
    %5449 = vmatprep.subr.bf16.mxu0 %v3376
    %5450 = vmatpush1.bf16.msra.mxu0 %v3375
    %5451 = vmatprep.subr.bf16.mxu0 %v3388
    %5452 = vmatpush1.bf16.msra.mxu0 %v3387
    %5453 = vmatprep.subr.bf16.mxu0 %v3400
    %5454 = vmatpush1.bf16.msra.mxu0 %v3399
    %5455 = vmatprep.subr.bf16.mxu0 %v3412
    %5456 = vmatpush1.bf16.msra.mxu0 %v3411
    %5457 = vmatprep.subr.bf16.mxu0 %v3424
    %5458 = vmatpush1.bf16.msra.mxu0 %v3423
    %5459 = vmatprep.mubr.bf16.mxu0 %v911
    %5460 = vmatmul.mubr.bf16.gmra.mrb[0].mxu0 %v897
    %v5461 = vpop.f32.mrb[0].mxu0
    %v5462 = vadd.f32 %v848, %v5461
    %v5463 = vpop.f32.mrb[0].mxu0
    %v5464 = vadd.f32 %v852, %v5463
    %v5465 = vpop.f32.mrb[0].mxu0
    %v5466 = vpop.f32.mrb[0].mxu0
    %5467 = vdwg.mxu0
    %5468 = vmatprep.subr.bf16.mxu0 %v3436
    %5469 = vmatpush1.bf16.msra.mxu0 %v3435
    %5470 = vmatprep.subr.bf16.mxu0 %v3448
    %5471 = vmatpush1.bf16.msra.mxu0 %v3447
    %5472 = vmatprep.subr.bf16.mxu0 %v3460
    %5473 = vmatpush1.bf16.msra.mxu0 %v3459
    %5474 = vmatprep.subr.bf16.mxu0 %v3472
    %5475 = vmatpush1.bf16.msra.mxu0 %v3471
    %5476 = vmatprep.subr.bf16.mxu0 %v3484
    %5477 = vmatpush1.bf16.msra.mxu0 %v3483
    %5478 = vmatprep.subr.bf16.mxu0 %v3496
    %5479 = vmatpush1.bf16.msra.mxu0 %v3495
    %5480 = vmatprep.subr.bf16.mxu0 %v3508
    %5481 = vmatpush1.bf16.msra.mxu0 %v3507
    %5482 = vmatprep.subr.bf16.mxu0 %v3520
    %5483 = vmatpush1.bf16.msra.mxu0 %v3519
    %5484 = vmatprep.subr.bf16.mxu0 %v3532
    %5485 = vmatpush1.bf16.msra.mxu0 %v3531
    %5486 = vmatprep.subr.bf16.mxu0 %v3544
    %5487 = vmatpush1.bf16.msra.mxu0 %v3543
    %5488 = vmatprep.subr.bf16.mxu0 %v3556
    %5489 = vmatpush1.bf16.msra.mxu0 %v3555
    %5490 = vmatprep.subr.bf16.mxu0 %v3568
    %5491 = vmatpush1.bf16.msra.mxu0 %v3567
    %5492 = vmatprep.subr.bf16.mxu0 %v3580
    %5493 = vmatpush1.bf16.msra.mxu0 %v3579
    %5494 = vmatprep.subr.bf16.mxu0 %v3592
    %5495 = vmatpush1.bf16.msra.mxu0 %v3591
    %5496 = vmatprep.subr.bf16.mxu0 %v3604
    %5497 = vmatpush1.bf16.msra.mxu0 %v3603
    %5498 = vmatprep.subr.bf16.mxu0 %v3616
    %5499 = vmatpush1.bf16.msra.mxu0 %v3615
    %5500 = vmatprep.mubr.bf16.mxu0 %v921
    %5501 = vmatmul.mubr.bf16.gmra.mrb[0].mxu0 %v919
    %v5502 = vpop.f32.mrb[0].mxu0
    %v5503 = vadd.f32 %v5462, %v5502
    %v5504 = vpop.f32.mrb[0].mxu0
    %v5505 = vadd.f32 %v5464, %v5504
    %v5506 = vpop.f32.mrb[0].mxu0
    %v5507 = vpop.f32.mrb[0].mxu0
    %5508 = vdwg.mxu0
    %5509 = vmatprep.subr.bf16.mxu0 %v3628
    %5510 = vmatpush1.bf16.msra.mxu0 %v3627
    %5511 = vmatprep.subr.bf16.mxu0 %v3640
    %5512 = vmatpush1.bf16.msra.mxu0 %v3639
    %5513 = vmatprep.subr.bf16.mxu0 %v3652
    %5514 = vmatpush1.bf16.msra.mxu0 %v3651
    %5515 = vmatprep.subr.bf16.mxu0 %v3664
    %5516 = vmatpush1.bf16.msra.mxu0 %v3663
    %5517 = vmatprep.subr.bf16.mxu0 %v3676
    %5518 = vmatpush1.bf16.msra.mxu0 %v3675
    %5519 = vmatprep.subr.bf16.mxu0 %v3688
    %5520 = vmatpush1.bf16.msra.mxu0 %v3687
    %5521 = vmatprep.subr.bf16.mxu0 %v3700
    %5522 = vmatpush1.bf16.msra.mxu0 %v3699
    %5523 = vmatprep.subr.bf16.mxu0 %v3712
    %5524 = vmatpush1.bf16.msra.mxu0 %v3711
    %5525 = vmatprep.subr.bf16.mxu0 %v3724
    %5526 = vmatpush1.bf16.msra.mxu0 %v3723
    %5527 = vmatprep.subr.bf16.mxu0 %v3736
    %5528 = vmatpush1.bf16.msra.mxu0 %v3735
    %5529 = vmatprep.subr.bf16.mxu0 %v3748
    %5530 = vmatpush1.bf16.msra.mxu0 %v3747
    %5531 = vmatprep.subr.bf16.mxu0 %v3760
    %5532 = vmatpush1.bf16.msra.mxu0 %v3759
    %5533 = vmatprep.subr.bf16.mxu0 %v3772
    %5534 = vmatpush1.bf16.msra.mxu0 %v3771
    %5535 = vmatprep.subr.bf16.mxu0 %v3784
    %5536 = vmatpush1.bf16.msra.mxu0 %v3783
    %5537 = vmatprep.subr.bf16.mxu0 %v3796
    %5538 = vmatpush1.bf16.msra.mxu0 %v3795
    %5539 = vmatprep.subr.bf16.mxu0 %v3808
    %5540 = vmatpush1.bf16.msra.mxu0 %v3807
    %5541 = vmatprep.mubr.bf16.mxu0 %v918
    %5542 = vmatmul.mubr.bf16.gmra.mrb[0].mxu0 %v904
    %v5543 = vpop.f32.mrb[0].mxu0
    %v5544 = vadd.f32 %v5503, %v5543
    %v5545 = vpop.f32.mrb[0].mxu0
    %v5546 = vadd.f32 %v5505, %v5545
    %v5547 = vpop.f32.mrb[0].mxu0
    %v5548 = vpop.f32.mrb[0].mxu0
    %5549 = vdwg.mxu0
    %5550 = vmatprep.subr.bf16.mxu0 %v3820
    %5551 = vmatpush1.bf16.msra.mxu0 %v3819
    %5552 = vmatprep.subr.bf16.mxu0 %v3832
    %5553 = vmatpush1.bf16.msra.mxu0 %v3831
    %5554 = vmatprep.subr.bf16.mxu0 %v3844
    %5555 = vmatpush1.bf16.msra.mxu0 %v3843
    %5556 = vmatprep.subr.bf16.mxu0 %v3856
    %5557 = vmatpush1.bf16.msra.mxu0 %v3855
    %5558 = vmatprep.subr.bf16.mxu0 %v3868
    %5559 = vmatpush1.bf16.msra.mxu0 %v3867
    %5560 = vmatprep.subr.bf16.mxu0 %v3880
    %5561 = vmatpush1.bf16.msra.mxu0 %v3879
    %5562 = vmatprep.subr.bf16.mxu0 %v3892
    %5563 = vmatpush1.bf16.msra.mxu0 %v3891
    %5564 = vmatprep.subr.bf16.mxu0 %v3904
    %5565 = vmatpush1.bf16.msra.mxu0 %v3903
    %5566 = vmatprep.subr.bf16.mxu0 %v3916
    %5567 = vmatpush1.bf16.msra.mxu0 %v3915
    %5568 = vmatprep.subr.bf16.mxu0 %v3928
    %5569 = vmatpush1.bf16.msra.mxu0 %v3927
    %5570 = vmatprep.subr.bf16.mxu0 %v3940
    %5571 = vmatpush1.bf16.msra.mxu0 %v3939
    %5572 = vmatprep.subr.bf16.mxu0 %v3952
    %5573 = vmatpush1.bf16.msra.mxu0 %v3951
    %5574 = vmatprep.subr.bf16.mxu0 %v3964
    %5575 = vmatpush1.bf16.msra.mxu0 %v3963
    %5576 = vmatprep.subr.bf16.mxu0 %v3976
    %5577 = vmatpush1.bf16.msra.mxu0 %v3975
    %5578 = vmatprep.subr.bf16.mxu0 %v3988
    %5579 = vmatpush1.bf16.msra.mxu0 %v3987
    %5580 = vmatprep.subr.bf16.mxu0 %v4000
    %5581 = vmatpush1.bf16.msra.mxu0 %v3999
    %5582 = vmatprep.mubr.bf16.mxu0 %v922
    %5583 = vmatmul.mubr.bf16.gmra.mrb[0].mxu0 %v920
    %v5584 = vpop.f32.mrb[0].mxu0
    %v5585 = vadd.f32 %v5544, %v5584
    %v5586 = vpop.f32.mrb[0].mxu0
    %v5587 = vadd.f32 %v5546, %v5586
    %v5588 = vpop.f32.mrb[0].mxu0
    %v5589 = vpop.f32.mrb[0].mxu0
    %5590 = vdwg.mxu0
    %5591 = vmatprep.subr.bf16.mxu0 %v3246
    %5592 = vmatpush1.bf16.msra.mxu0 %v3245
    %5593 = vmatprep.subr.bf16.mxu0 %v3258
    %5594 = vmatpush1.bf16.msra.mxu0 %v3257
    %5595 = vmatprep.subr.bf16.mxu0 %v3270
    %5596 = vmatpush1.bf16.msra.mxu0 %v3269
    %5597 = vmatprep.subr.bf16.mxu0 %v3282
    %5598 = vmatpush1.bf16.msra.mxu0 %v3281
    %5599 = vmatprep.subr.bf16.mxu0 %v3294
    %5600 = vmatpush1.bf16.msra.mxu0 %v3293
    %5601 = vmatprep.subr.bf16.mxu0 %v3306
    %5602 = vmatpush1.bf16.msra.mxu0 %v3305
    %5603 = vmatprep.subr.bf16.mxu0 %v3318
    %5604 = vmatpush1.bf16.msra.mxu0 %v3317
    %5605 = vmatprep.subr.bf16.mxu0 %v3330
    %5606 = vmatpush1.bf16.msra.mxu0 %v3329
    %5607 = vmatprep.subr.bf16.mxu0 %v3342
    %5608 = vmatpush1.bf16.msra.mxu0 %v3341
    %5609 = vmatprep.subr.bf16.mxu0 %v3354
    %5610 = vmatpush1.bf16.msra.mxu0 %v3353
    %5611 = vmatprep.subr.bf16.mxu0 %v3366
    %5612 = vmatpush1.bf16.msra.mxu0 %v3365
    %5613 = vmatprep.subr.bf16.mxu0 %v3378
    %5614 = vmatpush1.bf16.msra.mxu0 %v3377
    %5615 = vmatprep.subr.bf16.mxu0 %v3390
    %5616 = vmatpush1.bf16.msra.mxu0 %v3389
    %5617 = vmatprep.subr.bf16.mxu0 %v3402
    %5618 = vmatpush1.bf16.msra.mxu0 %v3401
    %5619 = vmatprep.subr.bf16.mxu0 %v3414
    %5620 = vmatpush1.bf16.msra.mxu0 %v3413
    %5621 = vmatprep.subr.bf16.mxu0 %v3426
    %5622 = vmatpush1.bf16.msra.mxu0 %v3425
    %5623 = vmatprep.mubr.bf16.mxu0 %v911
    %5624 = vmatmul.mubr.bf16.gmra.mrb[0].mxu0 %v897
    %v5625 = vpop.f32.mrb[0].mxu0
    %v5626 = vadd.f32 %v856, %v5625
    %v5627 = vpop.f32.mrb[0].mxu0
    %v5628 = vadd.f32 %v860, %v5627
    %v5629 = vpop.f32.mrb[0].mxu0
    %v5630 = vpop.f32.mrb[0].mxu0
    %5631 = vdwg.mxu0
    %5632 = vmatprep.subr.bf16.mxu0 %v3438
    %5633 = vmatpush1.bf16.msra.mxu0 %v3437
    %5634 = vmatprep.subr.bf16.mxu0 %v3450
    %5635 = vmatpush1.bf16.msra.mxu0 %v3449
    %5636 = vmatprep.subr.bf16.mxu0 %v3462
    %5637 = vmatpush1.bf16.msra.mxu0 %v3461
    %5638 = vmatprep.subr.bf16.mxu0 %v3474
    %5639 = vmatpush1.bf16.msra.mxu0 %v3473
    %5640 = vmatprep.subr.bf16.mxu0 %v3486
    %5641 = vmatpush1.bf16.msra.mxu0 %v3485
    %5642 = vmatprep.subr.bf16.mxu0 %v3498
    %5643 = vmatpush1.bf16.msra.mxu0 %v3497
    %5644 = vmatprep.subr.bf16.mxu0 %v3510
    %5645 = vmatpush1.bf16.msra.mxu0 %v3509
    %5646 = vmatprep.subr.bf16.mxu0 %v3522
    %5647 = vmatpush1.bf16.msra.mxu0 %v3521
    %5648 = vmatprep.subr.bf16.mxu0 %v3534
    %5649 = vmatpush1.bf16.msra.mxu0 %v3533
    %5650 = vmatprep.subr.bf16.mxu0 %v3546
    %5651 = vmatpush1.bf16.msra.mxu0 %v3545
    %5652 = vmatprep.subr.bf16.mxu0 %v3558
    %5653 = vmatpush1.bf16.msra.mxu0 %v3557
    %5654 = vmatprep.subr.bf16.mxu0 %v3570
    %5655 = vmatpush1.bf16.msra.mxu0 %v3569
    %5656 = vmatprep.subr.bf16.mxu0 %v3582
    %5657 = vmatpush1.bf16.msra.mxu0 %v3581
    %5658 = vmatprep.subr.bf16.mxu0 %v3594
    %5659 = vmatpush1.bf16.msra.mxu0 %v3593
    %5660 = vmatprep.subr.bf16.mxu0 %v3606
    %5661 = vmatpush1.bf16.msra.mxu0 %v3605
    %5662 = vmatprep.subr.bf16.mxu0 %v3618
    %5663 = vmatpush1.bf16.msra.mxu0 %v3617
    %5664 = vmatprep.mubr.bf16.mxu0 %v921
    %5665 = vmatmul.mubr.bf16.gmra.mrb[0].mxu0 %v919
    %v5666 = vpop.f32.mrb[0].mxu0
    %v5667 = vadd.f32 %v5626, %v5666
    %v5668 = vpop.f32.mrb[0].mxu0
    %v5669 = vadd.f32 %v5628, %v5668
    %v5670 = vpop.f32.mrb[0].mxu0
    %v5671 = vpop.f32.mrb[0].mxu0
    %5672 = vdwg.mxu0
    %5673 = vmatprep.subr.bf16.mxu0 %v3630
    %5674 = vmatpush1.bf16.msra.mxu0 %v3629
    %5675 = vmatprep.subr.bf16.mxu0 %v3642
    %5676 = vmatpush1.bf16.msra.mxu0 %v3641
    %5677 = vmatprep.subr.bf16.mxu0 %v3654
    %5678 = vmatpush1.bf16.msra.mxu0 %v3653
    %5679 = vmatprep.subr.bf16.mxu0 %v3666
    %5680 = vmatpush1.bf16.msra.mxu0 %v3665
    %5681 = vmatprep.subr.bf16.mxu0 %v3678
    %5682 = vmatpush1.bf16.msra.mxu0 %v3677
    %5683 = vmatprep.subr.bf16.mxu0 %v3690
    %5684 = vmatpush1.bf16.msra.mxu0 %v3689
    %5685 = vmatprep.subr.bf16.mxu0 %v3702
    %5686 = vmatpush1.bf16.msra.mxu0 %v3701
    %5687 = vmatprep.subr.bf16.mxu0 %v3714
    %5688 = vmatpush1.bf16.msra.mxu0 %v3713
    %5689 = vmatprep.subr.bf16.mxu0 %v3726
    %5690 = vmatpush1.bf16.msra.mxu0 %v3725
    %5691 = vmatprep.subr.bf16.mxu0 %v3738
    %5692 = vmatpush1.bf16.msra.mxu0 %v3737
    %5693 = vmatprep.subr.bf16.mxu0 %v3750
    %5694 = vmatpush1.bf16.msra.mxu0 %v3749
    %5695 = vmatprep.subr.bf16.mxu0 %v3762
    %5696 = vmatpush1.bf16.msra.mxu0 %v3761
    %5697 = vmatprep.subr.bf16.mxu0 %v3774
    %5698 = vmatpush1.bf16.msra.mxu0 %v3773
    %5699 = vmatprep.subr.bf16.mxu0 %v3786
    %5700 = vmatpush1.bf16.msra.mxu0 %v3785
    %5701 = vmatprep.subr.bf16.mxu0 %v3798
    %5702 = vmatpush1.bf16.msra.mxu0 %v3797
    %5703 = vmatprep.subr.bf16.mxu0 %v3810
    %5704 = vmatpush1.bf16.msra.mxu0 %v3809
    %5705 = vmatprep.mubr.bf16.mxu0 %v918
    %5706 = vmatmul.mubr.bf16.gmra.mrb[0].mxu0 %v904
    %v5707 = vpop.f32.mrb[0].mxu0
    %v5708 = vadd.f32 %v5667, %v5707
    %v5709 = vpop.f32.mrb[0].mxu0
    %v5710 = vadd.f32 %v5669, %v5709
    %v5711 = vpop.f32.mrb[0].mxu0
    %v5712 = vpop.f32.mrb[0].mxu0
    %5713 = vdwg.mxu0
    %5714 = vmatprep.subr.bf16.mxu0 %v3822
    %5715 = vmatpush1.bf16.msra.mxu0 %v3821
    %5716 = vmatprep.subr.bf16.mxu0 %v3834
    %5717 = vmatpush1.bf16.msra.mxu0 %v3833
    %5718 = vmatprep.subr.bf16.mxu0 %v3846
    %5719 = vmatpush1.bf16.msra.mxu0 %v3845
    %5720 = vmatprep.subr.bf16.mxu0 %v3858
    %5721 = vmatpush1.bf16.msra.mxu0 %v3857
    %5722 = vmatprep.subr.bf16.mxu0 %v3870
    %5723 = vmatpush1.bf16.msra.mxu0 %v3869
    %5724 = vmatprep.subr.bf16.mxu0 %v3882
    %5725 = vmatpush1.bf16.msra.mxu0 %v3881
    %5726 = vmatprep.subr.bf16.mxu0 %v3894
    %5727 = vmatpush1.bf16.msra.mxu0 %v3893
    %5728 = vmatprep.subr.bf16.mxu0 %v3906
    %5729 = vmatpush1.bf16.msra.mxu0 %v3905
    %5730 = vmatprep.subr.bf16.mxu0 %v3918
    %5731 = vmatpush1.bf16.msra.mxu0 %v3917
    %5732 = vmatprep.subr.bf16.mxu0 %v3930
    %5733 = vmatpush1.bf16.msra.mxu0 %v3929
    %5734 = vmatprep.subr.bf16.mxu0 %v3942
    %5735 = vmatpush1.bf16.msra.mxu0 %v3941
    %5736 = vmatprep.subr.bf16.mxu0 %v3954
    %5737 = vmatpush1.bf16.msra.mxu0 %v3953
    %5738 = vmatprep.subr.bf16.mxu0 %v3966
    %5739 = vmatpush1.bf16.msra.mxu0 %v3965
    %5740 = vmatprep.subr.bf16.mxu0 %v3978
    %5741 = vmatpush1.bf16.msra.mxu0 %v3977
    %5742 = vmatprep.subr.bf16.mxu0 %v3990
    %5743 = vmatpush1.bf16.msra.mxu0 %v3989
    %5744 = vmatprep.subr.bf16.mxu0 %v4002
    %5745 = vmatpush1.bf16.msra.mxu0 %v4001
    %5746 = vmatprep.mubr.bf16.mxu0 %v922
    %5747 = vmatmul.mubr.bf16.gmra.mrb[0].mxu0 %v920
    %v5748 = vpop.f32.mrb[0].mxu0
    %v5749 = vadd.f32 %v5708, %v5748
    %v5750 = vpop.f32.mrb[0].mxu0
    %v5751 = vadd.f32 %v5710, %v5750
    %v5752 = vpop.f32.mrb[0].mxu0
    %v5753 = vpop.f32.mrb[0].mxu0
    %5754 = vdwg.mxu0
    %v5755 = vtanh.pop %v4929
    %v5756 = vtanh.pop %v4931
    %v5757 = vtanh.pop %v5093
    %v5758 = vtanh.pop %v5095
    %v5759 = vtanh.pop %v5257
    %v5760 = vtanh.pop %v5259
    %v5761 = vtanh.pop %v5421
    %v5762 = vtanh.pop %v5423
    %v5763 = vtanh.pop %v5585
    %v5764 = vtanh.pop %v5587
    %v5765 = vtanh.pop %v5749
    %v5766 = vtanh.pop %v5751
    %v5779 = vcombine.low %v5755, %v5756
    %v5780 = vcombine.low %v5757, %v5758
    %v5782 = vunpack.c.l.s4 1983009808
    %v5783 = vunpack.c.0.s8 %v5782
    %v5784 = vlaneseq
    %v5785 = vshrl.u32 %v5784, 7
    %v5786 = vsub.s32 %v5783, %v5785
    %v5787 = vrot.slane %v5779, %v5786
    %v5789 = vunpack.c.l.s4 1983009808
    %v5790 = vunpack.c.0.s8 %v5789
    %v5791 = vlaneseq
    %v5792 = vshrl.u32 %v5791, 7
    %v5793 = vsub.s32 %v5790, %v5792
    %v5794 = vrot.slane %v5780, %v5793
    %v5795 = vcombine.low %v5787, %v5794
    %v5796 = vcombine.low %v5759, %v5760
    %v5797 = vcombine.low %v5761, %v5762
    %v5799 = vunpack.c.l.s4 1983009808
    %v5800 = vunpack.c.0.s8 %v5799
    %v5801 = vlaneseq
    %v5802 = vshrl.u32 %v5801, 7
    %v5803 = vsub.s32 %v5800, %v5802
    %v5804 = vrot.slane %v5796, %v5803
    %v5806 = vunpack.c.l.s4 1983009808
    %v5807 = vunpack.c.0.s8 %v5806
    %v5808 = vlaneseq
    %v5809 = vshrl.u32 %v5808, 7
    %v5810 = vsub.s32 %v5807, %v5809
    %v5811 = vrot.slane %v5797, %v5810
    %v5812 = vcombine.low %v5804, %v5811
    %v5813 = vcombine.low %v5763, %v5764
    %v5814 = vcombine.low %v5765, %v5766
    %v5816 = vunpack.c.l.s4 1983009808
    %v5817 = vunpack.c.0.s8 %v5816
    %v5818 = vlaneseq
    %v5819 = vshrl.u32 %v5818, 7
    %v5820 = vsub.s32 %v5817, %v5819
    %v5821 = vrot.slane %v5813, %v5820
    %v5823 = vunpack.c.l.s4 1983009808
    %v5824 = vunpack.c.0.s8 %v5823
    %v5825 = vlaneseq
    %v5826 = vshrl.u32 %v5825, 7
    %v5827 = vsub.s32 %v5824, %v5826
    %v5828 = vrot.slane %v5814, %v5827
    %v5829 = vcombine.low %v5821, %v5828
    %5833 = vst [vmem:[%s3] sm:$0xff] %v5795
    %5834 = vst [vmem:[%s3 + $0x8] sm:$0xff] %v5812
    %5835 = vst [vmem:[%s3 + $0x10] sm:$0xff] %v5829
    // Predicated region
    $region22: #{pointnet_fcae_forward.5} parent=1 // pred_check
      _
    $region23: #{pointnet_fcae_forward.5} parent=1 // pred_check_branch
      %5837 = sbr.rel (0) target = $region25
    $region24: #{pointnet_fcae_forward.5} parent=1 // pred_region
      _
    $region25: #{pointnet_fcae_forward.5} parent=1 // pred_fallthru
      _
    // Predicated region
    $region26: #{pointnet_fcae_forward.5} parent=1 // pred_check
      _
    $region27: #{pointnet_fcae_forward.5} parent=1 // pred_check_branch
      %5839 = sbr.rel (0) target = $region29
    $region28: #{pointnet_fcae_forward.5} parent=1 // pred_region
      _
    $region29: #{pointnet_fcae_forward.5} parent=1 // pred_fallthru
      _
    %5840 = vsyncpa [#allocation3], 1
    %5841 = vsyncpa [#allocation5], 1

</llo_original>
